<compile_context>
chip_gen: v7x
topology: tpu7x:2x2x1
jax: 0.10.0
libtpu: 0.0.40
codegen_flags: <defaults>
</compile_context>

<pallas_src>
import jax
import jax.numpy as jnp
from jax import lax
from jax.experimental import pallas as pl
from jax.experimental.pallas import tpu as pltpu

C_IN, C_OUT, K = 576, 300, 3
H = W = 8
OH = OW = H - K + 1            # 6
S = OH * OW                    # 36
PATCH = C_IN * K * K           # 5184
FLAT = C_OUT * S               # 10800 (matches nn.Linear(10800, 30))
N_CLASSES = 30

TM_CONV = 288                  # 8 batch elements per MXU tile (multiple of 8 and of 36)
TB_FC = 128                    # batch tile for the FC kernel


def _round_up(x, m):
    return ((x + m - 1) // m) * m


# ----------------------------- Pallas kernels ------------------------------

def _conv_relu_kernel(p_ref, wc_ref, bc_ref, o_ref):
    # p_ref:  [TM, PATCH]   bf16 im2col patch rows (row = b*36 + s)
    # wc_ref: [C_OUT, PATCH] bf16 conv weight in natural (out, in*k*k) layout
    # bc_ref: [1, C_OUT]    f32 conv bias
    # o_ref:  [TM, C_OUT]   bf16 relu(conv) output
    acc = lax.dot_general(
        p_ref[...], wc_ref[...],
        dimension_numbers=(((1,), (1,)), ((), ())),   # A @ B^T, contract PATCH
        preferred_element_type=jnp.float32)
    o_ref[...] = jnp.maximum(acc + bc_ref[...], 0.0).astype(o_ref.dtype)


def _fc_kernel(x_ref, w_ref, b_ref, o_ref):
    # x_ref: [TB, FLAT] bf16 (s-major flatten of the conv output)
    # w_ref: [N_CLASSES, FLAT] bf16, columns pre-permuted to s*300+c order
    # b_ref: [1, N_CLASSES] f32
    # o_ref: [TB, N_CLASSES] f32 logits
    acc = lax.dot_general(
        x_ref[...], w_ref[...],
        dimension_numbers=(((1,), (1,)), ((), ())),   # A @ B^T, contract FLAT
        preferred_element_type=jnp.float32)
    o_ref[...] = acc + b_ref[...]


# ------------------------------ wrappers -----------------------------------

def _im2col(feat):
    # feat: [B, C, H, W] -> patches [B, S, C*K*K], inner index c*9 + kh*3 + kw
    B = feat.shape[0]
    cols = []
    for kh in range(K):
        for kw in range(K):
            cols.append(feat[:, :, kh:kh + OH, kw:kw + OW])   # [B, C, OH, OW]
    p = jnp.stack(cols, axis=2)                               # [B, C, 9, OH, OW]
    p = p.reshape(B, C_IN * K * K, S)                         # [B, C*9, S]
    return jnp.transpose(p, (0, 2, 1))                        # [B, S, C*9]


def _conv_relu(patches2d, wc_mat, bc_row):
    M = patches2d.shape[0]                                    # B * S
    tm = TM_CONV if M >= TM_CONV else _round_up(M, 8)
    Mp = _round_up(M, tm)
    if Mp != M:
        patches2d = jnp.pad(patches2d, ((0, Mp - M), (0, 0)))
    out = pl.pallas_call(
        _conv_relu_kernel,
        out_shape=jax.ShapeDtypeStruct((Mp, C_OUT), jnp.bfloat16),
        grid_spec=pltpu.PrefetchScalarGridSpec(
            num_scalar_prefetch=0,
            grid=(Mp // tm,),
            in_specs=[
                pl.BlockSpec((tm, PATCH), lambda i: (i, 0)),
                pl.BlockSpec((C_OUT, PATCH), lambda i: (0, 0)),   # resident weight
                pl.BlockSpec((1, C_OUT), lambda i: (0, 0)),
            ],
            out_specs=pl.BlockSpec((tm, C_OUT), lambda i: (i, 0)),
        ),
        compiler_params=pltpu.CompilerParams(
            dimension_semantics=("parallel",),
            vmem_limit_bytes=32 * 1024 * 1024,   # ~12 MiB working set + headroom
        ),
    )(patches2d, wc_mat, bc_row)
    return out[:M]


def _fc(x2d, w_perm, b_row):
    B = x2d.shape[0]
    tb = B if B <= TB_FC else TB_FC
    Bp = _round_up(B, tb)
    if Bp != B:
        x2d = jnp.pad(x2d, ((0, Bp - B), (0, 0)))
    out = pl.pallas_call(
        _fc_kernel,
        out_shape=jax.ShapeDtypeStruct((Bp, N_CLASSES), jnp.float32),
        grid_spec=pltpu.PrefetchScalarGridSpec(
            num_scalar_prefetch=0,
            grid=(Bp // tb,),
            in_specs=[
                pl.BlockSpec((tb, FLAT), lambda i: (i, 0)),
                pl.BlockSpec((N_CLASSES, FLAT), lambda i: (0, 0)),
                pl.BlockSpec((1, N_CLASSES), lambda i: (0, 0)),
            ],
            out_specs=pl.BlockSpec((tb, N_CLASSES), lambda i: (i, 0)),
        ),
        compiler_params=pltpu.CompilerParams(
            dimension_semantics=("parallel",),
            vmem_limit_bytes=32 * 1024 * 1024,
        ),
    )(x2d, w_perm, b_row)
    return out[:B]


@jax.jit
def waste_head_forward(feat, conv_w, conv_b, fc_w, fc_b):
    """feat: [B, 576, 8, 8] 'mob_feature'. Returns logits [B, 30]."""
    B = feat.shape[0]
    feat_bf = feat.astype(jnp.bfloat16)
    patches = _im2col(feat_bf)                                # [B, 36, 5184] bf16
    patches2d = patches.reshape(B * S, PATCH)                 # [B*36, 5184], free reshape
    wc_mat = conv_w.reshape(C_OUT, PATCH).astype(jnp.bfloat16)  # no transpose needed
    act = _conv_relu(patches2d, wc_mat,
                     conv_b[None, :].astype(jnp.float32))     # [B*36, 300] bf16
    # Free reshape to [B, 10800] in s-major order (s*300 + c); instead of
    # transposing the activations to PyTorch's c*36 + s flatten order, permute
    # the FC weight columns at trace time (independent of B, ~1.3 MB).
    x2d = act.reshape(B, FLAT)
    w_perm = (fc_w.reshape(N_CLASSES, C_OUT, S)
              .transpose(0, 2, 1)
              .reshape(N_CLASSES, FLAT)
              .astype(jnp.bfloat16))
    # nn.Dropout(): identity at inference time.
    return _fc(x2d, w_perm, fc_b[None, :].astype(jnp.float32))   # [B, 30]


def _reference(feat, conv_w, conv_b, fc_w, fc_b):
    conv = lax.conv_general_dilated(
        feat, conv_w, window_strides=(1, 1), padding="VALID",
        dimension_numbers=("NCHW", "OIHW", "NCHW"))
    conv = jax.nn.relu(conv + conv_b[None, :, None, None])
    x = conv.reshape(feat.shape[0], -1)
    return x @ fc_w.T + fc_b


# -------------------------------- main --------------------------------------

if __name__ == "__main__":
    key = jax.random.PRNGKey(0)
    k1, k2, k3, k4, k5 = jax.random.split(key, 5)

    # Deterministic synthetic parameters matching the module's layer shapes.
    conv_w = jax.random.normal(k1, (C_OUT, C_IN, K, K), jnp.float32) / (PATCH ** 0.5)
    conv_b = 0.01 * jax.random.normal(k2, (C_OUT,), jnp.float32)
    fc_w = jax.random.normal(k3, (N_CLASSES, FLAT), jnp.float32) / (FLAT ** 0.5)
    fc_b = 0.01 * jax.random.normal(k4, (N_CLASSES,), jnp.float32)

    # 'mob_feature' input (output of the MobileNetV3-small feature extractor).
    feat = jax.random.normal(k5, (2, C_IN, H, W), jnp.float32)

    out = jax.block_until_ready(waste_head_forward(feat, conv_w, conv_b, fc_w, fc_b))
    assert out.shape == (2, N_CLASSES) and out.dtype == jnp.float32

    ref = _reference(feat, conv_w, conv_b, fc_w, fc_b)
    # bf16 operands / f32 accumulation: tolerance loosened accordingly.
    err = float(jnp.max(jnp.abs(out - ref)))
    assert jnp.allclose(out, ref, rtol=2e-2, atol=2e-2), err

    print("KERNEL_OK")
</pallas_src>

<mosaic_0001>
module attributes {stable_mosaic.version = 11 : i64} {
  func.func @_conv_relu_kernel(%arg0: i32, %arg1: memref<72x5184xbf16, #tpu.memory_space<vmem>>, %arg2: memref<300x5184xbf16, #tpu.memory_space<vmem>>, %arg3: memref<1x300xf32, #tpu.memory_space<vmem>>, %arg4: memref<72x300xbf16, #tpu.memory_space<vmem>>) attributes {dimension_semantics = [#tpu.dimension_semantics<parallel>], iteration_bounds = array<i64: 1>, scalar_prefetch = 0 : i64, scratch_operands = 0 : i64, tpu.core_type = #tpu.core_type<tc>, window_params = [{transform_indices = @transform_0, window_bounds = array<i64: 72, 5184>}, {pipeline_mode = #tpu.pipeline_mode<synchronous>, transform_indices = @transform_1, window_bounds = array<i64: 300, 5184>}, {pipeline_mode = #tpu.pipeline_mode<synchronous>, transform_indices = @transform_2, window_bounds = array<i64: 1, 300>}, {transform_indices = @transform_3, window_bounds = array<i64: 72, 300>}]} {
    %c0 = arith.constant 0 : index
    %c0_0 = arith.constant 0 : index
    %0 = vector.load %arg1[%c0, %c0_0] : memref<72x5184xbf16, #tpu.memory_space<vmem>>, vector<72x5184xbf16>
    %c0_1 = arith.constant 0 : index
    %c0_2 = arith.constant 0 : index
    %1 = vector.load %arg2[%c0_1, %c0_2] : memref<300x5184xbf16, #tpu.memory_space<vmem>>, vector<300x5184xbf16>
    %cst = arith.constant dense<0.000000e+00> : vector<72x300xf32>
    %2 = tpu.matmul %0, %1, %cst {dimension_numbers = #tpu.dot_dimension_numbers<[1], [1], [0], [0], [0, 0, 1, 0], [], []>} : vector<72x5184xbf16>, vector<300x5184xbf16>, vector<72x300xf32> -> vector<72x300xf32>
    %c0_3 = arith.constant 0 : index
    %c0_4 = arith.constant 0 : index
    %3 = vector.load %arg3[%c0_3, %c0_4] : memref<1x300xf32, #tpu.memory_space<vmem>>, vector<1x300xf32>
    %4 = vector.broadcast %3 : vector<1x300xf32> to vector<72x300xf32>
    %5 = arith.addf %2, %4 : vector<72x300xf32>
    %cst_5 = arith.constant 0.000000e+00 : f32
    %6 = vector.broadcast %cst_5 : f32 to vector<72x300xf32>
    %7 = arith.maximumf %5, %6 : vector<72x300xf32>
    %8 = arith.truncf %7 : vector<72x300xf32> to vector<72x300xbf16>
    %c0_6 = arith.constant 0 : index
    %c0_7 = arith.constant 0 : index
    %9 = vector.load %arg4[%c0_6, %c0_7] : memref<72x300xbf16, #tpu.memory_space<vmem>>, vector<72x300xbf16>
    tpu.vector_store %arg4[%c0_6, %c0_7], %8 {strides = array<i32>} : memref<72x300xbf16, #tpu.memory_space<vmem>>, vector<72x300xbf16>,
    return
  }
  func.func @transform_0(%arg0: i32) -> (i32, i32) {
    %c0_i32 = arith.constant 0 : i32
    %c0_i32_0 = arith.constant 0 : i32
    return %arg0, %c0_i32 : i32, i32
  }
  func.func @transform_1(%arg0: i32) -> (i32, i32) {
    %c0_i32 = arith.constant 0 : i32
    %c0_i32_0 = arith.constant 0 : i32
    %c0_i32_1 = arith.constant 0 : i32
    return %c0_i32, %c0_i32_0 : i32, i32
  }
  func.func @transform_2(%arg0: i32) -> (i32, i32) {
    %c0_i32 = arith.constant 0 : i32
    %c0_i32_0 = arith.constant 0 : i32
    %c0_i32_1 = arith.constant 0 : i32
    return %c0_i32, %c0_i32_0 : i32, i32
  }
  func.func @transform_3(%arg0: i32) -> (i32, i32) {
    %c0_i32 = arith.constant 0 : i32
    %c0_i32_0 = arith.constant 0 : i32
    return %arg0, %c0_i32 : i32, i32
  }
}

module attributes {stable_mosaic.version = 11 : i64} {
  func.func @_fc_kernel(%arg0: i32, %arg1: memref<2x10800xbf16, #tpu.memory_space<vmem>>, %arg2: memref<30x10800xbf16, #tpu.memory_space<vmem>>, %arg3: memref<1x30xf32, #tpu.memory_space<vmem>>, %arg4: memref<2x30xf32, #tpu.memory_space<vmem>>) attributes {dimension_semantics = [#tpu.dimension_semantics<parallel>], iteration_bounds = array<i64: 1>, scalar_prefetch = 0 : i64, scratch_operands = 0 : i64, tpu.core_type = #tpu.core_type<tc>, window_params = [{transform_indices = @transform_0, window_bounds = array<i64: 2, 10800>}, {pipeline_mode = #tpu.pipeline_mode<synchronous>, transform_indices = @transform_1, window_bounds = array<i64: 30, 10800>}, {pipeline_mode = #tpu.pipeline_mode<synchronous>, transform_indices = @transform_2, window_bounds = array<i64: 1, 30>}, {transform_indices = @transform_3, window_bounds = array<i64: 2, 30>}]} {
    %c0 = arith.constant 0 : index
    %c0_0 = arith.constant 0 : index
    %0 = vector.load %arg1[%c0, %c0_0] : memref<2x10800xbf16, #tpu.memory_space<vmem>>, vector<2x10800xbf16>
    %c0_1 = arith.constant 0 : index
    %c0_2 = arith.constant 0 : index
    %1 = vector.load %arg2[%c0_1, %c0_2] : memref<30x10800xbf16, #tpu.memory_space<vmem>>, vector<30x10800xbf16>
    %cst = arith.constant dense<0.000000e+00> : vector<2x30xf32>
    %2 = tpu.matmul %0, %1, %cst {dimension_numbers = #tpu.dot_dimension_numbers<[1], [1], [0], [0], [0, 0, 1, 0], [], []>} : vector<2x10800xbf16>, vector<30x10800xbf16>, vector<2x30xf32> -> vector<2x30xf32>
    %c0_3 = arith.constant 0 : index
    %c0_4 = arith.constant 0 : index
    %3 = vector.load %arg3[%c0_3, %c0_4] : memref<1x30xf32, #tpu.memory_space<vmem>>, vector<1x30xf32>
    %4 = vector.broadcast %3 : vector<1x30xf32> to vector<2x30xf32>
    %5 = arith.addf %2, %4 : vector<2x30xf32>
    %c0_5 = arith.constant 0 : index
    %c0_6 = arith.constant 0 : index
    %6 = vector.load %arg4[%c0_5, %c0_6] : memref<2x30xf32, #tpu.memory_space<vmem>>, vector<2x30xf32>
    tpu.vector_store %arg4[%c0_5, %c0_6], %5 {strides = array<i32>} : memref<2x30xf32, #tpu.memory_space<vmem>>, vector<2x30xf32>,
    return
  }
  func.func @transform_0(%arg0: i32) -> (i32, i32) {
    %c0_i32 = arith.constant 0 : i32
    %c0_i32_0 = arith.constant 0 : i32
    return %arg0, %c0_i32 : i32, i32
  }
  func.func @transform_1(%arg0: i32) -> (i32, i32) {
    %c0_i32 = arith.constant 0 : i32
    %c0_i32_0 = arith.constant 0 : i32
    %c0_i32_1 = arith.constant 0 : i32
    return %c0_i32, %c0_i32_0 : i32, i32
  }
  func.func @transform_2(%arg0: i32) -> (i32, i32) {
    %c0_i32 = arith.constant 0 : i32
    %c0_i32_0 = arith.constant 0 : i32
    %c0_i32_1 = arith.constant 0 : i32
    return %c0_i32, %c0_i32_0 : i32, i32
  }
  func.func @transform_3(%arg0: i32) -> (i32, i32) {
    %c0_i32 = arith.constant 0 : i32
    %c0_i32_0 = arith.constant 0 : i32
    return %arg0, %c0_i32 : i32, i32
  }
}

</mosaic_0001>

<llo_original>
// kernel: waste_head_forward.2
$region0: #{waste_head_forward.2}
  #allocation0 [shape = 'u32[]', space=smem, size = 0x4, offset = 0x4, fixed_abs, tag = 'smem constant byte address 0x4 - core index']
  #allocation1 [shape = 'u32[144,128]{1,0:T(1,128)}', space=vmem, size = 0x12000, scoped, tag = 'internal scratch']
  %s0 = inlined_call_operand.vmem [shape: bf16[72,5184], index: 0, kind: input, shape index: {}]
  %s1 = inlined_call_operand.vmem [shape: bf16[300,5184], index: 1, kind: input, shape index: {}]
  %s2 = inlined_call_operand.vmem [shape: f32[1,300], index: 2, kind: input, shape index: {}]
  %s3 = inlined_call_operand.vmem [shape: bf16[72,300], index: 3, kind: output, shape index: {}]
  %s4 = sld [smem:[#allocation0]]
  $region22: #{waste_head_forward.2} parent=0
    _
  %s6 = ssub.s32 1, %s4
  %s7 = scalar_select 0, %s6, %s4
  // Predicated region
  $region2: #{waste_head_forward.2} parent=0 // pred_check
    _
  $region3: #{waste_head_forward.2} parent=0 // pred_check_branch
    %9 = sbr.rel (0) target = $region5
  $region4: #{waste_head_forward.2} parent=0 // pred_region
    _
  $region5: #{waste_head_forward.2} parent=0 // pred_fallthru
    _
  // Predicated region
  $region6: #{waste_head_forward.2} parent=0 // pred_check
    _
  $region7: #{waste_head_forward.2} parent=0 // pred_check_branch
    %11 = sbr.rel (0) target = $region9
  $region8: #{waste_head_forward.2} parent=0 // pred_region
    _
  $region9: #{waste_head_forward.2} parent=0 // pred_fallthru
    _
  // Predicated region
  $region10: #{waste_head_forward.2} parent=0 // pred_check
    _
  $region11: #{waste_head_forward.2} parent=0 // pred_check_branch
    %13 = sbr.rel (0) target = $region13
  $region12: #{waste_head_forward.2} parent=0 // pred_region
    _
  $region13: #{waste_head_forward.2} parent=0 // pred_fallthru
    _
  %v15 = vld [vmem:[%s0] sm:$0xff]
  %v16 = vld [vmem:[%s0 + $0x8] sm:$0xff]
  %v17 = vld [vmem:[%s0 + $0x10] sm:$0xff]
  %v18 = vld [vmem:[%s0 + $0x18] sm:$0xff]
  %v19 = vld [vmem:[%s0 + $0x20] sm:$0xff]
  %v20 = vld [vmem:[%s0 + $0x28] sm:$0xff]
  %v21 = vld [vmem:[%s0 + $0x30] sm:$0xff]
  %v22 = vld [vmem:[%s0 + $0x38] sm:$0xff]
  %v23 = vld [vmem:[%s0 + $0x40] sm:$0xff]
  %v24 = vld [vmem:[%s0 + $0x48] sm:$0xff]
  %v25 = vld [vmem:[%s0 + $0x50] sm:$0xff]
  %v26 = vld [vmem:[%s0 + $0x58] sm:$0xff]
  %v27 = vld [vmem:[%s0 + $0x60] sm:$0xff]
  %v28 = vld [vmem:[%s0 + $0x68] sm:$0xff]
  %v29 = vld [vmem:[%s0 + $0x70] sm:$0xff]
  %v30 = vld [vmem:[%s0 + $0x78] sm:$0xff]
  %v31 = vld [vmem:[%s0 + $0x80] sm:$0xff]
  %v32 = vld [vmem:[%s0 + $0x88] sm:$0xff]
  %v33 = vld [vmem:[%s0 + $0x90] sm:$0xff]
  %v34 = vld [vmem:[%s0 + $0x98] sm:$0xff]
  %v35 = vld [vmem:[%s0 + $0xa0] sm:$0xf]
  %v36 = vld [vmem:[%s0 + $0xa4] sm:$0xff]
  %v37 = vld [vmem:[%s0 + $0xac] sm:$0xff]
  %v38 = vld [vmem:[%s0 + $0xb4] sm:$0xff]
  %v39 = vld [vmem:[%s0 + $0xbc] sm:$0xff]
  %v40 = vld [vmem:[%s0 + $0xc4] sm:$0xff]
  %v41 = vld [vmem:[%s0 + $0xcc] sm:$0xff]
  %v42 = vld [vmem:[%s0 + $0xd4] sm:$0xff]
  %v43 = vld [vmem:[%s0 + $0xdc] sm:$0xff]
  %v44 = vld [vmem:[%s0 + $0xe4] sm:$0xff]
  %v45 = vld [vmem:[%s0 + $0xec] sm:$0xff]
  %v46 = vld [vmem:[%s0 + $0xf4] sm:$0xff]
  %v47 = vld [vmem:[%s0 + $0xfc] sm:$0xff]
  %v48 = vld [vmem:[%s0 + $0x104] sm:$0xff]
  %v49 = vld [vmem:[%s0 + $0x10c] sm:$0xff]
  %v50 = vld [vmem:[%s0 + $0x114] sm:$0xff]
  %v51 = vld [vmem:[%s0 + $0x11c] sm:$0xff]
  %v52 = vld [vmem:[%s0 + $0x124] sm:$0xff]
  %v53 = vld [vmem:[%s0 + $0x12c] sm:$0xff]
  %v54 = vld [vmem:[%s0 + $0x134] sm:$0xff]
  %v55 = vld [vmem:[%s0 + $0x13c] sm:$0xff]
  %v56 = vld [vmem:[%s0 + $0x144] sm:$0xf]
  %v57 = vld [vmem:[%s0 + $0x148] sm:$0xff]
  %v58 = vld [vmem:[%s0 + $0x150] sm:$0xff]
  %v59 = vld [vmem:[%s0 + $0x158] sm:$0xff]
  %v60 = vld [vmem:[%s0 + $0x160] sm:$0xff]
  %v61 = vld [vmem:[%s0 + $0x168] sm:$0xff]
  %v62 = vld [vmem:[%s0 + $0x170] sm:$0xff]
  %v63 = vld [vmem:[%s0 + $0x178] sm:$0xff]
  %v64 = vld [vmem:[%s0 + $0x180] sm:$0xff]
  %v65 = vld [vmem:[%s0 + $0x188] sm:$0xff]
  %v66 = vld [vmem:[%s0 + $0x190] sm:$0xff]
  %v67 = vld [vmem:[%s0 + $0x198] sm:$0xff]
  %v68 = vld [vmem:[%s0 + $0x1a0] sm:$0xff]
  %v69 = vld [vmem:[%s0 + $0x1a8] sm:$0xff]
  %v70 = vld [vmem:[%s0 + $0x1b0] sm:$0xff]
  %v71 = vld [vmem:[%s0 + $0x1b8] sm:$0xff]
  %v72 = vld [vmem:[%s0 + $0x1c0] sm:$0xff]
  %v73 = vld [vmem:[%s0 + $0x1c8] sm:$0xff]
  %v74 = vld [vmem:[%s0 + $0x1d0] sm:$0xff]
  %v75 = vld [vmem:[%s0 + $0x1d8] sm:$0xff]
  %v76 = vld [vmem:[%s0 + $0x1e0] sm:$0xff]
  %v77 = vld [vmem:[%s0 + $0x1e8] sm:$0xf]
  %v78 = vld [vmem:[%s0 + $0x1ec] sm:$0xff]
  %v79 = vld [vmem:[%s0 + $0x1f4] sm:$0xff]
  %v80 = vld [vmem:[%s0 + $0x1fc] sm:$0xff]
  %v81 = vld [vmem:[%s0 + $0x204] sm:$0xff]
  %v82 = vld [vmem:[%s0 + $0x20c] sm:$0xff]
  %v83 = vld [vmem:[%s0 + $0x214] sm:$0xff]
  %v84 = vld [vmem:[%s0 + $0x21c] sm:$0xff]
  %v85 = vld [vmem:[%s0 + $0x224] sm:$0xff]
  %v86 = vld [vmem:[%s0 + $0x22c] sm:$0xff]
  %v87 = vld [vmem:[%s0 + $0x234] sm:$0xff]
  %v88 = vld [vmem:[%s0 + $0x23c] sm:$0xff]
  %v89 = vld [vmem:[%s0 + $0x244] sm:$0xff]
  %v90 = vld [vmem:[%s0 + $0x24c] sm:$0xff]
  %v91 = vld [vmem:[%s0 + $0x254] sm:$0xff]
  %v92 = vld [vmem:[%s0 + $0x25c] sm:$0xff]
  %v93 = vld [vmem:[%s0 + $0x264] sm:$0xff]
  %v94 = vld [vmem:[%s0 + $0x26c] sm:$0xff]
  %v95 = vld [vmem:[%s0 + $0x274] sm:$0xff]
  %v96 = vld [vmem:[%s0 + $0x27c] sm:$0xff]
  %v97 = vld [vmem:[%s0 + $0x284] sm:$0xff]
  %v98 = vld [vmem:[%s0 + $0x28c] sm:$0xf]
  %v99 = vld [vmem:[%s0 + $0x290] sm:$0xff]
  %v100 = vld [vmem:[%s0 + $0x298] sm:$0xff]
  %v101 = vld [vmem:[%s0 + $0x2a0] sm:$0xff]
  %v102 = vld [vmem:[%s0 + $0x2a8] sm:$0xff]
  %v103 = vld [vmem:[%s0 + $0x2b0] sm:$0xff]
  %v104 = vld [vmem:[%s0 + $0x2b8] sm:$0xff]
  %v105 = vld [vmem:[%s0 + $0x2c0] sm:$0xff]
  %v106 = vld [vmem:[%s0 + $0x2c8] sm:$0xff]
  %v107 = vld [vmem:[%s0 + $0x2d0] sm:$0xff]
  %v108 = vld [vmem:[%s0 + $0x2d8] sm:$0xff]
  %v109 = vld [vmem:[%s0 + $0x2e0] sm:$0xff]
  %v110 = vld [vmem:[%s0 + $0x2e8] sm:$0xff]
  %v111 = vld [vmem:[%s0 + $0x2f0] sm:$0xff]
  %v112 = vld [vmem:[%s0 + $0x2f8] sm:$0xff]
  %v113 = vld [vmem:[%s0 + $0x300] sm:$0xff]
  %v114 = vld [vmem:[%s0 + $0x308] sm:$0xff]
  %v115 = vld [vmem:[%s0 + $0x310] sm:$0xff]
  %v116 = vld [vmem:[%s0 + $0x318] sm:$0xff]
  %v117 = vld [vmem:[%s0 + $0x320] sm:$0xff]
  %v118 = vld [vmem:[%s0 + $0x328] sm:$0xff]
  %v119 = vld [vmem:[%s0 + $0x330] sm:$0xf]
  %v120 = vld [vmem:[%s0 + $0x334] sm:$0xff]
  %v121 = vld [vmem:[%s0 + $0x33c] sm:$0xff]
  %v122 = vld [vmem:[%s0 + $0x344] sm:$0xff]
  %v123 = vld [vmem:[%s0 + $0x34c] sm:$0xff]
  %v124 = vld [vmem:[%s0 + $0x354] sm:$0xff]
  %v125 = vld [vmem:[%s0 + $0x35c] sm:$0xff]
  %v126 = vld [vmem:[%s0 + $0x364] sm:$0xff]
  %v127 = vld [vmem:[%s0 + $0x36c] sm:$0xff]
  %v128 = vld [vmem:[%s0 + $0x374] sm:$0xff]
  %v129 = vld [vmem:[%s0 + $0x37c] sm:$0xff]
  %v130 = vld [vmem:[%s0 + $0x384] sm:$0xff]
  %v131 = vld [vmem:[%s0 + $0x38c] sm:$0xff]
  %v132 = vld [vmem:[%s0 + $0x394] sm:$0xff]
  %v133 = vld [vmem:[%s0 + $0x39c] sm:$0xff]
  %v134 = vld [vmem:[%s0 + $0x3a4] sm:$0xff]
  %v135 = vld [vmem:[%s0 + $0x3ac] sm:$0xff]
  %v136 = vld [vmem:[%s0 + $0x3b4] sm:$0xff]
  %v137 = vld [vmem:[%s0 + $0x3bc] sm:$0xff]
  %v138 = vld [vmem:[%s0 + $0x3c4] sm:$0xff]
  %v139 = vld [vmem:[%s0 + $0x3cc] sm:$0xff]
  %v140 = vld [vmem:[%s0 + $0x3d4] sm:$0xf]
  %v141 = vld [vmem:[%s0 + $0x3d8] sm:$0xff]
  %v142 = vld [vmem:[%s0 + $0x3e0] sm:$0xff]
  %v143 = vld [vmem:[%s0 + $0x3e8] sm:$0xff]
  %v144 = vld [vmem:[%s0 + $0x3f0] sm:$0xff]
  %v145 = vld [vmem:[%s0 + $0x3f8] sm:$0xff]
  %v146 = vld [vmem:[%s0 + $0x400] sm:$0xff]
  %v147 = vld [vmem:[%s0 + $0x408] sm:$0xff]
  %v148 = vld [vmem:[%s0 + $0x410] sm:$0xff]
  %v149 = vld [vmem:[%s0 + $0x418] sm:$0xff]
  %v150 = vld [vmem:[%s0 + $0x420] sm:$0xff]
  %v151 = vld [vmem:[%s0 + $0x428] sm:$0xff]
  %v152 = vld [vmem:[%s0 + $0x430] sm:$0xff]
  %v153 = vld [vmem:[%s0 + $0x438] sm:$0xff]
  %v154 = vld [vmem:[%s0 + $0x440] sm:$0xff]
  %v155 = vld [vmem:[%s0 + $0x448] sm:$0xff]
  %v156 = vld [vmem:[%s0 + $0x450] sm:$0xff]
  %v157 = vld [vmem:[%s0 + $0x458] sm:$0xff]
  %v158 = vld [vmem:[%s0 + $0x460] sm:$0xff]
  %v159 = vld [vmem:[%s0 + $0x468] sm:$0xff]
  %v160 = vld [vmem:[%s0 + $0x470] sm:$0xff]
  %v161 = vld [vmem:[%s0 + $0x478] sm:$0xf]
  %v162 = vld [vmem:[%s0 + $0x47c] sm:$0xff]
  %v163 = vld [vmem:[%s0 + $0x484] sm:$0xff]
  %v164 = vld [vmem:[%s0 + $0x48c] sm:$0xff]
  %v165 = vld [vmem:[%s0 + $0x494] sm:$0xff]
  %v166 = vld [vmem:[%s0 + $0x49c] sm:$0xff]
  %v167 = vld [vmem:[%s0 + $0x4a4] sm:$0xff]
  %v168 = vld [vmem:[%s0 + $0x4ac] sm:$0xff]
  %v169 = vld [vmem:[%s0 + $0x4b4] sm:$0xff]
  %v170 = vld [vmem:[%s0 + $0x4bc] sm:$0xff]
  %v171 = vld [vmem:[%s0 + $0x4c4] sm:$0xff]
  %v172 = vld [vmem:[%s0 + $0x4cc] sm:$0xff]
  %v173 = vld [vmem:[%s0 + $0x4d4] sm:$0xff]
  %v174 = vld [vmem:[%s0 + $0x4dc] sm:$0xff]
  %v175 = vld [vmem:[%s0 + $0x4e4] sm:$0xff]
  %v176 = vld [vmem:[%s0 + $0x4ec] sm:$0xff]
  %v177 = vld [vmem:[%s0 + $0x4f4] sm:$0xff]
  %v178 = vld [vmem:[%s0 + $0x4fc] sm:$0xff]
  %v179 = vld [vmem:[%s0 + $0x504] sm:$0xff]
  %v180 = vld [vmem:[%s0 + $0x50c] sm:$0xff]
  %v181 = vld [vmem:[%s0 + $0x514] sm:$0xff]
  %v182 = vld [vmem:[%s0 + $0x51c] sm:$0xf]
  %v183 = vld [vmem:[%s0 + $0x520] sm:$0xff]
  %v184 = vld [vmem:[%s0 + $0x528] sm:$0xff]
  %v185 = vld [vmem:[%s0 + $0x530] sm:$0xff]
  %v186 = vld [vmem:[%s0 + $0x538] sm:$0xff]
  %v187 = vld [vmem:[%s0 + $0x540] sm:$0xff]
  %v188 = vld [vmem:[%s0 + $0x548] sm:$0xff]
  %v189 = vld [vmem:[%s0 + $0x550] sm:$0xff]
  %v190 = vld [vmem:[%s0 + $0x558] sm:$0xff]
  %v191 = vld [vmem:[%s0 + $0x560] sm:$0xff]
  %v192 = vld [vmem:[%s0 + $0x568] sm:$0xff]
  %v193 = vld [vmem:[%s0 + $0x570] sm:$0xff]
  %v194 = vld [vmem:[%s0 + $0x578] sm:$0xff]
  %v195 = vld [vmem:[%s0 + $0x580] sm:$0xff]
  %v196 = vld [vmem:[%s0 + $0x588] sm:$0xff]
  %v197 = vld [vmem:[%s0 + $0x590] sm:$0xff]
  %v198 = vld [vmem:[%s0 + $0x598] sm:$0xff]
  %v199 = vld [vmem:[%s0 + $0x5a0] sm:$0xff]
  %v200 = vld [vmem:[%s0 + $0x5a8] sm:$0xff]
  %v201 = vld [vmem:[%s0 + $0x5b0] sm:$0xff]
  %v202 = vld [vmem:[%s0 + $0x5b8] sm:$0xff]
  %v203 = vld [vmem:[%s0 + $0x5c0] sm:$0xf]
  %v204 = vld [vmem:[%s1] sm:$0xff]
  %v205 = vld [vmem:[%s1 + $0x8] sm:$0xff]
  %v206 = vld [vmem:[%s1 + $0x10] sm:$0xff]
  %v207 = vld [vmem:[%s1 + $0x18] sm:$0xff]
  %v208 = vld [vmem:[%s1 + $0x20] sm:$0xff]
  %v209 = vld [vmem:[%s1 + $0x28] sm:$0xff]
  %v210 = vld [vmem:[%s1 + $0x30] sm:$0xff]
  %v211 = vld [vmem:[%s1 + $0x38] sm:$0xff]
  %v212 = vld [vmem:[%s1 + $0x40] sm:$0xff]
  %v213 = vld [vmem:[%s1 + $0x48] sm:$0xff]
  %v214 = vld [vmem:[%s1 + $0x50] sm:$0xff]
  %v215 = vld [vmem:[%s1 + $0x58] sm:$0xff]
  %v216 = vld [vmem:[%s1 + $0x60] sm:$0xff]
  %v217 = vld [vmem:[%s1 + $0x68] sm:$0xff]
  %v218 = vld [vmem:[%s1 + $0x70] sm:$0xff]
  %v219 = vld [vmem:[%s1 + $0x78] sm:$0xff]
  %v220 = vld [vmem:[%s1 + $0x80] sm:$0xff]
  %v221 = vld [vmem:[%s1 + $0x88] sm:$0xff]
  %v222 = vld [vmem:[%s1 + $0x90] sm:$0xff]
  %v223 = vld [vmem:[%s1 + $0x98] sm:$0xff]
  %v224 = vld [vmem:[%s1 + $0xa0] sm:$0xf]
  %v225 = vld [vmem:[%s1 + $0xa4] sm:$0xff]
  %v226 = vld [vmem:[%s1 + $0xac] sm:$0xff]
  %v227 = vld [vmem:[%s1 + $0xb4] sm:$0xff]
  %v228 = vld [vmem:[%s1 + $0xbc] sm:$0xff]
  %v229 = vld [vmem:[%s1 + $0xc4] sm:$0xff]
  %v230 = vld [vmem:[%s1 + $0xcc] sm:$0xff]
  %v231 = vld [vmem:[%s1 + $0xd4] sm:$0xff]
  %v232 = vld [vmem:[%s1 + $0xdc] sm:$0xff]
  %v233 = vld [vmem:[%s1 + $0xe4] sm:$0xff]
  %v234 = vld [vmem:[%s1 + $0xec] sm:$0xff]
  %v235 = vld [vmem:[%s1 + $0xf4] sm:$0xff]
  %v236 = vld [vmem:[%s1 + $0xfc] sm:$0xff]
  %v237 = vld [vmem:[%s1 + $0x104] sm:$0xff]
  %v238 = vld [vmem:[%s1 + $0x10c] sm:$0xff]
  %v239 = vld [vmem:[%s1 + $0x114] sm:$0xff]
  %v240 = vld [vmem:[%s1 + $0x11c] sm:$0xff]
  %v241 = vld [vmem:[%s1 + $0x124] sm:$0xff]
  %v242 = vld [vmem:[%s1 + $0x12c] sm:$0xff]
  %v243 = vld [vmem:[%s1 + $0x134] sm:$0xff]
  %v244 = vld [vmem:[%s1 + $0x13c] sm:$0xff]
  %v245 = vld [vmem:[%s1 + $0x144] sm:$0xf]
  %v246 = vld [vmem:[%s1 + $0x148] sm:$0xff]
  %v247 = vld [vmem:[%s1 + $0x150] sm:$0xff]
  %v248 = vld [vmem:[%s1 + $0x158] sm:$0xff]
  %v249 = vld [vmem:[%s1 + $0x160] sm:$0xff]
  %v250 = vld [vmem:[%s1 + $0x168] sm:$0xff]
  %v251 = vld [vmem:[%s1 + $0x170] sm:$0xff]
  %v252 = vld [vmem:[%s1 + $0x178] sm:$0xff]
  %v253 = vld [vmem:[%s1 + $0x180] sm:$0xff]
  %v254 = vld [vmem:[%s1 + $0x188] sm:$0xff]
  %v255 = vld [vmem:[%s1 + $0x190] sm:$0xff]
  %v256 = vld [vmem:[%s1 + $0x198] sm:$0xff]
  %v257 = vld [vmem:[%s1 + $0x1a0] sm:$0xff]
  %v258 = vld [vmem:[%s1 + $0x1a8] sm:$0xff]
  %v259 = vld [vmem:[%s1 + $0x1b0] sm:$0xff]
  %v260 = vld [vmem:[%s1 + $0x1b8] sm:$0xff]
  %v261 = vld [vmem:[%s1 + $0x1c0] sm:$0xff]
  %v262 = vld [vmem:[%s1 + $0x1c8] sm:$0xff]
  %v263 = vld [vmem:[%s1 + $0x1d0] sm:$0xff]
  %v264 = vld [vmem:[%s1 + $0x1d8] sm:$0xff]
  %v265 = vld [vmem:[%s1 + $0x1e0] sm:$0xff]
  %v266 = vld [vmem:[%s1 + $0x1e8] sm:$0xf]
  %v267 = vld [vmem:[%s1 + $0x1ec] sm:$0xff]
  %v268 = vld [vmem:[%s1 + $0x1f4] sm:$0xff]
  %v269 = vld [vmem:[%s1 + $0x1fc] sm:$0xff]
  %v270 = vld [vmem:[%s1 + $0x204] sm:$0xff]
  %v271 = vld [vmem:[%s1 + $0x20c] sm:$0xff]
  %v272 = vld [vmem:[%s1 + $0x214] sm:$0xff]
  %v273 = vld [vmem:[%s1 + $0x21c] sm:$0xff]
  %v274 = vld [vmem:[%s1 + $0x224] sm:$0xff]
  %v275 = vld [vmem:[%s1 + $0x22c] sm:$0xff]
  %v276 = vld [vmem:[%s1 + $0x234] sm:$0xff]
  %v277 = vld [vmem:[%s1 + $0x23c] sm:$0xff]
  %v278 = vld [vmem:[%s1 + $0x244] sm:$0xff]
  %v279 = vld [vmem:[%s1 + $0x24c] sm:$0xff]
  %v280 = vld [vmem:[%s1 + $0x254] sm:$0xff]
  %v281 = vld [vmem:[%s1 + $0x25c] sm:$0xff]
  %v282 = vld [vmem:[%s1 + $0x264] sm:$0xff]
  %v283 = vld [vmem:[%s1 + $0x26c] sm:$0xff]
  %v284 = vld [vmem:[%s1 + $0x274] sm:$0xff]
  %v285 = vld [vmem:[%s1 + $0x27c] sm:$0xff]
  %v286 = vld [vmem:[%s1 + $0x284] sm:$0xff]
  %v287 = vld [vmem:[%s1 + $0x28c] sm:$0xf]
  %v288 = vld [vmem:[%s1 + $0x290] sm:$0xff]
  %v289 = vld [vmem:[%s1 + $0x298] sm:$0xff]
  %v290 = vld [vmem:[%s1 + $0x2a0] sm:$0xff]
  %v291 = vld [vmem:[%s1 + $0x2a8] sm:$0xff]
  %v292 = vld [vmem:[%s1 + $0x2b0] sm:$0xff]
  %v293 = vld [vmem:[%s1 + $0x2b8] sm:$0xff]
  %v294 = vld [vmem:[%s1 + $0x2c0] sm:$0xff]
  %v295 = vld [vmem:[%s1 + $0x2c8] sm:$0xff]
  %v296 = vld [vmem:[%s1 + $0x2d0] sm:$0xff]
  %v297 = vld [vmem:[%s1 + $0x2d8] sm:$0xff]
  %v298 = vld [vmem:[%s1 + $0x2e0] sm:$0xff]
  %v299 = vld [vmem:[%s1 + $0x2e8] sm:$0xff]
  %v300 = vld [vmem:[%s1 + $0x2f0] sm:$0xff]
  %v301 = vld [vmem:[%s1 + $0x2f8] sm:$0xff]
  %v302 = vld [vmem:[%s1 + $0x300] sm:$0xff]
  %v303 = vld [vmem:[%s1 + $0x308] sm:$0xff]
  %v304 = vld [vmem:[%s1 + $0x310] sm:$0xff]
  %v305 = vld [vmem:[%s1 + $0x318] sm:$0xff]
  %v306 = vld [vmem:[%s1 + $0x320] sm:$0xff]
  %v307 = vld [vmem:[%s1 + $0x328] sm:$0xff]
  %v308 = vld [vmem:[%s1 + $0x330] sm:$0xf]
  %v309 = vld [vmem:[%s1 + $0x334] sm:$0xff]
  %v310 = vld [vmem:[%s1 + $0x33c] sm:$0xff]
  %v311 = vld [vmem:[%s1 + $0x344] sm:$0xff]
  %v312 = vld [vmem:[%s1 + $0x34c] sm:$0xff]
  %v313 = vld [vmem:[%s1 + $0x354] sm:$0xff]
  %v314 = vld [vmem:[%s1 + $0x35c] sm:$0xff]
  %v315 = vld [vmem:[%s1 + $0x364] sm:$0xff]
  %v316 = vld [vmem:[%s1 + $0x36c] sm:$0xff]
  %v317 = vld [vmem:[%s1 + $0x374] sm:$0xff]
  %v318 = vld [vmem:[%s1 + $0x37c] sm:$0xff]
  %v319 = vld [vmem:[%s1 + $0x384] sm:$0xff]
  %v320 = vld [vmem:[%s1 + $0x38c] sm:$0xff]
  %v321 = vld [vmem:[%s1 + $0x394] sm:$0xff]
  %v322 = vld [vmem:[%s1 + $0x39c] sm:$0xff]
  %v323 = vld [vmem:[%s1 + $0x3a4] sm:$0xff]
  %v324 = vld [vmem:[%s1 + $0x3ac] sm:$0xff]
  %v325 = vld [vmem:[%s1 + $0x3b4] sm:$0xff]
  %v326 = vld [vmem:[%s1 + $0x3bc] sm:$0xff]
  %v327 = vld [vmem:[%s1 + $0x3c4] sm:$0xff]
  %v328 = vld [vmem:[%s1 + $0x3cc] sm:$0xff]
  %v329 = vld [vmem:[%s1 + $0x3d4] sm:$0xf]
  %v330 = vld [vmem:[%s1 + $0x3d8] sm:$0xff]
  %v331 = vld [vmem:[%s1 + $0x3e0] sm:$0xff]
  %v332 = vld [vmem:[%s1 + $0x3e8] sm:$0xff]
  %v333 = vld [vmem:[%s1 + $0x3f0] sm:$0xff]
  %v334 = vld [vmem:[%s1 + $0x3f8] sm:$0xff]
  %v335 = vld [vmem:[%s1 + $0x400] sm:$0xff]
  %v336 = vld [vmem:[%s1 + $0x408] sm:$0xff]
  %v337 = vld [vmem:[%s1 + $0x410] sm:$0xff]
  %v338 = vld [vmem:[%s1 + $0x418] sm:$0xff]
  %v339 = vld [vmem:[%s1 + $0x420] sm:$0xff]
  %v340 = vld [vmem:[%s1 + $0x428] sm:$0xff]
  %v341 = vld [vmem:[%s1 + $0x430] sm:$0xff]
  %v342 = vld [vmem:[%s1 + $0x438] sm:$0xff]
  %v343 = vld [vmem:[%s1 + $0x440] sm:$0xff]
  %v344 = vld [vmem:[%s1 + $0x448] sm:$0xff]
  %v345 = vld [vmem:[%s1 + $0x450] sm:$0xff]
  %v346 = vld [vmem:[%s1 + $0x458] sm:$0xff]
  %v347 = vld [vmem:[%s1 + $0x460] sm:$0xff]
  %v348 = vld [vmem:[%s1 + $0x468] sm:$0xff]
  %v349 = vld [vmem:[%s1 + $0x470] sm:$0xff]
  %v350 = vld [vmem:[%s1 + $0x478] sm:$0xf]
  %v351 = vld [vmem:[%s1 + $0x47c] sm:$0xff]
  %v352 = vld [vmem:[%s1 + $0x484] sm:$0xff]
  %v353 = vld [vmem:[%s1 + $0x48c] sm:$0xff]
  %v354 = vld [vmem:[%s1 + $0x494] sm:$0xff]
  %v355 = vld [vmem:[%s1 + $0x49c] sm:$0xff]
  %v356 = vld [vmem:[%s1 + $0x4a4] sm:$0xff]
  %v357 = vld [vmem:[%s1 + $0x4ac] sm:$0xff]
  %v358 = vld [vmem:[%s1 + $0x4b4] sm:$0xff]
  %v359 = vld [vmem:[%s1 + $0x4bc] sm:$0xff]
  %v360 = vld [vmem:[%s1 + $0x4c4] sm:$0xff]
  %v361 = vld [vmem:[%s1 + $0x4cc] sm:$0xff]
  %v362 = vld [vmem:[%s1 + $0x4d4] sm:$0xff]
  %v363 = vld [vmem:[%s1 + $0x4dc] sm:$0xff]
  %v364 = vld [vmem:[%s1 + $0x4e4] sm:$0xff]
  %v365 = vld [vmem:[%s1 + $0x4ec] sm:$0xff]
  %v366 = vld [vmem:[%s1 + $0x4f4] sm:$0xff]
  %v367 = vld [vmem:[%s1 + $0x4fc] sm:$0xff]
  %v368 = vld [vmem:[%s1 + $0x504] sm:$0xff]
  %v369 = vld [vmem:[%s1 + $0x50c] sm:$0xff]
  %v370 = vld [vmem:[%s1 + $0x514] sm:$0xff]
  %v371 = vld [vmem:[%s1 + $0x51c] sm:$0xf]
  %v372 = vld [vmem:[%s1 + $0x520] sm:$0xff]
  %v373 = vld [vmem:[%s1 + $0x528] sm:$0xff]
  %v374 = vld [vmem:[%s1 + $0x530] sm:$0xff]
  %v375 = vld [vmem:[%s1 + $0x538] sm:$0xff]
  %v376 = vld [vmem:[%s1 + $0x540] sm:$0xff]
  %v377 = vld [vmem:[%s1 + $0x548] sm:$0xff]
  %v378 = vld [vmem:[%s1 + $0x550] sm:$0xff]
  %v379 = vld [vmem:[%s1 + $0x558] sm:$0xff]
  %v380 = vld [vmem:[%s1 + $0x560] sm:$0xff]
  %v381 = vld [vmem:[%s1 + $0x568] sm:$0xff]
  %v382 = vld [vmem:[%s1 + $0x570] sm:$0xff]
  %v383 = vld [vmem:[%s1 + $0x578] sm:$0xff]
  %v384 = vld [vmem:[%s1 + $0x580] sm:$0xff]
  %v385 = vld [vmem:[%s1 + $0x588] sm:$0xff]
  %v386 = vld [vmem:[%s1 + $0x590] sm:$0xff]
  %v387 = vld [vmem:[%s1 + $0x598] sm:$0xff]
  %v388 = vld [vmem:[%s1 + $0x5a0] sm:$0xff]
  %v389 = vld [vmem:[%s1 + $0x5a8] sm:$0xff]
  %v390 = vld [vmem:[%s1 + $0x5b0] sm:$0xff]
  %v391 = vld [vmem:[%s1 + $0x5b8] sm:$0xff]
  %v392 = vld [vmem:[%s1 + $0x5c0] sm:$0xf]
  %v393 = vld [vmem:[%s1 + $0x5c4] sm:$0xff]
  %v394 = vld [vmem:[%s1 + $0x5cc] sm:$0xff]
  %v395 = vld [vmem:[%s1 + $0x5d4] sm:$0xff]
  %v396 = vld [vmem:[%s1 + $0x5dc] sm:$0xff]
  %v397 = vld [vmem:[%s1 + $0x5e4] sm:$0xff]
  %v398 = vld [vmem:[%s1 + $0x5ec] sm:$0xff]
  %v399 = vld [vmem:[%s1 + $0x5f4] sm:$0xff]
  %v400 = vld [vmem:[%s1 + $0x5fc] sm:$0xff]
  %v401 = vld [vmem:[%s1 + $0x604] sm:$0xff]
  %v402 = vld [vmem:[%s1 + $0x60c] sm:$0xff]
  %v403 = vld [vmem:[%s1 + $0x614] sm:$0xff]
  %v404 = vld [vmem:[%s1 + $0x61c] sm:$0xff]
  %v405 = vld [vmem:[%s1 + $0x624] sm:$0xff]
  %v406 = vld [vmem:[%s1 + $0x62c] sm:$0xff]
  %v407 = vld [vmem:[%s1 + $0x634] sm:$0xff]
  %v408 = vld [vmem:[%s1 + $0x63c] sm:$0xff]
  %v409 = vld [vmem:[%s1 + $0x644] sm:$0xff]
  %v410 = vld [vmem:[%s1 + $0x64c] sm:$0xff]
  %v411 = vld [vmem:[%s1 + $0x654] sm:$0xff]
  %v412 = vld [vmem:[%s1 + $0x65c] sm:$0xff]
  %v413 = vld [vmem:[%s1 + $0x664] sm:$0xf]
  %v414 = vld [vmem:[%s1 + $0x668] sm:$0xff]
  %v415 = vld [vmem:[%s1 + $0x670] sm:$0xff]
  %v416 = vld [vmem:[%s1 + $0x678] sm:$0xff]
  %v417 = vld [vmem:[%s1 + $0x680] sm:$0xff]
  %v418 = vld [vmem:[%s1 + $0x688] sm:$0xff]
  %v419 = vld [vmem:[%s1 + $0x690] sm:$0xff]
  %v420 = vld [vmem:[%s1 + $0x698] sm:$0xff]
  %v421 = vld [vmem:[%s1 + $0x6a0] sm:$0xff]
  %v422 = vld [vmem:[%s1 + $0x6a8] sm:$0xff]
  %v423 = vld [vmem:[%s1 + $0x6b0] sm:$0xff]
  %v424 = vld [vmem:[%s1 + $0x6b8] sm:$0xff]
  %v425 = vld [vmem:[%s1 + $0x6c0] sm:$0xff]
  %v426 = vld [vmem:[%s1 + $0x6c8] sm:$0xff]
  %v427 = vld [vmem:[%s1 + $0x6d0] sm:$0xff]
  %v428 = vld [vmem:[%s1 + $0x6d8] sm:$0xff]
  %v429 = vld [vmem:[%s1 + $0x6e0] sm:$0xff]
  %v430 = vld [vmem:[%s1 + $0x6e8] sm:$0xff]
  %v431 = vld [vmem:[%s1 + $0x6f0] sm:$0xff]
  %v432 = vld [vmem:[%s1 + $0x6f8] sm:$0xff]
  %v433 = vld [vmem:[%s1 + $0x700] sm:$0xff]
  %v434 = vld [vmem:[%s1 + $0x708] sm:$0xf]
  %v435 = vld [vmem:[%s1 + $0x70c] sm:$0xff]
  %v436 = vld [vmem:[%s1 + $0x714] sm:$0xff]
  %v437 = vld [vmem:[%s1 + $0x71c] sm:$0xff]
  %v438 = vld [vmem:[%s1 + $0x724] sm:$0xff]
  %v439 = vld [vmem:[%s1 + $0x72c] sm:$0xff]
  %v440 = vld [vmem:[%s1 + $0x734] sm:$0xff]
  %v441 = vld [vmem:[%s1 + $0x73c] sm:$0xff]
  %v442 = vld [vmem:[%s1 + $0x744] sm:$0xff]
  %v443 = vld [vmem:[%s1 + $0x74c] sm:$0xff]
  %v444 = vld [vmem:[%s1 + $0x754] sm:$0xff]
  %v445 = vld [vmem:[%s1 + $0x75c] sm:$0xff]
  %v446 = vld [vmem:[%s1 + $0x764] sm:$0xff]
  %v447 = vld [vmem:[%s1 + $0x76c] sm:$0xff]
  %v448 = vld [vmem:[%s1 + $0x774] sm:$0xff]
  %v449 = vld [vmem:[%s1 + $0x77c] sm:$0xff]
  %v450 = vld [vmem:[%s1 + $0x784] sm:$0xff]
  %v451 = vld [vmem:[%s1 + $0x78c] sm:$0xff]
  %v452 = vld [vmem:[%s1 + $0x794] sm:$0xff]
  %v453 = vld [vmem:[%s1 + $0x79c] sm:$0xff]
  %v454 = vld [vmem:[%s1 + $0x7a4] sm:$0xff]
  %v455 = vld [vmem:[%s1 + $0x7ac] sm:$0xf]
  %v456 = vld [vmem:[%s1 + $0x7b0] sm:$0xff]
  %v457 = vld [vmem:[%s1 + $0x7b8] sm:$0xff]
  %v458 = vld [vmem:[%s1 + $0x7c0] sm:$0xff]
  %v459 = vld [vmem:[%s1 + $0x7c8] sm:$0xff]
  %v460 = vld [vmem:[%s1 + $0x7d0] sm:$0xff]
  %v461 = vld [vmem:[%s1 + $0x7d8] sm:$0xff]
  %v462 = vld [vmem:[%s1 + $0x7e0] sm:$0xff]
  %v463 = vld [vmem:[%s1 + $0x7e8] sm:$0xff]
  %v464 = vld [vmem:[%s1 + $0x7f0] sm:$0xff]
  %v465 = vld [vmem:[%s1 + $0x7f8] sm:$0xff]
  %v466 = vld [vmem:[%s1 + $0x800] sm:$0xff]
  %v467 = vld [vmem:[%s1 + $0x808] sm:$0xff]
  %v468 = vld [vmem:[%s1 + $0x810] sm:$0xff]
  %v469 = vld [vmem:[%s1 + $0x818] sm:$0xff]
  %v470 = vld [vmem:[%s1 + $0x820] sm:$0xff]
  %v471 = vld [vmem:[%s1 + $0x828] sm:$0xff]
  %v472 = vld [vmem:[%s1 + $0x830] sm:$0xff]
  %v473 = vld [vmem:[%s1 + $0x838] sm:$0xff]
  %v474 = vld [vmem:[%s1 + $0x840] sm:$0xff]
  %v475 = vld [vmem:[%s1 + $0x848] sm:$0xff]
  %v476 = vld [vmem:[%s1 + $0x850] sm:$0xf]
  %v477 = vld [vmem:[%s1 + $0x854] sm:$0xff]
  %v478 = vld [vmem:[%s1 + $0x85c] sm:$0xff]
  %v479 = vld [vmem:[%s1 + $0x864] sm:$0xff]
  %v480 = vld [vmem:[%s1 + $0x86c] sm:$0xff]
  %v481 = vld [vmem:[%s1 + $0x874] sm:$0xff]
  %v482 = vld [vmem:[%s1 + $0x87c] sm:$0xff]
  %v483 = vld [vmem:[%s1 + $0x884] sm:$0xff]
  %v484 = vld [vmem:[%s1 + $0x88c] sm:$0xff]
  %v485 = vld [vmem:[%s1 + $0x894] sm:$0xff]
  %v486 = vld [vmem:[%s1 + $0x89c] sm:$0xff]
  %v487 = vld [vmem:[%s1 + $0x8a4] sm:$0xff]
  %v488 = vld [vmem:[%s1 + $0x8ac] sm:$0xff]
  %v489 = vld [vmem:[%s1 + $0x8b4] sm:$0xff]
  %v490 = vld [vmem:[%s1 + $0x8bc] sm:$0xff]
  %v491 = vld [vmem:[%s1 + $0x8c4] sm:$0xff]
  %v492 = vld [vmem:[%s1 + $0x8cc] sm:$0xff]
  %v493 = vld [vmem:[%s1 + $0x8d4] sm:$0xff]
  %v494 = vld [vmem:[%s1 + $0x8dc] sm:$0xff]
  %v495 = vld [vmem:[%s1 + $0x8e4] sm:$0xff]
  %v496 = vld [vmem:[%s1 + $0x8ec] sm:$0xff]
  %v497 = vld [vmem:[%s1 + $0x8f4] sm:$0xf]
  %v498 = vld [vmem:[%s1 + $0x8f8] sm:$0xff]
  %v499 = vld [vmem:[%s1 + $0x900] sm:$0xff]
  %v500 = vld [vmem:[%s1 + $0x908] sm:$0xff]
  %v501 = vld [vmem:[%s1 + $0x910] sm:$0xff]
  %v502 = vld [vmem:[%s1 + $0x918] sm:$0xff]
  %v503 = vld [vmem:[%s1 + $0x920] sm:$0xff]
  %v504 = vld [vmem:[%s1 + $0x928] sm:$0xff]
  %v505 = vld [vmem:[%s1 + $0x930] sm:$0xff]
  %v506 = vld [vmem:[%s1 + $0x938] sm:$0xff]
  %v507 = vld [vmem:[%s1 + $0x940] sm:$0xff]
  %v508 = vld [vmem:[%s1 + $0x948] sm:$0xff]
  %v509 = vld [vmem:[%s1 + $0x950] sm:$0xff]
  %v510 = vld [vmem:[%s1 + $0x958] sm:$0xff]
  %v511 = vld [vmem:[%s1 + $0x960] sm:$0xff]
  %v512 = vld [vmem:[%s1 + $0x968] sm:$0xff]
  %v513 = vld [vmem:[%s1 + $0x970] sm:$0xff]
  %v514 = vld [vmem:[%s1 + $0x978] sm:$0xff]
  %v515 = vld [vmem:[%s1 + $0x980] sm:$0xff]
  %v516 = vld [vmem:[%s1 + $0x988] sm:$0xff]
  %v517 = vld [vmem:[%s1 + $0x990] sm:$0xff]
  %v518 = vld [vmem:[%s1 + $0x998] sm:$0xf]
  %v519 = vld [vmem:[%s1 + $0x99c] sm:$0xff]
  %v520 = vld [vmem:[%s1 + $0x9a4] sm:$0xff]
  %v521 = vld [vmem:[%s1 + $0x9ac] sm:$0xff]
  %v522 = vld [vmem:[%s1 + $0x9b4] sm:$0xff]
  %v523 = vld [vmem:[%s1 + $0x9bc] sm:$0xff]
  %v524 = vld [vmem:[%s1 + $0x9c4] sm:$0xff]
  %v525 = vld [vmem:[%s1 + $0x9cc] sm:$0xff]
  %v526 = vld [vmem:[%s1 + $0x9d4] sm:$0xff]
  %v527 = vld [vmem:[%s1 + $0x9dc] sm:$0xff]
  %v528 = vld [vmem:[%s1 + $0x9e4] sm:$0xff]
  %v529 = vld [vmem:[%s1 + $0x9ec] sm:$0xff]
  %v530 = vld [vmem:[%s1 + $0x9f4] sm:$0xff]
  %v531 = vld [vmem:[%s1 + $0x9fc] sm:$0xff]
  %v532 = vld [vmem:[%s1 + $0xa04] sm:$0xff]
  %v533 = vld [vmem:[%s1 + $0xa0c] sm:$0xff]
  %v534 = vld [vmem:[%s1 + $0xa14] sm:$0xff]
  %v535 = vld [vmem:[%s1 + $0xa1c] sm:$0xff]
  %v536 = vld [vmem:[%s1 + $0xa24] sm:$0xff]
  %v537 = vld [vmem:[%s1 + $0xa2c] sm:$0xff]
  %v538 = vld [vmem:[%s1 + $0xa34] sm:$0xff]
  %v539 = vld [vmem:[%s1 + $0xa3c] sm:$0xf]
  %v540 = vld [vmem:[%s1 + $0xa40] sm:$0xff]
  %v541 = vld [vmem:[%s1 + $0xa48] sm:$0xff]
  %v542 = vld [vmem:[%s1 + $0xa50] sm:$0xff]
  %v543 = vld [vmem:[%s1 + $0xa58] sm:$0xff]
  %v544 = vld [vmem:[%s1 + $0xa60] sm:$0xff]
  %v545 = vld [vmem:[%s1 + $0xa68] sm:$0xff]
  %v546 = vld [vmem:[%s1 + $0xa70] sm:$0xff]
  %v547 = vld [vmem:[%s1 + $0xa78] sm:$0xff]
  %v548 = vld [vmem:[%s1 + $0xa80] sm:$0xff]
  %v549 = vld [vmem:[%s1 + $0xa88] sm:$0xff]
  %v550 = vld [vmem:[%s1 + $0xa90] sm:$0xff]
  %v551 = vld [vmem:[%s1 + $0xa98] sm:$0xff]
  %v552 = vld [vmem:[%s1 + $0xaa0] sm:$0xff]
  %v553 = vld [vmem:[%s1 + $0xaa8] sm:$0xff]
  %v554 = vld [vmem:[%s1 + $0xab0] sm:$0xff]
  %v555 = vld [vmem:[%s1 + $0xab8] sm:$0xff]
  %v556 = vld [vmem:[%s1 + $0xac0] sm:$0xff]
  %v557 = vld [vmem:[%s1 + $0xac8] sm:$0xff]
  %v558 = vld [vmem:[%s1 + $0xad0] sm:$0xff]
  %v559 = vld [vmem:[%s1 + $0xad8] sm:$0xff]
  %v560 = vld [vmem:[%s1 + $0xae0] sm:$0xf]
  %v561 = vld [vmem:[%s1 + $0xae4] sm:$0xff]
  %v562 = vld [vmem:[%s1 + $0xaec] sm:$0xff]
  %v563 = vld [vmem:[%s1 + $0xaf4] sm:$0xff]
  %v564 = vld [vmem:[%s1 + $0xafc] sm:$0xff]
  %v565 = vld [vmem:[%s1 + $0xb04] sm:$0xff]
  %v566 = vld [vmem:[%s1 + $0xb0c] sm:$0xff]
  %v567 = vld [vmem:[%s1 + $0xb14] sm:$0xff]
  %v568 = vld [vmem:[%s1 + $0xb1c] sm:$0xff]
  %v569 = vld [vmem:[%s1 + $0xb24] sm:$0xff]
  %v570 = vld [vmem:[%s1 + $0xb2c] sm:$0xff]
  %v571 = vld [vmem:[%s1 + $0xb34] sm:$0xff]
  %v572 = vld [vmem:[%s1 + $0xb3c] sm:$0xff]
  %v573 = vld [vmem:[%s1 + $0xb44] sm:$0xff]
  %v574 = vld [vmem:[%s1 + $0xb4c] sm:$0xff]
  %v575 = vld [vmem:[%s1 + $0xb54] sm:$0xff]
  %v576 = vld [vmem:[%s1 + $0xb5c] sm:$0xff]
  %v577 = vld [vmem:[%s1 + $0xb64] sm:$0xff]
  %v578 = vld [vmem:[%s1 + $0xb6c] sm:$0xff]
  %v579 = vld [vmem:[%s1 + $0xb74] sm:$0xff]
  %v580 = vld [vmem:[%s1 + $0xb7c] sm:$0xff]
  %v581 = vld [vmem:[%s1 + $0xb84] sm:$0xf]
  %v582 = vld [vmem:[%s1 + $0xb88] sm:$0xff]
  %v583 = vld [vmem:[%s1 + $0xb90] sm:$0xff]
  %v584 = vld [vmem:[%s1 + $0xb98] sm:$0xff]
  %v585 = vld [vmem:[%s1 + $0xba0] sm:$0xff]
  %v586 = vld [vmem:[%s1 + $0xba8] sm:$0xff]
  %v587 = vld [vmem:[%s1 + $0xbb0] sm:$0xff]
  %v588 = vld [vmem:[%s1 + $0xbb8] sm:$0xff]
  %v589 = vld [vmem:[%s1 + $0xbc0] sm:$0xff]
  %v590 = vld [vmem:[%s1 + $0xbc8] sm:$0xff]
  %v591 = vld [vmem:[%s1 + $0xbd0] sm:$0xff]
  %v592 = vld [vmem:[%s1 + $0xbd8] sm:$0xff]
  %v593 = vld [vmem:[%s1 + $0xbe0] sm:$0xff]
  %v594 = vld [vmem:[%s1 + $0xbe8] sm:$0xff]
  %v595 = vld [vmem:[%s1 + $0xbf0] sm:$0xff]
  %v596 = vld [vmem:[%s1 + $0xbf8] sm:$0xff]
  %v597 = vld [vmem:[%s1 + $0xc00] sm:$0xff]
  %v598 = vld [vmem:[%s1 + $0xc08] sm:$0xff]
  %v599 = vld [vmem:[%s1 + $0xc10] sm:$0xff]
  %v600 = vld [vmem:[%s1 + $0xc18] sm:$0xff]
  %v601 = vld [vmem:[%s1 + $0xc20] sm:$0xff]
  %v602 = vld [vmem:[%s1 + $0xc28] sm:$0xf]
  %v603 = vld [vmem:[%s1 + $0xc2c] sm:$0xff]
  %v604 = vld [vmem:[%s1 + $0xc34] sm:$0xff]
  %v605 = vld [vmem:[%s1 + $0xc3c] sm:$0xff]
  %v606 = vld [vmem:[%s1 + $0xc44] sm:$0xff]
  %v607 = vld [vmem:[%s1 + $0xc4c] sm:$0xff]
  %v608 = vld [vmem:[%s1 + $0xc54] sm:$0xff]
  %v609 = vld [vmem:[%s1 + $0xc5c] sm:$0xff]
  %v610 = vld [vmem:[%s1 + $0xc64] sm:$0xff]
  %v611 = vld [vmem:[%s1 + $0xc6c] sm:$0xff]
  %v612 = vld [vmem:[%s1 + $0xc74] sm:$0xff]
  %v613 = vld [vmem:[%s1 + $0xc7c] sm:$0xff]
  %v614 = vld [vmem:[%s1 + $0xc84] sm:$0xff]
  %v615 = vld [vmem:[%s1 + $0xc8c] sm:$0xff]
  %v616 = vld [vmem:[%s1 + $0xc94] sm:$0xff]
  %v617 = vld [vmem:[%s1 + $0xc9c] sm:$0xff]
  %v618 = vld [vmem:[%s1 + $0xca4] sm:$0xff]
  %v619 = vld [vmem:[%s1 + $0xcac] sm:$0xff]
  %v620 = vld [vmem:[%s1 + $0xcb4] sm:$0xff]
  %v621 = vld [vmem:[%s1 + $0xcbc] sm:$0xff]
  %v622 = vld [vmem:[%s1 + $0xcc4] sm:$0xff]
  %v623 = vld [vmem:[%s1 + $0xccc] sm:$0xf]
  %v624 = vld [vmem:[%s1 + $0xcd0] sm:$0xff]
  %v625 = vld [vmem:[%s1 + $0xcd8] sm:$0xff]
  %v626 = vld [vmem:[%s1 + $0xce0] sm:$0xff]
  %v627 = vld [vmem:[%s1 + $0xce8] sm:$0xff]
  %v628 = vld [vmem:[%s1 + $0xcf0] sm:$0xff]
  %v629 = vld [vmem:[%s1 + $0xcf8] sm:$0xff]
  %v630 = vld [vmem:[%s1 + $0xd00] sm:$0xff]
  %v631 = vld [vmem:[%s1 + $0xd08] sm:$0xff]
  %v632 = vld [vmem:[%s1 + $0xd10] sm:$0xff]
  %v633 = vld [vmem:[%s1 + $0xd18] sm:$0xff]
  %v634 = vld [vmem:[%s1 + $0xd20] sm:$0xff]
  %v635 = vld [vmem:[%s1 + $0xd28] sm:$0xff]
  %v636 = vld [vmem:[%s1 + $0xd30] sm:$0xff]
  %v637 = vld [vmem:[%s1 + $0xd38] sm:$0xff]
  %v638 = vld [vmem:[%s1 + $0xd40] sm:$0xff]
  %v639 = vld [vmem:[%s1 + $0xd48] sm:$0xff]
  %v640 = vld [vmem:[%s1 + $0xd50] sm:$0xff]
  %v641 = vld [vmem:[%s1 + $0xd58] sm:$0xff]
  %v642 = vld [vmem:[%s1 + $0xd60] sm:$0xff]
  %v643 = vld [vmem:[%s1 + $0xd68] sm:$0xff]
  %v644 = vld [vmem:[%s1 + $0xd70] sm:$0xf]
  %v645 = vld [vmem:[%s1 + $0xd74] sm:$0xff]
  %v646 = vld [vmem:[%s1 + $0xd7c] sm:$0xff]
  %v647 = vld [vmem:[%s1 + $0xd84] sm:$0xff]
  %v648 = vld [vmem:[%s1 + $0xd8c] sm:$0xff]
  %v649 = vld [vmem:[%s1 + $0xd94] sm:$0xff]
  %v650 = vld [vmem:[%s1 + $0xd9c] sm:$0xff]
  %v651 = vld [vmem:[%s1 + $0xda4] sm:$0xff]
  %v652 = vld [vmem:[%s1 + $0xdac] sm:$0xff]
  %v653 = vld [vmem:[%s1 + $0xdb4] sm:$0xff]
  %v654 = vld [vmem:[%s1 + $0xdbc] sm:$0xff]
  %v655 = vld [vmem:[%s1 + $0xdc4] sm:$0xff]
  %v656 = vld [vmem:[%s1 + $0xdcc] sm:$0xff]
  %v657 = vld [vmem:[%s1 + $0xdd4] sm:$0xff]
  %v658 = vld [vmem:[%s1 + $0xddc] sm:$0xff]
  %v659 = vld [vmem:[%s1 + $0xde4] sm:$0xff]
  %v660 = vld [vmem:[%s1 + $0xdec] sm:$0xff]
  %v661 = vld [vmem:[%s1 + $0xdf4] sm:$0xff]
  %v662 = vld [vmem:[%s1 + $0xdfc] sm:$0xff]
  %v663 = vld [vmem:[%s1 + $0xe04] sm:$0xff]
  %v664 = vld [vmem:[%s1 + $0xe0c] sm:$0xff]
  %v665 = vld [vmem:[%s1 + $0xe14] sm:$0xf]
  %v666 = vld [vmem:[%s1 + $0xe18] sm:$0xff]
  %v667 = vld [vmem:[%s1 + $0xe20] sm:$0xff]
  %v668 = vld [vmem:[%s1 + $0xe28] sm:$0xff]
  %v669 = vld [vmem:[%s1 + $0xe30] sm:$0xff]
  %v670 = vld [vmem:[%s1 + $0xe38] sm:$0xff]
  %v671 = vld [vmem:[%s1 + $0xe40] sm:$0xff]
  %v672 = vld [vmem:[%s1 + $0xe48] sm:$0xff]
  %v673 = vld [vmem:[%s1 + $0xe50] sm:$0xff]
  %v674 = vld [vmem:[%s1 + $0xe58] sm:$0xff]
  %v675 = vld [vmem:[%s1 + $0xe60] sm:$0xff]
  %v676 = vld [vmem:[%s1 + $0xe68] sm:$0xff]
  %v677 = vld [vmem:[%s1 + $0xe70] sm:$0xff]
  %v678 = vld [vmem:[%s1 + $0xe78] sm:$0xff]
  %v679 = vld [vmem:[%s1 + $0xe80] sm:$0xff]
  %v680 = vld [vmem:[%s1 + $0xe88] sm:$0xff]
  %v681 = vld [vmem:[%s1 + $0xe90] sm:$0xff]
  %v682 = vld [vmem:[%s1 + $0xe98] sm:$0xff]
  %v683 = vld [vmem:[%s1 + $0xea0] sm:$0xff]
  %v684 = vld [vmem:[%s1 + $0xea8] sm:$0xff]
  %v685 = vld [vmem:[%s1 + $0xeb0] sm:$0xff]
  %v686 = vld [vmem:[%s1 + $0xeb8] sm:$0xf]
  %v687 = vld [vmem:[%s1 + $0xebc] sm:$0xff]
  %v688 = vld [vmem:[%s1 + $0xec4] sm:$0xff]
  %v689 = vld [vmem:[%s1 + $0xecc] sm:$0xff]
  %v690 = vld [vmem:[%s1 + $0xed4] sm:$0xff]
  %v691 = vld [vmem:[%s1 + $0xedc] sm:$0xff]
  %v692 = vld [vmem:[%s1 + $0xee4] sm:$0xff]
  %v693 = vld [vmem:[%s1 + $0xeec] sm:$0xff]
  %v694 = vld [vmem:[%s1 + $0xef4] sm:$0xff]
  %v695 = vld [vmem:[%s1 + $0xefc] sm:$0xff]
  %v696 = vld [vmem:[%s1 + $0xf04] sm:$0xff]
  %v697 = vld [vmem:[%s1 + $0xf0c] sm:$0xff]
  %v698 = vld [vmem:[%s1 + $0xf14] sm:$0xff]
  %v699 = vld [vmem:[%s1 + $0xf1c] sm:$0xff]
  %v700 = vld [vmem:[%s1 + $0xf24] sm:$0xff]
  %v701 = vld [vmem:[%s1 + $0xf2c] sm:$0xff]
  %v702 = vld [vmem:[%s1 + $0xf34] sm:$0xff]
  %v703 = vld [vmem:[%s1 + $0xf3c] sm:$0xff]
  %v704 = vld [vmem:[%s1 + $0xf44] sm:$0xff]
  %v705 = vld [vmem:[%s1 + $0xf4c] sm:$0xff]
  %v706 = vld [vmem:[%s1 + $0xf54] sm:$0xff]
  %v707 = vld [vmem:[%s1 + $0xf5c] sm:$0xf]
  %v708 = vld [vmem:[%s1 + $0xf60] sm:$0xff]
  %v709 = vld [vmem:[%s1 + $0xf68] sm:$0xff]
  %v710 = vld [vmem:[%s1 + $0xf70] sm:$0xff]
  %v711 = vld [vmem:[%s1 + $0xf78] sm:$0xff]
  %v712 = vld [vmem:[%s1 + $0xf80] sm:$0xff]
  %v713 = vld [vmem:[%s1 + $0xf88] sm:$0xff]
  %v714 = vld [vmem:[%s1 + $0xf90] sm:$0xff]
  %v715 = vld [vmem:[%s1 + $0xf98] sm:$0xff]
  %v716 = vld [vmem:[%s1 + $0xfa0] sm:$0xff]
  %v717 = vld [vmem:[%s1 + $0xfa8] sm:$0xff]
  %v718 = vld [vmem:[%s1 + $0xfb0] sm:$0xff]
  %v719 = vld [vmem:[%s1 + $0xfb8] sm:$0xff]
  %v720 = vld [vmem:[%s1 + $0xfc0] sm:$0xff]
  %v721 = vld [vmem:[%s1 + $0xfc8] sm:$0xff]
  %v722 = vld [vmem:[%s1 + $0xfd0] sm:$0xff]
  %v723 = vld [vmem:[%s1 + $0xfd8] sm:$0xff]
  %v724 = vld [vmem:[%s1 + $0xfe0] sm:$0xff]
  %v725 = vld [vmem:[%s1 + $0xfe8] sm:$0xff]
  %v726 = vld [vmem:[%s1 + $0xff0] sm:$0xff]
  %v727 = vld [vmem:[%s1 + $0xff8] sm:$0xff]
  %v728 = vld [vmem:[%s1 + $0x1000] sm:$0xf]
  %v729 = vld [vmem:[%s1 + $0x1004] sm:$0xff]
  %v730 = vld [vmem:[%s1 + $0x100c] sm:$0xff]
  %v731 = vld [vmem:[%s1 + $0x1014] sm:$0xff]
  %v732 = vld [vmem:[%s1 + $0x101c] sm:$0xff]
  %v733 = vld [vmem:[%s1 + $0x1024] sm:$0xff]
  %v734 = vld [vmem:[%s1 + $0x102c] sm:$0xff]
  %v735 = vld [vmem:[%s1 + $0x1034] sm:$0xff]
  %v736 = vld [vmem:[%s1 + $0x103c] sm:$0xff]
  %v737 = vld [vmem:[%s1 + $0x1044] sm:$0xff]
  %v738 = vld [vmem:[%s1 + $0x104c] sm:$0xff]
  %v739 = vld [vmem:[%s1 + $0x1054] sm:$0xff]
  %v740 = vld [vmem:[%s1 + $0x105c] sm:$0xff]
  %v741 = vld [vmem:[%s1 + $0x1064] sm:$0xff]
  %v742 = vld [vmem:[%s1 + $0x106c] sm:$0xff]
  %v743 = vld [vmem:[%s1 + $0x1074] sm:$0xff]
  %v744 = vld [vmem:[%s1 + $0x107c] sm:$0xff]
  %v745 = vld [vmem:[%s1 + $0x1084] sm:$0xff]
  %v746 = vld [vmem:[%s1 + $0x108c] sm:$0xff]
  %v747 = vld [vmem:[%s1 + $0x1094] sm:$0xff]
  %v748 = vld [vmem:[%s1 + $0x109c] sm:$0xff]
  %v749 = vld [vmem:[%s1 + $0x10a4] sm:$0xf]
  %v750 = vld [vmem:[%s1 + $0x10a8] sm:$0xff]
  %v751 = vld [vmem:[%s1 + $0x10b0] sm:$0xff]
  %v752 = vld [vmem:[%s1 + $0x10b8] sm:$0xff]
  %v753 = vld [vmem:[%s1 + $0x10c0] sm:$0xff]
  %v754 = vld [vmem:[%s1 + $0x10c8] sm:$0xff]
  %v755 = vld [vmem:[%s1 + $0x10d0] sm:$0xff]
  %v756 = vld [vmem:[%s1 + $0x10d8] sm:$0xff]
  %v757 = vld [vmem:[%s1 + $0x10e0] sm:$0xff]
  %v758 = vld [vmem:[%s1 + $0x10e8] sm:$0xff]
  %v759 = vld [vmem:[%s1 + $0x10f0] sm:$0xff]
  %v760 = vld [vmem:[%s1 + $0x10f8] sm:$0xff]
  %v761 = vld [vmem:[%s1 + $0x1100] sm:$0xff]
  %v762 = vld [vmem:[%s1 + $0x1108] sm:$0xff]
  %v763 = vld [vmem:[%s1 + $0x1110] sm:$0xff]
  %v764 = vld [vmem:[%s1 + $0x1118] sm:$0xff]
  %v765 = vld [vmem:[%s1 + $0x1120] sm:$0xff]
  %v766 = vld [vmem:[%s1 + $0x1128] sm:$0xff]
  %v767 = vld [vmem:[%s1 + $0x1130] sm:$0xff]
  %v768 = vld [vmem:[%s1 + $0x1138] sm:$0xff]
  %v769 = vld [vmem:[%s1 + $0x1140] sm:$0xff]
  %v770 = vld [vmem:[%s1 + $0x1148] sm:$0xf]
  %v771 = vld [vmem:[%s1 + $0x114c] sm:$0xff]
  %v772 = vld [vmem:[%s1 + $0x1154] sm:$0xff]
  %v773 = vld [vmem:[%s1 + $0x115c] sm:$0xff]
  %v774 = vld [vmem:[%s1 + $0x1164] sm:$0xff]
  %v775 = vld [vmem:[%s1 + $0x116c] sm:$0xff]
  %v776 = vld [vmem:[%s1 + $0x1174] sm:$0xff]
  %v777 = vld [vmem:[%s1 + $0x117c] sm:$0xff]
  %v778 = vld [vmem:[%s1 + $0x1184] sm:$0xff]
  %v779 = vld [vmem:[%s1 + $0x118c] sm:$0xff]
  %v780 = vld [vmem:[%s1 + $0x1194] sm:$0xff]
  %v781 = vld [vmem:[%s1 + $0x119c] sm:$0xff]
  %v782 = vld [vmem:[%s1 + $0x11a4] sm:$0xff]
  %v783 = vld [vmem:[%s1 + $0x11ac] sm:$0xff]
  %v784 = vld [vmem:[%s1 + $0x11b4] sm:$0xff]
  %v785 = vld [vmem:[%s1 + $0x11bc] sm:$0xff]
  %v786 = vld [vmem:[%s1 + $0x11c4] sm:$0xff]
  %v787 = vld [vmem:[%s1 + $0x11cc] sm:$0xff]
  %v788 = vld [vmem:[%s1 + $0x11d4] sm:$0xff]
  %v789 = vld [vmem:[%s1 + $0x11dc] sm:$0xff]
  %v790 = vld [vmem:[%s1 + $0x11e4] sm:$0xff]
  %v791 = vld [vmem:[%s1 + $0x11ec] sm:$0xf]
  %v792 = vld [vmem:[%s1 + $0x11f0] sm:$0xff]
  %v793 = vld [vmem:[%s1 + $0x11f8] sm:$0xff]
  %v794 = vld [vmem:[%s1 + $0x1200] sm:$0xff]
  %v795 = vld [vmem:[%s1 + $0x1208] sm:$0xff]
  %v796 = vld [vmem:[%s1 + $0x1210] sm:$0xff]
  %v797 = vld [vmem:[%s1 + $0x1218] sm:$0xff]
  %v798 = vld [vmem:[%s1 + $0x1220] sm:$0xff]
  %v799 = vld [vmem:[%s1 + $0x1228] sm:$0xff]
  %v800 = vld [vmem:[%s1 + $0x1230] sm:$0xff]
  %v801 = vld [vmem:[%s1 + $0x1238] sm:$0xff]
  %v802 = vld [vmem:[%s1 + $0x1240] sm:$0xff]
  %v803 = vld [vmem:[%s1 + $0x1248] sm:$0xff]
  %v804 = vld [vmem:[%s1 + $0x1250] sm:$0xff]
  %v805 = vld [vmem:[%s1 + $0x1258] sm:$0xff]
  %v806 = vld [vmem:[%s1 + $0x1260] sm:$0xff]
  %v807 = vld [vmem:[%s1 + $0x1268] sm:$0xff]
  %v808 = vld [vmem:[%s1 + $0x1270] sm:$0xff]
  %v809 = vld [vmem:[%s1 + $0x1278] sm:$0xff]
  %v810 = vld [vmem:[%s1 + $0x1280] sm:$0xff]
  %v811 = vld [vmem:[%s1 + $0x1288] sm:$0xff]
  %v812 = vld [vmem:[%s1 + $0x1290] sm:$0xf]
  %v813 = vld [vmem:[%s1 + $0x1294] sm:$0xff]
  %v814 = vld [vmem:[%s1 + $0x129c] sm:$0xff]
  %v815 = vld [vmem:[%s1 + $0x12a4] sm:$0xff]
  %v816 = vld [vmem:[%s1 + $0x12ac] sm:$0xff]
  %v817 = vld [vmem:[%s1 + $0x12b4] sm:$0xff]
  %v818 = vld [vmem:[%s1 + $0x12bc] sm:$0xff]
  %v819 = vld [vmem:[%s1 + $0x12c4] sm:$0xff]
  %v820 = vld [vmem:[%s1 + $0x12cc] sm:$0xff]
  %v821 = vld [vmem:[%s1 + $0x12d4] sm:$0xff]
  %v822 = vld [vmem:[%s1 + $0x12dc] sm:$0xff]
  %v823 = vld [vmem:[%s1 + $0x12e4] sm:$0xff]
  %v824 = vld [vmem:[%s1 + $0x12ec] sm:$0xff]
  %v825 = vld [vmem:[%s1 + $0x12f4] sm:$0xff]
  %v826 = vld [vmem:[%s1 + $0x12fc] sm:$0xff]
  %v827 = vld [vmem:[%s1 + $0x1304] sm:$0xff]
  %v828 = vld [vmem:[%s1 + $0x130c] sm:$0xff]
  %v829 = vld [vmem:[%s1 + $0x1314] sm:$0xff]
  %v830 = vld [vmem:[%s1 + $0x131c] sm:$0xff]
  %v831 = vld [vmem:[%s1 + $0x1324] sm:$0xff]
  %v832 = vld [vmem:[%s1 + $0x132c] sm:$0xff]
  %v833 = vld [vmem:[%s1 + $0x1334] sm:$0xf]
  %v834 = vld [vmem:[%s1 + $0x1338] sm:$0xff]
  %v835 = vld [vmem:[%s1 + $0x1340] sm:$0xff]
  %v836 = vld [vmem:[%s1 + $0x1348] sm:$0xff]
  %v837 = vld [vmem:[%s1 + $0x1350] sm:$0xff]
  %v838 = vld [vmem:[%s1 + $0x1358] sm:$0xff]
  %v839 = vld [vmem:[%s1 + $0x1360] sm:$0xff]
  %v840 = vld [vmem:[%s1 + $0x1368] sm:$0xff]
  %v841 = vld [vmem:[%s1 + $0x1370] sm:$0xff]
  %v842 = vld [vmem:[%s1 + $0x1378] sm:$0xff]
  %v843 = vld [vmem:[%s1 + $0x1380] sm:$0xff]
  %v844 = vld [vmem:[%s1 + $0x1388] sm:$0xff]
  %v845 = vld [vmem:[%s1 + $0x1390] sm:$0xff]
  %v846 = vld [vmem:[%s1 + $0x1398] sm:$0xff]
  %v847 = vld [vmem:[%s1 + $0x13a0] sm:$0xff]
  %v848 = vld [vmem:[%s1 + $0x13a8] sm:$0xff]
  %v849 = vld [vmem:[%s1 + $0x13b0] sm:$0xff]
  %v850 = vld [vmem:[%s1 + $0x13b8] sm:$0xff]
  %v851 = vld [vmem:[%s1 + $0x13c0] sm:$0xff]
  %v852 = vld [vmem:[%s1 + $0x13c8] sm:$0xff]
  %v853 = vld [vmem:[%s1 + $0x13d0] sm:$0xff]
  %v854 = vld [vmem:[%s1 + $0x13d8] sm:$0xf]
  %v855 = vld [vmem:[%s1 + $0x13dc] sm:$0xff]
  %v856 = vld [vmem:[%s1 + $0x13e4] sm:$0xff]
  %v857 = vld [vmem:[%s1 + $0x13ec] sm:$0xff]
  %v858 = vld [vmem:[%s1 + $0x13f4] sm:$0xff]
  %v859 = vld [vmem:[%s1 + $0x13fc] sm:$0xff]
  %v860 = vld [vmem:[%s1 + $0x1404] sm:$0xff]
  %v861 = vld [vmem:[%s1 + $0x140c] sm:$0xff]
  %v862 = vld [vmem:[%s1 + $0x1414] sm:$0xff]
  %v863 = vld [vmem:[%s1 + $0x141c] sm:$0xff]
  %v864 = vld [vmem:[%s1 + $0x1424] sm:$0xff]
  %v865 = vld [vmem:[%s1 + $0x142c] sm:$0xff]
  %v866 = vld [vmem:[%s1 + $0x1434] sm:$0xff]
  %v867 = vld [vmem:[%s1 + $0x143c] sm:$0xff]
  %v868 = vld [vmem:[%s1 + $0x1444] sm:$0xff]
  %v869 = vld [vmem:[%s1 + $0x144c] sm:$0xff]
  %v870 = vld [vmem:[%s1 + $0x1454] sm:$0xff]
  %v871 = vld [vmem:[%s1 + $0x145c] sm:$0xff]
  %v872 = vld [vmem:[%s1 + $0x1464] sm:$0xff]
  %v873 = vld [vmem:[%s1 + $0x146c] sm:$0xff]
  %v874 = vld [vmem:[%s1 + $0x1474] sm:$0xff]
  %v875 = vld [vmem:[%s1 + $0x147c] sm:$0xf]
  %v876 = vld [vmem:[%s1 + $0x1480] sm:$0xff]
  %v877 = vld [vmem:[%s1 + $0x1488] sm:$0xff]
  %v878 = vld [vmem:[%s1 + $0x1490] sm:$0xff]
  %v879 = vld [vmem:[%s1 + $0x1498] sm:$0xff]
  %v880 = vld [vmem:[%s1 + $0x14a0] sm:$0xff]
  %v881 = vld [vmem:[%s1 + $0x14a8] sm:$0xff]
  %v882 = vld [vmem:[%s1 + $0x14b0] sm:$0xff]
  %v883 = vld [vmem:[%s1 + $0x14b8] sm:$0xff]
  %v884 = vld [vmem:[%s1 + $0x14c0] sm:$0xff]
  %v885 = vld [vmem:[%s1 + $0x14c8] sm:$0xff]
  %v886 = vld [vmem:[%s1 + $0x14d0] sm:$0xff]
  %v887 = vld [vmem:[%s1 + $0x14d8] sm:$0xff]
  %v888 = vld [vmem:[%s1 + $0x14e0] sm:$0xff]
  %v889 = vld [vmem:[%s1 + $0x14e8] sm:$0xff]
  %v890 = vld [vmem:[%s1 + $0x14f0] sm:$0xff]
  %v891 = vld [vmem:[%s1 + $0x14f8] sm:$0xff]
  %v892 = vld [vmem:[%s1 + $0x1500] sm:$0xff]
  %v893 = vld [vmem:[%s1 + $0x1508] sm:$0xff]
  %v894 = vld [vmem:[%s1 + $0x1510] sm:$0xff]
  %v895 = vld [vmem:[%s1 + $0x1518] sm:$0xff]
  %v896 = vld [vmem:[%s1 + $0x1520] sm:$0xf]
  %v897 = vld [vmem:[%s1 + $0x1524] sm:$0xff]
  %v898 = vld [vmem:[%s1 + $0x152c] sm:$0xff]
  %v899 = vld [vmem:[%s1 + $0x1534] sm:$0xff]
  %v900 = vld [vmem:[%s1 + $0x153c] sm:$0xff]
  %v901 = vld [vmem:[%s1 + $0x1544] sm:$0xff]
  %v902 = vld [vmem:[%s1 + $0x154c] sm:$0xff]
  %v903 = vld [vmem:[%s1 + $0x1554] sm:$0xff]
  %v904 = vld [vmem:[%s1 + $0x155c] sm:$0xff]
  %v905 = vld [vmem:[%s1 + $0x1564] sm:$0xff]
  %v906 = vld [vmem:[%s1 + $0x156c] sm:$0xff]
  %v907 = vld [vmem:[%s1 + $0x1574] sm:$0xff]
  %v908 = vld [vmem:[%s1 + $0x157c] sm:$0xff]
  %v909 = vld [vmem:[%s1 + $0x1584] sm:$0xff]
  %v910 = vld [vmem:[%s1 + $0x158c] sm:$0xff]
  %v911 = vld [vmem:[%s1 + $0x1594] sm:$0xff]
  %v912 = vld [vmem:[%s1 + $0x159c] sm:$0xff]
  %v913 = vld [vmem:[%s1 + $0x15a4] sm:$0xff]
  %v914 = vld [vmem:[%s1 + $0x15ac] sm:$0xff]
  %v915 = vld [vmem:[%s1 + $0x15b4] sm:$0xff]
  %v916 = vld [vmem:[%s1 + $0x15bc] sm:$0xff]
  %v917 = vld [vmem:[%s1 + $0x15c4] sm:$0xf]
  %v918 = vld [vmem:[%s1 + $0x15c8] sm:$0xff]
  %v919 = vld [vmem:[%s1 + $0x15d0] sm:$0xff]
  %v920 = vld [vmem:[%s1 + $0x15d8] sm:$0xff]
  %v921 = vld [vmem:[%s1 + $0x15e0] sm:$0xff]
  %v922 = vld [vmem:[%s1 + $0x15e8] sm:$0xff]
  %v923 = vld [vmem:[%s1 + $0x15f0] sm:$0xff]
  %v924 = vld [vmem:[%s1 + $0x15f8] sm:$0xff]
  %v925 = vld [vmem:[%s1 + $0x1600] sm:$0xff]
  %v926 = vld [vmem:[%s1 + $0x1608] sm:$0xff]
  %v927 = vld [vmem:[%s1 + $0x1610] sm:$0xff]
  %v928 = vld [vmem:[%s1 + $0x1618] sm:$0xff]
  %v929 = vld [vmem:[%s1 + $0x1620] sm:$0xff]
  %v930 = vld [vmem:[%s1 + $0x1628] sm:$0xff]
  %v931 = vld [vmem:[%s1 + $0x1630] sm:$0xff]
  %v932 = vld [vmem:[%s1 + $0x1638] sm:$0xff]
  %v933 = vld [vmem:[%s1 + $0x1640] sm:$0xff]
  %v934 = vld [vmem:[%s1 + $0x1648] sm:$0xff]
  %v935 = vld [vmem:[%s1 + $0x1650] sm:$0xff]
  %v936 = vld [vmem:[%s1 + $0x1658] sm:$0xff]
  %v937 = vld [vmem:[%s1 + $0x1660] sm:$0xff]
  %v938 = vld [vmem:[%s1 + $0x1668] sm:$0xf]
  %v939 = vld [vmem:[%s1 + $0x166c] sm:$0xff]
  %v940 = vld [vmem:[%s1 + $0x1674] sm:$0xff]
  %v941 = vld [vmem:[%s1 + $0x167c] sm:$0xff]
  %v942 = vld [vmem:[%s1 + $0x1684] sm:$0xff]
  %v943 = vld [vmem:[%s1 + $0x168c] sm:$0xff]
  %v944 = vld [vmem:[%s1 + $0x1694] sm:$0xff]
  %v945 = vld [vmem:[%s1 + $0x169c] sm:$0xff]
  %v946 = vld [vmem:[%s1 + $0x16a4] sm:$0xff]
  %v947 = vld [vmem:[%s1 + $0x16ac] sm:$0xff]
  %v948 = vld [vmem:[%s1 + $0x16b4] sm:$0xff]
  %v949 = vld [vmem:[%s1 + $0x16bc] sm:$0xff]
  %v950 = vld [vmem:[%s1 + $0x16c4] sm:$0xff]
  %v951 = vld [vmem:[%s1 + $0x16cc] sm:$0xff]
  %v952 = vld [vmem:[%s1 + $0x16d4] sm:$0xff]
  %v953 = vld [vmem:[%s1 + $0x16dc] sm:$0xff]
  %v954 = vld [vmem:[%s1 + $0x16e4] sm:$0xff]
  %v955 = vld [vmem:[%s1 + $0x16ec] sm:$0xff]
  %v956 = vld [vmem:[%s1 + $0x16f4] sm:$0xff]
  %v957 = vld [vmem:[%s1 + $0x16fc] sm:$0xff]
  %v958 = vld [vmem:[%s1 + $0x1704] sm:$0xff]
  %v959 = vld [vmem:[%s1 + $0x170c] sm:$0xf]
  %v960 = vld [vmem:[%s1 + $0x1710] sm:$0xff]
  %v961 = vld [vmem:[%s1 + $0x1718] sm:$0xff]
  %v962 = vld [vmem:[%s1 + $0x1720] sm:$0xff]
  %v963 = vld [vmem:[%s1 + $0x1728] sm:$0xff]
  %v964 = vld [vmem:[%s1 + $0x1730] sm:$0xff]
  %v965 = vld [vmem:[%s1 + $0x1738] sm:$0xff]
  %v966 = vld [vmem:[%s1 + $0x1740] sm:$0xff]
  %v967 = vld [vmem:[%s1 + $0x1748] sm:$0xff]
  %v968 = vld [vmem:[%s1 + $0x1750] sm:$0xff]
  %v969 = vld [vmem:[%s1 + $0x1758] sm:$0xff]
  %v970 = vld [vmem:[%s1 + $0x1760] sm:$0xff]
  %v971 = vld [vmem:[%s1 + $0x1768] sm:$0xff]
  %v972 = vld [vmem:[%s1 + $0x1770] sm:$0xff]
  %v973 = vld [vmem:[%s1 + $0x1778] sm:$0xff]
  %v974 = vld [vmem:[%s1 + $0x1780] sm:$0xff]
  %v975 = vld [vmem:[%s1 + $0x1788] sm:$0xff]
  %v976 = vld [vmem:[%s1 + $0x1790] sm:$0xff]
  %v977 = vld [vmem:[%s1 + $0x1798] sm:$0xff]
  %v978 = vld [vmem:[%s1 + $0x17a0] sm:$0xff]
  %v979 = vld [vmem:[%s1 + $0x17a8] sm:$0xff]
  %v980 = vld [vmem:[%s1 + $0x17b0] sm:$0xf]
  %v981 = vld [vmem:[%s1 + $0x17b4] sm:$0x33]
  %v982 = vld [vmem:[%s1 + $0x17bc] sm:$0x33]
  %v983 = vld [vmem:[%s1 + $0x17c4] sm:$0x33]
  %v984 = vld [vmem:[%s1 + $0x17cc] sm:$0x33]
  %v985 = vld [vmem:[%s1 + $0x17d4] sm:$0x33]
  %v986 = vld [vmem:[%s1 + $0x17dc] sm:$0x33]
  %v987 = vld [vmem:[%s1 + $0x17e4] sm:$0x33]
  %v988 = vld [vmem:[%s1 + $0x17ec] sm:$0x33]
  %v989 = vld [vmem:[%s1 + $0x17f4] sm:$0x33]
  %v990 = vld [vmem:[%s1 + $0x17fc] sm:$0x33]
  %v991 = vld [vmem:[%s1 + $0x1804] sm:$0x33]
  %v992 = vld [vmem:[%s1 + $0x180c] sm:$0x33]
  %v993 = vld [vmem:[%s1 + $0x1814] sm:$0x33]
  %v994 = vld [vmem:[%s1 + $0x181c] sm:$0x33]
  %v995 = vld [vmem:[%s1 + $0x1824] sm:$0x33]
  %v996 = vld [vmem:[%s1 + $0x182c] sm:$0x33]
  %v997 = vld [vmem:[%s1 + $0x1834] sm:$0x33]
  %v998 = vld [vmem:[%s1 + $0x183c] sm:$0x33]
  %v999 = vld [vmem:[%s1 + $0x1844] sm:$0x33]
  %v1000 = vld [vmem:[%s1 + $0x184c] sm:$0x33]
  %v1001 = vld [vmem:[%s1 + $0x1854] sm:$0x3]
  %v1002 = vld [vmem:[%s2] sm:$0x7]
  %v1004 = vlaneseq
  %v1005 = vshrl.u32 %v1004, 7
  %v1006 = vsub.s32 0, %v1005
  %v1007 = vrot.slane %v1002, %v1006
  %v1008 = vlaneseq
  %v1009 = vshrl.u32 %v1008, 7
  %v1010 = vsub.s32 1, %v1009
  %v1011 = vrot.slane %v1002, %v1010
  %v1012 = vlaneseq
  %v1013 = vshrl.u32 %v1012, 7
  %v1014 = vsub.s32 2, %v1013
  %v1015 = vrot.slane %v1002, %v1014
  %v1208 = vunpack.c.l.b16 %v15
  %v1209 = vunpack.c.h.b16 %v15
  %v1210 = vunpack.c.l.b16 %v16
  %v1211 = vunpack.c.h.b16 %v16
  %v1212 = vunpack.c.l.b16 %v17
  %v1213 = vunpack.c.h.b16 %v17
  %v1214 = vunpack.c.l.b16 %v18
  %v1215 = vunpack.c.h.b16 %v18
  %v1216 = vunpack.c.l.b16 %v19
  %v1217 = vunpack.c.h.b16 %v19
  %v1218 = vunpack.c.l.b16 %v20
  %v1219 = vunpack.c.h.b16 %v20
  %v1220 = vunpack.c.l.b16 %v21
  %v1221 = vunpack.c.h.b16 %v21
  %v1222 = vunpack.c.l.b16 %v22
  %v1223 = vunpack.c.h.b16 %v22
  %v1224 = vunpack.c.l.b16 %v23
  %v1225 = vunpack.c.h.b16 %v23
  %v1226 = vunpack.c.l.b16 %v24
  %v1227 = vunpack.c.h.b16 %v24
  %v1228 = vunpack.c.l.b16 %v25
  %v1229 = vunpack.c.h.b16 %v25
  %v1230 = vunpack.c.l.b16 %v26
  %v1231 = vunpack.c.h.b16 %v26
  %v1232 = vunpack.c.l.b16 %v27
  %v1233 = vunpack.c.h.b16 %v27
  %v1234 = vunpack.c.l.b16 %v28
  %v1235 = vunpack.c.h.b16 %v28
  %v1236 = vunpack.c.l.b16 %v29
  %v1237 = vunpack.c.h.b16 %v29
  %v1238 = vunpack.c.l.b16 %v30
  %v1239 = vunpack.c.h.b16 %v30
  %v1240 = vunpack.c.l.b16 %v31
  %v1241 = vunpack.c.h.b16 %v31
  %v1242 = vunpack.c.l.b16 %v32
  %v1243 = vunpack.c.h.b16 %v32
  %v1244 = vunpack.c.l.b16 %v33
  %v1245 = vunpack.c.h.b16 %v33
  %v1246 = vunpack.c.l.b16 %v34
  %v1247 = vunpack.c.h.b16 %v34
  %v1248 = vunpack.c.l.b16 %v35
  %v1249 = vunpack.c.l.b16 %v36
  %v1250 = vunpack.c.h.b16 %v36
  %v1251 = vunpack.c.l.b16 %v37
  %v1252 = vunpack.c.h.b16 %v37
  %v1253 = vunpack.c.l.b16 %v38
  %v1254 = vunpack.c.h.b16 %v38
  %v1255 = vunpack.c.l.b16 %v39
  %v1256 = vunpack.c.h.b16 %v39
  %v1257 = vunpack.c.l.b16 %v40
  %v1258 = vunpack.c.h.b16 %v40
  %v1259 = vunpack.c.l.b16 %v41
  %v1260 = vunpack.c.h.b16 %v41
  %v1261 = vunpack.c.l.b16 %v42
  %v1262 = vunpack.c.h.b16 %v42
  %v1263 = vunpack.c.l.b16 %v43
  %v1264 = vunpack.c.h.b16 %v43
  %v1265 = vunpack.c.l.b16 %v44
  %v1266 = vunpack.c.h.b16 %v44
  %v1267 = vunpack.c.l.b16 %v45
  %v1268 = vunpack.c.h.b16 %v45
  %v1269 = vunpack.c.l.b16 %v46
  %v1270 = vunpack.c.h.b16 %v46
  %v1271 = vunpack.c.l.b16 %v47
  %v1272 = vunpack.c.h.b16 %v47
  %v1273 = vunpack.c.l.b16 %v48
  %v1274 = vunpack.c.h.b16 %v48
  %v1275 = vunpack.c.l.b16 %v49
  %v1276 = vunpack.c.h.b16 %v49
  %v1277 = vunpack.c.l.b16 %v50
  %v1278 = vunpack.c.h.b16 %v50
  %v1279 = vunpack.c.l.b16 %v51
  %v1280 = vunpack.c.h.b16 %v51
  %v1281 = vunpack.c.l.b16 %v52
  %v1282 = vunpack.c.h.b16 %v52
  %v1283 = vunpack.c.l.b16 %v53
  %v1284 = vunpack.c.h.b16 %v53
  %v1285 = vunpack.c.l.b16 %v54
  %v1286 = vunpack.c.h.b16 %v54
  %v1287 = vunpack.c.l.b16 %v55
  %v1288 = vunpack.c.h.b16 %v55
  %v1289 = vunpack.c.l.b16 %v56
  %v1290 = vunpack.c.l.b16 %v57
  %v1291 = vunpack.c.h.b16 %v57
  %v1292 = vunpack.c.l.b16 %v58
  %v1293 = vunpack.c.h.b16 %v58
  %v1294 = vunpack.c.l.b16 %v59
  %v1295 = vunpack.c.h.b16 %v59
  %v1296 = vunpack.c.l.b16 %v60
  %v1297 = vunpack.c.h.b16 %v60
  %v1298 = vunpack.c.l.b16 %v61
  %v1299 = vunpack.c.h.b16 %v61
  %v1300 = vunpack.c.l.b16 %v62
  %v1301 = vunpack.c.h.b16 %v62
  %v1302 = vunpack.c.l.b16 %v63
  %v1303 = vunpack.c.h.b16 %v63
  %v1304 = vunpack.c.l.b16 %v64
  %v1305 = vunpack.c.h.b16 %v64
  %v1306 = vunpack.c.l.b16 %v65
  %v1307 = vunpack.c.h.b16 %v65
  %v1308 = vunpack.c.l.b16 %v66
  %v1309 = vunpack.c.h.b16 %v66
  %v1310 = vunpack.c.l.b16 %v67
  %v1311 = vunpack.c.h.b16 %v67
  %v1312 = vunpack.c.l.b16 %v68
  %v1313 = vunpack.c.h.b16 %v68
  %v1314 = vunpack.c.l.b16 %v69
  %v1315 = vunpack.c.h.b16 %v69
  %v1316 = vunpack.c.l.b16 %v70
  %v1317 = vunpack.c.h.b16 %v70
  %v1318 = vunpack.c.l.b16 %v71
  %v1319 = vunpack.c.h.b16 %v71
  %v1320 = vunpack.c.l.b16 %v72
  %v1321 = vunpack.c.h.b16 %v72
  %v1322 = vunpack.c.l.b16 %v73
  %v1323 = vunpack.c.h.b16 %v73
  %v1324 = vunpack.c.l.b16 %v74
  %v1325 = vunpack.c.h.b16 %v74
  %v1326 = vunpack.c.l.b16 %v75
  %v1327 = vunpack.c.h.b16 %v75
  %v1328 = vunpack.c.l.b16 %v76
  %v1329 = vunpack.c.h.b16 %v76
  %v1330 = vunpack.c.l.b16 %v77
  %v1331 = vunpack.c.l.b16 %v78
  %v1332 = vunpack.c.h.b16 %v78
  %v1333 = vunpack.c.l.b16 %v79
  %v1334 = vunpack.c.h.b16 %v79
  %v1335 = vunpack.c.l.b16 %v80
  %v1336 = vunpack.c.h.b16 %v80
  %v1337 = vunpack.c.l.b16 %v81
  %v1338 = vunpack.c.h.b16 %v81
  %v1339 = vunpack.c.l.b16 %v82
  %v1340 = vunpack.c.h.b16 %v82
  %v1341 = vunpack.c.l.b16 %v83
  %v1342 = vunpack.c.h.b16 %v83
  %v1343 = vunpack.c.l.b16 %v84
  %v1344 = vunpack.c.h.b16 %v84
  %v1345 = vunpack.c.l.b16 %v85
  %v1346 = vunpack.c.h.b16 %v85
  %v1347 = vunpack.c.l.b16 %v86
  %v1348 = vunpack.c.h.b16 %v86
  %v1349 = vunpack.c.l.b16 %v87
  %v1350 = vunpack.c.h.b16 %v87
  %v1351 = vunpack.c.l.b16 %v88
  %v1352 = vunpack.c.h.b16 %v88
  %v1353 = vunpack.c.l.b16 %v89
  %v1354 = vunpack.c.h.b16 %v89
  %v1355 = vunpack.c.l.b16 %v90
  %v1356 = vunpack.c.h.b16 %v90
  %v1357 = vunpack.c.l.b16 %v91
  %v1358 = vunpack.c.h.b16 %v91
  %v1359 = vunpack.c.l.b16 %v92
  %v1360 = vunpack.c.h.b16 %v92
  %v1361 = vunpack.c.l.b16 %v93
  %v1362 = vunpack.c.h.b16 %v93
  %v1363 = vunpack.c.l.b16 %v94
  %v1364 = vunpack.c.h.b16 %v94
  %v1365 = vunpack.c.l.b16 %v95
  %v1366 = vunpack.c.h.b16 %v95
  %v1367 = vunpack.c.l.b16 %v96
  %v1368 = vunpack.c.h.b16 %v96
  %v1369 = vunpack.c.l.b16 %v97
  %v1370 = vunpack.c.h.b16 %v97
  %v1371 = vunpack.c.l.b16 %v98
  %v1372 = vunpack.c.l.b16 %v99
  %v1373 = vunpack.c.h.b16 %v99
  %v1374 = vunpack.c.l.b16 %v100
  %v1375 = vunpack.c.h.b16 %v100
  %v1376 = vunpack.c.l.b16 %v101
  %v1377 = vunpack.c.h.b16 %v101
  %v1378 = vunpack.c.l.b16 %v102
  %v1379 = vunpack.c.h.b16 %v102
  %v1380 = vunpack.c.l.b16 %v103
  %v1381 = vunpack.c.h.b16 %v103
  %v1382 = vunpack.c.l.b16 %v104
  %v1383 = vunpack.c.h.b16 %v104
  %v1384 = vunpack.c.l.b16 %v105
  %v1385 = vunpack.c.h.b16 %v105
  %v1386 = vunpack.c.l.b16 %v106
  %v1387 = vunpack.c.h.b16 %v106
  %v1388 = vunpack.c.l.b16 %v107
  %v1389 = vunpack.c.h.b16 %v107
  %v1390 = vunpack.c.l.b16 %v108
  %v1391 = vunpack.c.h.b16 %v108
  %v1392 = vunpack.c.l.b16 %v109
  %v1393 = vunpack.c.h.b16 %v109
  %v1394 = vunpack.c.l.b16 %v110
  %v1395 = vunpack.c.h.b16 %v110
  %v1396 = vunpack.c.l.b16 %v111
  %v1397 = vunpack.c.h.b16 %v111
  %v1398 = vunpack.c.l.b16 %v112
  %v1399 = vunpack.c.h.b16 %v112
  %v1400 = vunpack.c.l.b16 %v113
  %v1401 = vunpack.c.h.b16 %v113
  %v1402 = vunpack.c.l.b16 %v114
  %v1403 = vunpack.c.h.b16 %v114
  %v1404 = vunpack.c.l.b16 %v115
  %v1405 = vunpack.c.h.b16 %v115
  %v1406 = vunpack.c.l.b16 %v116
  %v1407 = vunpack.c.h.b16 %v116
  %v1408 = vunpack.c.l.b16 %v117
  %v1409 = vunpack.c.h.b16 %v117
  %v1410 = vunpack.c.l.b16 %v118
  %v1411 = vunpack.c.h.b16 %v118
  %v1412 = vunpack.c.l.b16 %v119
  %v1413 = vunpack.c.l.b16 %v120
  %v1414 = vunpack.c.h.b16 %v120
  %v1415 = vunpack.c.l.b16 %v121
  %v1416 = vunpack.c.h.b16 %v121
  %v1417 = vunpack.c.l.b16 %v122
  %v1418 = vunpack.c.h.b16 %v122
  %v1419 = vunpack.c.l.b16 %v123
  %v1420 = vunpack.c.h.b16 %v123
  %v1421 = vunpack.c.l.b16 %v124
  %v1422 = vunpack.c.h.b16 %v124
  %v1423 = vunpack.c.l.b16 %v125
  %v1424 = vunpack.c.h.b16 %v125
  %v1425 = vunpack.c.l.b16 %v126
  %v1426 = vunpack.c.h.b16 %v126
  %v1427 = vunpack.c.l.b16 %v127
  %v1428 = vunpack.c.h.b16 %v127
  %v1429 = vunpack.c.l.b16 %v128
  %v1430 = vunpack.c.h.b16 %v128
  %v1431 = vunpack.c.l.b16 %v129
  %v1432 = vunpack.c.h.b16 %v129
  %v1433 = vunpack.c.l.b16 %v130
  %v1434 = vunpack.c.h.b16 %v130
  %v1435 = vunpack.c.l.b16 %v131
  %v1436 = vunpack.c.h.b16 %v131
  %v1437 = vunpack.c.l.b16 %v132
  %v1438 = vunpack.c.h.b16 %v132
  %v1439 = vunpack.c.l.b16 %v133
  %v1440 = vunpack.c.h.b16 %v133
  %v1441 = vunpack.c.l.b16 %v134
  %v1442 = vunpack.c.h.b16 %v134
  %v1443 = vunpack.c.l.b16 %v135
  %v1444 = vunpack.c.h.b16 %v135
  %v1445 = vunpack.c.l.b16 %v136
  %v1446 = vunpack.c.h.b16 %v136
  %v1447 = vunpack.c.l.b16 %v137
  %v1448 = vunpack.c.h.b16 %v137
  %v1449 = vunpack.c.l.b16 %v138
  %v1450 = vunpack.c.h.b16 %v138
  %v1451 = vunpack.c.l.b16 %v139
  %v1452 = vunpack.c.h.b16 %v139
  %v1453 = vunpack.c.l.b16 %v140
  %v1454 = vunpack.c.l.b16 %v141
  %v1455 = vunpack.c.h.b16 %v141
  %v1456 = vunpack.c.l.b16 %v142
  %v1457 = vunpack.c.h.b16 %v142
  %v1458 = vunpack.c.l.b16 %v143
  %v1459 = vunpack.c.h.b16 %v143
  %v1460 = vunpack.c.l.b16 %v144
  %v1461 = vunpack.c.h.b16 %v144
  %v1462 = vunpack.c.l.b16 %v145
  %v1463 = vunpack.c.h.b16 %v145
  %v1464 = vunpack.c.l.b16 %v146
  %v1465 = vunpack.c.h.b16 %v146
  %v1466 = vunpack.c.l.b16 %v147
  %v1467 = vunpack.c.h.b16 %v147
  %v1468 = vunpack.c.l.b16 %v148
  %v1469 = vunpack.c.h.b16 %v148
  %v1470 = vunpack.c.l.b16 %v149
  %v1471 = vunpack.c.h.b16 %v149
  %v1472 = vunpack.c.l.b16 %v150
  %v1473 = vunpack.c.h.b16 %v150
  %v1474 = vunpack.c.l.b16 %v151
  %v1475 = vunpack.c.h.b16 %v151
  %v1476 = vunpack.c.l.b16 %v152
  %v1477 = vunpack.c.h.b16 %v152
  %v1478 = vunpack.c.l.b16 %v153
  %v1479 = vunpack.c.h.b16 %v153
  %v1480 = vunpack.c.l.b16 %v154
  %v1481 = vunpack.c.h.b16 %v154
  %v1482 = vunpack.c.l.b16 %v155
  %v1483 = vunpack.c.h.b16 %v155
  %v1484 = vunpack.c.l.b16 %v156
  %v1485 = vunpack.c.h.b16 %v156
  %v1486 = vunpack.c.l.b16 %v157
  %v1487 = vunpack.c.h.b16 %v157
  %v1488 = vunpack.c.l.b16 %v158
  %v1489 = vunpack.c.h.b16 %v158
  %v1490 = vunpack.c.l.b16 %v159
  %v1491 = vunpack.c.h.b16 %v159
  %v1492 = vunpack.c.l.b16 %v160
  %v1493 = vunpack.c.h.b16 %v160
  %v1494 = vunpack.c.l.b16 %v161
  %v1495 = vunpack.c.l.b16 %v162
  %v1496 = vunpack.c.h.b16 %v162
  %v1497 = vunpack.c.l.b16 %v163
  %v1498 = vunpack.c.h.b16 %v163
  %v1499 = vunpack.c.l.b16 %v164
  %v1500 = vunpack.c.h.b16 %v164
  %v1501 = vunpack.c.l.b16 %v165
  %v1502 = vunpack.c.h.b16 %v165
  %v1503 = vunpack.c.l.b16 %v166
  %v1504 = vunpack.c.h.b16 %v166
  %v1505 = vunpack.c.l.b16 %v167
  %v1506 = vunpack.c.h.b16 %v167
  %v1507 = vunpack.c.l.b16 %v168
  %v1508 = vunpack.c.h.b16 %v168
  %v1509 = vunpack.c.l.b16 %v169
  %v1510 = vunpack.c.h.b16 %v169
  %v1511 = vunpack.c.l.b16 %v170
  %v1512 = vunpack.c.h.b16 %v170
  %v1513 = vunpack.c.l.b16 %v171
  %v1514 = vunpack.c.h.b16 %v171
  %v1515 = vunpack.c.l.b16 %v172
  %v1516 = vunpack.c.h.b16 %v172
  %v1517 = vunpack.c.l.b16 %v173
  %v1518 = vunpack.c.h.b16 %v173
  %v1519 = vunpack.c.l.b16 %v174
  %v1520 = vunpack.c.h.b16 %v174
  %v1521 = vunpack.c.l.b16 %v175
  %v1522 = vunpack.c.h.b16 %v175
  %v1523 = vunpack.c.l.b16 %v176
  %v1524 = vunpack.c.h.b16 %v176
  %v1525 = vunpack.c.l.b16 %v177
  %v1526 = vunpack.c.h.b16 %v177
  %v1527 = vunpack.c.l.b16 %v178
  %v1528 = vunpack.c.h.b16 %v178
  %v1529 = vunpack.c.l.b16 %v179
  %v1530 = vunpack.c.h.b16 %v179
  %v1531 = vunpack.c.l.b16 %v180
  %v1532 = vunpack.c.h.b16 %v180
  %v1533 = vunpack.c.l.b16 %v181
  %v1534 = vunpack.c.h.b16 %v181
  %v1535 = vunpack.c.l.b16 %v182
  %v1536 = vunpack.c.l.b16 %v183
  %v1537 = vunpack.c.h.b16 %v183
  %v1538 = vunpack.c.l.b16 %v184
  %v1539 = vunpack.c.h.b16 %v184
  %v1540 = vunpack.c.l.b16 %v185
  %v1541 = vunpack.c.h.b16 %v185
  %v1542 = vunpack.c.l.b16 %v186
  %v1543 = vunpack.c.h.b16 %v186
  %v1544 = vunpack.c.l.b16 %v187
  %v1545 = vunpack.c.h.b16 %v187
  %v1546 = vunpack.c.l.b16 %v188
  %v1547 = vunpack.c.h.b16 %v188
  %v1548 = vunpack.c.l.b16 %v189
  %v1549 = vunpack.c.h.b16 %v189
  %v1550 = vunpack.c.l.b16 %v190
  %v1551 = vunpack.c.h.b16 %v190
  %v1552 = vunpack.c.l.b16 %v191
  %v1553 = vunpack.c.h.b16 %v191
  %v1554 = vunpack.c.l.b16 %v192
  %v1555 = vunpack.c.h.b16 %v192
  %v1556 = vunpack.c.l.b16 %v193
  %v1557 = vunpack.c.h.b16 %v193
  %v1558 = vunpack.c.l.b16 %v194
  %v1559 = vunpack.c.h.b16 %v194
  %v1560 = vunpack.c.l.b16 %v195
  %v1561 = vunpack.c.h.b16 %v195
  %v1562 = vunpack.c.l.b16 %v196
  %v1563 = vunpack.c.h.b16 %v196
  %v1564 = vunpack.c.l.b16 %v197
  %v1565 = vunpack.c.h.b16 %v197
  %v1566 = vunpack.c.l.b16 %v198
  %v1567 = vunpack.c.h.b16 %v198
  %v1568 = vunpack.c.l.b16 %v199
  %v1569 = vunpack.c.h.b16 %v199
  %v1570 = vunpack.c.l.b16 %v200
  %v1571 = vunpack.c.h.b16 %v200
  %v1572 = vunpack.c.l.b16 %v201
  %v1573 = vunpack.c.h.b16 %v201
  %v1574 = vunpack.c.l.b16 %v202
  %v1575 = vunpack.c.h.b16 %v202
  %v1576 = vunpack.c.l.b16 %v203
  %v1577 = vpack.c.b16 %v1249, %v1208
  %v1578 = vpack.c.b16 %v1250, %v1209
  %v1579 = vpack.c.b16 %v1251, %v1210
  %v1580 = vpack.c.b16 %v1252, %v1211
  %v1581 = vpack.c.b16 %v1253, %v1212
  %v1582 = vpack.c.b16 %v1254, %v1213
  %v1583 = vpack.c.b16 %v1255, %v1214
  %v1584 = vpack.c.b16 %v1256, %v1215
  %v1585 = vpack.c.b16 %v1257, %v1216
  %v1586 = vpack.c.b16 %v1258, %v1217
  %v1587 = vpack.c.b16 %v1259, %v1218
  %v1588 = vpack.c.b16 %v1260, %v1219
  %v1589 = vpack.c.b16 %v1261, %v1220
  %v1590 = vpack.c.b16 %v1262, %v1221
  %v1591 = vpack.c.b16 %v1263, %v1222
  %v1592 = vpack.c.b16 %v1264, %v1223
  %v1593 = vpack.c.b16 %v1265, %v1224
  %v1594 = vpack.c.b16 %v1266, %v1225
  %v1595 = vpack.c.b16 %v1267, %v1226
  %v1596 = vpack.c.b16 %v1268, %v1227
  %v1597 = vpack.c.b16 %v1269, %v1228
  %v1598 = vpack.c.b16 %v1270, %v1229
  %v1599 = vpack.c.b16 %v1271, %v1230
  %v1600 = vpack.c.b16 %v1272, %v1231
  %v1601 = vpack.c.b16 %v1273, %v1232
  %v1602 = vpack.c.b16 %v1274, %v1233
  %v1603 = vpack.c.b16 %v1275, %v1234
  %v1604 = vpack.c.b16 %v1276, %v1235
  %v1605 = vpack.c.b16 %v1277, %v1236
  %v1606 = vpack.c.b16 %v1278, %v1237
  %v1607 = vpack.c.b16 %v1279, %v1238
  %v1608 = vpack.c.b16 %v1280, %v1239
  %v1609 = vpack.c.b16 %v1281, %v1240
  %v1610 = vpack.c.b16 %v1282, %v1241
  %v1611 = vpack.c.b16 %v1283, %v1242
  %v1612 = vpack.c.b16 %v1284, %v1243
  %v1613 = vpack.c.b16 %v1285, %v1244
  %v1614 = vpack.c.b16 %v1286, %v1245
  %v1615 = vpack.c.b16 %v1287, %v1246
  %v1616 = vpack.c.b16 %v1288, %v1247
  %v1617 = vpack.c.b16 %v1289, %v1248
  %v1618 = vpack.c.b16 %v1331, %v1290
  %v1619 = vpack.c.b16 %v1332, %v1291
  %v1620 = vpack.c.b16 %v1333, %v1292
  %v1621 = vpack.c.b16 %v1334, %v1293
  %v1622 = vpack.c.b16 %v1335, %v1294
  %v1623 = vpack.c.b16 %v1336, %v1295
  %v1624 = vpack.c.b16 %v1337, %v1296
  %v1625 = vpack.c.b16 %v1338, %v1297
  %v1626 = vpack.c.b16 %v1339, %v1298
  %v1627 = vpack.c.b16 %v1340, %v1299
  %v1628 = vpack.c.b16 %v1341, %v1300
  %v1629 = vpack.c.b16 %v1342, %v1301
  %v1630 = vpack.c.b16 %v1343, %v1302
  %v1631 = vpack.c.b16 %v1344, %v1303
  %v1632 = vpack.c.b16 %v1345, %v1304
  %v1633 = vpack.c.b16 %v1346, %v1305
  %v1634 = vpack.c.b16 %v1347, %v1306
  %v1635 = vpack.c.b16 %v1348, %v1307
  %v1636 = vpack.c.b16 %v1349, %v1308
  %v1637 = vpack.c.b16 %v1350, %v1309
  %v1638 = vpack.c.b16 %v1351, %v1310
  %v1639 = vpack.c.b16 %v1352, %v1311
  %v1640 = vpack.c.b16 %v1353, %v1312
  %v1641 = vpack.c.b16 %v1354, %v1313
  %v1642 = vpack.c.b16 %v1355, %v1314
  %v1643 = vpack.c.b16 %v1356, %v1315
  %v1644 = vpack.c.b16 %v1357, %v1316
  %v1645 = vpack.c.b16 %v1358, %v1317
  %v1646 = vpack.c.b16 %v1359, %v1318
  %v1647 = vpack.c.b16 %v1360, %v1319
  %v1648 = vpack.c.b16 %v1361, %v1320
  %v1649 = vpack.c.b16 %v1362, %v1321
  %v1650 = vpack.c.b16 %v1363, %v1322
  %v1651 = vpack.c.b16 %v1364, %v1323
  %v1652 = vpack.c.b16 %v1365, %v1324
  %v1653 = vpack.c.b16 %v1366, %v1325
  %v1654 = vpack.c.b16 %v1367, %v1326
  %v1655 = vpack.c.b16 %v1368, %v1327
  %v1656 = vpack.c.b16 %v1369, %v1328
  %v1657 = vpack.c.b16 %v1370, %v1329
  %v1658 = vpack.c.b16 %v1371, %v1330
  %v1659 = vpack.c.b16 %v1413, %v1372
  %v1660 = vpack.c.b16 %v1414, %v1373
  %v1661 = vpack.c.b16 %v1415, %v1374
  %v1662 = vpack.c.b16 %v1416, %v1375
  %v1663 = vpack.c.b16 %v1417, %v1376
  %v1664 = vpack.c.b16 %v1418, %v1377
  %v1665 = vpack.c.b16 %v1419, %v1378
  %v1666 = vpack.c.b16 %v1420, %v1379
  %v1667 = vpack.c.b16 %v1421, %v1380
  %v1668 = vpack.c.b16 %v1422, %v1381
  %v1669 = vpack.c.b16 %v1423, %v1382
  %v1670 = vpack.c.b16 %v1424, %v1383
  %v1671 = vpack.c.b16 %v1425, %v1384
  %v1672 = vpack.c.b16 %v1426, %v1385
  %v1673 = vpack.c.b16 %v1427, %v1386
  %v1674 = vpack.c.b16 %v1428, %v1387
  %v1675 = vpack.c.b16 %v1429, %v1388
  %v1676 = vpack.c.b16 %v1430, %v1389
  %v1677 = vpack.c.b16 %v1431, %v1390
  %v1678 = vpack.c.b16 %v1432, %v1391
  %v1679 = vpack.c.b16 %v1433, %v1392
  %v1680 = vpack.c.b16 %v1434, %v1393
  %v1681 = vpack.c.b16 %v1435, %v1394
  %v1682 = vpack.c.b16 %v1436, %v1395
  %v1683 = vpack.c.b16 %v1437, %v1396
  %v1684 = vpack.c.b16 %v1438, %v1397
  %v1685 = vpack.c.b16 %v1439, %v1398
  %v1686 = vpack.c.b16 %v1440, %v1399
  %v1687 = vpack.c.b16 %v1441, %v1400
  %v1688 = vpack.c.b16 %v1442, %v1401
  %v1689 = vpack.c.b16 %v1443, %v1402
  %v1690 = vpack.c.b16 %v1444, %v1403
  %v1691 = vpack.c.b16 %v1445, %v1404
  %v1692 = vpack.c.b16 %v1446, %v1405
  %v1693 = vpack.c.b16 %v1447, %v1406
  %v1694 = vpack.c.b16 %v1448, %v1407
  %v1695 = vpack.c.b16 %v1449, %v1408
  %v1696 = vpack.c.b16 %v1450, %v1409
  %v1697 = vpack.c.b16 %v1451, %v1410
  %v1698 = vpack.c.b16 %v1452, %v1411
  %v1699 = vpack.c.b16 %v1453, %v1412
  %v1700 = vpack.c.b16 %v1495, %v1454
  %v1701 = vpack.c.b16 %v1496, %v1455
  %v1702 = vpack.c.b16 %v1497, %v1456
  %v1703 = vpack.c.b16 %v1498, %v1457
  %v1704 = vpack.c.b16 %v1499, %v1458
  %v1705 = vpack.c.b16 %v1500, %v1459
  %v1706 = vpack.c.b16 %v1501, %v1460
  %v1707 = vpack.c.b16 %v1502, %v1461
  %v1708 = vpack.c.b16 %v1503, %v1462
  %v1709 = vpack.c.b16 %v1504, %v1463
  %v1710 = vpack.c.b16 %v1505, %v1464
  %v1711 = vpack.c.b16 %v1506, %v1465
  %v1712 = vpack.c.b16 %v1507, %v1466
  %v1713 = vpack.c.b16 %v1508, %v1467
  %v1714 = vpack.c.b16 %v1509, %v1468
  %v1715 = vpack.c.b16 %v1510, %v1469
  %v1716 = vpack.c.b16 %v1511, %v1470
  %v1717 = vpack.c.b16 %v1512, %v1471
  %v1718 = vpack.c.b16 %v1513, %v1472
  %v1719 = vpack.c.b16 %v1514, %v1473
  %v1720 = vpack.c.b16 %v1515, %v1474
  %v1721 = vpack.c.b16 %v1516, %v1475
  %v1722 = vpack.c.b16 %v1517, %v1476
  %v1723 = vpack.c.b16 %v1518, %v1477
  %v1724 = vpack.c.b16 %v1519, %v1478
  %v1725 = vpack.c.b16 %v1520, %v1479
  %v1726 = vpack.c.b16 %v1521, %v1480
  %v1727 = vpack.c.b16 %v1522, %v1481
  %v1728 = vpack.c.b16 %v1523, %v1482
  %v1729 = vpack.c.b16 %v1524, %v1483
  %v1730 = vpack.c.b16 %v1525, %v1484
  %v1731 = vpack.c.b16 %v1526, %v1485
  %v1732 = vpack.c.b16 %v1527, %v1486
  %v1733 = vpack.c.b16 %v1528, %v1487
  %v1734 = vpack.c.b16 %v1529, %v1488
  %v1735 = vpack.c.b16 %v1530, %v1489
  %v1736 = vpack.c.b16 %v1531, %v1490
  %v1737 = vpack.c.b16 %v1532, %v1491
  %v1738 = vpack.c.b16 %v1533, %v1492
  %v1739 = vpack.c.b16 %v1534, %v1493
  %v1740 = vpack.c.b16 %v1535, %v1494
  %v1741 = vpack.c.b16 %v1536, %v1536
  %v1742 = vpack.c.b16 %v1537, %v1537
  %v1743 = vpack.c.b16 %v1538, %v1538
  %v1744 = vpack.c.b16 %v1539, %v1539
  %v1745 = vpack.c.b16 %v1540, %v1540
  %v1746 = vpack.c.b16 %v1541, %v1541
  %v1747 = vpack.c.b16 %v1542, %v1542
  %v1748 = vpack.c.b16 %v1543, %v1543
  %v1749 = vpack.c.b16 %v1544, %v1544
  %v1750 = vpack.c.b16 %v1545, %v1545
  %v1751 = vpack.c.b16 %v1546, %v1546
  %v1752 = vpack.c.b16 %v1547, %v1547
  %v1753 = vpack.c.b16 %v1548, %v1548
  %v1754 = vpack.c.b16 %v1549, %v1549
  %v1755 = vpack.c.b16 %v1550, %v1550
  %v1756 = vpack.c.b16 %v1551, %v1551
  %v1757 = vpack.c.b16 %v1552, %v1552
  %v1758 = vpack.c.b16 %v1553, %v1553
  %v1759 = vpack.c.b16 %v1554, %v1554
  %v1760 = vpack.c.b16 %v1555, %v1555
  %v1761 = vpack.c.b16 %v1556, %v1556
  %v1762 = vpack.c.b16 %v1557, %v1557
  %v1763 = vpack.c.b16 %v1558, %v1558
  %v1764 = vpack.c.b16 %v1559, %v1559
  %v1765 = vpack.c.b16 %v1560, %v1560
  %v1766 = vpack.c.b16 %v1561, %v1561
  %v1767 = vpack.c.b16 %v1562, %v1562
  %v1768 = vpack.c.b16 %v1563, %v1563
  %v1769 = vpack.c.b16 %v1564, %v1564
  %v1770 = vpack.c.b16 %v1565, %v1565
  %v1771 = vpack.c.b16 %v1566, %v1566
  %v1772 = vpack.c.b16 %v1567, %v1567
  %v1773 = vpack.c.b16 %v1568, %v1568
  %v1774 = vpack.c.b16 %v1569, %v1569
  %v1775 = vpack.c.b16 %v1570, %v1570
  %v1776 = vpack.c.b16 %v1571, %v1571
  %v1777 = vpack.c.b16 %v1572, %v1572
  %v1778 = vpack.c.b16 %v1573, %v1573
  %v1779 = vpack.c.b16 %v1574, %v1574
  %v1780 = vpack.c.b16 %v1575, %v1575
  %v1781 = vpack.c.b16 %v1576, %v1576
  %v2780 = vunpack.c.l.b16 %v204
  %v2781 = vunpack.c.h.b16 %v204
  %v2782 = vunpack.c.l.b16 %v205
  %v2783 = vunpack.c.h.b16 %v205
  %v2784 = vunpack.c.l.b16 %v206
  %v2785 = vunpack.c.h.b16 %v206
  %v2786 = vunpack.c.l.b16 %v207
  %v2787 = vunpack.c.h.b16 %v207
  %v2788 = vunpack.c.l.b16 %v208
  %v2789 = vunpack.c.h.b16 %v208
  %v2790 = vunpack.c.l.b16 %v209
  %v2791 = vunpack.c.h.b16 %v209
  %v2792 = vunpack.c.l.b16 %v210
  %v2793 = vunpack.c.h.b16 %v210
  %v2794 = vunpack.c.l.b16 %v211
  %v2795 = vunpack.c.h.b16 %v211
  %v2796 = vunpack.c.l.b16 %v212
  %v2797 = vunpack.c.h.b16 %v212
  %v2798 = vunpack.c.l.b16 %v213
  %v2799 = vunpack.c.h.b16 %v213
  %v2800 = vunpack.c.l.b16 %v214
  %v2801 = vunpack.c.h.b16 %v214
  %v2802 = vunpack.c.l.b16 %v215
  %v2803 = vunpack.c.h.b16 %v215
  %v2804 = vunpack.c.l.b16 %v216
  %v2805 = vunpack.c.h.b16 %v216
  %v2806 = vunpack.c.l.b16 %v217
  %v2807 = vunpack.c.h.b16 %v217
  %v2808 = vunpack.c.l.b16 %v218
  %v2809 = vunpack.c.h.b16 %v218
  %v2810 = vunpack.c.l.b16 %v219
  %v2811 = vunpack.c.h.b16 %v219
  %v2812 = vunpack.c.l.b16 %v220
  %v2813 = vunpack.c.h.b16 %v220
  %v2814 = vunpack.c.l.b16 %v221
  %v2815 = vunpack.c.h.b16 %v221
  %v2816 = vunpack.c.l.b16 %v222
  %v2817 = vunpack.c.h.b16 %v222
  %v2818 = vunpack.c.l.b16 %v223
  %v2819 = vunpack.c.h.b16 %v223
  %v2820 = vunpack.c.l.b16 %v224
  %v2821 = vunpack.c.l.b16 %v225
  %v2822 = vunpack.c.h.b16 %v225
  %v2823 = vunpack.c.l.b16 %v226
  %v2824 = vunpack.c.h.b16 %v226
  %v2825 = vunpack.c.l.b16 %v227
  %v2826 = vunpack.c.h.b16 %v227
  %v2827 = vunpack.c.l.b16 %v228
  %v2828 = vunpack.c.h.b16 %v228
  %v2829 = vunpack.c.l.b16 %v229
  %v2830 = vunpack.c.h.b16 %v229
  %v2831 = vunpack.c.l.b16 %v230
  %v2832 = vunpack.c.h.b16 %v230
  %v2833 = vunpack.c.l.b16 %v231
  %v2834 = vunpack.c.h.b16 %v231
  %v2835 = vunpack.c.l.b16 %v232
  %v2836 = vunpack.c.h.b16 %v232
  %v2837 = vunpack.c.l.b16 %v233
  %v2838 = vunpack.c.h.b16 %v233
  %v2839 = vunpack.c.l.b16 %v234
  %v2840 = vunpack.c.h.b16 %v234
  %v2841 = vunpack.c.l.b16 %v235
  %v2842 = vunpack.c.h.b16 %v235
  %v2843 = vunpack.c.l.b16 %v236
  %v2844 = vunpack.c.h.b16 %v236
  %v2845 = vunpack.c.l.b16 %v237
  %v2846 = vunpack.c.h.b16 %v237
  %v2847 = vunpack.c.l.b16 %v238
  %v2848 = vunpack.c.h.b16 %v238
  %v2849 = vunpack.c.l.b16 %v239
  %v2850 = vunpack.c.h.b16 %v239
  %v2851 = vunpack.c.l.b16 %v240
  %v2852 = vunpack.c.h.b16 %v240
  %v2853 = vunpack.c.l.b16 %v241
  %v2854 = vunpack.c.h.b16 %v241
  %v2855 = vunpack.c.l.b16 %v242
  %v2856 = vunpack.c.h.b16 %v242
  %v2857 = vunpack.c.l.b16 %v243
  %v2858 = vunpack.c.h.b16 %v243
  %v2859 = vunpack.c.l.b16 %v244
  %v2860 = vunpack.c.h.b16 %v244
  %v2861 = vunpack.c.l.b16 %v245
  %v2862 = vunpack.c.l.b16 %v246
  %v2863 = vunpack.c.h.b16 %v246
  %v2864 = vunpack.c.l.b16 %v247
  %v2865 = vunpack.c.h.b16 %v247
  %v2866 = vunpack.c.l.b16 %v248
  %v2867 = vunpack.c.h.b16 %v248
  %v2868 = vunpack.c.l.b16 %v249
  %v2869 = vunpack.c.h.b16 %v249
  %v2870 = vunpack.c.l.b16 %v250
  %v2871 = vunpack.c.h.b16 %v250
  %v2872 = vunpack.c.l.b16 %v251
  %v2873 = vunpack.c.h.b16 %v251
  %v2874 = vunpack.c.l.b16 %v252
  %v2875 = vunpack.c.h.b16 %v252
  %v2876 = vunpack.c.l.b16 %v253
  %v2877 = vunpack.c.h.b16 %v253
  %v2878 = vunpack.c.l.b16 %v254
  %v2879 = vunpack.c.h.b16 %v254
  %v2880 = vunpack.c.l.b16 %v255
  %v2881 = vunpack.c.h.b16 %v255
  %v2882 = vunpack.c.l.b16 %v256
  %v2883 = vunpack.c.h.b16 %v256
  %v2884 = vunpack.c.l.b16 %v257
  %v2885 = vunpack.c.h.b16 %v257
  %v2886 = vunpack.c.l.b16 %v258
  %v2887 = vunpack.c.h.b16 %v258
  %v2888 = vunpack.c.l.b16 %v259
  %v2889 = vunpack.c.h.b16 %v259
  %v2890 = vunpack.c.l.b16 %v260
  %v2891 = vunpack.c.h.b16 %v260
  %v2892 = vunpack.c.l.b16 %v261
  %v2893 = vunpack.c.h.b16 %v261
  %v2894 = vunpack.c.l.b16 %v262
  %v2895 = vunpack.c.h.b16 %v262
  %v2896 = vunpack.c.l.b16 %v263
  %v2897 = vunpack.c.h.b16 %v263
  %v2898 = vunpack.c.l.b16 %v264
  %v2899 = vunpack.c.h.b16 %v264
  %v2900 = vunpack.c.l.b16 %v265
  %v2901 = vunpack.c.h.b16 %v265
  %v2902 = vunpack.c.l.b16 %v266
  %v2903 = vunpack.c.l.b16 %v267
  %v2904 = vunpack.c.h.b16 %v267
  %v2905 = vunpack.c.l.b16 %v268
  %v2906 = vunpack.c.h.b16 %v268
  %v2907 = vunpack.c.l.b16 %v269
  %v2908 = vunpack.c.h.b16 %v269
  %v2909 = vunpack.c.l.b16 %v270
  %v2910 = vunpack.c.h.b16 %v270
  %v2911 = vunpack.c.l.b16 %v271
  %v2912 = vunpack.c.h.b16 %v271
  %v2913 = vunpack.c.l.b16 %v272
  %v2914 = vunpack.c.h.b16 %v272
  %v2915 = vunpack.c.l.b16 %v273
  %v2916 = vunpack.c.h.b16 %v273
  %v2917 = vunpack.c.l.b16 %v274
  %v2918 = vunpack.c.h.b16 %v274
  %v2919 = vunpack.c.l.b16 %v275
  %v2920 = vunpack.c.h.b16 %v275
  %v2921 = vunpack.c.l.b16 %v276
  %v2922 = vunpack.c.h.b16 %v276
  %v2923 = vunpack.c.l.b16 %v277
  %v2924 = vunpack.c.h.b16 %v277
  %v2925 = vunpack.c.l.b16 %v278
  %v2926 = vunpack.c.h.b16 %v278
  %v2927 = vunpack.c.l.b16 %v279
  %v2928 = vunpack.c.h.b16 %v279
  %v2929 = vunpack.c.l.b16 %v280
  %v2930 = vunpack.c.h.b16 %v280
  %v2931 = vunpack.c.l.b16 %v281
  %v2932 = vunpack.c.h.b16 %v281
  %v2933 = vunpack.c.l.b16 %v282
  %v2934 = vunpack.c.h.b16 %v282
  %v2935 = vunpack.c.l.b16 %v283
  %v2936 = vunpack.c.h.b16 %v283
  %v2937 = vunpack.c.l.b16 %v284
  %v2938 = vunpack.c.h.b16 %v284
  %v2939 = vunpack.c.l.b16 %v285
  %v2940 = vunpack.c.h.b16 %v285
  %v2941 = vunpack.c.l.b16 %v286
  %v2942 = vunpack.c.h.b16 %v286
  %v2943 = vunpack.c.l.b16 %v287
  %v2944 = vunpack.c.l.b16 %v288
  %v2945 = vunpack.c.h.b16 %v288
  %v2946 = vunpack.c.l.b16 %v289
  %v2947 = vunpack.c.h.b16 %v289
  %v2948 = vunpack.c.l.b16 %v290
  %v2949 = vunpack.c.h.b16 %v290
  %v2950 = vunpack.c.l.b16 %v291
  %v2951 = vunpack.c.h.b16 %v291
  %v2952 = vunpack.c.l.b16 %v292
  %v2953 = vunpack.c.h.b16 %v292
  %v2954 = vunpack.c.l.b16 %v293
  %v2955 = vunpack.c.h.b16 %v293
  %v2956 = vunpack.c.l.b16 %v294
  %v2957 = vunpack.c.h.b16 %v294
  %v2958 = vunpack.c.l.b16 %v295
  %v2959 = vunpack.c.h.b16 %v295
  %v2960 = vunpack.c.l.b16 %v296
  %v2961 = vunpack.c.h.b16 %v296
  %v2962 = vunpack.c.l.b16 %v297
  %v2963 = vunpack.c.h.b16 %v297
  %v2964 = vunpack.c.l.b16 %v298
  %v2965 = vunpack.c.h.b16 %v298
  %v2966 = vunpack.c.l.b16 %v299
  %v2967 = vunpack.c.h.b16 %v299
  %v2968 = vunpack.c.l.b16 %v300
  %v2969 = vunpack.c.h.b16 %v300
  %v2970 = vunpack.c.l.b16 %v301
  %v2971 = vunpack.c.h.b16 %v301
  %v2972 = vunpack.c.l.b16 %v302
  %v2973 = vunpack.c.h.b16 %v302
  %v2974 = vunpack.c.l.b16 %v303
  %v2975 = vunpack.c.h.b16 %v303
  %v2976 = vunpack.c.l.b16 %v304
  %v2977 = vunpack.c.h.b16 %v304
  %v2978 = vunpack.c.l.b16 %v305
  %v2979 = vunpack.c.h.b16 %v305
  %v2980 = vunpack.c.l.b16 %v306
  %v2981 = vunpack.c.h.b16 %v306
  %v2982 = vunpack.c.l.b16 %v307
  %v2983 = vunpack.c.h.b16 %v307
  %v2984 = vunpack.c.l.b16 %v308
  %v2985 = vunpack.c.l.b16 %v309
  %v2986 = vunpack.c.h.b16 %v309
  %v2987 = vunpack.c.l.b16 %v310
  %v2988 = vunpack.c.h.b16 %v310
  %v2989 = vunpack.c.l.b16 %v311
  %v2990 = vunpack.c.h.b16 %v311
  %v2991 = vunpack.c.l.b16 %v312
  %v2992 = vunpack.c.h.b16 %v312
  %v2993 = vunpack.c.l.b16 %v313
  %v2994 = vunpack.c.h.b16 %v313
  %v2995 = vunpack.c.l.b16 %v314
  %v2996 = vunpack.c.h.b16 %v314
  %v2997 = vunpack.c.l.b16 %v315
  %v2998 = vunpack.c.h.b16 %v315
  %v2999 = vunpack.c.l.b16 %v316
  %v3000 = vunpack.c.h.b16 %v316
  %v3001 = vunpack.c.l.b16 %v317
  %v3002 = vunpack.c.h.b16 %v317
  %v3003 = vunpack.c.l.b16 %v318
  %v3004 = vunpack.c.h.b16 %v318
  %v3005 = vunpack.c.l.b16 %v319
  %v3006 = vunpack.c.h.b16 %v319
  %v3007 = vunpack.c.l.b16 %v320
  %v3008 = vunpack.c.h.b16 %v320
  %v3009 = vunpack.c.l.b16 %v321
  %v3010 = vunpack.c.h.b16 %v321
  %v3011 = vunpack.c.l.b16 %v322
  %v3012 = vunpack.c.h.b16 %v322
  %v3013 = vunpack.c.l.b16 %v323
  %v3014 = vunpack.c.h.b16 %v323
  %v3015 = vunpack.c.l.b16 %v324
  %v3016 = vunpack.c.h.b16 %v324
  %v3017 = vunpack.c.l.b16 %v325
  %v3018 = vunpack.c.h.b16 %v325
  %v3019 = vunpack.c.l.b16 %v326
  %v3020 = vunpack.c.h.b16 %v326
  %v3021 = vunpack.c.l.b16 %v327
  %v3022 = vunpack.c.h.b16 %v327
  %v3023 = vunpack.c.l.b16 %v328
  %v3024 = vunpack.c.h.b16 %v328
  %v3025 = vunpack.c.l.b16 %v329
  %v3026 = vunpack.c.l.b16 %v330
  %v3027 = vunpack.c.h.b16 %v330
  %v3028 = vunpack.c.l.b16 %v331
  %v3029 = vunpack.c.h.b16 %v331
  %v3030 = vunpack.c.l.b16 %v332
  %v3031 = vunpack.c.h.b16 %v332
  %v3032 = vunpack.c.l.b16 %v333
  %v3033 = vunpack.c.h.b16 %v333
  %v3034 = vunpack.c.l.b16 %v334
  %v3035 = vunpack.c.h.b16 %v334
  %v3036 = vunpack.c.l.b16 %v335
  %v3037 = vunpack.c.h.b16 %v335
  %v3038 = vunpack.c.l.b16 %v336
  %v3039 = vunpack.c.h.b16 %v336
  %v3040 = vunpack.c.l.b16 %v337
  %v3041 = vunpack.c.h.b16 %v337
  %v3042 = vunpack.c.l.b16 %v338
  %v3043 = vunpack.c.h.b16 %v338
  %v3044 = vunpack.c.l.b16 %v339
  %v3045 = vunpack.c.h.b16 %v339
  %v3046 = vunpack.c.l.b16 %v340
  %v3047 = vunpack.c.h.b16 %v340
  %v3048 = vunpack.c.l.b16 %v341
  %v3049 = vunpack.c.h.b16 %v341
  %v3050 = vunpack.c.l.b16 %v342
  %v3051 = vunpack.c.h.b16 %v342
  %v3052 = vunpack.c.l.b16 %v343
  %v3053 = vunpack.c.h.b16 %v343
  %v3054 = vunpack.c.l.b16 %v344
  %v3055 = vunpack.c.h.b16 %v344
  %v3056 = vunpack.c.l.b16 %v345
  %v3057 = vunpack.c.h.b16 %v345
  %v3058 = vunpack.c.l.b16 %v346
  %v3059 = vunpack.c.h.b16 %v346
  %v3060 = vunpack.c.l.b16 %v347
  %v3061 = vunpack.c.h.b16 %v347
  %v3062 = vunpack.c.l.b16 %v348
  %v3063 = vunpack.c.h.b16 %v348
  %v3064 = vunpack.c.l.b16 %v349
  %v3065 = vunpack.c.h.b16 %v349
  %v3066 = vunpack.c.l.b16 %v350
  %v3067 = vunpack.c.l.b16 %v351
  %v3068 = vunpack.c.h.b16 %v351
  %v3069 = vunpack.c.l.b16 %v352
  %v3070 = vunpack.c.h.b16 %v352
  %v3071 = vunpack.c.l.b16 %v353
  %v3072 = vunpack.c.h.b16 %v353
  %v3073 = vunpack.c.l.b16 %v354
  %v3074 = vunpack.c.h.b16 %v354
  %v3075 = vunpack.c.l.b16 %v355
  %v3076 = vunpack.c.h.b16 %v355
  %v3077 = vunpack.c.l.b16 %v356
  %v3078 = vunpack.c.h.b16 %v356
  %v3079 = vunpack.c.l.b16 %v357
  %v3080 = vunpack.c.h.b16 %v357
  %v3081 = vunpack.c.l.b16 %v358
  %v3082 = vunpack.c.h.b16 %v358
  %v3083 = vunpack.c.l.b16 %v359
  %v3084 = vunpack.c.h.b16 %v359
  %v3085 = vunpack.c.l.b16 %v360
  %v3086 = vunpack.c.h.b16 %v360
  %v3087 = vunpack.c.l.b16 %v361
  %v3088 = vunpack.c.h.b16 %v361
  %v3089 = vunpack.c.l.b16 %v362
  %v3090 = vunpack.c.h.b16 %v362
  %v3091 = vunpack.c.l.b16 %v363
  %v3092 = vunpack.c.h.b16 %v363
  %v3093 = vunpack.c.l.b16 %v364
  %v3094 = vunpack.c.h.b16 %v364
  %v3095 = vunpack.c.l.b16 %v365
  %v3096 = vunpack.c.h.b16 %v365
  %v3097 = vunpack.c.l.b16 %v366
  %v3098 = vunpack.c.h.b16 %v366
  %v3099 = vunpack.c.l.b16 %v367
  %v3100 = vunpack.c.h.b16 %v367
  %v3101 = vunpack.c.l.b16 %v368
  %v3102 = vunpack.c.h.b16 %v368
  %v3103 = vunpack.c.l.b16 %v369
  %v3104 = vunpack.c.h.b16 %v369
  %v3105 = vunpack.c.l.b16 %v370
  %v3106 = vunpack.c.h.b16 %v370
  %v3107 = vunpack.c.l.b16 %v371
  %v3108 = vunpack.c.l.b16 %v372
  %v3109 = vunpack.c.h.b16 %v372
  %v3110 = vunpack.c.l.b16 %v373
  %v3111 = vunpack.c.h.b16 %v373
  %v3112 = vunpack.c.l.b16 %v374
  %v3113 = vunpack.c.h.b16 %v374
  %v3114 = vunpack.c.l.b16 %v375
  %v3115 = vunpack.c.h.b16 %v375
  %v3116 = vunpack.c.l.b16 %v376
  %v3117 = vunpack.c.h.b16 %v376
  %v3118 = vunpack.c.l.b16 %v377
  %v3119 = vunpack.c.h.b16 %v377
  %v3120 = vunpack.c.l.b16 %v378
  %v3121 = vunpack.c.h.b16 %v378
  %v3122 = vunpack.c.l.b16 %v379
  %v3123 = vunpack.c.h.b16 %v379
  %v3124 = vunpack.c.l.b16 %v380
  %v3125 = vunpack.c.h.b16 %v380
  %v3126 = vunpack.c.l.b16 %v381
  %v3127 = vunpack.c.h.b16 %v381
  %v3128 = vunpack.c.l.b16 %v382
  %v3129 = vunpack.c.h.b16 %v382
  %v3130 = vunpack.c.l.b16 %v383
  %v3131 = vunpack.c.h.b16 %v383
  %v3132 = vunpack.c.l.b16 %v384
  %v3133 = vunpack.c.h.b16 %v384
  %v3134 = vunpack.c.l.b16 %v385
  %v3135 = vunpack.c.h.b16 %v385
  %v3136 = vunpack.c.l.b16 %v386
  %v3137 = vunpack.c.h.b16 %v386
  %v3138 = vunpack.c.l.b16 %v387
  %v3139 = vunpack.c.h.b16 %v387
  %v3140 = vunpack.c.l.b16 %v388
  %v3141 = vunpack.c.h.b16 %v388
  %v3142 = vunpack.c.l.b16 %v389
  %v3143 = vunpack.c.h.b16 %v389
  %v3144 = vunpack.c.l.b16 %v390
  %v3145 = vunpack.c.h.b16 %v390
  %v3146 = vunpack.c.l.b16 %v391
  %v3147 = vunpack.c.h.b16 %v391
  %v3148 = vunpack.c.l.b16 %v392
  %v3149 = vunpack.c.l.b16 %v393
  %v3150 = vunpack.c.h.b16 %v393
  %v3151 = vunpack.c.l.b16 %v394
  %v3152 = vunpack.c.h.b16 %v394
  %v3153 = vunpack.c.l.b16 %v395
  %v3154 = vunpack.c.h.b16 %v395
  %v3155 = vunpack.c.l.b16 %v396
  %v3156 = vunpack.c.h.b16 %v396
  %v3157 = vunpack.c.l.b16 %v397
  %v3158 = vunpack.c.h.b16 %v397
  %v3159 = vunpack.c.l.b16 %v398
  %v3160 = vunpack.c.h.b16 %v398
  %v3161 = vunpack.c.l.b16 %v399
  %v3162 = vunpack.c.h.b16 %v399
  %v3163 = vunpack.c.l.b16 %v400
  %v3164 = vunpack.c.h.b16 %v400
  %v3165 = vunpack.c.l.b16 %v401
  %v3166 = vunpack.c.h.b16 %v401
  %v3167 = vunpack.c.l.b16 %v402
  %v3168 = vunpack.c.h.b16 %v402
  %v3169 = vunpack.c.l.b16 %v403
  %v3170 = vunpack.c.h.b16 %v403
  %v3171 = vunpack.c.l.b16 %v404
  %v3172 = vunpack.c.h.b16 %v404
  %v3173 = vunpack.c.l.b16 %v405
  %v3174 = vunpack.c.h.b16 %v405
  %v3175 = vunpack.c.l.b16 %v406
  %v3176 = vunpack.c.h.b16 %v406
  %v3177 = vunpack.c.l.b16 %v407
  %v3178 = vunpack.c.h.b16 %v407
  %v3179 = vunpack.c.l.b16 %v408
  %v3180 = vunpack.c.h.b16 %v408
  %v3181 = vunpack.c.l.b16 %v409
  %v3182 = vunpack.c.h.b16 %v409
  %v3183 = vunpack.c.l.b16 %v410
  %v3184 = vunpack.c.h.b16 %v410
  %v3185 = vunpack.c.l.b16 %v411
  %v3186 = vunpack.c.h.b16 %v411
  %v3187 = vunpack.c.l.b16 %v412
  %v3188 = vunpack.c.h.b16 %v412
  %v3189 = vunpack.c.l.b16 %v413
  %v3190 = vunpack.c.l.b16 %v414
  %v3191 = vunpack.c.h.b16 %v414
  %v3192 = vunpack.c.l.b16 %v415
  %v3193 = vunpack.c.h.b16 %v415
  %v3194 = vunpack.c.l.b16 %v416
  %v3195 = vunpack.c.h.b16 %v416
  %v3196 = vunpack.c.l.b16 %v417
  %v3197 = vunpack.c.h.b16 %v417
  %v3198 = vunpack.c.l.b16 %v418
  %v3199 = vunpack.c.h.b16 %v418
  %v3200 = vunpack.c.l.b16 %v419
  %v3201 = vunpack.c.h.b16 %v419
  %v3202 = vunpack.c.l.b16 %v420
  %v3203 = vunpack.c.h.b16 %v420
  %v3204 = vunpack.c.l.b16 %v421
  %v3205 = vunpack.c.h.b16 %v421
  %v3206 = vunpack.c.l.b16 %v422
  %v3207 = vunpack.c.h.b16 %v422
  %v3208 = vunpack.c.l.b16 %v423
  %v3209 = vunpack.c.h.b16 %v423
  %v3210 = vunpack.c.l.b16 %v424
  %v3211 = vunpack.c.h.b16 %v424
  %v3212 = vunpack.c.l.b16 %v425
  %v3213 = vunpack.c.h.b16 %v425
  %v3214 = vunpack.c.l.b16 %v426
  %v3215 = vunpack.c.h.b16 %v426
  %v3216 = vunpack.c.l.b16 %v427
  %v3217 = vunpack.c.h.b16 %v427
  %v3218 = vunpack.c.l.b16 %v428
  %v3219 = vunpack.c.h.b16 %v428
  %v3220 = vunpack.c.l.b16 %v429
  %v3221 = vunpack.c.h.b16 %v429
  %v3222 = vunpack.c.l.b16 %v430
  %v3223 = vunpack.c.h.b16 %v430
  %v3224 = vunpack.c.l.b16 %v431
  %v3225 = vunpack.c.h.b16 %v431
  %v3226 = vunpack.c.l.b16 %v432
  %v3227 = vunpack.c.h.b16 %v432
  %v3228 = vunpack.c.l.b16 %v433
  %v3229 = vunpack.c.h.b16 %v433
  %v3230 = vunpack.c.l.b16 %v434
  %v3231 = vunpack.c.l.b16 %v435
  %v3232 = vunpack.c.h.b16 %v435
  %v3233 = vunpack.c.l.b16 %v436
  %v3234 = vunpack.c.h.b16 %v436
  %v3235 = vunpack.c.l.b16 %v437
  %v3236 = vunpack.c.h.b16 %v437
  %v3237 = vunpack.c.l.b16 %v438
  %v3238 = vunpack.c.h.b16 %v438
  %v3239 = vunpack.c.l.b16 %v439
  %v3240 = vunpack.c.h.b16 %v439
  %v3241 = vunpack.c.l.b16 %v440
  %v3242 = vunpack.c.h.b16 %v440
  %v3243 = vunpack.c.l.b16 %v441
  %v3244 = vunpack.c.h.b16 %v441
  %v3245 = vunpack.c.l.b16 %v442
  %v3246 = vunpack.c.h.b16 %v442
  %v3247 = vunpack.c.l.b16 %v443
  %v3248 = vunpack.c.h.b16 %v443
  %v3249 = vunpack.c.l.b16 %v444
  %v3250 = vunpack.c.h.b16 %v444
  %v3251 = vunpack.c.l.b16 %v445
  %v3252 = vunpack.c.h.b16 %v445
  %v3253 = vunpack.c.l.b16 %v446
  %v3254 = vunpack.c.h.b16 %v446
  %v3255 = vunpack.c.l.b16 %v447
  %v3256 = vunpack.c.h.b16 %v447
  %v3257 = vunpack.c.l.b16 %v448
  %v3258 = vunpack.c.h.b16 %v448
  %v3259 = vunpack.c.l.b16 %v449
  %v3260 = vunpack.c.h.b16 %v449
  %v3261 = vunpack.c.l.b16 %v450
  %v3262 = vunpack.c.h.b16 %v450
  %v3263 = vunpack.c.l.b16 %v451
  %v3264 = vunpack.c.h.b16 %v451
  %v3265 = vunpack.c.l.b16 %v452
  %v3266 = vunpack.c.h.b16 %v452
  %v3267 = vunpack.c.l.b16 %v453
  %v3268 = vunpack.c.h.b16 %v453
  %v3269 = vunpack.c.l.b16 %v454
  %v3270 = vunpack.c.h.b16 %v454
  %v3271 = vunpack.c.l.b16 %v455
  %v3272 = vunpack.c.l.b16 %v456
  %v3273 = vunpack.c.h.b16 %v456
  %v3274 = vunpack.c.l.b16 %v457
  %v3275 = vunpack.c.h.b16 %v457
  %v3276 = vunpack.c.l.b16 %v458
  %v3277 = vunpack.c.h.b16 %v458
  %v3278 = vunpack.c.l.b16 %v459
  %v3279 = vunpack.c.h.b16 %v459
  %v3280 = vunpack.c.l.b16 %v460
  %v3281 = vunpack.c.h.b16 %v460
  %v3282 = vunpack.c.l.b16 %v461
  %v3283 = vunpack.c.h.b16 %v461
  %v3284 = vunpack.c.l.b16 %v462
  %v3285 = vunpack.c.h.b16 %v462
  %v3286 = vunpack.c.l.b16 %v463
  %v3287 = vunpack.c.h.b16 %v463
  %v3288 = vunpack.c.l.b16 %v464
  %v3289 = vunpack.c.h.b16 %v464
  %v3290 = vunpack.c.l.b16 %v465
  %v3291 = vunpack.c.h.b16 %v465
  %v3292 = vunpack.c.l.b16 %v466
  %v3293 = vunpack.c.h.b16 %v466
  %v3294 = vunpack.c.l.b16 %v467
  %v3295 = vunpack.c.h.b16 %v467
  %v3296 = vunpack.c.l.b16 %v468
  %v3297 = vunpack.c.h.b16 %v468
  %v3298 = vunpack.c.l.b16 %v469
  %v3299 = vunpack.c.h.b16 %v469
  %v3300 = vunpack.c.l.b16 %v470
  %v3301 = vunpack.c.h.b16 %v470
  %v3302 = vunpack.c.l.b16 %v471
  %v3303 = vunpack.c.h.b16 %v471
  %v3304 = vunpack.c.l.b16 %v472
  %v3305 = vunpack.c.h.b16 %v472
  %v3306 = vunpack.c.l.b16 %v473
  %v3307 = vunpack.c.h.b16 %v473
  %v3308 = vunpack.c.l.b16 %v474
  %v3309 = vunpack.c.h.b16 %v474
  %v3310 = vunpack.c.l.b16 %v475
  %v3311 = vunpack.c.h.b16 %v475
  %v3312 = vunpack.c.l.b16 %v476
  %v3313 = vunpack.c.l.b16 %v477
  %v3314 = vunpack.c.h.b16 %v477
  %v3315 = vunpack.c.l.b16 %v478
  %v3316 = vunpack.c.h.b16 %v478
  %v3317 = vunpack.c.l.b16 %v479
  %v3318 = vunpack.c.h.b16 %v479
  %v3319 = vunpack.c.l.b16 %v480
  %v3320 = vunpack.c.h.b16 %v480
  %v3321 = vunpack.c.l.b16 %v481
  %v3322 = vunpack.c.h.b16 %v481
  %v3323 = vunpack.c.l.b16 %v482
  %v3324 = vunpack.c.h.b16 %v482
  %v3325 = vunpack.c.l.b16 %v483
  %v3326 = vunpack.c.h.b16 %v483
  %v3327 = vunpack.c.l.b16 %v484
  %v3328 = vunpack.c.h.b16 %v484
  %v3329 = vunpack.c.l.b16 %v485
  %v3330 = vunpack.c.h.b16 %v485
  %v3331 = vunpack.c.l.b16 %v486
  %v3332 = vunpack.c.h.b16 %v486
  %v3333 = vunpack.c.l.b16 %v487
  %v3334 = vunpack.c.h.b16 %v487
  %v3335 = vunpack.c.l.b16 %v488
  %v3336 = vunpack.c.h.b16 %v488
  %v3337 = vunpack.c.l.b16 %v489
  %v3338 = vunpack.c.h.b16 %v489
  %v3339 = vunpack.c.l.b16 %v490
  %v3340 = vunpack.c.h.b16 %v490
  %v3341 = vunpack.c.l.b16 %v491
  %v3342 = vunpack.c.h.b16 %v491
  %v3343 = vunpack.c.l.b16 %v492
  %v3344 = vunpack.c.h.b16 %v492
  %v3345 = vunpack.c.l.b16 %v493
  %v3346 = vunpack.c.h.b16 %v493
  %v3347 = vunpack.c.l.b16 %v494
  %v3348 = vunpack.c.h.b16 %v494
  %v3349 = vunpack.c.l.b16 %v495
  %v3350 = vunpack.c.h.b16 %v495
  %v3351 = vunpack.c.l.b16 %v496
  %v3352 = vunpack.c.h.b16 %v496
  %v3353 = vunpack.c.l.b16 %v497
  %v3354 = vunpack.c.l.b16 %v498
  %v3355 = vunpack.c.h.b16 %v498
  %v3356 = vunpack.c.l.b16 %v499
  %v3357 = vunpack.c.h.b16 %v499
  %v3358 = vunpack.c.l.b16 %v500
  %v3359 = vunpack.c.h.b16 %v500
  %v3360 = vunpack.c.l.b16 %v501
  %v3361 = vunpack.c.h.b16 %v501
  %v3362 = vunpack.c.l.b16 %v502
  %v3363 = vunpack.c.h.b16 %v502
  %v3364 = vunpack.c.l.b16 %v503
  %v3365 = vunpack.c.h.b16 %v503
  %v3366 = vunpack.c.l.b16 %v504
  %v3367 = vunpack.c.h.b16 %v504
  %v3368 = vunpack.c.l.b16 %v505
  %v3369 = vunpack.c.h.b16 %v505
  %v3370 = vunpack.c.l.b16 %v506
  %v3371 = vunpack.c.h.b16 %v506
  %v3372 = vunpack.c.l.b16 %v507
  %v3373 = vunpack.c.h.b16 %v507
  %v3374 = vunpack.c.l.b16 %v508
  %v3375 = vunpack.c.h.b16 %v508
  %v3376 = vunpack.c.l.b16 %v509
  %v3377 = vunpack.c.h.b16 %v509
  %v3378 = vunpack.c.l.b16 %v510
  %v3379 = vunpack.c.h.b16 %v510
  %v3380 = vunpack.c.l.b16 %v511
  %v3381 = vunpack.c.h.b16 %v511
  %v3382 = vunpack.c.l.b16 %v512
  %v3383 = vunpack.c.h.b16 %v512
  %v3384 = vunpack.c.l.b16 %v513
  %v3385 = vunpack.c.h.b16 %v513
  %v3386 = vunpack.c.l.b16 %v514
  %v3387 = vunpack.c.h.b16 %v514
  %v3388 = vunpack.c.l.b16 %v515
  %v3389 = vunpack.c.h.b16 %v515
  %v3390 = vunpack.c.l.b16 %v516
  %v3391 = vunpack.c.h.b16 %v516
  %v3392 = vunpack.c.l.b16 %v517
  %v3393 = vunpack.c.h.b16 %v517
  %v3394 = vunpack.c.l.b16 %v518
  %v3395 = vunpack.c.l.b16 %v519
  %v3396 = vunpack.c.h.b16 %v519
  %v3397 = vunpack.c.l.b16 %v520
  %v3398 = vunpack.c.h.b16 %v520
  %v3399 = vunpack.c.l.b16 %v521
  %v3400 = vunpack.c.h.b16 %v521
  %v3401 = vunpack.c.l.b16 %v522
  %v3402 = vunpack.c.h.b16 %v522
  %v3403 = vunpack.c.l.b16 %v523
  %v3404 = vunpack.c.h.b16 %v523
  %v3405 = vunpack.c.l.b16 %v524
  %v3406 = vunpack.c.h.b16 %v524
  %v3407 = vunpack.c.l.b16 %v525
  %v3408 = vunpack.c.h.b16 %v525
  %v3409 = vunpack.c.l.b16 %v526
  %v3410 = vunpack.c.h.b16 %v526
  %v3411 = vunpack.c.l.b16 %v527
  %v3412 = vunpack.c.h.b16 %v527
  %v3413 = vunpack.c.l.b16 %v528
  %v3414 = vunpack.c.h.b16 %v528
  %v3415 = vunpack.c.l.b16 %v529
  %v3416 = vunpack.c.h.b16 %v529
  %v3417 = vunpack.c.l.b16 %v530
  %v3418 = vunpack.c.h.b16 %v530
  %v3419 = vunpack.c.l.b16 %v531
  %v3420 = vunpack.c.h.b16 %v531
  %v3421 = vunpack.c.l.b16 %v532
  %v3422 = vunpack.c.h.b16 %v532
  %v3423 = vunpack.c.l.b16 %v533
  %v3424 = vunpack.c.h.b16 %v533
  %v3425 = vunpack.c.l.b16 %v534
  %v3426 = vunpack.c.h.b16 %v534
  %v3427 = vunpack.c.l.b16 %v535
  %v3428 = vunpack.c.h.b16 %v535
  %v3429 = vunpack.c.l.b16 %v536
  %v3430 = vunpack.c.h.b16 %v536
  %v3431 = vunpack.c.l.b16 %v537
  %v3432 = vunpack.c.h.b16 %v537
  %v3433 = vunpack.c.l.b16 %v538
  %v3434 = vunpack.c.h.b16 %v538
  %v3435 = vunpack.c.l.b16 %v539
  %v3436 = vunpack.c.l.b16 %v540
  %v3437 = vunpack.c.h.b16 %v540
  %v3438 = vunpack.c.l.b16 %v541
  %v3439 = vunpack.c.h.b16 %v541
  %v3440 = vunpack.c.l.b16 %v542
  %v3441 = vunpack.c.h.b16 %v542
  %v3442 = vunpack.c.l.b16 %v543
  %v3443 = vunpack.c.h.b16 %v543
  %v3444 = vunpack.c.l.b16 %v544
  %v3445 = vunpack.c.h.b16 %v544
  %v3446 = vunpack.c.l.b16 %v545
  %v3447 = vunpack.c.h.b16 %v545
  %v3448 = vunpack.c.l.b16 %v546
  %v3449 = vunpack.c.h.b16 %v546
  %v3450 = vunpack.c.l.b16 %v547
  %v3451 = vunpack.c.h.b16 %v547
  %v3452 = vunpack.c.l.b16 %v548
  %v3453 = vunpack.c.h.b16 %v548
  %v3454 = vunpack.c.l.b16 %v549
  %v3455 = vunpack.c.h.b16 %v549
  %v3456 = vunpack.c.l.b16 %v550
  %v3457 = vunpack.c.h.b16 %v550
  %v3458 = vunpack.c.l.b16 %v551
  %v3459 = vunpack.c.h.b16 %v551
  %v3460 = vunpack.c.l.b16 %v552
  %v3461 = vunpack.c.h.b16 %v552
  %v3462 = vunpack.c.l.b16 %v553
  %v3463 = vunpack.c.h.b16 %v553
  %v3464 = vunpack.c.l.b16 %v554
  %v3465 = vunpack.c.h.b16 %v554
  %v3466 = vunpack.c.l.b16 %v555
  %v3467 = vunpack.c.h.b16 %v555
  %v3468 = vunpack.c.l.b16 %v556
  %v3469 = vunpack.c.h.b16 %v556
  %v3470 = vunpack.c.l.b16 %v557
  %v3471 = vunpack.c.h.b16 %v557
  %v3472 = vunpack.c.l.b16 %v558
  %v3473 = vunpack.c.h.b16 %v558
  %v3474 = vunpack.c.l.b16 %v559
  %v3475 = vunpack.c.h.b16 %v559
  %v3476 = vunpack.c.l.b16 %v560
  %v3477 = vunpack.c.l.b16 %v561
  %v3478 = vunpack.c.h.b16 %v561
  %v3479 = vunpack.c.l.b16 %v562
  %v3480 = vunpack.c.h.b16 %v562
  %v3481 = vunpack.c.l.b16 %v563
  %v3482 = vunpack.c.h.b16 %v563
  %v3483 = vunpack.c.l.b16 %v564
  %v3484 = vunpack.c.h.b16 %v564
  %v3485 = vunpack.c.l.b16 %v565
  %v3486 = vunpack.c.h.b16 %v565
  %v3487 = vunpack.c.l.b16 %v566
  %v3488 = vunpack.c.h.b16 %v566
  %v3489 = vunpack.c.l.b16 %v567
  %v3490 = vunpack.c.h.b16 %v567
  %v3491 = vunpack.c.l.b16 %v568
  %v3492 = vunpack.c.h.b16 %v568
  %v3493 = vunpack.c.l.b16 %v569
  %v3494 = vunpack.c.h.b16 %v569
  %v3495 = vunpack.c.l.b16 %v570
  %v3496 = vunpack.c.h.b16 %v570
  %v3497 = vunpack.c.l.b16 %v571
  %v3498 = vunpack.c.h.b16 %v571
  %v3499 = vunpack.c.l.b16 %v572
  %v3500 = vunpack.c.h.b16 %v572
  %v3501 = vunpack.c.l.b16 %v573
  %v3502 = vunpack.c.h.b16 %v573
  %v3503 = vunpack.c.l.b16 %v574
  %v3504 = vunpack.c.h.b16 %v574
  %v3505 = vunpack.c.l.b16 %v575
  %v3506 = vunpack.c.h.b16 %v575
  %v3507 = vunpack.c.l.b16 %v576
  %v3508 = vunpack.c.h.b16 %v576
  %v3509 = vunpack.c.l.b16 %v577
  %v3510 = vunpack.c.h.b16 %v577
  %v3511 = vunpack.c.l.b16 %v578
  %v3512 = vunpack.c.h.b16 %v578
  %v3513 = vunpack.c.l.b16 %v579
  %v3514 = vunpack.c.h.b16 %v579
  %v3515 = vunpack.c.l.b16 %v580
  %v3516 = vunpack.c.h.b16 %v580
  %v3517 = vunpack.c.l.b16 %v581
  %v3518 = vunpack.c.l.b16 %v582
  %v3519 = vunpack.c.h.b16 %v582
  %v3520 = vunpack.c.l.b16 %v583
  %v3521 = vunpack.c.h.b16 %v583
  %v3522 = vunpack.c.l.b16 %v584
  %v3523 = vunpack.c.h.b16 %v584
  %v3524 = vunpack.c.l.b16 %v585
  %v3525 = vunpack.c.h.b16 %v585
  %v3526 = vunpack.c.l.b16 %v586
  %v3527 = vunpack.c.h.b16 %v586
  %v3528 = vunpack.c.l.b16 %v587
  %v3529 = vunpack.c.h.b16 %v587
  %v3530 = vunpack.c.l.b16 %v588
  %v3531 = vunpack.c.h.b16 %v588
  %v3532 = vunpack.c.l.b16 %v589
  %v3533 = vunpack.c.h.b16 %v589
  %v3534 = vunpack.c.l.b16 %v590
  %v3535 = vunpack.c.h.b16 %v590
  %v3536 = vunpack.c.l.b16 %v591
  %v3537 = vunpack.c.h.b16 %v591
  %v3538 = vunpack.c.l.b16 %v592
  %v3539 = vunpack.c.h.b16 %v592
  %v3540 = vunpack.c.l.b16 %v593
  %v3541 = vunpack.c.h.b16 %v593
  %v3542 = vunpack.c.l.b16 %v594
  %v3543 = vunpack.c.h.b16 %v594
  %v3544 = vunpack.c.l.b16 %v595
  %v3545 = vunpack.c.h.b16 %v595
  %v3546 = vunpack.c.l.b16 %v596
  %v3547 = vunpack.c.h.b16 %v596
  %v3548 = vunpack.c.l.b16 %v597
  %v3549 = vunpack.c.h.b16 %v597
  %v3550 = vunpack.c.l.b16 %v598
  %v3551 = vunpack.c.h.b16 %v598
  %v3552 = vunpack.c.l.b16 %v599
  %v3553 = vunpack.c.h.b16 %v599
  %v3554 = vunpack.c.l.b16 %v600
  %v3555 = vunpack.c.h.b16 %v600
  %v3556 = vunpack.c.l.b16 %v601
  %v3557 = vunpack.c.h.b16 %v601
  %v3558 = vunpack.c.l.b16 %v602
  %v3559 = vunpack.c.l.b16 %v603
  %v3560 = vunpack.c.h.b16 %v603
  %v3561 = vunpack.c.l.b16 %v604
  %v3562 = vunpack.c.h.b16 %v604
  %v3563 = vunpack.c.l.b16 %v605
  %v3564 = vunpack.c.h.b16 %v605
  %v3565 = vunpack.c.l.b16 %v606
  %v3566 = vunpack.c.h.b16 %v606
  %v3567 = vunpack.c.l.b16 %v607
  %v3568 = vunpack.c.h.b16 %v607
  %v3569 = vunpack.c.l.b16 %v608
  %v3570 = vunpack.c.h.b16 %v608
  %v3571 = vunpack.c.l.b16 %v609
  %v3572 = vunpack.c.h.b16 %v609
  %v3573 = vunpack.c.l.b16 %v610
  %v3574 = vunpack.c.h.b16 %v610
  %v3575 = vunpack.c.l.b16 %v611
  %v3576 = vunpack.c.h.b16 %v611
  %v3577 = vunpack.c.l.b16 %v612
  %v3578 = vunpack.c.h.b16 %v612
  %v3579 = vunpack.c.l.b16 %v613
  %v3580 = vunpack.c.h.b16 %v613
  %v3581 = vunpack.c.l.b16 %v614
  %v3582 = vunpack.c.h.b16 %v614
  %v3583 = vunpack.c.l.b16 %v615
  %v3584 = vunpack.c.h.b16 %v615
  %v3585 = vunpack.c.l.b16 %v616
  %v3586 = vunpack.c.h.b16 %v616
  %v3587 = vunpack.c.l.b16 %v617
  %v3588 = vunpack.c.h.b16 %v617
  %v3589 = vunpack.c.l.b16 %v618
  %v3590 = vunpack.c.h.b16 %v618
  %v3591 = vunpack.c.l.b16 %v619
  %v3592 = vunpack.c.h.b16 %v619
  %v3593 = vunpack.c.l.b16 %v620
  %v3594 = vunpack.c.h.b16 %v620
  %v3595 = vunpack.c.l.b16 %v621
  %v3596 = vunpack.c.h.b16 %v621
  %v3597 = vunpack.c.l.b16 %v622
  %v3598 = vunpack.c.h.b16 %v622
  %v3599 = vunpack.c.l.b16 %v623
  %v3600 = vunpack.c.l.b16 %v624
  %v3601 = vunpack.c.h.b16 %v624
  %v3602 = vunpack.c.l.b16 %v625
  %v3603 = vunpack.c.h.b16 %v625
  %v3604 = vunpack.c.l.b16 %v626
  %v3605 = vunpack.c.h.b16 %v626
  %v3606 = vunpack.c.l.b16 %v627
  %v3607 = vunpack.c.h.b16 %v627
  %v3608 = vunpack.c.l.b16 %v628
  %v3609 = vunpack.c.h.b16 %v628
  %v3610 = vunpack.c.l.b16 %v629
  %v3611 = vunpack.c.h.b16 %v629
  %v3612 = vunpack.c.l.b16 %v630
  %v3613 = vunpack.c.h.b16 %v630
  %v3614 = vunpack.c.l.b16 %v631
  %v3615 = vunpack.c.h.b16 %v631
  %v3616 = vunpack.c.l.b16 %v632
  %v3617 = vunpack.c.h.b16 %v632
  %v3618 = vunpack.c.l.b16 %v633
  %v3619 = vunpack.c.h.b16 %v633
  %v3620 = vunpack.c.l.b16 %v634
  %v3621 = vunpack.c.h.b16 %v634
  %v3622 = vunpack.c.l.b16 %v635
  %v3623 = vunpack.c.h.b16 %v635
  %v3624 = vunpack.c.l.b16 %v636
  %v3625 = vunpack.c.h.b16 %v636
  %v3626 = vunpack.c.l.b16 %v637
  %v3627 = vunpack.c.h.b16 %v637
  %v3628 = vunpack.c.l.b16 %v638
  %v3629 = vunpack.c.h.b16 %v638
  %v3630 = vunpack.c.l.b16 %v639
  %v3631 = vunpack.c.h.b16 %v639
  %v3632 = vunpack.c.l.b16 %v640
  %v3633 = vunpack.c.h.b16 %v640
  %v3634 = vunpack.c.l.b16 %v641
  %v3635 = vunpack.c.h.b16 %v641
  %v3636 = vunpack.c.l.b16 %v642
  %v3637 = vunpack.c.h.b16 %v642
  %v3638 = vunpack.c.l.b16 %v643
  %v3639 = vunpack.c.h.b16 %v643
  %v3640 = vunpack.c.l.b16 %v644
  %v3641 = vunpack.c.l.b16 %v645
  %v3642 = vunpack.c.h.b16 %v645
  %v3643 = vunpack.c.l.b16 %v646
  %v3644 = vunpack.c.h.b16 %v646
  %v3645 = vunpack.c.l.b16 %v647
  %v3646 = vunpack.c.h.b16 %v647
  %v3647 = vunpack.c.l.b16 %v648
  %v3648 = vunpack.c.h.b16 %v648
  %v3649 = vunpack.c.l.b16 %v649
  %v3650 = vunpack.c.h.b16 %v649
  %v3651 = vunpack.c.l.b16 %v650
  %v3652 = vunpack.c.h.b16 %v650
  %v3653 = vunpack.c.l.b16 %v651
  %v3654 = vunpack.c.h.b16 %v651
  %v3655 = vunpack.c.l.b16 %v652
  %v3656 = vunpack.c.h.b16 %v652
  %v3657 = vunpack.c.l.b16 %v653
  %v3658 = vunpack.c.h.b16 %v653
  %v3659 = vunpack.c.l.b16 %v654
  %v3660 = vunpack.c.h.b16 %v654
  %v3661 = vunpack.c.l.b16 %v655
  %v3662 = vunpack.c.h.b16 %v655
  %v3663 = vunpack.c.l.b16 %v656
  %v3664 = vunpack.c.h.b16 %v656
  %v3665 = vunpack.c.l.b16 %v657
  %v3666 = vunpack.c.h.b16 %v657
  %v3667 = vunpack.c.l.b16 %v658
  %v3668 = vunpack.c.h.b16 %v658
  %v3669 = vunpack.c.l.b16 %v659
  %v3670 = vunpack.c.h.b16 %v659
  %v3671 = vunpack.c.l.b16 %v660
  %v3672 = vunpack.c.h.b16 %v660
  %v3673 = vunpack.c.l.b16 %v661
  %v3674 = vunpack.c.h.b16 %v661
  %v3675 = vunpack.c.l.b16 %v662
  %v3676 = vunpack.c.h.b16 %v662
  %v3677 = vunpack.c.l.b16 %v663
  %v3678 = vunpack.c.h.b16 %v663
  %v3679 = vunpack.c.l.b16 %v664
  %v3680 = vunpack.c.h.b16 %v664
  %v3681 = vunpack.c.l.b16 %v665
  %v3682 = vunpack.c.l.b16 %v666
  %v3683 = vunpack.c.h.b16 %v666
  %v3684 = vunpack.c.l.b16 %v667
  %v3685 = vunpack.c.h.b16 %v667
  %v3686 = vunpack.c.l.b16 %v668
  %v3687 = vunpack.c.h.b16 %v668
  %v3688 = vunpack.c.l.b16 %v669
  %v3689 = vunpack.c.h.b16 %v669
  %v3690 = vunpack.c.l.b16 %v670
  %v3691 = vunpack.c.h.b16 %v670
  %v3692 = vunpack.c.l.b16 %v671
  %v3693 = vunpack.c.h.b16 %v671
  %v3694 = vunpack.c.l.b16 %v672
  %v3695 = vunpack.c.h.b16 %v672
  %v3696 = vunpack.c.l.b16 %v673
  %v3697 = vunpack.c.h.b16 %v673
  %v3698 = vunpack.c.l.b16 %v674
  %v3699 = vunpack.c.h.b16 %v674
  %v3700 = vunpack.c.l.b16 %v675
  %v3701 = vunpack.c.h.b16 %v675
  %v3702 = vunpack.c.l.b16 %v676
  %v3703 = vunpack.c.h.b16 %v676
  %v3704 = vunpack.c.l.b16 %v677
  %v3705 = vunpack.c.h.b16 %v677
  %v3706 = vunpack.c.l.b16 %v678
  %v3707 = vunpack.c.h.b16 %v678
  %v3708 = vunpack.c.l.b16 %v679
  %v3709 = vunpack.c.h.b16 %v679
  %v3710 = vunpack.c.l.b16 %v680
  %v3711 = vunpack.c.h.b16 %v680
  %v3712 = vunpack.c.l.b16 %v681
  %v3713 = vunpack.c.h.b16 %v681
  %v3714 = vunpack.c.l.b16 %v682
  %v3715 = vunpack.c.h.b16 %v682
  %v3716 = vunpack.c.l.b16 %v683
  %v3717 = vunpack.c.h.b16 %v683
  %v3718 = vunpack.c.l.b16 %v684
  %v3719 = vunpack.c.h.b16 %v684
  %v3720 = vunpack.c.l.b16 %v685
  %v3721 = vunpack.c.h.b16 %v685
  %v3722 = vunpack.c.l.b16 %v686
  %v3723 = vunpack.c.l.b16 %v687
  %v3724 = vunpack.c.h.b16 %v687
  %v3725 = vunpack.c.l.b16 %v688
  %v3726 = vunpack.c.h.b16 %v688
  %v3727 = vunpack.c.l.b16 %v689
  %v3728 = vunpack.c.h.b16 %v689
  %v3729 = vunpack.c.l.b16 %v690
  %v3730 = vunpack.c.h.b16 %v690
  %v3731 = vunpack.c.l.b16 %v691
  %v3732 = vunpack.c.h.b16 %v691
  %v3733 = vunpack.c.l.b16 %v692
  %v3734 = vunpack.c.h.b16 %v692
  %v3735 = vunpack.c.l.b16 %v693
  %v3736 = vunpack.c.h.b16 %v693
  %v3737 = vunpack.c.l.b16 %v694
  %v3738 = vunpack.c.h.b16 %v694
  %v3739 = vunpack.c.l.b16 %v695
  %v3740 = vunpack.c.h.b16 %v695
  %v3741 = vunpack.c.l.b16 %v696
  %v3742 = vunpack.c.h.b16 %v696
  %v3743 = vunpack.c.l.b16 %v697
  %v3744 = vunpack.c.h.b16 %v697
  %v3745 = vunpack.c.l.b16 %v698
  %v3746 = vunpack.c.h.b16 %v698
  %v3747 = vunpack.c.l.b16 %v699
  %v3748 = vunpack.c.h.b16 %v699
  %v3749 = vunpack.c.l.b16 %v700
  %v3750 = vunpack.c.h.b16 %v700
  %v3751 = vunpack.c.l.b16 %v701
  %v3752 = vunpack.c.h.b16 %v701
  %v3753 = vunpack.c.l.b16 %v702
  %v3754 = vunpack.c.h.b16 %v702
  %v3755 = vunpack.c.l.b16 %v703
  %v3756 = vunpack.c.h.b16 %v703
  %v3757 = vunpack.c.l.b16 %v704
  %v3758 = vunpack.c.h.b16 %v704
  %v3759 = vunpack.c.l.b16 %v705
  %v3760 = vunpack.c.h.b16 %v705
  %v3761 = vunpack.c.l.b16 %v706
  %v3762 = vunpack.c.h.b16 %v706
  %v3763 = vunpack.c.l.b16 %v707
  %v3764 = vunpack.c.l.b16 %v708
  %v3765 = vunpack.c.h.b16 %v708
  %v3766 = vunpack.c.l.b16 %v709
  %v3767 = vunpack.c.h.b16 %v709
  %v3768 = vunpack.c.l.b16 %v710
  %v3769 = vunpack.c.h.b16 %v710
  %v3770 = vunpack.c.l.b16 %v711
  %v3771 = vunpack.c.h.b16 %v711
  %v3772 = vunpack.c.l.b16 %v712
  %v3773 = vunpack.c.h.b16 %v712
  %v3774 = vunpack.c.l.b16 %v713
  %v3775 = vunpack.c.h.b16 %v713
  %v3776 = vunpack.c.l.b16 %v714
  %v3777 = vunpack.c.h.b16 %v714
  %v3778 = vunpack.c.l.b16 %v715
  %v3779 = vunpack.c.h.b16 %v715
  %v3780 = vunpack.c.l.b16 %v716
  %v3781 = vunpack.c.h.b16 %v716
  %v3782 = vunpack.c.l.b16 %v717
  %v3783 = vunpack.c.h.b16 %v717
  %v3784 = vunpack.c.l.b16 %v718
  %v3785 = vunpack.c.h.b16 %v718
  %v3786 = vunpack.c.l.b16 %v719
  %v3787 = vunpack.c.h.b16 %v719
  %v3788 = vunpack.c.l.b16 %v720
  %v3789 = vunpack.c.h.b16 %v720
  %v3790 = vunpack.c.l.b16 %v721
  %v3791 = vunpack.c.h.b16 %v721
  %v3792 = vunpack.c.l.b16 %v722
  %v3793 = vunpack.c.h.b16 %v722
  %v3794 = vunpack.c.l.b16 %v723
  %v3795 = vunpack.c.h.b16 %v723
  %v3796 = vunpack.c.l.b16 %v724
  %v3797 = vunpack.c.h.b16 %v724
  %v3798 = vunpack.c.l.b16 %v725
  %v3799 = vunpack.c.h.b16 %v725
  %v3800 = vunpack.c.l.b16 %v726
  %v3801 = vunpack.c.h.b16 %v726
  %v3802 = vunpack.c.l.b16 %v727
  %v3803 = vunpack.c.h.b16 %v727
  %v3804 = vunpack.c.l.b16 %v728
  %v3805 = vunpack.c.l.b16 %v729
  %v3806 = vunpack.c.h.b16 %v729
  %v3807 = vunpack.c.l.b16 %v730
  %v3808 = vunpack.c.h.b16 %v730
  %v3809 = vunpack.c.l.b16 %v731
  %v3810 = vunpack.c.h.b16 %v731
  %v3811 = vunpack.c.l.b16 %v732
  %v3812 = vunpack.c.h.b16 %v732
  %v3813 = vunpack.c.l.b16 %v733
  %v3814 = vunpack.c.h.b16 %v733
  %v3815 = vunpack.c.l.b16 %v734
  %v3816 = vunpack.c.h.b16 %v734
  %v3817 = vunpack.c.l.b16 %v735
  %v3818 = vunpack.c.h.b16 %v735
  %v3819 = vunpack.c.l.b16 %v736
  %v3820 = vunpack.c.h.b16 %v736
  %v3821 = vunpack.c.l.b16 %v737
  %v3822 = vunpack.c.h.b16 %v737
  %v3823 = vunpack.c.l.b16 %v738
  %v3824 = vunpack.c.h.b16 %v738
  %v3825 = vunpack.c.l.b16 %v739
  %v3826 = vunpack.c.h.b16 %v739
  %v3827 = vunpack.c.l.b16 %v740
  %v3828 = vunpack.c.h.b16 %v740
  %v3829 = vunpack.c.l.b16 %v741
  %v3830 = vunpack.c.h.b16 %v741
  %v3831 = vunpack.c.l.b16 %v742
  %v3832 = vunpack.c.h.b16 %v742
  %v3833 = vunpack.c.l.b16 %v743
  %v3834 = vunpack.c.h.b16 %v743
  %v3835 = vunpack.c.l.b16 %v744
  %v3836 = vunpack.c.h.b16 %v744
  %v3837 = vunpack.c.l.b16 %v745
  %v3838 = vunpack.c.h.b16 %v745
  %v3839 = vunpack.c.l.b16 %v746
  %v3840 = vunpack.c.h.b16 %v746
  %v3841 = vunpack.c.l.b16 %v747
  %v3842 = vunpack.c.h.b16 %v747
  %v3843 = vunpack.c.l.b16 %v748
  %v3844 = vunpack.c.h.b16 %v748
  %v3845 = vunpack.c.l.b16 %v749
  %v3846 = vunpack.c.l.b16 %v750
  %v3847 = vunpack.c.h.b16 %v750
  %v3848 = vunpack.c.l.b16 %v751
  %v3849 = vunpack.c.h.b16 %v751
  %v3850 = vunpack.c.l.b16 %v752
  %v3851 = vunpack.c.h.b16 %v752
  %v3852 = vunpack.c.l.b16 %v753
  %v3853 = vunpack.c.h.b16 %v753
  %v3854 = vunpack.c.l.b16 %v754
  %v3855 = vunpack.c.h.b16 %v754
  %v3856 = vunpack.c.l.b16 %v755
  %v3857 = vunpack.c.h.b16 %v755
  %v3858 = vunpack.c.l.b16 %v756
  %v3859 = vunpack.c.h.b16 %v756
  %v3860 = vunpack.c.l.b16 %v757
  %v3861 = vunpack.c.h.b16 %v757
  %v3862 = vunpack.c.l.b16 %v758
  %v3863 = vunpack.c.h.b16 %v758
  %v3864 = vunpack.c.l.b16 %v759
  %v3865 = vunpack.c.h.b16 %v759
  %v3866 = vunpack.c.l.b16 %v760
  %v3867 = vunpack.c.h.b16 %v760
  %v3868 = vunpack.c.l.b16 %v761
  %v3869 = vunpack.c.h.b16 %v761
  %v3870 = vunpack.c.l.b16 %v762
  %v3871 = vunpack.c.h.b16 %v762
  %v3872 = vunpack.c.l.b16 %v763
  %v3873 = vunpack.c.h.b16 %v763
  %v3874 = vunpack.c.l.b16 %v764
  %v3875 = vunpack.c.h.b16 %v764
  %v3876 = vunpack.c.l.b16 %v765
  %v3877 = vunpack.c.h.b16 %v765
  %v3878 = vunpack.c.l.b16 %v766
  %v3879 = vunpack.c.h.b16 %v766
  %v3880 = vunpack.c.l.b16 %v767
  %v3881 = vunpack.c.h.b16 %v767
  %v3882 = vunpack.c.l.b16 %v768
  %v3883 = vunpack.c.h.b16 %v768
  %v3884 = vunpack.c.l.b16 %v769
  %v3885 = vunpack.c.h.b16 %v769
  %v3886 = vunpack.c.l.b16 %v770
  %v3887 = vunpack.c.l.b16 %v771
  %v3888 = vunpack.c.h.b16 %v771
  %v3889 = vunpack.c.l.b16 %v772
  %v3890 = vunpack.c.h.b16 %v772
  %v3891 = vunpack.c.l.b16 %v773
  %v3892 = vunpack.c.h.b16 %v773
  %v3893 = vunpack.c.l.b16 %v774
  %v3894 = vunpack.c.h.b16 %v774
  %v3895 = vunpack.c.l.b16 %v775
  %v3896 = vunpack.c.h.b16 %v775
  %v3897 = vunpack.c.l.b16 %v776
  %v3898 = vunpack.c.h.b16 %v776
  %v3899 = vunpack.c.l.b16 %v777
  %v3900 = vunpack.c.h.b16 %v777
  %v3901 = vunpack.c.l.b16 %v778
  %v3902 = vunpack.c.h.b16 %v778
  %v3903 = vunpack.c.l.b16 %v779
  %v3904 = vunpack.c.h.b16 %v779
  %v3905 = vunpack.c.l.b16 %v780
  %v3906 = vunpack.c.h.b16 %v780
  %v3907 = vunpack.c.l.b16 %v781
  %v3908 = vunpack.c.h.b16 %v781
  %v3909 = vunpack.c.l.b16 %v782
  %v3910 = vunpack.c.h.b16 %v782
  %v3911 = vunpack.c.l.b16 %v783
  %v3912 = vunpack.c.h.b16 %v783
  %v3913 = vunpack.c.l.b16 %v784
  %v3914 = vunpack.c.h.b16 %v784
  %v3915 = vunpack.c.l.b16 %v785
  %v3916 = vunpack.c.h.b16 %v785
  %v3917 = vunpack.c.l.b16 %v786
  %v3918 = vunpack.c.h.b16 %v786
  %v3919 = vunpack.c.l.b16 %v787
  %v3920 = vunpack.c.h.b16 %v787
  %v3921 = vunpack.c.l.b16 %v788
  %v3922 = vunpack.c.h.b16 %v788
  %v3923 = vunpack.c.l.b16 %v789
  %v3924 = vunpack.c.h.b16 %v789
  %v3925 = vunpack.c.l.b16 %v790
  %v3926 = vunpack.c.h.b16 %v790
  %v3927 = vunpack.c.l.b16 %v791
  %v3928 = vunpack.c.l.b16 %v792
  %v3929 = vunpack.c.h.b16 %v792
  %v3930 = vunpack.c.l.b16 %v793
  %v3931 = vunpack.c.h.b16 %v793
  %v3932 = vunpack.c.l.b16 %v794
  %v3933 = vunpack.c.h.b16 %v794
  %v3934 = vunpack.c.l.b16 %v795
  %v3935 = vunpack.c.h.b16 %v795
  %v3936 = vunpack.c.l.b16 %v796
  %v3937 = vunpack.c.h.b16 %v796
  %v3938 = vunpack.c.l.b16 %v797
  %v3939 = vunpack.c.h.b16 %v797
  %v3940 = vunpack.c.l.b16 %v798
  %v3941 = vunpack.c.h.b16 %v798
  %v3942 = vunpack.c.l.b16 %v799
  %v3943 = vunpack.c.h.b16 %v799
  %v3944 = vunpack.c.l.b16 %v800
  %v3945 = vunpack.c.h.b16 %v800
  %v3946 = vunpack.c.l.b16 %v801
  %v3947 = vunpack.c.h.b16 %v801
  %v3948 = vunpack.c.l.b16 %v802
  %v3949 = vunpack.c.h.b16 %v802
  %v3950 = vunpack.c.l.b16 %v803
  %v3951 = vunpack.c.h.b16 %v803
  %v3952 = vunpack.c.l.b16 %v804
  %v3953 = vunpack.c.h.b16 %v804
  %v3954 = vunpack.c.l.b16 %v805
  %v3955 = vunpack.c.h.b16 %v805
  %v3956 = vunpack.c.l.b16 %v806
  %v3957 = vunpack.c.h.b16 %v806
  %v3958 = vunpack.c.l.b16 %v807
  %v3959 = vunpack.c.h.b16 %v807
  %v3960 = vunpack.c.l.b16 %v808
  %v3961 = vunpack.c.h.b16 %v808
  %v3962 = vunpack.c.l.b16 %v809
  %v3963 = vunpack.c.h.b16 %v809
  %v3964 = vunpack.c.l.b16 %v810
  %v3965 = vunpack.c.h.b16 %v810
  %v3966 = vunpack.c.l.b16 %v811
  %v3967 = vunpack.c.h.b16 %v811
  %v3968 = vunpack.c.l.b16 %v812
  %v3969 = vunpack.c.l.b16 %v813
  %v3970 = vunpack.c.h.b16 %v813
  %v3971 = vunpack.c.l.b16 %v814
  %v3972 = vunpack.c.h.b16 %v814
  %v3973 = vunpack.c.l.b16 %v815
  %v3974 = vunpack.c.h.b16 %v815
  %v3975 = vunpack.c.l.b16 %v816
  %v3976 = vunpack.c.h.b16 %v816
  %v3977 = vunpack.c.l.b16 %v817
  %v3978 = vunpack.c.h.b16 %v817
  %v3979 = vunpack.c.l.b16 %v818
  %v3980 = vunpack.c.h.b16 %v818
  %v3981 = vunpack.c.l.b16 %v819
  %v3982 = vunpack.c.h.b16 %v819
  %v3983 = vunpack.c.l.b16 %v820
  %v3984 = vunpack.c.h.b16 %v820
  %v3985 = vunpack.c.l.b16 %v821
  %v3986 = vunpack.c.h.b16 %v821
  %v3987 = vunpack.c.l.b16 %v822
  %v3988 = vunpack.c.h.b16 %v822
  %v3989 = vunpack.c.l.b16 %v823
  %v3990 = vunpack.c.h.b16 %v823
  %v3991 = vunpack.c.l.b16 %v824
  %v3992 = vunpack.c.h.b16 %v824
  %v3993 = vunpack.c.l.b16 %v825
  %v3994 = vunpack.c.h.b16 %v825
  %v3995 = vunpack.c.l.b16 %v826
  %v3996 = vunpack.c.h.b16 %v826
  %v3997 = vunpack.c.l.b16 %v827
  %v3998 = vunpack.c.h.b16 %v827
  %v3999 = vunpack.c.l.b16 %v828
  %v4000 = vunpack.c.h.b16 %v828
  %v4001 = vunpack.c.l.b16 %v829
  %v4002 = vunpack.c.h.b16 %v829
  %v4003 = vunpack.c.l.b16 %v830
  %v4004 = vunpack.c.h.b16 %v830
  %v4005 = vunpack.c.l.b16 %v831
  %v4006 = vunpack.c.h.b16 %v831
  %v4007 = vunpack.c.l.b16 %v832
  %v4008 = vunpack.c.h.b16 %v832
  %v4009 = vunpack.c.l.b16 %v833
  %v4010 = vunpack.c.l.b16 %v834
  %v4011 = vunpack.c.h.b16 %v834
  %v4012 = vunpack.c.l.b16 %v835
  %v4013 = vunpack.c.h.b16 %v835
  %v4014 = vunpack.c.l.b16 %v836
  %v4015 = vunpack.c.h.b16 %v836
  %v4016 = vunpack.c.l.b16 %v837
  %v4017 = vunpack.c.h.b16 %v837
  %v4018 = vunpack.c.l.b16 %v838
  %v4019 = vunpack.c.h.b16 %v838
  %v4020 = vunpack.c.l.b16 %v839
  %v4021 = vunpack.c.h.b16 %v839
  %v4022 = vunpack.c.l.b16 %v840
  %v4023 = vunpack.c.h.b16 %v840
  %v4024 = vunpack.c.l.b16 %v841
  %v4025 = vunpack.c.h.b16 %v841
  %v4026 = vunpack.c.l.b16 %v842
  %v4027 = vunpack.c.h.b16 %v842
  %v4028 = vunpack.c.l.b16 %v843
  %v4029 = vunpack.c.h.b16 %v843
  %v4030 = vunpack.c.l.b16 %v844
  %v4031 = vunpack.c.h.b16 %v844
  %v4032 = vunpack.c.l.b16 %v845
  %v4033 = vunpack.c.h.b16 %v845
  %v4034 = vunpack.c.l.b16 %v846
  %v4035 = vunpack.c.h.b16 %v846
  %v4036 = vunpack.c.l.b16 %v847
  %v4037 = vunpack.c.h.b16 %v847
  %v4038 = vunpack.c.l.b16 %v848
  %v4039 = vunpack.c.h.b16 %v848
  %v4040 = vunpack.c.l.b16 %v849
  %v4041 = vunpack.c.h.b16 %v849
  %v4042 = vunpack.c.l.b16 %v850
  %v4043 = vunpack.c.h.b16 %v850
  %v4044 = vunpack.c.l.b16 %v851
  %v4045 = vunpack.c.h.b16 %v851
  %v4046 = vunpack.c.l.b16 %v852
  %v4047 = vunpack.c.h.b16 %v852
  %v4048 = vunpack.c.l.b16 %v853
  %v4049 = vunpack.c.h.b16 %v853
  %v4050 = vunpack.c.l.b16 %v854
  %v4051 = vunpack.c.l.b16 %v855
  %v4052 = vunpack.c.h.b16 %v855
  %v4053 = vunpack.c.l.b16 %v856
  %v4054 = vunpack.c.h.b16 %v856
  %v4055 = vunpack.c.l.b16 %v857
  %v4056 = vunpack.c.h.b16 %v857
  %v4057 = vunpack.c.l.b16 %v858
  %v4058 = vunpack.c.h.b16 %v858
  %v4059 = vunpack.c.l.b16 %v859
  %v4060 = vunpack.c.h.b16 %v859
  %v4061 = vunpack.c.l.b16 %v860
  %v4062 = vunpack.c.h.b16 %v860
  %v4063 = vunpack.c.l.b16 %v861
  %v4064 = vunpack.c.h.b16 %v861
  %v4065 = vunpack.c.l.b16 %v862
  %v4066 = vunpack.c.h.b16 %v862
  %v4067 = vunpack.c.l.b16 %v863
  %v4068 = vunpack.c.h.b16 %v863
  %v4069 = vunpack.c.l.b16 %v864
  %v4070 = vunpack.c.h.b16 %v864
  %v4071 = vunpack.c.l.b16 %v865
  %v4072 = vunpack.c.h.b16 %v865
  %v4073 = vunpack.c.l.b16 %v866
  %v4074 = vunpack.c.h.b16 %v866
  %v4075 = vunpack.c.l.b16 %v867
  %v4076 = vunpack.c.h.b16 %v867
  %v4077 = vunpack.c.l.b16 %v868
  %v4078 = vunpack.c.h.b16 %v868
  %v4079 = vunpack.c.l.b16 %v869
  %v4080 = vunpack.c.h.b16 %v869
  %v4081 = vunpack.c.l.b16 %v870
  %v4082 = vunpack.c.h.b16 %v870
  %v4083 = vunpack.c.l.b16 %v871
  %v4084 = vunpack.c.h.b16 %v871
  %v4085 = vunpack.c.l.b16 %v872
  %v4086 = vunpack.c.h.b16 %v872
  %v4087 = vunpack.c.l.b16 %v873
  %v4088 = vunpack.c.h.b16 %v873
  %v4089 = vunpack.c.l.b16 %v874
  %v4090 = vunpack.c.h.b16 %v874
  %v4091 = vunpack.c.l.b16 %v875
  %v4092 = vunpack.c.l.b16 %v876
  %v4093 = vunpack.c.h.b16 %v876
  %v4094 = vunpack.c.l.b16 %v877
  %v4095 = vunpack.c.h.b16 %v877
  %v4096 = vunpack.c.l.b16 %v878
  %v4097 = vunpack.c.h.b16 %v878
  %v4098 = vunpack.c.l.b16 %v879
  %v4099 = vunpack.c.h.b16 %v879
  %v4100 = vunpack.c.l.b16 %v880
  %v4101 = vunpack.c.h.b16 %v880
  %v4102 = vunpack.c.l.b16 %v881
  %v4103 = vunpack.c.h.b16 %v881
  %v4104 = vunpack.c.l.b16 %v882
  %v4105 = vunpack.c.h.b16 %v882
  %v4106 = vunpack.c.l.b16 %v883
  %v4107 = vunpack.c.h.b16 %v883
  %v4108 = vunpack.c.l.b16 %v884
  %v4109 = vunpack.c.h.b16 %v884
  %v4110 = vunpack.c.l.b16 %v885
  %v4111 = vunpack.c.h.b16 %v885
  %v4112 = vunpack.c.l.b16 %v886
  %v4113 = vunpack.c.h.b16 %v886
  %v4114 = vunpack.c.l.b16 %v887
  %v4115 = vunpack.c.h.b16 %v887
  %v4116 = vunpack.c.l.b16 %v888
  %v4117 = vunpack.c.h.b16 %v888
  %v4118 = vunpack.c.l.b16 %v889
  %v4119 = vunpack.c.h.b16 %v889
  %v4120 = vunpack.c.l.b16 %v890
  %v4121 = vunpack.c.h.b16 %v890
  %v4122 = vunpack.c.l.b16 %v891
  %v4123 = vunpack.c.h.b16 %v891
  %v4124 = vunpack.c.l.b16 %v892
  %v4125 = vunpack.c.h.b16 %v892
  %v4126 = vunpack.c.l.b16 %v893
  %v4127 = vunpack.c.h.b16 %v893
  %v4128 = vunpack.c.l.b16 %v894
  %v4129 = vunpack.c.h.b16 %v894
  %v4130 = vunpack.c.l.b16 %v895
  %v4131 = vunpack.c.h.b16 %v895
  %v4132 = vunpack.c.l.b16 %v896
  %v4133 = vunpack.c.l.b16 %v897
  %v4134 = vunpack.c.h.b16 %v897
  %v4135 = vunpack.c.l.b16 %v898
  %v4136 = vunpack.c.h.b16 %v898
  %v4137 = vunpack.c.l.b16 %v899
  %v4138 = vunpack.c.h.b16 %v899
  %v4139 = vunpack.c.l.b16 %v900
  %v4140 = vunpack.c.h.b16 %v900
  %v4141 = vunpack.c.l.b16 %v901
  %v4142 = vunpack.c.h.b16 %v901
  %v4143 = vunpack.c.l.b16 %v902
  %v4144 = vunpack.c.h.b16 %v902
  %v4145 = vunpack.c.l.b16 %v903
  %v4146 = vunpack.c.h.b16 %v903
  %v4147 = vunpack.c.l.b16 %v904
  %v4148 = vunpack.c.h.b16 %v904
  %v4149 = vunpack.c.l.b16 %v905
  %v4150 = vunpack.c.h.b16 %v905
  %v4151 = vunpack.c.l.b16 %v906
  %v4152 = vunpack.c.h.b16 %v906
  %v4153 = vunpack.c.l.b16 %v907
  %v4154 = vunpack.c.h.b16 %v907
  %v4155 = vunpack.c.l.b16 %v908
  %v4156 = vunpack.c.h.b16 %v908
  %v4157 = vunpack.c.l.b16 %v909
  %v4158 = vunpack.c.h.b16 %v909
  %v4159 = vunpack.c.l.b16 %v910
  %v4160 = vunpack.c.h.b16 %v910
  %v4161 = vunpack.c.l.b16 %v911
  %v4162 = vunpack.c.h.b16 %v911
  %v4163 = vunpack.c.l.b16 %v912
  %v4164 = vunpack.c.h.b16 %v912
  %v4165 = vunpack.c.l.b16 %v913
  %v4166 = vunpack.c.h.b16 %v913
  %v4167 = vunpack.c.l.b16 %v914
  %v4168 = vunpack.c.h.b16 %v914
  %v4169 = vunpack.c.l.b16 %v915
  %v4170 = vunpack.c.h.b16 %v915
  %v4171 = vunpack.c.l.b16 %v916
  %v4172 = vunpack.c.h.b16 %v916
  %v4173 = vunpack.c.l.b16 %v917
  %v4174 = vunpack.c.l.b16 %v918
  %v4175 = vunpack.c.h.b16 %v918
  %v4176 = vunpack.c.l.b16 %v919
  %v4177 = vunpack.c.h.b16 %v919
  %v4178 = vunpack.c.l.b16 %v920
  %v4179 = vunpack.c.h.b16 %v920
  %v4180 = vunpack.c.l.b16 %v921
  %v4181 = vunpack.c.h.b16 %v921
  %v4182 = vunpack.c.l.b16 %v922
  %v4183 = vunpack.c.h.b16 %v922
  %v4184 = vunpack.c.l.b16 %v923
  %v4185 = vunpack.c.h.b16 %v923
  %v4186 = vunpack.c.l.b16 %v924
  %v4187 = vunpack.c.h.b16 %v924
  %v4188 = vunpack.c.l.b16 %v925
  %v4189 = vunpack.c.h.b16 %v925
  %v4190 = vunpack.c.l.b16 %v926
  %v4191 = vunpack.c.h.b16 %v926
  %v4192 = vunpack.c.l.b16 %v927
  %v4193 = vunpack.c.h.b16 %v927
  %v4194 = vunpack.c.l.b16 %v928
  %v4195 = vunpack.c.h.b16 %v928
  %v4196 = vunpack.c.l.b16 %v929
  %v4197 = vunpack.c.h.b16 %v929
  %v4198 = vunpack.c.l.b16 %v930
  %v4199 = vunpack.c.h.b16 %v930
  %v4200 = vunpack.c.l.b16 %v931
  %v4201 = vunpack.c.h.b16 %v931
  %v4202 = vunpack.c.l.b16 %v932
  %v4203 = vunpack.c.h.b16 %v932
  %v4204 = vunpack.c.l.b16 %v933
  %v4205 = vunpack.c.h.b16 %v933
  %v4206 = vunpack.c.l.b16 %v934
  %v4207 = vunpack.c.h.b16 %v934
  %v4208 = vunpack.c.l.b16 %v935
  %v4209 = vunpack.c.h.b16 %v935
  %v4210 = vunpack.c.l.b16 %v936
  %v4211 = vunpack.c.h.b16 %v936
  %v4212 = vunpack.c.l.b16 %v937
  %v4213 = vunpack.c.h.b16 %v937
  %v4214 = vunpack.c.l.b16 %v938
  %v4215 = vunpack.c.l.b16 %v939
  %v4216 = vunpack.c.h.b16 %v939
  %v4217 = vunpack.c.l.b16 %v940
  %v4218 = vunpack.c.h.b16 %v940
  %v4219 = vunpack.c.l.b16 %v941
  %v4220 = vunpack.c.h.b16 %v941
  %v4221 = vunpack.c.l.b16 %v942
  %v4222 = vunpack.c.h.b16 %v942
  %v4223 = vunpack.c.l.b16 %v943
  %v4224 = vunpack.c.h.b16 %v943
  %v4225 = vunpack.c.l.b16 %v944
  %v4226 = vunpack.c.h.b16 %v944
  %v4227 = vunpack.c.l.b16 %v945
  %v4228 = vunpack.c.h.b16 %v945
  %v4229 = vunpack.c.l.b16 %v946
  %v4230 = vunpack.c.h.b16 %v946
  %v4231 = vunpack.c.l.b16 %v947
  %v4232 = vunpack.c.h.b16 %v947
  %v4233 = vunpack.c.l.b16 %v948
  %v4234 = vunpack.c.h.b16 %v948
  %v4235 = vunpack.c.l.b16 %v949
  %v4236 = vunpack.c.h.b16 %v949
  %v4237 = vunpack.c.l.b16 %v950
  %v4238 = vunpack.c.h.b16 %v950
  %v4239 = vunpack.c.l.b16 %v951
  %v4240 = vunpack.c.h.b16 %v951
  %v4241 = vunpack.c.l.b16 %v952
  %v4242 = vunpack.c.h.b16 %v952
  %v4243 = vunpack.c.l.b16 %v953
  %v4244 = vunpack.c.h.b16 %v953
  %v4245 = vunpack.c.l.b16 %v954
  %v4246 = vunpack.c.h.b16 %v954
  %v4247 = vunpack.c.l.b16 %v955
  %v4248 = vunpack.c.h.b16 %v955
  %v4249 = vunpack.c.l.b16 %v956
  %v4250 = vunpack.c.h.b16 %v956
  %v4251 = vunpack.c.l.b16 %v957
  %v4252 = vunpack.c.h.b16 %v957
  %v4253 = vunpack.c.l.b16 %v958
  %v4254 = vunpack.c.h.b16 %v958
  %v4255 = vunpack.c.l.b16 %v959
  %v4256 = vunpack.c.l.b16 %v960
  %v4257 = vunpack.c.h.b16 %v960
  %v4258 = vunpack.c.l.b16 %v961
  %v4259 = vunpack.c.h.b16 %v961
  %v4260 = vunpack.c.l.b16 %v962
  %v4261 = vunpack.c.h.b16 %v962
  %v4262 = vunpack.c.l.b16 %v963
  %v4263 = vunpack.c.h.b16 %v963
  %v4264 = vunpack.c.l.b16 %v964
  %v4265 = vunpack.c.h.b16 %v964
  %v4266 = vunpack.c.l.b16 %v965
  %v4267 = vunpack.c.h.b16 %v965
  %v4268 = vunpack.c.l.b16 %v966
  %v4269 = vunpack.c.h.b16 %v966
  %v4270 = vunpack.c.l.b16 %v967
  %v4271 = vunpack.c.h.b16 %v967
  %v4272 = vunpack.c.l.b16 %v968
  %v4273 = vunpack.c.h.b16 %v968
  %v4274 = vunpack.c.l.b16 %v969
  %v4275 = vunpack.c.h.b16 %v969
  %v4276 = vunpack.c.l.b16 %v970
  %v4277 = vunpack.c.h.b16 %v970
  %v4278 = vunpack.c.l.b16 %v971
  %v4279 = vunpack.c.h.b16 %v971
  %v4280 = vunpack.c.l.b16 %v972
  %v4281 = vunpack.c.h.b16 %v972
  %v4282 = vunpack.c.l.b16 %v973
  %v4283 = vunpack.c.h.b16 %v973
  %v4284 = vunpack.c.l.b16 %v974
  %v4285 = vunpack.c.h.b16 %v974
  %v4286 = vunpack.c.l.b16 %v975
  %v4287 = vunpack.c.h.b16 %v975
  %v4288 = vunpack.c.l.b16 %v976
  %v4289 = vunpack.c.h.b16 %v976
  %v4290 = vunpack.c.l.b16 %v977
  %v4291 = vunpack.c.h.b16 %v977
  %v4292 = vunpack.c.l.b16 %v978
  %v4293 = vunpack.c.h.b16 %v978
  %v4294 = vunpack.c.l.b16 %v979
  %v4295 = vunpack.c.h.b16 %v979
  %v4296 = vunpack.c.l.b16 %v980
  %v4297 = vunpack.c.l.b16 %v981
  %v4298 = vunpack.c.h.b16 %v981
  %v4299 = vunpack.c.l.b16 %v982
  %v4300 = vunpack.c.h.b16 %v982
  %v4301 = vunpack.c.l.b16 %v983
  %v4302 = vunpack.c.h.b16 %v983
  %v4303 = vunpack.c.l.b16 %v984
  %v4304 = vunpack.c.h.b16 %v984
  %v4305 = vunpack.c.l.b16 %v985
  %v4306 = vunpack.c.h.b16 %v985
  %v4307 = vunpack.c.l.b16 %v986
  %v4308 = vunpack.c.h.b16 %v986
  %v4309 = vunpack.c.l.b16 %v987
  %v4310 = vunpack.c.h.b16 %v987
  %v4311 = vunpack.c.l.b16 %v988
  %v4312 = vunpack.c.h.b16 %v988
  %v4313 = vunpack.c.l.b16 %v989
  %v4314 = vunpack.c.h.b16 %v989
  %v4315 = vunpack.c.l.b16 %v990
  %v4316 = vunpack.c.h.b16 %v990
  %v4317 = vunpack.c.l.b16 %v991
  %v4318 = vunpack.c.h.b16 %v991
  %v4319 = vunpack.c.l.b16 %v992
  %v4320 = vunpack.c.h.b16 %v992
  %v4321 = vunpack.c.l.b16 %v993
  %v4322 = vunpack.c.h.b16 %v993
  %v4323 = vunpack.c.l.b16 %v994
  %v4324 = vunpack.c.h.b16 %v994
  %v4325 = vunpack.c.l.b16 %v995
  %v4326 = vunpack.c.h.b16 %v995
  %v4327 = vunpack.c.l.b16 %v996
  %v4328 = vunpack.c.h.b16 %v996
  %v4329 = vunpack.c.l.b16 %v997
  %v4330 = vunpack.c.h.b16 %v997
  %v4331 = vunpack.c.l.b16 %v998
  %v4332 = vunpack.c.h.b16 %v998
  %v4333 = vunpack.c.l.b16 %v999
  %v4334 = vunpack.c.h.b16 %v999
  %v4335 = vunpack.c.l.b16 %v1000
  %v4336 = vunpack.c.h.b16 %v1000
  %v4337 = vunpack.c.l.b16 %v1001
  %v4338 = vpack.c.b16 %v2821, %v2780
  %v4339 = vpack.c.b16 %v2822, %v2781
  %v4340 = vpack.c.b16 %v2823, %v2782
  %v4341 = vpack.c.b16 %v2824, %v2783
  %v4342 = vpack.c.b16 %v2825, %v2784
  %v4343 = vpack.c.b16 %v2826, %v2785
  %v4344 = vpack.c.b16 %v2827, %v2786
  %v4345 = vpack.c.b16 %v2828, %v2787
  %v4346 = vpack.c.b16 %v2829, %v2788
  %v4347 = vpack.c.b16 %v2830, %v2789
  %v4348 = vpack.c.b16 %v2831, %v2790
  %v4349 = vpack.c.b16 %v2832, %v2791
  %v4350 = vpack.c.b16 %v2833, %v2792
  %v4351 = vpack.c.b16 %v2834, %v2793
  %v4352 = vpack.c.b16 %v2835, %v2794
  %v4353 = vpack.c.b16 %v2836, %v2795
  %v4354 = vpack.c.b16 %v2837, %v2796
  %v4355 = vpack.c.b16 %v2838, %v2797
  %v4356 = vpack.c.b16 %v2839, %v2798
  %v4357 = vpack.c.b16 %v2840, %v2799
  %v4358 = vpack.c.b16 %v2841, %v2800
  %v4359 = vpack.c.b16 %v2842, %v2801
  %v4360 = vpack.c.b16 %v2843, %v2802
  %v4361 = vpack.c.b16 %v2844, %v2803
  %v4362 = vpack.c.b16 %v2845, %v2804
  %v4363 = vpack.c.b16 %v2846, %v2805
  %v4364 = vpack.c.b16 %v2847, %v2806
  %v4365 = vpack.c.b16 %v2848, %v2807
  %v4366 = vpack.c.b16 %v2849, %v2808
  %v4367 = vpack.c.b16 %v2850, %v2809
  %v4368 = vpack.c.b16 %v2851, %v2810
  %v4369 = vpack.c.b16 %v2852, %v2811
  %v4370 = vpack.c.b16 %v2853, %v2812
  %v4371 = vpack.c.b16 %v2854, %v2813
  %v4372 = vpack.c.b16 %v2855, %v2814
  %v4373 = vpack.c.b16 %v2856, %v2815
  %v4374 = vpack.c.b16 %v2857, %v2816
  %v4375 = vpack.c.b16 %v2858, %v2817
  %v4376 = vpack.c.b16 %v2859, %v2818
  %v4377 = vpack.c.b16 %v2860, %v2819
  %v4378 = vpack.c.b16 %v2861, %v2820
  %v4379 = vpack.c.b16 %v2903, %v2862
  %v4380 = vpack.c.b16 %v2904, %v2863
  %v4381 = vpack.c.b16 %v2905, %v2864
  %v4382 = vpack.c.b16 %v2906, %v2865
  %v4383 = vpack.c.b16 %v2907, %v2866
  %v4384 = vpack.c.b16 %v2908, %v2867
  %v4385 = vpack.c.b16 %v2909, %v2868
  %v4386 = vpack.c.b16 %v2910, %v2869
  %v4387 = vpack.c.b16 %v2911, %v2870
  %v4388 = vpack.c.b16 %v2912, %v2871
  %v4389 = vpack.c.b16 %v2913, %v2872
  %v4390 = vpack.c.b16 %v2914, %v2873
  %v4391 = vpack.c.b16 %v2915, %v2874
  %v4392 = vpack.c.b16 %v2916, %v2875
  %v4393 = vpack.c.b16 %v2917, %v2876
  %v4394 = vpack.c.b16 %v2918, %v2877
  %v4395 = vpack.c.b16 %v2919, %v2878
  %v4396 = vpack.c.b16 %v2920, %v2879
  %v4397 = vpack.c.b16 %v2921, %v2880
  %v4398 = vpack.c.b16 %v2922, %v2881
  %v4399 = vpack.c.b16 %v2923, %v2882
  %v4400 = vpack.c.b16 %v2924, %v2883
  %v4401 = vpack.c.b16 %v2925, %v2884
  %v4402 = vpack.c.b16 %v2926, %v2885
  %v4403 = vpack.c.b16 %v2927, %v2886
  %v4404 = vpack.c.b16 %v2928, %v2887
  %v4405 = vpack.c.b16 %v2929, %v2888
  %v4406 = vpack.c.b16 %v2930, %v2889
  %v4407 = vpack.c.b16 %v2931, %v2890
  %v4408 = vpack.c.b16 %v2932, %v2891
  %v4409 = vpack.c.b16 %v2933, %v2892
  %v4410 = vpack.c.b16 %v2934, %v2893
  %v4411 = vpack.c.b16 %v2935, %v2894
  %v4412 = vpack.c.b16 %v2936, %v2895
  %v4413 = vpack.c.b16 %v2937, %v2896
  %v4414 = vpack.c.b16 %v2938, %v2897
  %v4415 = vpack.c.b16 %v2939, %v2898
  %v4416 = vpack.c.b16 %v2940, %v2899
  %v4417 = vpack.c.b16 %v2941, %v2900
  %v4418 = vpack.c.b16 %v2942, %v2901
  %v4419 = vpack.c.b16 %v2943, %v2902
  %v4420 = vpack.c.b16 %v2985, %v2944
  %v4421 = vpack.c.b16 %v2986, %v2945
  %v4422 = vpack.c.b16 %v2987, %v2946
  %v4423 = vpack.c.b16 %v2988, %v2947
  %v4424 = vpack.c.b16 %v2989, %v2948
  %v4425 = vpack.c.b16 %v2990, %v2949
  %v4426 = vpack.c.b16 %v2991, %v2950
  %v4427 = vpack.c.b16 %v2992, %v2951
  %v4428 = vpack.c.b16 %v2993, %v2952
  %v4429 = vpack.c.b16 %v2994, %v2953
  %v4430 = vpack.c.b16 %v2995, %v2954
  %v4431 = vpack.c.b16 %v2996, %v2955
  %v4432 = vpack.c.b16 %v2997, %v2956
  %v4433 = vpack.c.b16 %v2998, %v2957
  %v4434 = vpack.c.b16 %v2999, %v2958
  %v4435 = vpack.c.b16 %v3000, %v2959
  %v4436 = vpack.c.b16 %v3001, %v2960
  %v4437 = vpack.c.b16 %v3002, %v2961
  %v4438 = vpack.c.b16 %v3003, %v2962
  %v4439 = vpack.c.b16 %v3004, %v2963
  %v4440 = vpack.c.b16 %v3005, %v2964
  %v4441 = vpack.c.b16 %v3006, %v2965
  %v4442 = vpack.c.b16 %v3007, %v2966
  %v4443 = vpack.c.b16 %v3008, %v2967
  %v4444 = vpack.c.b16 %v3009, %v2968
  %v4445 = vpack.c.b16 %v3010, %v2969
  %v4446 = vpack.c.b16 %v3011, %v2970
  %v4447 = vpack.c.b16 %v3012, %v2971
  %v4448 = vpack.c.b16 %v3013, %v2972
  %v4449 = vpack.c.b16 %v3014, %v2973
  %v4450 = vpack.c.b16 %v3015, %v2974
  %v4451 = vpack.c.b16 %v3016, %v2975
  %v4452 = vpack.c.b16 %v3017, %v2976
  %v4453 = vpack.c.b16 %v3018, %v2977
  %v4454 = vpack.c.b16 %v3019, %v2978
  %v4455 = vpack.c.b16 %v3020, %v2979
  %v4456 = vpack.c.b16 %v3021, %v2980
  %v4457 = vpack.c.b16 %v3022, %v2981
  %v4458 = vpack.c.b16 %v3023, %v2982
  %v4459 = vpack.c.b16 %v3024, %v2983
  %v4460 = vpack.c.b16 %v3025, %v2984
  %v4461 = vpack.c.b16 %v3067, %v3026
  %v4462 = vpack.c.b16 %v3068, %v3027
  %v4463 = vpack.c.b16 %v3069, %v3028
  %v4464 = vpack.c.b16 %v3070, %v3029
  %v4465 = vpack.c.b16 %v3071, %v3030
  %v4466 = vpack.c.b16 %v3072, %v3031
  %v4467 = vpack.c.b16 %v3073, %v3032
  %v4468 = vpack.c.b16 %v3074, %v3033
  %v4469 = vpack.c.b16 %v3075, %v3034
  %v4470 = vpack.c.b16 %v3076, %v3035
  %v4471 = vpack.c.b16 %v3077, %v3036
  %v4472 = vpack.c.b16 %v3078, %v3037
  %v4473 = vpack.c.b16 %v3079, %v3038
  %v4474 = vpack.c.b16 %v3080, %v3039
  %v4475 = vpack.c.b16 %v3081, %v3040
  %v4476 = vpack.c.b16 %v3082, %v3041
  %v4477 = vpack.c.b16 %v3083, %v3042
  %v4478 = vpack.c.b16 %v3084, %v3043
  %v4479 = vpack.c.b16 %v3085, %v3044
  %v4480 = vpack.c.b16 %v3086, %v3045
  %v4481 = vpack.c.b16 %v3087, %v3046
  %v4482 = vpack.c.b16 %v3088, %v3047
  %v4483 = vpack.c.b16 %v3089, %v3048
  %v4484 = vpack.c.b16 %v3090, %v3049
  %v4485 = vpack.c.b16 %v3091, %v3050
  %v4486 = vpack.c.b16 %v3092, %v3051
  %v4487 = vpack.c.b16 %v3093, %v3052
  %v4488 = vpack.c.b16 %v3094, %v3053
  %v4489 = vpack.c.b16 %v3095, %v3054
  %v4490 = vpack.c.b16 %v3096, %v3055
  %v4491 = vpack.c.b16 %v3097, %v3056
  %v4492 = vpack.c.b16 %v3098, %v3057
  %v4493 = vpack.c.b16 %v3099, %v3058
  %v4494 = vpack.c.b16 %v3100, %v3059
  %v4495 = vpack.c.b16 %v3101, %v3060
  %v4496 = vpack.c.b16 %v3102, %v3061
  %v4497 = vpack.c.b16 %v3103, %v3062
  %v4498 = vpack.c.b16 %v3104, %v3063
  %v4499 = vpack.c.b16 %v3105, %v3064
  %v4500 = vpack.c.b16 %v3106, %v3065
  %v4501 = vpack.c.b16 %v3107, %v3066
  %v4502 = vpack.c.b16 %v3149, %v3108
  %v4503 = vpack.c.b16 %v3150, %v3109
  %v4504 = vpack.c.b16 %v3151, %v3110
  %v4505 = vpack.c.b16 %v3152, %v3111
  %v4506 = vpack.c.b16 %v3153, %v3112
  %v4507 = vpack.c.b16 %v3154, %v3113
  %v4508 = vpack.c.b16 %v3155, %v3114
  %v4509 = vpack.c.b16 %v3156, %v3115
  %v4510 = vpack.c.b16 %v3157, %v3116
  %v4511 = vpack.c.b16 %v3158, %v3117
  %v4512 = vpack.c.b16 %v3159, %v3118
  %v4513 = vpack.c.b16 %v3160, %v3119
  %v4514 = vpack.c.b16 %v3161, %v3120
  %v4515 = vpack.c.b16 %v3162, %v3121
  %v4516 = vpack.c.b16 %v3163, %v3122
  %v4517 = vpack.c.b16 %v3164, %v3123
  %v4518 = vpack.c.b16 %v3165, %v3124
  %v4519 = vpack.c.b16 %v3166, %v3125
  %v4520 = vpack.c.b16 %v3167, %v3126
  %v4521 = vpack.c.b16 %v3168, %v3127
  %v4522 = vpack.c.b16 %v3169, %v3128
  %v4523 = vpack.c.b16 %v3170, %v3129
  %v4524 = vpack.c.b16 %v3171, %v3130
  %v4525 = vpack.c.b16 %v3172, %v3131
  %v4526 = vpack.c.b16 %v3173, %v3132
  %v4527 = vpack.c.b16 %v3174, %v3133
  %v4528 = vpack.c.b16 %v3175, %v3134
  %v4529 = vpack.c.b16 %v3176, %v3135
  %v4530 = vpack.c.b16 %v3177, %v3136
  %v4531 = vpack.c.b16 %v3178, %v3137
  %v4532 = vpack.c.b16 %v3179, %v3138
  %v4533 = vpack.c.b16 %v3180, %v3139
  %v4534 = vpack.c.b16 %v3181, %v3140
  %v4535 = vpack.c.b16 %v3182, %v3141
  %v4536 = vpack.c.b16 %v3183, %v3142
  %v4537 = vpack.c.b16 %v3184, %v3143
  %v4538 = vpack.c.b16 %v3185, %v3144
  %v4539 = vpack.c.b16 %v3186, %v3145
  %v4540 = vpack.c.b16 %v3187, %v3146
  %v4541 = vpack.c.b16 %v3188, %v3147
  %v4542 = vpack.c.b16 %v3189, %v3148
  %v4543 = vpack.c.b16 %v3231, %v3190
  %v4544 = vpack.c.b16 %v3232, %v3191
  %v4545 = vpack.c.b16 %v3233, %v3192
  %v4546 = vpack.c.b16 %v3234, %v3193
  %v4547 = vpack.c.b16 %v3235, %v3194
  %v4548 = vpack.c.b16 %v3236, %v3195
  %v4549 = vpack.c.b16 %v3237, %v3196
  %v4550 = vpack.c.b16 %v3238, %v3197
  %v4551 = vpack.c.b16 %v3239, %v3198
  %v4552 = vpack.c.b16 %v3240, %v3199
  %v4553 = vpack.c.b16 %v3241, %v3200
  %v4554 = vpack.c.b16 %v3242, %v3201
  %v4555 = vpack.c.b16 %v3243, %v3202
  %v4556 = vpack.c.b16 %v3244, %v3203
  %v4557 = vpack.c.b16 %v3245, %v3204
  %v4558 = vpack.c.b16 %v3246, %v3205
  %v4559 = vpack.c.b16 %v3247, %v3206
  %v4560 = vpack.c.b16 %v3248, %v3207
  %v4561 = vpack.c.b16 %v3249, %v3208
  %v4562 = vpack.c.b16 %v3250, %v3209
  %v4563 = vpack.c.b16 %v3251, %v3210
  %v4564 = vpack.c.b16 %v3252, %v3211
  %v4565 = vpack.c.b16 %v3253, %v3212
  %v4566 = vpack.c.b16 %v3254, %v3213
  %v4567 = vpack.c.b16 %v3255, %v3214
  %v4568 = vpack.c.b16 %v3256, %v3215
  %v4569 = vpack.c.b16 %v3257, %v3216
  %v4570 = vpack.c.b16 %v3258, %v3217
  %v4571 = vpack.c.b16 %v3259, %v3218
  %v4572 = vpack.c.b16 %v3260, %v3219
  %v4573 = vpack.c.b16 %v3261, %v3220
  %v4574 = vpack.c.b16 %v3262, %v3221
  %v4575 = vpack.c.b16 %v3263, %v3222
  %v4576 = vpack.c.b16 %v3264, %v3223
  %v4577 = vpack.c.b16 %v3265, %v3224
  %v4578 = vpack.c.b16 %v3266, %v3225
  %v4579 = vpack.c.b16 %v3267, %v3226
  %v4580 = vpack.c.b16 %v3268, %v3227
  %v4581 = vpack.c.b16 %v3269, %v3228
  %v4582 = vpack.c.b16 %v3270, %v3229
  %v4583 = vpack.c.b16 %v3271, %v3230
  %v4584 = vpack.c.b16 %v3313, %v3272
  %v4585 = vpack.c.b16 %v3314, %v3273
  %v4586 = vpack.c.b16 %v3315, %v3274
  %v4587 = vpack.c.b16 %v3316, %v3275
  %v4588 = vpack.c.b16 %v3317, %v3276
  %v4589 = vpack.c.b16 %v3318, %v3277
  %v4590 = vpack.c.b16 %v3319, %v3278
  %v4591 = vpack.c.b16 %v3320, %v3279
  %v4592 = vpack.c.b16 %v3321, %v3280
  %v4593 = vpack.c.b16 %v3322, %v3281
  %v4594 = vpack.c.b16 %v3323, %v3282
  %v4595 = vpack.c.b16 %v3324, %v3283
  %v4596 = vpack.c.b16 %v3325, %v3284
  %v4597 = vpack.c.b16 %v3326, %v3285
  %v4598 = vpack.c.b16 %v3327, %v3286
  %v4599 = vpack.c.b16 %v3328, %v3287
  %v4600 = vpack.c.b16 %v3329, %v3288
  %v4601 = vpack.c.b16 %v3330, %v3289
  %v4602 = vpack.c.b16 %v3331, %v3290
  %v4603 = vpack.c.b16 %v3332, %v3291
  %v4604 = vpack.c.b16 %v3333, %v3292
  %v4605 = vpack.c.b16 %v3334, %v3293
  %v4606 = vpack.c.b16 %v3335, %v3294
  %v4607 = vpack.c.b16 %v3336, %v3295
  %v4608 = vpack.c.b16 %v3337, %v3296
  %v4609 = vpack.c.b16 %v3338, %v3297
  %v4610 = vpack.c.b16 %v3339, %v3298
  %v4611 = vpack.c.b16 %v3340, %v3299
  %v4612 = vpack.c.b16 %v3341, %v3300
  %v4613 = vpack.c.b16 %v3342, %v3301
  %v4614 = vpack.c.b16 %v3343, %v3302
  %v4615 = vpack.c.b16 %v3344, %v3303
  %v4616 = vpack.c.b16 %v3345, %v3304
  %v4617 = vpack.c.b16 %v3346, %v3305
  %v4618 = vpack.c.b16 %v3347, %v3306
  %v4619 = vpack.c.b16 %v3348, %v3307
  %v4620 = vpack.c.b16 %v3349, %v3308
  %v4621 = vpack.c.b16 %v3350, %v3309
  %v4622 = vpack.c.b16 %v3351, %v3310
  %v4623 = vpack.c.b16 %v3352, %v3311
  %v4624 = vpack.c.b16 %v3353, %v3312
  %v4625 = vpack.c.b16 %v3395, %v3354
  %v4626 = vpack.c.b16 %v3396, %v3355
  %v4627 = vpack.c.b16 %v3397, %v3356
  %v4628 = vpack.c.b16 %v3398, %v3357
  %v4629 = vpack.c.b16 %v3399, %v3358
  %v4630 = vpack.c.b16 %v3400, %v3359
  %v4631 = vpack.c.b16 %v3401, %v3360
  %v4632 = vpack.c.b16 %v3402, %v3361
  %v4633 = vpack.c.b16 %v3403, %v3362
  %v4634 = vpack.c.b16 %v3404, %v3363
  %v4635 = vpack.c.b16 %v3405, %v3364
  %v4636 = vpack.c.b16 %v3406, %v3365
  %v4637 = vpack.c.b16 %v3407, %v3366
  %v4638 = vpack.c.b16 %v3408, %v3367
  %v4639 = vpack.c.b16 %v3409, %v3368
  %v4640 = vpack.c.b16 %v3410, %v3369
  %v4641 = vpack.c.b16 %v3411, %v3370
  %v4642 = vpack.c.b16 %v3412, %v3371
  %v4643 = vpack.c.b16 %v3413, %v3372
  %v4644 = vpack.c.b16 %v3414, %v3373
  %v4645 = vpack.c.b16 %v3415, %v3374
  %v4646 = vpack.c.b16 %v3416, %v3375
  %v4647 = vpack.c.b16 %v3417, %v3376
  %v4648 = vpack.c.b16 %v3418, %v3377
  %v4649 = vpack.c.b16 %v3419, %v3378
  %v4650 = vpack.c.b16 %v3420, %v3379
  %v4651 = vpack.c.b16 %v3421, %v3380
  %v4652 = vpack.c.b16 %v3422, %v3381
  %v4653 = vpack.c.b16 %v3423, %v3382
  %v4654 = vpack.c.b16 %v3424, %v3383
  %v4655 = vpack.c.b16 %v3425, %v3384
  %v4656 = vpack.c.b16 %v3426, %v3385
  %v4657 = vpack.c.b16 %v3427, %v3386
  %v4658 = vpack.c.b16 %v3428, %v3387
  %v4659 = vpack.c.b16 %v3429, %v3388
  %v4660 = vpack.c.b16 %v3430, %v3389
  %v4661 = vpack.c.b16 %v3431, %v3390
  %v4662 = vpack.c.b16 %v3432, %v3391
  %v4663 = vpack.c.b16 %v3433, %v3392
  %v4664 = vpack.c.b16 %v3434, %v3393
  %v4665 = vpack.c.b16 %v3435, %v3394
  %v4666 = vpack.c.b16 %v3477, %v3436
  %v4667 = vpack.c.b16 %v3478, %v3437
  %v4668 = vpack.c.b16 %v3479, %v3438
  %v4669 = vpack.c.b16 %v3480, %v3439
  %v4670 = vpack.c.b16 %v3481, %v3440
  %v4671 = vpack.c.b16 %v3482, %v3441
  %v4672 = vpack.c.b16 %v3483, %v3442
  %v4673 = vpack.c.b16 %v3484, %v3443
  %v4674 = vpack.c.b16 %v3485, %v3444
  %v4675 = vpack.c.b16 %v3486, %v3445
  %v4676 = vpack.c.b16 %v3487, %v3446
  %v4677 = vpack.c.b16 %v3488, %v3447
  %v4678 = vpack.c.b16 %v3489, %v3448
  %v4679 = vpack.c.b16 %v3490, %v3449
  %v4680 = vpack.c.b16 %v3491, %v3450
  %v4681 = vpack.c.b16 %v3492, %v3451
  %v4682 = vpack.c.b16 %v3493, %v3452
  %v4683 = vpack.c.b16 %v3494, %v3453
  %v4684 = vpack.c.b16 %v3495, %v3454
  %v4685 = vpack.c.b16 %v3496, %v3455
  %v4686 = vpack.c.b16 %v3497, %v3456
  %v4687 = vpack.c.b16 %v3498, %v3457
  %v4688 = vpack.c.b16 %v3499, %v3458
  %v4689 = vpack.c.b16 %v3500, %v3459
  %v4690 = vpack.c.b16 %v3501, %v3460
  %v4691 = vpack.c.b16 %v3502, %v3461
  %v4692 = vpack.c.b16 %v3503, %v3462
  %v4693 = vpack.c.b16 %v3504, %v3463
  %v4694 = vpack.c.b16 %v3505, %v3464
  %v4695 = vpack.c.b16 %v3506, %v3465
  %v4696 = vpack.c.b16 %v3507, %v3466
  %v4697 = vpack.c.b16 %v3508, %v3467
  %v4698 = vpack.c.b16 %v3509, %v3468
  %v4699 = vpack.c.b16 %v3510, %v3469
  %v4700 = vpack.c.b16 %v3511, %v3470
  %v4701 = vpack.c.b16 %v3512, %v3471
  %v4702 = vpack.c.b16 %v3513, %v3472
  %v4703 = vpack.c.b16 %v3514, %v3473
  %v4704 = vpack.c.b16 %v3515, %v3474
  %v4705 = vpack.c.b16 %v3516, %v3475
  %v4706 = vpack.c.b16 %v3517, %v3476
  %v4707 = vpack.c.b16 %v3559, %v3518
  %v4708 = vpack.c.b16 %v3560, %v3519
  %v4709 = vpack.c.b16 %v3561, %v3520
  %v4710 = vpack.c.b16 %v3562, %v3521
  %v4711 = vpack.c.b16 %v3563, %v3522
  %v4712 = vpack.c.b16 %v3564, %v3523
  %v4713 = vpack.c.b16 %v3565, %v3524
  %v4714 = vpack.c.b16 %v3566, %v3525
  %v4715 = vpack.c.b16 %v3567, %v3526
  %v4716 = vpack.c.b16 %v3568, %v3527
  %v4717 = vpack.c.b16 %v3569, %v3528
  %v4718 = vpack.c.b16 %v3570, %v3529
  %v4719 = vpack.c.b16 %v3571, %v3530
  %v4720 = vpack.c.b16 %v3572, %v3531
  %v4721 = vpack.c.b16 %v3573, %v3532
  %v4722 = vpack.c.b16 %v3574, %v3533
  %v4723 = vpack.c.b16 %v3575, %v3534
  %v4724 = vpack.c.b16 %v3576, %v3535
  %v4725 = vpack.c.b16 %v3577, %v3536
  %v4726 = vpack.c.b16 %v3578, %v3537
  %v4727 = vpack.c.b16 %v3579, %v3538
  %v4728 = vpack.c.b16 %v3580, %v3539
  %v4729 = vpack.c.b16 %v3581, %v3540
  %v4730 = vpack.c.b16 %v3582, %v3541
  %v4731 = vpack.c.b16 %v3583, %v3542
  %v4732 = vpack.c.b16 %v3584, %v3543
  %v4733 = vpack.c.b16 %v3585, %v3544
  %v4734 = vpack.c.b16 %v3586, %v3545
  %v4735 = vpack.c.b16 %v3587, %v3546
  %v4736 = vpack.c.b16 %v3588, %v3547
  %v4737 = vpack.c.b16 %v3589, %v3548
  %v4738 = vpack.c.b16 %v3590, %v3549
  %v4739 = vpack.c.b16 %v3591, %v3550
  %v4740 = vpack.c.b16 %v3592, %v3551
  %v4741 = vpack.c.b16 %v3593, %v3552
  %v4742 = vpack.c.b16 %v3594, %v3553
  %v4743 = vpack.c.b16 %v3595, %v3554
  %v4744 = vpack.c.b16 %v3596, %v3555
  %v4745 = vpack.c.b16 %v3597, %v3556
  %v4746 = vpack.c.b16 %v3598, %v3557
  %v4747 = vpack.c.b16 %v3599, %v3558
  %v4748 = vpack.c.b16 %v3641, %v3600
  %v4749 = vpack.c.b16 %v3642, %v3601
  %v4750 = vpack.c.b16 %v3643, %v3602
  %v4751 = vpack.c.b16 %v3644, %v3603
  %v4752 = vpack.c.b16 %v3645, %v3604
  %v4753 = vpack.c.b16 %v3646, %v3605
  %v4754 = vpack.c.b16 %v3647, %v3606
  %v4755 = vpack.c.b16 %v3648, %v3607
  %v4756 = vpack.c.b16 %v3649, %v3608
  %v4757 = vpack.c.b16 %v3650, %v3609
  %v4758 = vpack.c.b16 %v3651, %v3610
  %v4759 = vpack.c.b16 %v3652, %v3611
  %v4760 = vpack.c.b16 %v3653, %v3612
  %v4761 = vpack.c.b16 %v3654, %v3613
  %v4762 = vpack.c.b16 %v3655, %v3614
  %v4763 = vpack.c.b16 %v3656, %v3615
  %v4764 = vpack.c.b16 %v3657, %v3616
  %v4765 = vpack.c.b16 %v3658, %v3617
  %v4766 = vpack.c.b16 %v3659, %v3618
  %v4767 = vpack.c.b16 %v3660, %v3619
  %v4768 = vpack.c.b16 %v3661, %v3620
  %v4769 = vpack.c.b16 %v3662, %v3621
  %v4770 = vpack.c.b16 %v3663, %v3622
  %v4771 = vpack.c.b16 %v3664, %v3623
  %v4772 = vpack.c.b16 %v3665, %v3624
  %v4773 = vpack.c.b16 %v3666, %v3625
  %v4774 = vpack.c.b16 %v3667, %v3626
  %v4775 = vpack.c.b16 %v3668, %v3627
  %v4776 = vpack.c.b16 %v3669, %v3628
  %v4777 = vpack.c.b16 %v3670, %v3629
  %v4778 = vpack.c.b16 %v3671, %v3630
  %v4779 = vpack.c.b16 %v3672, %v3631
  %v4780 = vpack.c.b16 %v3673, %v3632
  %v4781 = vpack.c.b16 %v3674, %v3633
  %v4782 = vpack.c.b16 %v3675, %v3634
  %v4783 = vpack.c.b16 %v3676, %v3635
  %v4784 = vpack.c.b16 %v3677, %v3636
  %v4785 = vpack.c.b16 %v3678, %v3637
  %v4786 = vpack.c.b16 %v3679, %v3638
  %v4787 = vpack.c.b16 %v3680, %v3639
  %v4788 = vpack.c.b16 %v3681, %v3640
  %v4789 = vpack.c.b16 %v3723, %v3682
  %v4790 = vpack.c.b16 %v3724, %v3683
  %v4791 = vpack.c.b16 %v3725, %v3684
  %v4792 = vpack.c.b16 %v3726, %v3685
  %v4793 = vpack.c.b16 %v3727, %v3686
  %v4794 = vpack.c.b16 %v3728, %v3687
  %v4795 = vpack.c.b16 %v3729, %v3688
  %v4796 = vpack.c.b16 %v3730, %v3689
  %v4797 = vpack.c.b16 %v3731, %v3690
  %v4798 = vpack.c.b16 %v3732, %v3691
  %v4799 = vpack.c.b16 %v3733, %v3692
  %v4800 = vpack.c.b16 %v3734, %v3693
  %v4801 = vpack.c.b16 %v3735, %v3694
  %v4802 = vpack.c.b16 %v3736, %v3695
  %v4803 = vpack.c.b16 %v3737, %v3696
  %v4804 = vpack.c.b16 %v3738, %v3697
  %v4805 = vpack.c.b16 %v3739, %v3698
  %v4806 = vpack.c.b16 %v3740, %v3699
  %v4807 = vpack.c.b16 %v3741, %v3700
  %v4808 = vpack.c.b16 %v3742, %v3701
  %v4809 = vpack.c.b16 %v3743, %v3702
  %v4810 = vpack.c.b16 %v3744, %v3703
  %v4811 = vpack.c.b16 %v3745, %v3704
  %v4812 = vpack.c.b16 %v3746, %v3705
  %v4813 = vpack.c.b16 %v3747, %v3706
  %v4814 = vpack.c.b16 %v3748, %v3707
  %v4815 = vpack.c.b16 %v3749, %v3708
  %v4816 = vpack.c.b16 %v3750, %v3709
  %v4817 = vpack.c.b16 %v3751, %v3710
  %v4818 = vpack.c.b16 %v3752, %v3711
  %v4819 = vpack.c.b16 %v3753, %v3712
  %v4820 = vpack.c.b16 %v3754, %v3713
  %v4821 = vpack.c.b16 %v3755, %v3714
  %v4822 = vpack.c.b16 %v3756, %v3715
  %v4823 = vpack.c.b16 %v3757, %v3716
  %v4824 = vpack.c.b16 %v3758, %v3717
  %v4825 = vpack.c.b16 %v3759, %v3718
  %v4826 = vpack.c.b16 %v3760, %v3719
  %v4827 = vpack.c.b16 %v3761, %v3720
  %v4828 = vpack.c.b16 %v3762, %v3721
  %v4829 = vpack.c.b16 %v3763, %v3722
  %v4830 = vpack.c.b16 %v3805, %v3764
  %v4831 = vpack.c.b16 %v3806, %v3765
  %v4832 = vpack.c.b16 %v3807, %v3766
  %v4833 = vpack.c.b16 %v3808, %v3767
  %v4834 = vpack.c.b16 %v3809, %v3768
  %v4835 = vpack.c.b16 %v3810, %v3769
  %v4836 = vpack.c.b16 %v3811, %v3770
  %v4837 = vpack.c.b16 %v3812, %v3771
  %v4838 = vpack.c.b16 %v3813, %v3772
  %v4839 = vpack.c.b16 %v3814, %v3773
  %v4840 = vpack.c.b16 %v3815, %v3774
  %v4841 = vpack.c.b16 %v3816, %v3775
  %v4842 = vpack.c.b16 %v3817, %v3776
  %v4843 = vpack.c.b16 %v3818, %v3777
  %v4844 = vpack.c.b16 %v3819, %v3778
  %v4845 = vpack.c.b16 %v3820, %v3779
  %v4846 = vpack.c.b16 %v3821, %v3780
  %v4847 = vpack.c.b16 %v3822, %v3781
  %v4848 = vpack.c.b16 %v3823, %v3782
  %v4849 = vpack.c.b16 %v3824, %v3783
  %v4850 = vpack.c.b16 %v3825, %v3784
  %v4851 = vpack.c.b16 %v3826, %v3785
  %v4852 = vpack.c.b16 %v3827, %v3786
  %v4853 = vpack.c.b16 %v3828, %v3787
  %v4854 = vpack.c.b16 %v3829, %v3788
  %v4855 = vpack.c.b16 %v3830, %v3789
  %v4856 = vpack.c.b16 %v3831, %v3790
  %v4857 = vpack.c.b16 %v3832, %v3791
  %v4858 = vpack.c.b16 %v3833, %v3792
  %v4859 = vpack.c.b16 %v3834, %v3793
  %v4860 = vpack.c.b16 %v3835, %v3794
  %v4861 = vpack.c.b16 %v3836, %v3795
  %v4862 = vpack.c.b16 %v3837, %v3796
  %v4863 = vpack.c.b16 %v3838, %v3797
  %v4864 = vpack.c.b16 %v3839, %v3798
  %v4865 = vpack.c.b16 %v3840, %v3799
  %v4866 = vpack.c.b16 %v3841, %v3800
  %v4867 = vpack.c.b16 %v3842, %v3801
  %v4868 = vpack.c.b16 %v3843, %v3802
  %v4869 = vpack.c.b16 %v3844, %v3803
  %v4870 = vpack.c.b16 %v3845, %v3804
  %v4871 = vpack.c.b16 %v3887, %v3846
  %v4872 = vpack.c.b16 %v3888, %v3847
  %v4873 = vpack.c.b16 %v3889, %v3848
  %v4874 = vpack.c.b16 %v3890, %v3849
  %v4875 = vpack.c.b16 %v3891, %v3850
  %v4876 = vpack.c.b16 %v3892, %v3851
  %v4877 = vpack.c.b16 %v3893, %v3852
  %v4878 = vpack.c.b16 %v3894, %v3853
  %v4879 = vpack.c.b16 %v3895, %v3854
  %v4880 = vpack.c.b16 %v3896, %v3855
  %v4881 = vpack.c.b16 %v3897, %v3856
  %v4882 = vpack.c.b16 %v3898, %v3857
  %v4883 = vpack.c.b16 %v3899, %v3858
  %v4884 = vpack.c.b16 %v3900, %v3859
  %v4885 = vpack.c.b16 %v3901, %v3860
  %v4886 = vpack.c.b16 %v3902, %v3861
  %v4887 = vpack.c.b16 %v3903, %v3862
  %v4888 = vpack.c.b16 %v3904, %v3863
  %v4889 = vpack.c.b16 %v3905, %v3864
  %v4890 = vpack.c.b16 %v3906, %v3865
  %v4891 = vpack.c.b16 %v3907, %v3866
  %v4892 = vpack.c.b16 %v3908, %v3867
  %v4893 = vpack.c.b16 %v3909, %v3868
  %v4894 = vpack.c.b16 %v3910, %v3869
  %v4895 = vpack.c.b16 %v3911, %v3870
  %v4896 = vpack.c.b16 %v3912, %v3871
  %v4897 = vpack.c.b16 %v3913, %v3872
  %v4898 = vpack.c.b16 %v3914, %v3873
  %v4899 = vpack.c.b16 %v3915, %v3874
  %v4900 = vpack.c.b16 %v3916, %v3875
  %v4901 = vpack.c.b16 %v3917, %v3876
  %v4902 = vpack.c.b16 %v3918, %v3877
  %v4903 = vpack.c.b16 %v3919, %v3878
  %v4904 = vpack.c.b16 %v3920, %v3879
  %v4905 = vpack.c.b16 %v3921, %v3880
  %v4906 = vpack.c.b16 %v3922, %v3881
  %v4907 = vpack.c.b16 %v3923, %v3882
  %v4908 = vpack.c.b16 %v3924, %v3883
  %v4909 = vpack.c.b16 %v3925, %v3884
  %v4910 = vpack.c.b16 %v3926, %v3885
  %v4911 = vpack.c.b16 %v3927, %v3886
  %v4912 = vpack.c.b16 %v3969, %v3928
  %v4913 = vpack.c.b16 %v3970, %v3929
  %v4914 = vpack.c.b16 %v3971, %v3930
  %v4915 = vpack.c.b16 %v3972, %v3931
  %v4916 = vpack.c.b16 %v3973, %v3932
  %v4917 = vpack.c.b16 %v3974, %v3933
  %v4918 = vpack.c.b16 %v3975, %v3934
  %v4919 = vpack.c.b16 %v3976, %v3935
  %v4920 = vpack.c.b16 %v3977, %v3936
  %v4921 = vpack.c.b16 %v3978, %v3937
  %v4922 = vpack.c.b16 %v3979, %v3938
  %v4923 = vpack.c.b16 %v3980, %v3939
  %v4924 = vpack.c.b16 %v3981, %v3940
  %v4925 = vpack.c.b16 %v3982, %v3941
  %v4926 = vpack.c.b16 %v3983, %v3942
  %v4927 = vpack.c.b16 %v3984, %v3943
  %v4928 = vpack.c.b16 %v3985, %v3944
  %v4929 = vpack.c.b16 %v3986, %v3945
  %v4930 = vpack.c.b16 %v3987, %v3946
  %v4931 = vpack.c.b16 %v3988, %v3947
  %v4932 = vpack.c.b16 %v3989, %v3948
  %v4933 = vpack.c.b16 %v3990, %v3949
  %v4934 = vpack.c.b16 %v3991, %v3950
  %v4935 = vpack.c.b16 %v3992, %v3951
  %v4936 = vpack.c.b16 %v3993, %v3952
  %v4937 = vpack.c.b16 %v3994, %v3953
  %v4938 = vpack.c.b16 %v3995, %v3954
  %v4939 = vpack.c.b16 %v3996, %v3955
  %v4940 = vpack.c.b16 %v3997, %v3956
  %v4941 = vpack.c.b16 %v3998, %v3957
  %v4942 = vpack.c.b16 %v3999, %v3958
  %v4943 = vpack.c.b16 %v4000, %v3959
  %v4944 = vpack.c.b16 %v4001, %v3960
  %v4945 = vpack.c.b16 %v4002, %v3961
  %v4946 = vpack.c.b16 %v4003, %v3962
  %v4947 = vpack.c.b16 %v4004, %v3963
  %v4948 = vpack.c.b16 %v4005, %v3964
  %v4949 = vpack.c.b16 %v4006, %v3965
  %v4950 = vpack.c.b16 %v4007, %v3966
  %v4951 = vpack.c.b16 %v4008, %v3967
  %v4952 = vpack.c.b16 %v4009, %v3968
  %v4953 = vpack.c.b16 %v4051, %v4010
  %v4954 = vpack.c.b16 %v4052, %v4011
  %v4955 = vpack.c.b16 %v4053, %v4012
  %v4956 = vpack.c.b16 %v4054, %v4013
  %v4957 = vpack.c.b16 %v4055, %v4014
  %v4958 = vpack.c.b16 %v4056, %v4015
  %v4959 = vpack.c.b16 %v4057, %v4016
  %v4960 = vpack.c.b16 %v4058, %v4017
  %v4961 = vpack.c.b16 %v4059, %v4018
  %v4962 = vpack.c.b16 %v4060, %v4019
  %v4963 = vpack.c.b16 %v4061, %v4020
  %v4964 = vpack.c.b16 %v4062, %v4021
  %v4965 = vpack.c.b16 %v4063, %v4022
  %v4966 = vpack.c.b16 %v4064, %v4023
  %v4967 = vpack.c.b16 %v4065, %v4024
  %v4968 = vpack.c.b16 %v4066, %v4025
  %v4969 = vpack.c.b16 %v4067, %v4026
  %v4970 = vpack.c.b16 %v4068, %v4027
  %v4971 = vpack.c.b16 %v4069, %v4028
  %v4972 = vpack.c.b16 %v4070, %v4029
  %v4973 = vpack.c.b16 %v4071, %v4030
  %v4974 = vpack.c.b16 %v4072, %v4031
  %v4975 = vpack.c.b16 %v4073, %v4032
  %v4976 = vpack.c.b16 %v4074, %v4033
  %v4977 = vpack.c.b16 %v4075, %v4034
  %v4978 = vpack.c.b16 %v4076, %v4035
  %v4979 = vpack.c.b16 %v4077, %v4036
  %v4980 = vpack.c.b16 %v4078, %v4037
  %v4981 = vpack.c.b16 %v4079, %v4038
  %v4982 = vpack.c.b16 %v4080, %v4039
  %v4983 = vpack.c.b16 %v4081, %v4040
  %v4984 = vpack.c.b16 %v4082, %v4041
  %v4985 = vpack.c.b16 %v4083, %v4042
  %v4986 = vpack.c.b16 %v4084, %v4043
  %v4987 = vpack.c.b16 %v4085, %v4044
  %v4988 = vpack.c.b16 %v4086, %v4045
  %v4989 = vpack.c.b16 %v4087, %v4046
  %v4990 = vpack.c.b16 %v4088, %v4047
  %v4991 = vpack.c.b16 %v4089, %v4048
  %v4992 = vpack.c.b16 %v4090, %v4049
  %v4993 = vpack.c.b16 %v4091, %v4050
  %v4994 = vpack.c.b16 %v4133, %v4092
  %v4995 = vpack.c.b16 %v4134, %v4093
  %v4996 = vpack.c.b16 %v4135, %v4094
  %v4997 = vpack.c.b16 %v4136, %v4095
  %v4998 = vpack.c.b16 %v4137, %v4096
  %v4999 = vpack.c.b16 %v4138, %v4097
  %v5000 = vpack.c.b16 %v4139, %v4098
  %v5001 = vpack.c.b16 %v4140, %v4099
  %v5002 = vpack.c.b16 %v4141, %v4100
  %v5003 = vpack.c.b16 %v4142, %v4101
  %v5004 = vpack.c.b16 %v4143, %v4102
  %v5005 = vpack.c.b16 %v4144, %v4103
  %v5006 = vpack.c.b16 %v4145, %v4104
  %v5007 = vpack.c.b16 %v4146, %v4105
  %v5008 = vpack.c.b16 %v4147, %v4106
  %v5009 = vpack.c.b16 %v4148, %v4107
  %v5010 = vpack.c.b16 %v4149, %v4108
  %v5011 = vpack.c.b16 %v4150, %v4109
  %v5012 = vpack.c.b16 %v4151, %v4110
  %v5013 = vpack.c.b16 %v4152, %v4111
  %v5014 = vpack.c.b16 %v4153, %v4112
  %v5015 = vpack.c.b16 %v4154, %v4113
  %v5016 = vpack.c.b16 %v4155, %v4114
  %v5017 = vpack.c.b16 %v4156, %v4115
  %v5018 = vpack.c.b16 %v4157, %v4116
  %v5019 = vpack.c.b16 %v4158, %v4117
  %v5020 = vpack.c.b16 %v4159, %v4118
  %v5021 = vpack.c.b16 %v4160, %v4119
  %v5022 = vpack.c.b16 %v4161, %v4120
  %v5023 = vpack.c.b16 %v4162, %v4121
  %v5024 = vpack.c.b16 %v4163, %v4122
  %v5025 = vpack.c.b16 %v4164, %v4123
  %v5026 = vpack.c.b16 %v4165, %v4124
  %v5027 = vpack.c.b16 %v4166, %v4125
  %v5028 = vpack.c.b16 %v4167, %v4126
  %v5029 = vpack.c.b16 %v4168, %v4127
  %v5030 = vpack.c.b16 %v4169, %v4128
  %v5031 = vpack.c.b16 %v4170, %v4129
  %v5032 = vpack.c.b16 %v4171, %v4130
  %v5033 = vpack.c.b16 %v4172, %v4131
  %v5034 = vpack.c.b16 %v4173, %v4132
  %v5035 = vpack.c.b16 %v4215, %v4174
  %v5036 = vpack.c.b16 %v4216, %v4175
  %v5037 = vpack.c.b16 %v4217, %v4176
  %v5038 = vpack.c.b16 %v4218, %v4177
  %v5039 = vpack.c.b16 %v4219, %v4178
  %v5040 = vpack.c.b16 %v4220, %v4179
  %v5041 = vpack.c.b16 %v4221, %v4180
  %v5042 = vpack.c.b16 %v4222, %v4181
  %v5043 = vpack.c.b16 %v4223, %v4182
  %v5044 = vpack.c.b16 %v4224, %v4183
  %v5045 = vpack.c.b16 %v4225, %v4184
  %v5046 = vpack.c.b16 %v4226, %v4185
  %v5047 = vpack.c.b16 %v4227, %v4186
  %v5048 = vpack.c.b16 %v4228, %v4187
  %v5049 = vpack.c.b16 %v4229, %v4188
  %v5050 = vpack.c.b16 %v4230, %v4189
  %v5051 = vpack.c.b16 %v4231, %v4190
  %v5052 = vpack.c.b16 %v4232, %v4191
  %v5053 = vpack.c.b16 %v4233, %v4192
  %v5054 = vpack.c.b16 %v4234, %v4193
  %v5055 = vpack.c.b16 %v4235, %v4194
  %v5056 = vpack.c.b16 %v4236, %v4195
  %v5057 = vpack.c.b16 %v4237, %v4196
  %v5058 = vpack.c.b16 %v4238, %v4197
  %v5059 = vpack.c.b16 %v4239, %v4198
  %v5060 = vpack.c.b16 %v4240, %v4199
  %v5061 = vpack.c.b16 %v4241, %v4200
  %v5062 = vpack.c.b16 %v4242, %v4201
  %v5063 = vpack.c.b16 %v4243, %v4202
  %v5064 = vpack.c.b16 %v4244, %v4203
  %v5065 = vpack.c.b16 %v4245, %v4204
  %v5066 = vpack.c.b16 %v4246, %v4205
  %v5067 = vpack.c.b16 %v4247, %v4206
  %v5068 = vpack.c.b16 %v4248, %v4207
  %v5069 = vpack.c.b16 %v4249, %v4208
  %v5070 = vpack.c.b16 %v4250, %v4209
  %v5071 = vpack.c.b16 %v4251, %v4210
  %v5072 = vpack.c.b16 %v4252, %v4211
  %v5073 = vpack.c.b16 %v4253, %v4212
  %v5074 = vpack.c.b16 %v4254, %v4213
  %v5075 = vpack.c.b16 %v4255, %v4214
  %v5076 = vpack.c.b16 %v4297, %v4256
  %v5077 = vpack.c.b16 %v4298, %v4257
  %v5078 = vpack.c.b16 %v4299, %v4258
  %v5079 = vpack.c.b16 %v4300, %v4259
  %v5080 = vpack.c.b16 %v4301, %v4260
  %v5081 = vpack.c.b16 %v4302, %v4261
  %v5082 = vpack.c.b16 %v4303, %v4262
  %v5083 = vpack.c.b16 %v4304, %v4263
  %v5084 = vpack.c.b16 %v4305, %v4264
  %v5085 = vpack.c.b16 %v4306, %v4265
  %v5086 = vpack.c.b16 %v4307, %v4266
  %v5087 = vpack.c.b16 %v4308, %v4267
  %v5088 = vpack.c.b16 %v4309, %v4268
  %v5089 = vpack.c.b16 %v4310, %v4269
  %v5090 = vpack.c.b16 %v4311, %v4270
  %v5091 = vpack.c.b16 %v4312, %v4271
  %v5092 = vpack.c.b16 %v4313, %v4272
  %v5093 = vpack.c.b16 %v4314, %v4273
  %v5094 = vpack.c.b16 %v4315, %v4274
  %v5095 = vpack.c.b16 %v4316, %v4275
  %v5096 = vpack.c.b16 %v4317, %v4276
  %v5097 = vpack.c.b16 %v4318, %v4277
  %v5098 = vpack.c.b16 %v4319, %v4278
  %v5099 = vpack.c.b16 %v4320, %v4279
  %v5100 = vpack.c.b16 %v4321, %v4280
  %v5101 = vpack.c.b16 %v4322, %v4281
  %v5102 = vpack.c.b16 %v4323, %v4282
  %v5103 = vpack.c.b16 %v4324, %v4283
  %v5104 = vpack.c.b16 %v4325, %v4284
  %v5105 = vpack.c.b16 %v4326, %v4285
  %v5106 = vpack.c.b16 %v4327, %v4286
  %v5107 = vpack.c.b16 %v4328, %v4287
  %v5108 = vpack.c.b16 %v4329, %v4288
  %v5109 = vpack.c.b16 %v4330, %v4289
  %v5110 = vpack.c.b16 %v4331, %v4290
  %v5111 = vpack.c.b16 %v4332, %v4291
  %v5112 = vpack.c.b16 %v4333, %v4292
  %v5113 = vpack.c.b16 %v4334, %v4293
  %v5114 = vpack.c.b16 %v4335, %v4294
  %v5115 = vpack.c.b16 %v4336, %v4295
  %v5116 = vpack.c.b16 %v4337, %v4296
  %vm5877 = vcmask 523264
  %v5879 = vsel %vm5877, %v1617, 0
  %v5882 = vsel %vm5877, %v1658, 0
  %v5885 = vsel %vm5877, %v1699, 0
  %v5888 = vsel %vm5877, %v1740, 0
  %v5891 = vsel %vm5877, %v1781, 0
  %v5894 = vsel %vm5877, %v4378, 0
  %v5897 = vsel %vm5877, %v4419, 0
  %v5900 = vsel %vm5877, %v4460, 0
  %v5903 = vsel %vm5877, %v4501, 0
  %v5906 = vsel %vm5877, %v4542, 0
  %v5909 = vsel %vm5877, %v4583, 0
  %v5912 = vsel %vm5877, %v4624, 0
  %v5915 = vsel %vm5877, %v4665, 0
  %v5918 = vsel %vm5877, %v4706, 0
  %v5921 = vsel %vm5877, %v4747, 0
  %v5924 = vsel %vm5877, %v4788, 0
  %v5927 = vsel %vm5877, %v4829, 0
  %v5930 = vsel %vm5877, %v4870, 0
  %v5933 = vsel %vm5877, %v4911, 0
  %v5936 = vsel %vm5877, %v4952, 0
  %v5939 = vsel %vm5877, %v4993, 0
  %v5942 = vsel %vm5877, %v5034, 0
  %v5945 = vsel %vm5877, %v5075, 0
  %v5948 = vsel %vm5877, %v5116, 0
  %5950 = vmatprep.subr.bf16.mxu0 %v4339
  %5951 = vmatpush1.bf16.xpose.msra.mxu0 %v4338
  %5952 = vmatprep.subr.bf16.mxu0 %v4380
  %5953 = vmatpush1.bf16.xpose.msra.mxu0 %v4379
  %5954 = vmatprep.subr.bf16.mxu0 %v4421
  %5955 = vmatpush1.bf16.xpose.msra.mxu0 %v4420
  %5956 = vmatprep.subr.bf16.mxu0 %v4462
  %5957 = vmatpush1.bf16.xpose.msra.mxu0 %v4461
  %5958 = vmatprep.subr.bf16.mxu0 %v4503
  %5959 = vmatpush1.bf16.xpose.msra.mxu0 %v4502
  %5960 = vmatprep.subr.bf16.mxu0 %v4544
  %5961 = vmatpush1.bf16.xpose.msra.mxu0 %v4543
  %5962 = vmatprep.subr.bf16.mxu0 %v4585
  %5963 = vmatpush1.bf16.xpose.msra.mxu0 %v4584
  %5964 = vmatprep.subr.bf16.mxu0 %v4626
  %5965 = vmatpush1.bf16.xpose.msra.mxu0 %v4625
  %5966 = vmatprep.subr.bf16.mxu0 %v4667
  %5967 = vmatpush1.bf16.xpose.msra.mxu0 %v4666
  %5968 = vmatprep.subr.bf16.mxu0 %v4708
  %5969 = vmatpush1.bf16.xpose.msra.mxu0 %v4707
  %5970 = vmatprep.subr.bf16.mxu0 %v4749
  %5971 = vmatpush1.bf16.xpose.msra.mxu0 %v4748
  %5972 = vmatprep.subr.bf16.mxu0 %v4790
  %5973 = vmatpush1.bf16.xpose.msra.mxu0 %v4789
  %5974 = vmatprep.subr.bf16.mxu0 %v4831
  %5975 = vmatpush1.bf16.xpose.msra.mxu0 %v4830
  %5976 = vmatprep.subr.bf16.mxu0 %v4872
  %5977 = vmatpush1.bf16.xpose.msra.mxu0 %v4871
  %5978 = vmatprep.subr.bf16.mxu0 %v4913
  %5979 = vmatpush1.bf16.xpose.msra.mxu0 %v4912
  %5980 = vmatprep.subr.bf16.mxu0 %v4954
  %5981 = vmatpush1.bf16.xpose.msra.mxu0 %v4953
  %5982 = vmatprep.mubr.bf16.mxu0 %v1578
  %5983 = vmatmul.mubr.bf16.gmra.mrb[0].mxu0 %v1577
  %v5984 = vpop.f32.mrb[0].mxu0
  %v5985 = vadd.f32 %v1007, %v5984
  %v5986 = vpop.f32.mrb[0].mxu0
  %v5987 = vadd.f32 %v1011, %v5986
  %v5988 = vpop.f32.mrb[0].mxu0
  %v5989 = vadd.f32 %v1007, %v5988
  %v5990 = vpop.f32.mrb[0].mxu0
  %v5991 = vadd.f32 %v1011, %v5990
  %5992 = vmatprep.mubr.bf16.mxu0 %v1619
  %5993 = vmatmul.mubr.bf16.gmra.mrb[0].mxu0 %v1618
  %v5994 = vpop.f32.mrb[0].mxu0
  %v5995 = vadd.f32 %v1007, %v5994
  %v5996 = vpop.f32.mrb[0].mxu0
  %v5997 = vadd.f32 %v1011, %v5996
  %v5998 = vpop.f32.mrb[0].mxu0
  %v5999 = vadd.f32 %v1007, %v5998
  %v6000 = vpop.f32.mrb[0].mxu0
  %v6001 = vadd.f32 %v1011, %v6000
  %6002 = vmatprep.mubr.bf16.mxu0 %v1660
  %6003 = vmatmul.mubr.bf16.gmra.mrb[0].mxu0 %v1659
  %v6004 = vpop.f32.mrb[0].mxu0
  %v6005 = vadd.f32 %v1007, %v6004
  %v6006 = vpop.f32.mrb[0].mxu0
  %v6007 = vadd.f32 %v1011, %v6006
  %v6008 = vpop.f32.mrb[0].mxu0
  %v6009 = vadd.f32 %v1007, %v6008
  %v6010 = vpop.f32.mrb[0].mxu0
  %v6011 = vadd.f32 %v1011, %v6010
  %6012 = vmatprep.mubr.bf16.mxu0 %v1701
  %6013 = vmatmul.mubr.bf16.gmra.mrb[0].mxu0 %v1700
  %v6014 = vpop.f32.mrb[0].mxu0
  %v6015 = vadd.f32 %v1007, %v6014
  %v6016 = vpop.f32.mrb[0].mxu0
  %v6017 = vadd.f32 %v1011, %v6016
  %v6018 = vpop.f32.mrb[0].mxu0
  %v6019 = vadd.f32 %v1007, %v6018
  %v6020 = vpop.f32.mrb[0].mxu0
  %v6021 = vadd.f32 %v1011, %v6020
  %6022 = vmatprep.mubr.bf16.mxu0 %v1742
  %6023 = vmatmul.mubr.bf16.gmra.mrb[0].mxu0 %v1741
  %v6024 = vpop.f32.mrb[0].mxu0
  %v6025 = vadd.f32 %v1007, %v6024
  %v6026 = vpop.f32.mrb[0].mxu0
  %v6027 = vadd.f32 %v1011, %v6026
  %v6028 = vpop.f32.mrb[0].mxu0
  %v6029 = vpop.f32.mrb[0].mxu0
  %6030 = vdwg.mxu0
  %6031 = vmatprep.subr.bf16.mxu0 %v4341
  %6032 = vmatpush1.bf16.xpose.msra.mxu0 %v4340
  %6033 = vmatprep.subr.bf16.mxu0 %v4382
  %6034 = vmatpush1.bf16.xpose.msra.mxu0 %v4381
  %6035 = vmatprep.subr.bf16.mxu0 %v4423
  %6036 = vmatpush1.bf16.xpose.msra.mxu0 %v4422
  %6037 = vmatprep.subr.bf16.mxu0 %v4464
  %6038 = vmatpush1.bf16.xpose.msra.mxu0 %v4463
  %6039 = vmatprep.subr.bf16.mxu0 %v4505
  %6040 = vmatpush1.bf16.xpose.msra.mxu0 %v4504
  %6041 = vmatprep.subr.bf16.mxu0 %v4546
  %6042 = vmatpush1.bf16.xpose.msra.mxu0 %v4545
  %6043 = vmatprep.subr.bf16.mxu0 %v4587
  %6044 = vmatpush1.bf16.xpose.msra.mxu0 %v4586
  %6045 = vmatprep.subr.bf16.mxu0 %v4628
  %6046 = vmatpush1.bf16.xpose.msra.mxu0 %v4627
  %6047 = vmatprep.subr.bf16.mxu0 %v4669
  %6048 = vmatpush1.bf16.xpose.msra.mxu0 %v4668
  %6049 = vmatprep.subr.bf16.mxu0 %v4710
  %6050 = vmatpush1.bf16.xpose.msra.mxu0 %v4709
  %6051 = vmatprep.subr.bf16.mxu0 %v4751
  %6052 = vmatpush1.bf16.xpose.msra.mxu0 %v4750
  %6053 = vmatprep.subr.bf16.mxu0 %v4792
  %6054 = vmatpush1.bf16.xpose.msra.mxu0 %v4791
  %6055 = vmatprep.subr.bf16.mxu0 %v4833
  %6056 = vmatpush1.bf16.xpose.msra.mxu0 %v4832
  %6057 = vmatprep.subr.bf16.mxu0 %v4874
  %6058 = vmatpush1.bf16.xpose.msra.mxu0 %v4873
  %6059 = vmatprep.subr.bf16.mxu0 %v4915
  %6060 = vmatpush1.bf16.xpose.msra.mxu0 %v4914
  %6061 = vmatprep.subr.bf16.mxu0 %v4956
  %6062 = vmatpush1.bf16.xpose.msra.mxu0 %v4955
  %6063 = vmatprep.mubr.bf16.mxu0 %v1580
  %6064 = vmatmul.mubr.bf16.gmra.mrb[0].mxu0 %v1579
  %v6065 = vpop.f32.mrb[0].mxu0
  %v6066 = vadd.f32 %v5985, %v6065
  %v6067 = vpop.f32.mrb[0].mxu0
  %v6068 = vadd.f32 %v5987, %v6067
  %v6069 = vpop.f32.mrb[0].mxu0
  %v6070 = vadd.f32 %v5989, %v6069
  %v6071 = vpop.f32.mrb[0].mxu0
  %v6072 = vadd.f32 %v5991, %v6071
  %6073 = vmatprep.mubr.bf16.mxu0 %v1621
  %6074 = vmatmul.mubr.bf16.gmra.mrb[0].mxu0 %v1620
  %v6075 = vpop.f32.mrb[0].mxu0
  %v6076 = vadd.f32 %v5995, %v6075
  %v6077 = vpop.f32.mrb[0].mxu0
  %v6078 = vadd.f32 %v5997, %v6077
  %v6079 = vpop.f32.mrb[0].mxu0
  %v6080 = vadd.f32 %v5999, %v6079
  %v6081 = vpop.f32.mrb[0].mxu0
  %v6082 = vadd.f32 %v6001, %v6081
  %6083 = vmatprep.mubr.bf16.mxu0 %v1662
  %6084 = vmatmul.mubr.bf16.gmra.mrb[0].mxu0 %v1661
  %v6085 = vpop.f32.mrb[0].mxu0
  %v6086 = vadd.f32 %v6005, %v6085
  %v6087 = vpop.f32.mrb[0].mxu0
  %v6088 = vadd.f32 %v6007, %v6087
  %v6089 = vpop.f32.mrb[0].mxu0
  %v6090 = vadd.f32 %v6009, %v6089
  %v6091 = vpop.f32.mrb[0].mxu0
  %v6092 = vadd.f32 %v6011, %v6091
  %6093 = vmatprep.mubr.bf16.mxu0 %v1703
  %6094 = vmatmul.mubr.bf16.gmra.mrb[0].mxu0 %v1702
  %v6095 = vpop.f32.mrb[0].mxu0
  %v6096 = vadd.f32 %v6015, %v6095
  %v6097 = vpop.f32.mrb[0].mxu0
  %v6098 = vadd.f32 %v6017, %v6097
  %v6099 = vpop.f32.mrb[0].mxu0
  %v6100 = vadd.f32 %v6019, %v6099
  %v6101 = vpop.f32.mrb[0].mxu0
  %v6102 = vadd.f32 %v6021, %v6101
  %6103 = vmatprep.mubr.bf16.mxu0 %v1744
  %6104 = vmatmul.mubr.bf16.gmra.mrb[0].mxu0 %v1743
  %v6105 = vpop.f32.mrb[0].mxu0
  %v6106 = vadd.f32 %v6025, %v6105
  %v6107 = vpop.f32.mrb[0].mxu0
  %v6108 = vadd.f32 %v6027, %v6107
  %v6109 = vpop.f32.mrb[0].mxu0
  %v6110 = vpop.f32.mrb[0].mxu0
  %6111 = vdwg.mxu0
  %6112 = vmatprep.subr.bf16.mxu0 %v4343
  %6113 = vmatpush1.bf16.xpose.msra.mxu0 %v4342
  %6114 = vmatprep.subr.bf16.mxu0 %v4384
  %6115 = vmatpush1.bf16.xpose.msra.mxu0 %v4383
  %6116 = vmatprep.subr.bf16.mxu0 %v4425
  %6117 = vmatpush1.bf16.xpose.msra.mxu0 %v4424
  %6118 = vmatprep.subr.bf16.mxu0 %v4466
  %6119 = vmatpush1.bf16.xpose.msra.mxu0 %v4465
  %6120 = vmatprep.subr.bf16.mxu0 %v4507
  %6121 = vmatpush1.bf16.xpose.msra.mxu0 %v4506
  %6122 = vmatprep.subr.bf16.mxu0 %v4548
  %6123 = vmatpush1.bf16.xpose.msra.mxu0 %v4547
  %6124 = vmatprep.subr.bf16.mxu0 %v4589
  %6125 = vmatpush1.bf16.xpose.msra.mxu0 %v4588
  %6126 = vmatprep.subr.bf16.mxu0 %v4630
  %6127 = vmatpush1.bf16.xpose.msra.mxu0 %v4629
  %6128 = vmatprep.subr.bf16.mxu0 %v4671
  %6129 = vmatpush1.bf16.xpose.msra.mxu0 %v4670
  %6130 = vmatprep.subr.bf16.mxu0 %v4712
  %6131 = vmatpush1.bf16.xpose.msra.mxu0 %v4711
  %6132 = vmatprep.subr.bf16.mxu0 %v4753
  %6133 = vmatpush1.bf16.xpose.msra.mxu0 %v4752
  %6134 = vmatprep.subr.bf16.mxu0 %v4794
  %6135 = vmatpush1.bf16.xpose.msra.mxu0 %v4793
  %6136 = vmatprep.subr.bf16.mxu0 %v4835
  %6137 = vmatpush1.bf16.xpose.msra.mxu0 %v4834
  %6138 = vmatprep.subr.bf16.mxu0 %v4876
  %6139 = vmatpush1.bf16.xpose.msra.mxu0 %v4875
  %6140 = vmatprep.subr.bf16.mxu0 %v4917
  %6141 = vmatpush1.bf16.xpose.msra.mxu0 %v4916
  %6142 = vmatprep.subr.bf16.mxu0 %v4958
  %6143 = vmatpush1.bf16.xpose.msra.mxu0 %v4957
  %6144 = vmatprep.mubr.bf16.mxu0 %v1582
  %6145 = vmatmul.mubr.bf16.gmra.mrb[0].mxu0 %v1581
  %v6146 = vpop.f32.mrb[0].mxu0
  %v6147 = vadd.f32 %v6066, %v6146
  %v6148 = vpop.f32.mrb[0].mxu0
  %v6149 = vadd.f32 %v6068, %v6148
  %v6150 = vpop.f32.mrb[0].mxu0
  %v6151 = vadd.f32 %v6070, %v6150
  %v6152 = vpop.f32.mrb[0].mxu0
  %v6153 = vadd.f32 %v6072, %v6152
  %6154 = vmatprep.mubr.bf16.mxu0 %v1623
  %6155 = vmatmul.mubr.bf16.gmra.mrb[0].mxu0 %v1622
  %v6156 = vpop.f32.mrb[0].mxu0
  %v6157 = vadd.f32 %v6076, %v6156
  %v6158 = vpop.f32.mrb[0].mxu0
  %v6159 = vadd.f32 %v6078, %v6158
  %v6160 = vpop.f32.mrb[0].mxu0
  %v6161 = vadd.f32 %v6080, %v6160
  %v6162 = vpop.f32.mrb[0].mxu0
  %v6163 = vadd.f32 %v6082, %v6162
  %6164 = vmatprep.mubr.bf16.mxu0 %v1664
  %6165 = vmatmul.mubr.bf16.gmra.mrb[0].mxu0 %v1663
  %v6166 = vpop.f32.mrb[0].mxu0
  %v6167 = vadd.f32 %v6086, %v6166
  %v6168 = vpop.f32.mrb[0].mxu0
  %v6169 = vadd.f32 %v6088, %v6168
  %v6170 = vpop.f32.mrb[0].mxu0
  %v6171 = vadd.f32 %v6090, %v6170
  %v6172 = vpop.f32.mrb[0].mxu0
  %v6173 = vadd.f32 %v6092, %v6172
  %6174 = vmatprep.mubr.bf16.mxu0 %v1705
  %6175 = vmatmul.mubr.bf16.gmra.mrb[0].mxu0 %v1704
  %v6176 = vpop.f32.mrb[0].mxu0
  %v6177 = vadd.f32 %v6096, %v6176
  %v6178 = vpop.f32.mrb[0].mxu0
  %v6179 = vadd.f32 %v6098, %v6178
  %v6180 = vpop.f32.mrb[0].mxu0
  %v6181 = vadd.f32 %v6100, %v6180
  %v6182 = vpop.f32.mrb[0].mxu0
  %v6183 = vadd.f32 %v6102, %v6182
  %6184 = vmatprep.mubr.bf16.mxu0 %v1746
  %6185 = vmatmul.mubr.bf16.gmra.mrb[0].mxu0 %v1745
  %v6186 = vpop.f32.mrb[0].mxu0
  %v6187 = vadd.f32 %v6106, %v6186
  %v6188 = vpop.f32.mrb[0].mxu0
  %v6189 = vadd.f32 %v6108, %v6188
  %v6190 = vpop.f32.mrb[0].mxu0
  %v6191 = vpop.f32.mrb[0].mxu0
  %6192 = vdwg.mxu0
  %6193 = vmatprep.subr.bf16.mxu0 %v4345
  %6194 = vmatpush1.bf16.xpose.msra.mxu0 %v4344
  %6195 = vmatprep.subr.bf16.mxu0 %v4386
  %6196 = vmatpush1.bf16.xpose.msra.mxu0 %v4385
  %6197 = vmatprep.subr.bf16.mxu0 %v4427
  %6198 = vmatpush1.bf16.xpose.msra.mxu0 %v4426
  %6199 = vmatprep.subr.bf16.mxu0 %v4468
  %6200 = vmatpush1.bf16.xpose.msra.mxu0 %v4467
  %6201 = vmatprep.subr.bf16.mxu0 %v4509
  %6202 = vmatpush1.bf16.xpose.msra.mxu0 %v4508
  %6203 = vmatprep.subr.bf16.mxu0 %v4550
  %6204 = vmatpush1.bf16.xpose.msra.mxu0 %v4549
  %6205 = vmatprep.subr.bf16.mxu0 %v4591
  %6206 = vmatpush1.bf16.xpose.msra.mxu0 %v4590
  %6207 = vmatprep.subr.bf16.mxu0 %v4632
  %6208 = vmatpush1.bf16.xpose.msra.mxu0 %v4631
  %6209 = vmatprep.subr.bf16.mxu0 %v4673
  %6210 = vmatpush1.bf16.xpose.msra.mxu0 %v4672
  %6211 = vmatprep.subr.bf16.mxu0 %v4714
  %6212 = vmatpush1.bf16.xpose.msra.mxu0 %v4713
  %6213 = vmatprep.subr.bf16.mxu0 %v4755
  %6214 = vmatpush1.bf16.xpose.msra.mxu0 %v4754
  %6215 = vmatprep.subr.bf16.mxu0 %v4796
  %6216 = vmatpush1.bf16.xpose.msra.mxu0 %v4795
  %6217 = vmatprep.subr.bf16.mxu0 %v4837
  %6218 = vmatpush1.bf16.xpose.msra.mxu0 %v4836
  %6219 = vmatprep.subr.bf16.mxu0 %v4878
  %6220 = vmatpush1.bf16.xpose.msra.mxu0 %v4877
  %6221 = vmatprep.subr.bf16.mxu0 %v4919
  %6222 = vmatpush1.bf16.xpose.msra.mxu0 %v4918
  %6223 = vmatprep.subr.bf16.mxu0 %v4960
  %6224 = vmatpush1.bf16.xpose.msra.mxu0 %v4959
  %6225 = vmatprep.mubr.bf16.mxu0 %v1584
  %6226 = vmatmul.mubr.bf16.gmra.mrb[0].mxu0 %v1583
  %v6227 = vpop.f32.mrb[0].mxu0
  %v6228 = vadd.f32 %v6147, %v6227
  %v6229 = vpop.f32.mrb[0].mxu0
  %v6230 = vadd.f32 %v6149, %v6229
  %v6231 = vpop.f32.mrb[0].mxu0
  %v6232 = vadd.f32 %v6151, %v6231
  %v6233 = vpop.f32.mrb[0].mxu0
  %v6234 = vadd.f32 %v6153, %v6233
  %6235 = vmatprep.mubr.bf16.mxu0 %v1625
  %6236 = vmatmul.mubr.bf16.gmra.mrb[0].mxu0 %v1624
  %v6237 = vpop.f32.mrb[0].mxu0
  %v6238 = vadd.f32 %v6157, %v6237
  %v6239 = vpop.f32.mrb[0].mxu0
  %v6240 = vadd.f32 %v6159, %v6239
  %v6241 = vpop.f32.mrb[0].mxu0
  %v6242 = vadd.f32 %v6161, %v6241
  %v6243 = vpop.f32.mrb[0].mxu0
  %v6244 = vadd.f32 %v6163, %v6243
  %6245 = vmatprep.mubr.bf16.mxu0 %v1666
  %6246 = vmatmul.mubr.bf16.gmra.mrb[0].mxu0 %v1665
  %v6247 = vpop.f32.mrb[0].mxu0
  %v6248 = vadd.f32 %v6167, %v6247
  %v6249 = vpop.f32.mrb[0].mxu0
  %v6250 = vadd.f32 %v6169, %v6249
  %v6251 = vpop.f32.mrb[0].mxu0
  %v6252 = vadd.f32 %v6171, %v6251
  %v6253 = vpop.f32.mrb[0].mxu0
  %v6254 = vadd.f32 %v6173, %v6253
  %6255 = vmatprep.mubr.bf16.mxu0 %v1707
  %6256 = vmatmul.mubr.bf16.gmra.mrb[0].mxu0 %v1706
  %v6257 = vpop.f32.mrb[0].mxu0
  %v6258 = vadd.f32 %v6177, %v6257
  %v6259 = vpop.f32.mrb[0].mxu0
  %v6260 = vadd.f32 %v6179, %v6259
  %v6261 = vpop.f32.mrb[0].mxu0
  %v6262 = vadd.f32 %v6181, %v6261
  %v6263 = vpop.f32.mrb[0].mxu0
  %v6264 = vadd.f32 %v6183, %v6263
  %6265 = vmatprep.mubr.bf16.mxu0 %v1748
  %6266 = vmatmul.mubr.bf16.gmra.mrb[0].mxu0 %v1747
  %v6267 = vpop.f32.mrb[0].mxu0
  %v6268 = vadd.f32 %v6187, %v6267
  %v6269 = vpop.f32.mrb[0].mxu0
  %v6270 = vadd.f32 %v6189, %v6269
  %v6271 = vpop.f32.mrb[0].mxu0
  %v6272 = vpop.f32.mrb[0].mxu0
  %6273 = vdwg.mxu0
  %6274 = vmatprep.subr.bf16.mxu0 %v4347
  %6275 = vmatpush1.bf16.xpose.msra.mxu0 %v4346
  %6276 = vmatprep.subr.bf16.mxu0 %v4388
  %6277 = vmatpush1.bf16.xpose.msra.mxu0 %v4387
  %6278 = vmatprep.subr.bf16.mxu0 %v4429
  %6279 = vmatpush1.bf16.xpose.msra.mxu0 %v4428
  %6280 = vmatprep.subr.bf16.mxu0 %v4470
  %6281 = vmatpush1.bf16.xpose.msra.mxu0 %v4469
  %6282 = vmatprep.subr.bf16.mxu0 %v4511
  %6283 = vmatpush1.bf16.xpose.msra.mxu0 %v4510
  %6284 = vmatprep.subr.bf16.mxu0 %v4552
  %6285 = vmatpush1.bf16.xpose.msra.mxu0 %v4551
  %6286 = vmatprep.subr.bf16.mxu0 %v4593
  %6287 = vmatpush1.bf16.xpose.msra.mxu0 %v4592
  %6288 = vmatprep.subr.bf16.mxu0 %v4634
  %6289 = vmatpush1.bf16.xpose.msra.mxu0 %v4633
  %6290 = vmatprep.subr.bf16.mxu0 %v4675
  %6291 = vmatpush1.bf16.xpose.msra.mxu0 %v4674
  %6292 = vmatprep.subr.bf16.mxu0 %v4716
  %6293 = vmatpush1.bf16.xpose.msra.mxu0 %v4715
  %6294 = vmatprep.subr.bf16.mxu0 %v4757
  %6295 = vmatpush1.bf16.xpose.msra.mxu0 %v4756
  %6296 = vmatprep.subr.bf16.mxu0 %v4798
  %6297 = vmatpush1.bf16.xpose.msra.mxu0 %v4797
  %6298 = vmatprep.subr.bf16.mxu0 %v4839
  %6299 = vmatpush1.bf16.xpose.msra.mxu0 %v4838
  %6300 = vmatprep.subr.bf16.mxu0 %v4880
  %6301 = vmatpush1.bf16.xpose.msra.mxu0 %v4879
  %6302 = vmatprep.subr.bf16.mxu0 %v4921
  %6303 = vmatpush1.bf16.xpose.msra.mxu0 %v4920
  %6304 = vmatprep.subr.bf16.mxu0 %v4962
  %6305 = vmatpush1.bf16.xpose.msra.mxu0 %v4961
  %6306 = vmatprep.mubr.bf16.mxu0 %v1586
  %6307 = vmatmul.mubr.bf16.gmra.mrb[0].mxu0 %v1585
  %v6308 = vpop.f32.mrb[0].mxu0
  %v6309 = vadd.f32 %v6228, %v6308
  %v6310 = vpop.f32.mrb[0].mxu0
  %v6311 = vadd.f32 %v6230, %v6310
  %v6312 = vpop.f32.mrb[0].mxu0
  %v6313 = vadd.f32 %v6232, %v6312
  %v6314 = vpop.f32.mrb[0].mxu0
  %v6315 = vadd.f32 %v6234, %v6314
  %6316 = vmatprep.mubr.bf16.mxu0 %v1627
  %6317 = vmatmul.mubr.bf16.gmra.mrb[0].mxu0 %v1626
  %v6318 = vpop.f32.mrb[0].mxu0
  %v6319 = vadd.f32 %v6238, %v6318
  %v6320 = vpop.f32.mrb[0].mxu0
  %v6321 = vadd.f32 %v6240, %v6320
  %v6322 = vpop.f32.mrb[0].mxu0
  %v6323 = vadd.f32 %v6242, %v6322
  %v6324 = vpop.f32.mrb[0].mxu0
  %v6325 = vadd.f32 %v6244, %v6324
  %6326 = vmatprep.mubr.bf16.mxu0 %v1668
  %6327 = vmatmul.mubr.bf16.gmra.mrb[0].mxu0 %v1667
  %v6328 = vpop.f32.mrb[0].mxu0
  %v6329 = vadd.f32 %v6248, %v6328
  %v6330 = vpop.f32.mrb[0].mxu0
  %v6331 = vadd.f32 %v6250, %v6330
  %v6332 = vpop.f32.mrb[0].mxu0
  %v6333 = vadd.f32 %v6252, %v6332
  %v6334 = vpop.f32.mrb[0].mxu0
  %v6335 = vadd.f32 %v6254, %v6334
  %6336 = vmatprep.mubr.bf16.mxu0 %v1709
  %6337 = vmatmul.mubr.bf16.gmra.mrb[0].mxu0 %v1708
  %v6338 = vpop.f32.mrb[0].mxu0
  %v6339 = vadd.f32 %v6258, %v6338
  %v6340 = vpop.f32.mrb[0].mxu0
  %v6341 = vadd.f32 %v6260, %v6340
  %v6342 = vpop.f32.mrb[0].mxu0
  %v6343 = vadd.f32 %v6262, %v6342
  %v6344 = vpop.f32.mrb[0].mxu0
  %v6345 = vadd.f32 %v6264, %v6344
  %6346 = vmatprep.mubr.bf16.mxu0 %v1750
  %6347 = vmatmul.mubr.bf16.gmra.mrb[0].mxu0 %v1749
  %v6348 = vpop.f32.mrb[0].mxu0
  %v6349 = vadd.f32 %v6268, %v6348
  %v6350 = vpop.f32.mrb[0].mxu0
  %v6351 = vadd.f32 %v6270, %v6350
  %v6352 = vpop.f32.mrb[0].mxu0
  %v6353 = vpop.f32.mrb[0].mxu0
  %6354 = vdwg.mxu0
  %6355 = vmatprep.subr.bf16.mxu0 %v4349
  %6356 = vmatpush1.bf16.xpose.msra.mxu0 %v4348
  %6357 = vmatprep.subr.bf16.mxu0 %v4390
  %6358 = vmatpush1.bf16.xpose.msra.mxu0 %v4389
  %6359 = vmatprep.subr.bf16.mxu0 %v4431
  %6360 = vmatpush1.bf16.xpose.msra.mxu0 %v4430
  %6361 = vmatprep.subr.bf16.mxu0 %v4472
  %6362 = vmatpush1.bf16.xpose.msra.mxu0 %v4471
  %6363 = vmatprep.subr.bf16.mxu0 %v4513
  %6364 = vmatpush1.bf16.xpose.msra.mxu0 %v4512
  %6365 = vmatprep.subr.bf16.mxu0 %v4554
  %6366 = vmatpush1.bf16.xpose.msra.mxu0 %v4553
  %6367 = vmatprep.subr.bf16.mxu0 %v4595
  %6368 = vmatpush1.bf16.xpose.msra.mxu0 %v4594
  %6369 = vmatprep.subr.bf16.mxu0 %v4636
  %6370 = vmatpush1.bf16.xpose.msra.mxu0 %v4635
  %6371 = vmatprep.subr.bf16.mxu0 %v4677
  %6372 = vmatpush1.bf16.xpose.msra.mxu0 %v4676
  %6373 = vmatprep.subr.bf16.mxu0 %v4718
  %6374 = vmatpush1.bf16.xpose.msra.mxu0 %v4717
  %6375 = vmatprep.subr.bf16.mxu0 %v4759
  %6376 = vmatpush1.bf16.xpose.msra.mxu0 %v4758
  %6377 = vmatprep.subr.bf16.mxu0 %v4800
  %6378 = vmatpush1.bf16.xpose.msra.mxu0 %v4799
  %6379 = vmatprep.subr.bf16.mxu0 %v4841
  %6380 = vmatpush1.bf16.xpose.msra.mxu0 %v4840
  %6381 = vmatprep.subr.bf16.mxu0 %v4882
  %6382 = vmatpush1.bf16.xpose.msra.mxu0 %v4881
  %6383 = vmatprep.subr.bf16.mxu0 %v4923
  %6384 = vmatpush1.bf16.xpose.msra.mxu0 %v4922
  %6385 = vmatprep.subr.bf16.mxu0 %v4964
  %6386 = vmatpush1.bf16.xpose.msra.mxu0 %v4963
  %6387 = vmatprep.mubr.bf16.mxu0 %v1588
  %6388 = vmatmul.mubr.bf16.gmra.mrb[0].mxu0 %v1587
  %v6389 = vpop.f32.mrb[0].mxu0
  %v6390 = vadd.f32 %v6309, %v6389
  %v6391 = vpop.f32.mrb[0].mxu0
  %v6392 = vadd.f32 %v6311, %v6391
  %v6393 = vpop.f32.mrb[0].mxu0
  %v6394 = vadd.f32 %v6313, %v6393
  %v6395 = vpop.f32.mrb[0].mxu0
  %v6396 = vadd.f32 %v6315, %v6395
  %6397 = vmatprep.mubr.bf16.mxu0 %v1629
  %6398 = vmatmul.mubr.bf16.gmra.mrb[0].mxu0 %v1628
  %v6399 = vpop.f32.mrb[0].mxu0
  %v6400 = vadd.f32 %v6319, %v6399
  %v6401 = vpop.f32.mrb[0].mxu0
  %v6402 = vadd.f32 %v6321, %v6401
  %v6403 = vpop.f32.mrb[0].mxu0
  %v6404 = vadd.f32 %v6323, %v6403
  %v6405 = vpop.f32.mrb[0].mxu0
  %v6406 = vadd.f32 %v6325, %v6405
  %6407 = vmatprep.mubr.bf16.mxu0 %v1670
  %6408 = vmatmul.mubr.bf16.gmra.mrb[0].mxu0 %v1669
  %v6409 = vpop.f32.mrb[0].mxu0
  %v6410 = vadd.f32 %v6329, %v6409
  %v6411 = vpop.f32.mrb[0].mxu0
  %v6412 = vadd.f32 %v6331, %v6411
  %v6413 = vpop.f32.mrb[0].mxu0
  %v6414 = vadd.f32 %v6333, %v6413
  %v6415 = vpop.f32.mrb[0].mxu0
  %v6416 = vadd.f32 %v6335, %v6415
  %6417 = vmatprep.mubr.bf16.mxu0 %v1711
  %6418 = vmatmul.mubr.bf16.gmra.mrb[0].mxu0 %v1710
  %v6419 = vpop.f32.mrb[0].mxu0
  %v6420 = vadd.f32 %v6339, %v6419
  %v6421 = vpop.f32.mrb[0].mxu0
  %v6422 = vadd.f32 %v6341, %v6421
  %v6423 = vpop.f32.mrb[0].mxu0
  %v6424 = vadd.f32 %v6343, %v6423
  %v6425 = vpop.f32.mrb[0].mxu0
  %v6426 = vadd.f32 %v6345, %v6425
  %6427 = vmatprep.mubr.bf16.mxu0 %v1752
  %6428 = vmatmul.mubr.bf16.gmra.mrb[0].mxu0 %v1751
  %v6429 = vpop.f32.mrb[0].mxu0
  %v6430 = vadd.f32 %v6349, %v6429
  %v6431 = vpop.f32.mrb[0].mxu0
  %v6432 = vadd.f32 %v6351, %v6431
  %v6433 = vpop.f32.mrb[0].mxu0
  %v6434 = vpop.f32.mrb[0].mxu0
  %6435 = vdwg.mxu0
  %6436 = vmatprep.subr.bf16.mxu0 %v4351
  %6437 = vmatpush1.bf16.xpose.msra.mxu0 %v4350
  %6438 = vmatprep.subr.bf16.mxu0 %v4392
  %6439 = vmatpush1.bf16.xpose.msra.mxu0 %v4391
  %6440 = vmatprep.subr.bf16.mxu0 %v4433
  %6441 = vmatpush1.bf16.xpose.msra.mxu0 %v4432
  %6442 = vmatprep.subr.bf16.mxu0 %v4474
  %6443 = vmatpush1.bf16.xpose.msra.mxu0 %v4473
  %6444 = vmatprep.subr.bf16.mxu0 %v4515
  %6445 = vmatpush1.bf16.xpose.msra.mxu0 %v4514
  %6446 = vmatprep.subr.bf16.mxu0 %v4556
  %6447 = vmatpush1.bf16.xpose.msra.mxu0 %v4555
  %6448 = vmatprep.subr.bf16.mxu0 %v4597
  %6449 = vmatpush1.bf16.xpose.msra.mxu0 %v4596
  %6450 = vmatprep.subr.bf16.mxu0 %v4638
  %6451 = vmatpush1.bf16.xpose.msra.mxu0 %v4637
  %6452 = vmatprep.subr.bf16.mxu0 %v4679
  %6453 = vmatpush1.bf16.xpose.msra.mxu0 %v4678
  %6454 = vmatprep.subr.bf16.mxu0 %v4720
  %6455 = vmatpush1.bf16.xpose.msra.mxu0 %v4719
  %6456 = vmatprep.subr.bf16.mxu0 %v4761
  %6457 = vmatpush1.bf16.xpose.msra.mxu0 %v4760
  %6458 = vmatprep.subr.bf16.mxu0 %v4802
  %6459 = vmatpush1.bf16.xpose.msra.mxu0 %v4801
  %6460 = vmatprep.subr.bf16.mxu0 %v4843
  %6461 = vmatpush1.bf16.xpose.msra.mxu0 %v4842
  %6462 = vmatprep.subr.bf16.mxu0 %v4884
  %6463 = vmatpush1.bf16.xpose.msra.mxu0 %v4883
  %6464 = vmatprep.subr.bf16.mxu0 %v4925
  %6465 = vmatpush1.bf16.xpose.msra.mxu0 %v4924
  %6466 = vmatprep.subr.bf16.mxu0 %v4966
  %6467 = vmatpush1.bf16.xpose.msra.mxu0 %v4965
  %6468 = vmatprep.mubr.bf16.mxu0 %v1590
  %6469 = vmatmul.mubr.bf16.gmra.mrb[0].mxu0 %v1589
  %v6470 = vpop.f32.mrb[0].mxu0
  %v6471 = vadd.f32 %v6390, %v6470
  %v6472 = vpop.f32.mrb[0].mxu0
  %v6473 = vadd.f32 %v6392, %v6472
  %v6474 = vpop.f32.mrb[0].mxu0
  %v6475 = vadd.f32 %v6394, %v6474
  %v6476 = vpop.f32.mrb[0].mxu0
  %v6477 = vadd.f32 %v6396, %v6476
  %6478 = vmatprep.mubr.bf16.mxu0 %v1631
  %6479 = vmatmul.mubr.bf16.gmra.mrb[0].mxu0 %v1630
  %v6480 = vpop.f32.mrb[0].mxu0
  %v6481 = vadd.f32 %v6400, %v6480
  %v6482 = vpop.f32.mrb[0].mxu0
  %v6483 = vadd.f32 %v6402, %v6482
  %v6484 = vpop.f32.mrb[0].mxu0
  %v6485 = vadd.f32 %v6404, %v6484
  %v6486 = vpop.f32.mrb[0].mxu0
  %v6487 = vadd.f32 %v6406, %v6486
  %6488 = vmatprep.mubr.bf16.mxu0 %v1672
  %6489 = vmatmul.mubr.bf16.gmra.mrb[0].mxu0 %v1671
  %v6490 = vpop.f32.mrb[0].mxu0
  %v6491 = vadd.f32 %v6410, %v6490
  %v6492 = vpop.f32.mrb[0].mxu0
  %v6493 = vadd.f32 %v6412, %v6492
  %v6494 = vpop.f32.mrb[0].mxu0
  %v6495 = vadd.f32 %v6414, %v6494
  %v6496 = vpop.f32.mrb[0].mxu0
  %v6497 = vadd.f32 %v6416, %v6496
  %6498 = vmatprep.mubr.bf16.mxu0 %v1713
  %6499 = vmatmul.mubr.bf16.gmra.mrb[0].mxu0 %v1712
  %v6500 = vpop.f32.mrb[0].mxu0
  %v6501 = vadd.f32 %v6420, %v6500
  %v6502 = vpop.f32.mrb[0].mxu0
  %v6503 = vadd.f32 %v6422, %v6502
  %v6504 = vpop.f32.mrb[0].mxu0
  %v6505 = vadd.f32 %v6424, %v6504
  %v6506 = vpop.f32.mrb[0].mxu0
  %v6507 = vadd.f32 %v6426, %v6506
  %6508 = vmatprep.mubr.bf16.mxu0 %v1754
  %6509 = vmatmul.mubr.bf16.gmra.mrb[0].mxu0 %v1753
  %v6510 = vpop.f32.mrb[0].mxu0
  %v6511 = vadd.f32 %v6430, %v6510
  %v6512 = vpop.f32.mrb[0].mxu0
  %v6513 = vadd.f32 %v6432, %v6512
  %v6514 = vpop.f32.mrb[0].mxu0
  %v6515 = vpop.f32.mrb[0].mxu0
  %6516 = vdwg.mxu0
  %6517 = vmatprep.subr.bf16.mxu0 %v4353
  %6518 = vmatpush1.bf16.xpose.msra.mxu0 %v4352
  %6519 = vmatprep.subr.bf16.mxu0 %v4394
  %6520 = vmatpush1.bf16.xpose.msra.mxu0 %v4393
  %6521 = vmatprep.subr.bf16.mxu0 %v4435
  %6522 = vmatpush1.bf16.xpose.msra.mxu0 %v4434
  %6523 = vmatprep.subr.bf16.mxu0 %v4476
  %6524 = vmatpush1.bf16.xpose.msra.mxu0 %v4475
  %6525 = vmatprep.subr.bf16.mxu0 %v4517
  %6526 = vmatpush1.bf16.xpose.msra.mxu0 %v4516
  %6527 = vmatprep.subr.bf16.mxu0 %v4558
  %6528 = vmatpush1.bf16.xpose.msra.mxu0 %v4557
  %6529 = vmatprep.subr.bf16.mxu0 %v4599
  %6530 = vmatpush1.bf16.xpose.msra.mxu0 %v4598
  %6531 = vmatprep.subr.bf16.mxu0 %v4640
  %6532 = vmatpush1.bf16.xpose.msra.mxu0 %v4639
  %6533 = vmatprep.subr.bf16.mxu0 %v4681
  %6534 = vmatpush1.bf16.xpose.msra.mxu0 %v4680
  %6535 = vmatprep.subr.bf16.mxu0 %v4722
  %6536 = vmatpush1.bf16.xpose.msra.mxu0 %v4721
  %6537 = vmatprep.subr.bf16.mxu0 %v4763
  %6538 = vmatpush1.bf16.xpose.msra.mxu0 %v4762
  %6539 = vmatprep.subr.bf16.mxu0 %v4804
  %6540 = vmatpush1.bf16.xpose.msra.mxu0 %v4803
  %6541 = vmatprep.subr.bf16.mxu0 %v4845
  %6542 = vmatpush1.bf16.xpose.msra.mxu0 %v4844
  %6543 = vmatprep.subr.bf16.mxu0 %v4886
  %6544 = vmatpush1.bf16.xpose.msra.mxu0 %v4885
  %6545 = vmatprep.subr.bf16.mxu0 %v4927
  %6546 = vmatpush1.bf16.xpose.msra.mxu0 %v4926
  %6547 = vmatprep.subr.bf16.mxu0 %v4968
  %6548 = vmatpush1.bf16.xpose.msra.mxu0 %v4967
  %6549 = vmatprep.mubr.bf16.mxu0 %v1592
  %6550 = vmatmul.mubr.bf16.gmra.mrb[0].mxu0 %v1591
  %v6551 = vpop.f32.mrb[0].mxu0
  %v6552 = vadd.f32 %v6471, %v6551
  %v6553 = vpop.f32.mrb[0].mxu0
  %v6554 = vadd.f32 %v6473, %v6553
  %v6555 = vpop.f32.mrb[0].mxu0
  %v6556 = vadd.f32 %v6475, %v6555
  %v6557 = vpop.f32.mrb[0].mxu0
  %v6558 = vadd.f32 %v6477, %v6557
  %6559 = vmatprep.mubr.bf16.mxu0 %v1633
  %6560 = vmatmul.mubr.bf16.gmra.mrb[0].mxu0 %v1632
  %v6561 = vpop.f32.mrb[0].mxu0
  %v6562 = vadd.f32 %v6481, %v6561
  %v6563 = vpop.f32.mrb[0].mxu0
  %v6564 = vadd.f32 %v6483, %v6563
  %v6565 = vpop.f32.mrb[0].mxu0
  %v6566 = vadd.f32 %v6485, %v6565
  %v6567 = vpop.f32.mrb[0].mxu0
  %v6568 = vadd.f32 %v6487, %v6567
  %6569 = vmatprep.mubr.bf16.mxu0 %v1674
  %6570 = vmatmul.mubr.bf16.gmra.mrb[0].mxu0 %v1673
  %v6571 = vpop.f32.mrb[0].mxu0
  %v6572 = vadd.f32 %v6491, %v6571
  %v6573 = vpop.f32.mrb[0].mxu0
  %v6574 = vadd.f32 %v6493, %v6573
  %v6575 = vpop.f32.mrb[0].mxu0
  %v6576 = vadd.f32 %v6495, %v6575
  %v6577 = vpop.f32.mrb[0].mxu0
  %v6578 = vadd.f32 %v6497, %v6577
  %6579 = vmatprep.mubr.bf16.mxu0 %v1715
  %6580 = vmatmul.mubr.bf16.gmra.mrb[0].mxu0 %v1714
  %v6581 = vpop.f32.mrb[0].mxu0
  %v6582 = vadd.f32 %v6501, %v6581
  %v6583 = vpop.f32.mrb[0].mxu0
  %v6584 = vadd.f32 %v6503, %v6583
  %v6585 = vpop.f32.mrb[0].mxu0
  %v6586 = vadd.f32 %v6505, %v6585
  %v6587 = vpop.f32.mrb[0].mxu0
  %v6588 = vadd.f32 %v6507, %v6587
  %6589 = vmatprep.mubr.bf16.mxu0 %v1756
  %6590 = vmatmul.mubr.bf16.gmra.mrb[0].mxu0 %v1755
  %v6591 = vpop.f32.mrb[0].mxu0
  %v6592 = vadd.f32 %v6511, %v6591
  %v6593 = vpop.f32.mrb[0].mxu0
  %v6594 = vadd.f32 %v6513, %v6593
  %v6595 = vpop.f32.mrb[0].mxu0
  %v6596 = vpop.f32.mrb[0].mxu0
  %6597 = vdwg.mxu0
  %6598 = vmatprep.subr.bf16.mxu0 %v4355
  %6599 = vmatpush1.bf16.xpose.msra.mxu0 %v4354
  %6600 = vmatprep.subr.bf16.mxu0 %v4396
  %6601 = vmatpush1.bf16.xpose.msra.mxu0 %v4395
  %6602 = vmatprep.subr.bf16.mxu0 %v4437
  %6603 = vmatpush1.bf16.xpose.msra.mxu0 %v4436
  %6604 = vmatprep.subr.bf16.mxu0 %v4478
  %6605 = vmatpush1.bf16.xpose.msra.mxu0 %v4477
  %6606 = vmatprep.subr.bf16.mxu0 %v4519
  %6607 = vmatpush1.bf16.xpose.msra.mxu0 %v4518
  %6608 = vmatprep.subr.bf16.mxu0 %v4560
  %6609 = vmatpush1.bf16.xpose.msra.mxu0 %v4559
  %6610 = vmatprep.subr.bf16.mxu0 %v4601
  %6611 = vmatpush1.bf16.xpose.msra.mxu0 %v4600
  %6612 = vmatprep.subr.bf16.mxu0 %v4642
  %6613 = vmatpush1.bf16.xpose.msra.mxu0 %v4641
  %6614 = vmatprep.subr.bf16.mxu0 %v4683
  %6615 = vmatpush1.bf16.xpose.msra.mxu0 %v4682
  %6616 = vmatprep.subr.bf16.mxu0 %v4724
  %6617 = vmatpush1.bf16.xpose.msra.mxu0 %v4723
  %6618 = vmatprep.subr.bf16.mxu0 %v4765
  %6619 = vmatpush1.bf16.xpose.msra.mxu0 %v4764
  %6620 = vmatprep.subr.bf16.mxu0 %v4806
  %6621 = vmatpush1.bf16.xpose.msra.mxu0 %v4805
  %6622 = vmatprep.subr.bf16.mxu0 %v4847
  %6623 = vmatpush1.bf16.xpose.msra.mxu0 %v4846
  %6624 = vmatprep.subr.bf16.mxu0 %v4888
  %6625 = vmatpush1.bf16.xpose.msra.mxu0 %v4887
  %6626 = vmatprep.subr.bf16.mxu0 %v4929
  %6627 = vmatpush1.bf16.xpose.msra.mxu0 %v4928
  %6628 = vmatprep.subr.bf16.mxu0 %v4970
  %6629 = vmatpush1.bf16.xpose.msra.mxu0 %v4969
  %6630 = vmatprep.mubr.bf16.mxu0 %v1594
  %6631 = vmatmul.mubr.bf16.gmra.mrb[0].mxu0 %v1593
  %v6632 = vpop.f32.mrb[0].mxu0
  %v6633 = vadd.f32 %v6552, %v6632
  %v6634 = vpop.f32.mrb[0].mxu0
  %v6635 = vadd.f32 %v6554, %v6634
  %v6636 = vpop.f32.mrb[0].mxu0
  %v6637 = vadd.f32 %v6556, %v6636
  %v6638 = vpop.f32.mrb[0].mxu0
  %v6639 = vadd.f32 %v6558, %v6638
  %6640 = vmatprep.mubr.bf16.mxu0 %v1635
  %6641 = vmatmul.mubr.bf16.gmra.mrb[0].mxu0 %v1634
  %v6642 = vpop.f32.mrb[0].mxu0
  %v6643 = vadd.f32 %v6562, %v6642
  %v6644 = vpop.f32.mrb[0].mxu0
  %v6645 = vadd.f32 %v6564, %v6644
  %v6646 = vpop.f32.mrb[0].mxu0
  %v6647 = vadd.f32 %v6566, %v6646
  %v6648 = vpop.f32.mrb[0].mxu0
  %v6649 = vadd.f32 %v6568, %v6648
  %6650 = vmatprep.mubr.bf16.mxu0 %v1676
  %6651 = vmatmul.mubr.bf16.gmra.mrb[0].mxu0 %v1675
  %v6652 = vpop.f32.mrb[0].mxu0
  %v6653 = vadd.f32 %v6572, %v6652
  %v6654 = vpop.f32.mrb[0].mxu0
  %v6655 = vadd.f32 %v6574, %v6654
  %v6656 = vpop.f32.mrb[0].mxu0
  %v6657 = vadd.f32 %v6576, %v6656
  %v6658 = vpop.f32.mrb[0].mxu0
  %v6659 = vadd.f32 %v6578, %v6658
  %6660 = vmatprep.mubr.bf16.mxu0 %v1717
  %6661 = vmatmul.mubr.bf16.gmra.mrb[0].mxu0 %v1716
  %v6662 = vpop.f32.mrb[0].mxu0
  %v6663 = vadd.f32 %v6582, %v6662
  %v6664 = vpop.f32.mrb[0].mxu0
  %v6665 = vadd.f32 %v6584, %v6664
  %v6666 = vpop.f32.mrb[0].mxu0
  %v6667 = vadd.f32 %v6586, %v6666
  %v6668 = vpop.f32.mrb[0].mxu0
  %v6669 = vadd.f32 %v6588, %v6668
  %6670 = vmatprep.mubr.bf16.mxu0 %v1758
  %6671 = vmatmul.mubr.bf16.gmra.mrb[0].mxu0 %v1757
  %v6672 = vpop.f32.mrb[0].mxu0
  %v6673 = vadd.f32 %v6592, %v6672
  %v6674 = vpop.f32.mrb[0].mxu0
  %v6675 = vadd.f32 %v6594, %v6674
  %v6676 = vpop.f32.mrb[0].mxu0
  %v6677 = vpop.f32.mrb[0].mxu0
  %6678 = vdwg.mxu0
  %6679 = vmatprep.subr.bf16.mxu0 %v4357
  %6680 = vmatpush1.bf16.xpose.msra.mxu0 %v4356
  %6681 = vmatprep.subr.bf16.mxu0 %v4398
  %6682 = vmatpush1.bf16.xpose.msra.mxu0 %v4397
  %6683 = vmatprep.subr.bf16.mxu0 %v4439
  %6684 = vmatpush1.bf16.xpose.msra.mxu0 %v4438
  %6685 = vmatprep.subr.bf16.mxu0 %v4480
  %6686 = vmatpush1.bf16.xpose.msra.mxu0 %v4479
  %6687 = vmatprep.subr.bf16.mxu0 %v4521
  %6688 = vmatpush1.bf16.xpose.msra.mxu0 %v4520
  %6689 = vmatprep.subr.bf16.mxu0 %v4562
  %6690 = vmatpush1.bf16.xpose.msra.mxu0 %v4561
  %6691 = vmatprep.subr.bf16.mxu0 %v4603
  %6692 = vmatpush1.bf16.xpose.msra.mxu0 %v4602
  %6693 = vmatprep.subr.bf16.mxu0 %v4644
  %6694 = vmatpush1.bf16.xpose.msra.mxu0 %v4643
  %6695 = vmatprep.subr.bf16.mxu0 %v4685
  %6696 = vmatpush1.bf16.xpose.msra.mxu0 %v4684
  %6697 = vmatprep.subr.bf16.mxu0 %v4726
  %6698 = vmatpush1.bf16.xpose.msra.mxu0 %v4725
  %6699 = vmatprep.subr.bf16.mxu0 %v4767
  %6700 = vmatpush1.bf16.xpose.msra.mxu0 %v4766
  %6701 = vmatprep.subr.bf16.mxu0 %v4808
  %6702 = vmatpush1.bf16.xpose.msra.mxu0 %v4807
  %6703 = vmatprep.subr.bf16.mxu0 %v4849
  %6704 = vmatpush1.bf16.xpose.msra.mxu0 %v4848
  %6705 = vmatprep.subr.bf16.mxu0 %v4890
  %6706 = vmatpush1.bf16.xpose.msra.mxu0 %v4889
  %6707 = vmatprep.subr.bf16.mxu0 %v4931
  %6708 = vmatpush1.bf16.xpose.msra.mxu0 %v4930
  %6709 = vmatprep.subr.bf16.mxu0 %v4972
  %6710 = vmatpush1.bf16.xpose.msra.mxu0 %v4971
  %6711 = vmatprep.mubr.bf16.mxu0 %v1596
  %6712 = vmatmul.mubr.bf16.gmra.mrb[0].mxu0 %v1595
  %v6713 = vpop.f32.mrb[0].mxu0
  %v6714 = vadd.f32 %v6633, %v6713
  %v6715 = vpop.f32.mrb[0].mxu0
  %v6716 = vadd.f32 %v6635, %v6715
  %v6717 = vpop.f32.mrb[0].mxu0
  %v6718 = vadd.f32 %v6637, %v6717
  %v6719 = vpop.f32.mrb[0].mxu0
  %v6720 = vadd.f32 %v6639, %v6719
  %6721 = vmatprep.mubr.bf16.mxu0 %v1637
  %6722 = vmatmul.mubr.bf16.gmra.mrb[0].mxu0 %v1636
  %v6723 = vpop.f32.mrb[0].mxu0
  %v6724 = vadd.f32 %v6643, %v6723
  %v6725 = vpop.f32.mrb[0].mxu0
  %v6726 = vadd.f32 %v6645, %v6725
  %v6727 = vpop.f32.mrb[0].mxu0
  %v6728 = vadd.f32 %v6647, %v6727
  %v6729 = vpop.f32.mrb[0].mxu0
  %v6730 = vadd.f32 %v6649, %v6729
  %6731 = vmatprep.mubr.bf16.mxu0 %v1678
  %6732 = vmatmul.mubr.bf16.gmra.mrb[0].mxu0 %v1677
  %v6733 = vpop.f32.mrb[0].mxu0
  %v6734 = vadd.f32 %v6653, %v6733
  %v6735 = vpop.f32.mrb[0].mxu0
  %v6736 = vadd.f32 %v6655, %v6735
  %v6737 = vpop.f32.mrb[0].mxu0
  %v6738 = vadd.f32 %v6657, %v6737
  %v6739 = vpop.f32.mrb[0].mxu0
  %v6740 = vadd.f32 %v6659, %v6739
  %6741 = vmatprep.mubr.bf16.mxu0 %v1719
  %6742 = vmatmul.mubr.bf16.gmra.mrb[0].mxu0 %v1718
  %v6743 = vpop.f32.mrb[0].mxu0
  %v6744 = vadd.f32 %v6663, %v6743
  %v6745 = vpop.f32.mrb[0].mxu0
  %v6746 = vadd.f32 %v6665, %v6745
  %v6747 = vpop.f32.mrb[0].mxu0
  %v6748 = vadd.f32 %v6667, %v6747
  %v6749 = vpop.f32.mrb[0].mxu0
  %v6750 = vadd.f32 %v6669, %v6749
  %6751 = vmatprep.mubr.bf16.mxu0 %v1760
  %6752 = vmatmul.mubr.bf16.gmra.mrb[0].mxu0 %v1759
  %v6753 = vpop.f32.mrb[0].mxu0
  %v6754 = vadd.f32 %v6673, %v6753
  %v6755 = vpop.f32.mrb[0].mxu0
  %v6756 = vadd.f32 %v6675, %v6755
  %v6757 = vpop.f32.mrb[0].mxu0
  %v6758 = vpop.f32.mrb[0].mxu0
  %6759 = vdwg.mxu0
  %6760 = vmatprep.subr.bf16.mxu0 %v4359
  %6761 = vmatpush1.bf16.xpose.msra.mxu0 %v4358
  %6762 = vmatprep.subr.bf16.mxu0 %v4400
  %6763 = vmatpush1.bf16.xpose.msra.mxu0 %v4399
  %6764 = vmatprep.subr.bf16.mxu0 %v4441
  %6765 = vmatpush1.bf16.xpose.msra.mxu0 %v4440
  %6766 = vmatprep.subr.bf16.mxu0 %v4482
  %6767 = vmatpush1.bf16.xpose.msra.mxu0 %v4481
  %6768 = vmatprep.subr.bf16.mxu0 %v4523
  %6769 = vmatpush1.bf16.xpose.msra.mxu0 %v4522
  %6770 = vmatprep.subr.bf16.mxu0 %v4564
  %6771 = vmatpush1.bf16.xpose.msra.mxu0 %v4563
  %6772 = vmatprep.subr.bf16.mxu0 %v4605
  %6773 = vmatpush1.bf16.xpose.msra.mxu0 %v4604
  %6774 = vmatprep.subr.bf16.mxu0 %v4646
  %6775 = vmatpush1.bf16.xpose.msra.mxu0 %v4645
  %6776 = vmatprep.subr.bf16.mxu0 %v4687
  %6777 = vmatpush1.bf16.xpose.msra.mxu0 %v4686
  %6778 = vmatprep.subr.bf16.mxu0 %v4728
  %6779 = vmatpush1.bf16.xpose.msra.mxu0 %v4727
  %6780 = vmatprep.subr.bf16.mxu0 %v4769
  %6781 = vmatpush1.bf16.xpose.msra.mxu0 %v4768
  %6782 = vmatprep.subr.bf16.mxu0 %v4810
  %6783 = vmatpush1.bf16.xpose.msra.mxu0 %v4809
  %6784 = vmatprep.subr.bf16.mxu0 %v4851
  %6785 = vmatpush1.bf16.xpose.msra.mxu0 %v4850
  %6786 = vmatprep.subr.bf16.mxu0 %v4892
  %6787 = vmatpush1.bf16.xpose.msra.mxu0 %v4891
  %6788 = vmatprep.subr.bf16.mxu0 %v4933
  %6789 = vmatpush1.bf16.xpose.msra.mxu0 %v4932
  %6790 = vmatprep.subr.bf16.mxu0 %v4974
  %6791 = vmatpush1.bf16.xpose.msra.mxu0 %v4973
  %6792 = vmatprep.mubr.bf16.mxu0 %v1598
  %6793 = vmatmul.mubr.bf16.gmra.mrb[0].mxu0 %v1597
  %v6794 = vpop.f32.mrb[0].mxu0
  %v6795 = vadd.f32 %v6714, %v6794
  %v6796 = vpop.f32.mrb[0].mxu0
  %v6797 = vadd.f32 %v6716, %v6796
  %v6798 = vpop.f32.mrb[0].mxu0
  %v6799 = vadd.f32 %v6718, %v6798
  %v6800 = vpop.f32.mrb[0].mxu0
  %v6801 = vadd.f32 %v6720, %v6800
  %6802 = vmatprep.mubr.bf16.mxu0 %v1639
  %6803 = vmatmul.mubr.bf16.gmra.mrb[0].mxu0 %v1638
  %v6804 = vpop.f32.mrb[0].mxu0
  %v6805 = vadd.f32 %v6724, %v6804
  %v6806 = vpop.f32.mrb[0].mxu0
  %v6807 = vadd.f32 %v6726, %v6806
  %v6808 = vpop.f32.mrb[0].mxu0
  %v6809 = vadd.f32 %v6728, %v6808
  %v6810 = vpop.f32.mrb[0].mxu0
  %v6811 = vadd.f32 %v6730, %v6810
  %6812 = vmatprep.mubr.bf16.mxu0 %v1680
  %6813 = vmatmul.mubr.bf16.gmra.mrb[0].mxu0 %v1679
  %v6814 = vpop.f32.mrb[0].mxu0
  %v6815 = vadd.f32 %v6734, %v6814
  %v6816 = vpop.f32.mrb[0].mxu0
  %v6817 = vadd.f32 %v6736, %v6816
  %v6818 = vpop.f32.mrb[0].mxu0
  %v6819 = vadd.f32 %v6738, %v6818
  %v6820 = vpop.f32.mrb[0].mxu0
  %v6821 = vadd.f32 %v6740, %v6820
  %6822 = vmatprep.mubr.bf16.mxu0 %v1721
  %6823 = vmatmul.mubr.bf16.gmra.mrb[0].mxu0 %v1720
  %v6824 = vpop.f32.mrb[0].mxu0
  %v6825 = vadd.f32 %v6744, %v6824
  %v6826 = vpop.f32.mrb[0].mxu0
  %v6827 = vadd.f32 %v6746, %v6826
  %v6828 = vpop.f32.mrb[0].mxu0
  %v6829 = vadd.f32 %v6748, %v6828
  %v6830 = vpop.f32.mrb[0].mxu0
  %v6831 = vadd.f32 %v6750, %v6830
  %6832 = vmatprep.mubr.bf16.mxu0 %v1762
  %6833 = vmatmul.mubr.bf16.gmra.mrb[0].mxu0 %v1761
  %v6834 = vpop.f32.mrb[0].mxu0
  %v6835 = vadd.f32 %v6754, %v6834
  %v6836 = vpop.f32.mrb[0].mxu0
  %v6837 = vadd.f32 %v6756, %v6836
  %v6838 = vpop.f32.mrb[0].mxu0
  %v6839 = vpop.f32.mrb[0].mxu0
  %6840 = vdwg.mxu0
  %6841 = vmatprep.subr.bf16.mxu0 %v4361
  %6842 = vmatpush1.bf16.xpose.msra.mxu0 %v4360
  %6843 = vmatprep.subr.bf16.mxu0 %v4402
  %6844 = vmatpush1.bf16.xpose.msra.mxu0 %v4401
  %6845 = vmatprep.subr.bf16.mxu0 %v4443
  %6846 = vmatpush1.bf16.xpose.msra.mxu0 %v4442
  %6847 = vmatprep.subr.bf16.mxu0 %v4484
  %6848 = vmatpush1.bf16.xpose.msra.mxu0 %v4483
  %6849 = vmatprep.subr.bf16.mxu0 %v4525
  %6850 = vmatpush1.bf16.xpose.msra.mxu0 %v4524
  %6851 = vmatprep.subr.bf16.mxu0 %v4566
  %6852 = vmatpush1.bf16.xpose.msra.mxu0 %v4565
  %6853 = vmatprep.subr.bf16.mxu0 %v4607
  %6854 = vmatpush1.bf16.xpose.msra.mxu0 %v4606
  %6855 = vmatprep.subr.bf16.mxu0 %v4648
  %6856 = vmatpush1.bf16.xpose.msra.mxu0 %v4647
  %6857 = vmatprep.subr.bf16.mxu0 %v4689
  %6858 = vmatpush1.bf16.xpose.msra.mxu0 %v4688
  %6859 = vmatprep.subr.bf16.mxu0 %v4730
  %6860 = vmatpush1.bf16.xpose.msra.mxu0 %v4729
  %6861 = vmatprep.subr.bf16.mxu0 %v4771
  %6862 = vmatpush1.bf16.xpose.msra.mxu0 %v4770
  %6863 = vmatprep.subr.bf16.mxu0 %v4812
  %6864 = vmatpush1.bf16.xpose.msra.mxu0 %v4811
  %6865 = vmatprep.subr.bf16.mxu0 %v4853
  %6866 = vmatpush1.bf16.xpose.msra.mxu0 %v4852
  %6867 = vmatprep.subr.bf16.mxu0 %v4894
  %6868 = vmatpush1.bf16.xpose.msra.mxu0 %v4893
  %6869 = vmatprep.subr.bf16.mxu0 %v4935
  %6870 = vmatpush1.bf16.xpose.msra.mxu0 %v4934
  %6871 = vmatprep.subr.bf16.mxu0 %v4976
  %6872 = vmatpush1.bf16.xpose.msra.mxu0 %v4975
  %6873 = vmatprep.mubr.bf16.mxu0 %v1600
  %6874 = vmatmul.mubr.bf16.gmra.mrb[0].mxu0 %v1599
  %v6875 = vpop.f32.mrb[0].mxu0
  %v6876 = vadd.f32 %v6795, %v6875
  %v6877 = vpop.f32.mrb[0].mxu0
  %v6878 = vadd.f32 %v6797, %v6877
  %v6879 = vpop.f32.mrb[0].mxu0
  %v6880 = vadd.f32 %v6799, %v6879
  %v6881 = vpop.f32.mrb[0].mxu0
  %v6882 = vadd.f32 %v6801, %v6881
  %6883 = vmatprep.mubr.bf16.mxu0 %v1641
  %6884 = vmatmul.mubr.bf16.gmra.mrb[0].mxu0 %v1640
  %v6885 = vpop.f32.mrb[0].mxu0
  %v6886 = vadd.f32 %v6805, %v6885
  %v6887 = vpop.f32.mrb[0].mxu0
  %v6888 = vadd.f32 %v6807, %v6887
  %v6889 = vpop.f32.mrb[0].mxu0
  %v6890 = vadd.f32 %v6809, %v6889
  %v6891 = vpop.f32.mrb[0].mxu0
  %v6892 = vadd.f32 %v6811, %v6891
  %6893 = vmatprep.mubr.bf16.mxu0 %v1682
  %6894 = vmatmul.mubr.bf16.gmra.mrb[0].mxu0 %v1681
  %v6895 = vpop.f32.mrb[0].mxu0
  %v6896 = vadd.f32 %v6815, %v6895
  %v6897 = vpop.f32.mrb[0].mxu0
  %v6898 = vadd.f32 %v6817, %v6897
  %v6899 = vpop.f32.mrb[0].mxu0
  %v6900 = vadd.f32 %v6819, %v6899
  %v6901 = vpop.f32.mrb[0].mxu0
  %v6902 = vadd.f32 %v6821, %v6901
  %6903 = vmatprep.mubr.bf16.mxu0 %v1723
  %6904 = vmatmul.mubr.bf16.gmra.mrb[0].mxu0 %v1722
  %v6905 = vpop.f32.mrb[0].mxu0
  %v6906 = vadd.f32 %v6825, %v6905
  %v6907 = vpop.f32.mrb[0].mxu0
  %v6908 = vadd.f32 %v6827, %v6907
  %v6909 = vpop.f32.mrb[0].mxu0
  %v6910 = vadd.f32 %v6829, %v6909
  %v6911 = vpop.f32.mrb[0].mxu0
  %v6912 = vadd.f32 %v6831, %v6911
  %6913 = vmatprep.mubr.bf16.mxu0 %v1764
  %6914 = vmatmul.mubr.bf16.gmra.mrb[0].mxu0 %v1763
  %v6915 = vpop.f32.mrb[0].mxu0
  %v6916 = vadd.f32 %v6835, %v6915
  %v6917 = vpop.f32.mrb[0].mxu0
  %v6918 = vadd.f32 %v6837, %v6917
  %v6919 = vpop.f32.mrb[0].mxu0
  %v6920 = vpop.f32.mrb[0].mxu0
  %6921 = vdwg.mxu0
  %6922 = vmatprep.subr.bf16.mxu0 %v4363
  %6923 = vmatpush1.bf16.xpose.msra.mxu0 %v4362
  %6924 = vmatprep.subr.bf16.mxu0 %v4404
  %6925 = vmatpush1.bf16.xpose.msra.mxu0 %v4403
  %6926 = vmatprep.subr.bf16.mxu0 %v4445
  %6927 = vmatpush1.bf16.xpose.msra.mxu0 %v4444
  %6928 = vmatprep.subr.bf16.mxu0 %v4486
  %6929 = vmatpush1.bf16.xpose.msra.mxu0 %v4485
  %6930 = vmatprep.subr.bf16.mxu0 %v4527
  %6931 = vmatpush1.bf16.xpose.msra.mxu0 %v4526
  %6932 = vmatprep.subr.bf16.mxu0 %v4568
  %6933 = vmatpush1.bf16.xpose.msra.mxu0 %v4567
  %6934 = vmatprep.subr.bf16.mxu0 %v4609
  %6935 = vmatpush1.bf16.xpose.msra.mxu0 %v4608
  %6936 = vmatprep.subr.bf16.mxu0 %v4650
  %6937 = vmatpush1.bf16.xpose.msra.mxu0 %v4649
  %6938 = vmatprep.subr.bf16.mxu0 %v4691
  %6939 = vmatpush1.bf16.xpose.msra.mxu0 %v4690
  %6940 = vmatprep.subr.bf16.mxu0 %v4732
  %6941 = vmatpush1.bf16.xpose.msra.mxu0 %v4731
  %6942 = vmatprep.subr.bf16.mxu0 %v4773
  %6943 = vmatpush1.bf16.xpose.msra.mxu0 %v4772
  %6944 = vmatprep.subr.bf16.mxu0 %v4814
  %6945 = vmatpush1.bf16.xpose.msra.mxu0 %v4813
  %6946 = vmatprep.subr.bf16.mxu0 %v4855
  %6947 = vmatpush1.bf16.xpose.msra.mxu0 %v4854
  %6948 = vmatprep.subr.bf16.mxu0 %v4896
  %6949 = vmatpush1.bf16.xpose.msra.mxu0 %v4895
  %6950 = vmatprep.subr.bf16.mxu0 %v4937
  %6951 = vmatpush1.bf16.xpose.msra.mxu0 %v4936
  %6952 = vmatprep.subr.bf16.mxu0 %v4978
  %6953 = vmatpush1.bf16.xpose.msra.mxu0 %v4977
  %6954 = vmatprep.mubr.bf16.mxu0 %v1602
  %6955 = vmatmul.mubr.bf16.gmra.mrb[0].mxu0 %v1601
  %v6956 = vpop.f32.mrb[0].mxu0
  %v6957 = vadd.f32 %v6876, %v6956
  %v6958 = vpop.f32.mrb[0].mxu0
  %v6959 = vadd.f32 %v6878, %v6958
  %v6960 = vpop.f32.mrb[0].mxu0
  %v6961 = vadd.f32 %v6880, %v6960
  %v6962 = vpop.f32.mrb[0].mxu0
  %v6963 = vadd.f32 %v6882, %v6962
  %6964 = vmatprep.mubr.bf16.mxu0 %v1643
  %6965 = vmatmul.mubr.bf16.gmra.mrb[0].mxu0 %v1642
  %v6966 = vpop.f32.mrb[0].mxu0
  %v6967 = vadd.f32 %v6886, %v6966
  %v6968 = vpop.f32.mrb[0].mxu0
  %v6969 = vadd.f32 %v6888, %v6968
  %v6970 = vpop.f32.mrb[0].mxu0
  %v6971 = vadd.f32 %v6890, %v6970
  %v6972 = vpop.f32.mrb[0].mxu0
  %v6973 = vadd.f32 %v6892, %v6972
  %6974 = vmatprep.mubr.bf16.mxu0 %v1684
  %6975 = vmatmul.mubr.bf16.gmra.mrb[0].mxu0 %v1683
  %v6976 = vpop.f32.mrb[0].mxu0
  %v6977 = vadd.f32 %v6896, %v6976
  %v6978 = vpop.f32.mrb[0].mxu0
  %v6979 = vadd.f32 %v6898, %v6978
  %v6980 = vpop.f32.mrb[0].mxu0
  %v6981 = vadd.f32 %v6900, %v6980
  %v6982 = vpop.f32.mrb[0].mxu0
  %v6983 = vadd.f32 %v6902, %v6982
  %6984 = vmatprep.mubr.bf16.mxu0 %v1725
  %6985 = vmatmul.mubr.bf16.gmra.mrb[0].mxu0 %v1724
  %v6986 = vpop.f32.mrb[0].mxu0
  %v6987 = vadd.f32 %v6906, %v6986
  %v6988 = vpop.f32.mrb[0].mxu0
  %v6989 = vadd.f32 %v6908, %v6988
  %v6990 = vpop.f32.mrb[0].mxu0
  %v6991 = vadd.f32 %v6910, %v6990
  %v6992 = vpop.f32.mrb[0].mxu0
  %v6993 = vadd.f32 %v6912, %v6992
  %6994 = vmatprep.mubr.bf16.mxu0 %v1766
  %6995 = vmatmul.mubr.bf16.gmra.mrb[0].mxu0 %v1765
  %v6996 = vpop.f32.mrb[0].mxu0
  %v6997 = vadd.f32 %v6916, %v6996
  %v6998 = vpop.f32.mrb[0].mxu0
  %v6999 = vadd.f32 %v6918, %v6998
  %v7000 = vpop.f32.mrb[0].mxu0
  %v7001 = vpop.f32.mrb[0].mxu0
  %7002 = vdwg.mxu0
  %7003 = vmatprep.subr.bf16.mxu0 %v4365
  %7004 = vmatpush1.bf16.xpose.msra.mxu0 %v4364
  %7005 = vmatprep.subr.bf16.mxu0 %v4406
  %7006 = vmatpush1.bf16.xpose.msra.mxu0 %v4405
  %7007 = vmatprep.subr.bf16.mxu0 %v4447
  %7008 = vmatpush1.bf16.xpose.msra.mxu0 %v4446
  %7009 = vmatprep.subr.bf16.mxu0 %v4488
  %7010 = vmatpush1.bf16.xpose.msra.mxu0 %v4487
  %7011 = vmatprep.subr.bf16.mxu0 %v4529
  %7012 = vmatpush1.bf16.xpose.msra.mxu0 %v4528
  %7013 = vmatprep.subr.bf16.mxu0 %v4570
  %7014 = vmatpush1.bf16.xpose.msra.mxu0 %v4569
  %7015 = vmatprep.subr.bf16.mxu0 %v4611
  %7016 = vmatpush1.bf16.xpose.msra.mxu0 %v4610
  %7017 = vmatprep.subr.bf16.mxu0 %v4652
  %7018 = vmatpush1.bf16.xpose.msra.mxu0 %v4651
  %7019 = vmatprep.subr.bf16.mxu0 %v4693
  %7020 = vmatpush1.bf16.xpose.msra.mxu0 %v4692
  %7021 = vmatprep.subr.bf16.mxu0 %v4734
  %7022 = vmatpush1.bf16.xpose.msra.mxu0 %v4733
  %7023 = vmatprep.subr.bf16.mxu0 %v4775
  %7024 = vmatpush1.bf16.xpose.msra.mxu0 %v4774
  %7025 = vmatprep.subr.bf16.mxu0 %v4816
  %7026 = vmatpush1.bf16.xpose.msra.mxu0 %v4815
  %7027 = vmatprep.subr.bf16.mxu0 %v4857
  %7028 = vmatpush1.bf16.xpose.msra.mxu0 %v4856
  %7029 = vmatprep.subr.bf16.mxu0 %v4898
  %7030 = vmatpush1.bf16.xpose.msra.mxu0 %v4897
  %7031 = vmatprep.subr.bf16.mxu0 %v4939
  %7032 = vmatpush1.bf16.xpose.msra.mxu0 %v4938
  %7033 = vmatprep.subr.bf16.mxu0 %v4980
  %7034 = vmatpush1.bf16.xpose.msra.mxu0 %v4979
  %7035 = vmatprep.mubr.bf16.mxu0 %v1604
  %7036 = vmatmul.mubr.bf16.gmra.mrb[0].mxu0 %v1603
  %v7037 = vpop.f32.mrb[0].mxu0
  %v7038 = vadd.f32 %v6957, %v7037
  %v7039 = vpop.f32.mrb[0].mxu0
  %v7040 = vadd.f32 %v6959, %v7039
  %v7041 = vpop.f32.mrb[0].mxu0
  %v7042 = vadd.f32 %v6961, %v7041
  %v7043 = vpop.f32.mrb[0].mxu0
  %v7044 = vadd.f32 %v6963, %v7043
  %7045 = vmatprep.mubr.bf16.mxu0 %v1645
  %7046 = vmatmul.mubr.bf16.gmra.mrb[0].mxu0 %v1644
  %v7047 = vpop.f32.mrb[0].mxu0
  %v7048 = vadd.f32 %v6967, %v7047
  %v7049 = vpop.f32.mrb[0].mxu0
  %v7050 = vadd.f32 %v6969, %v7049
  %v7051 = vpop.f32.mrb[0].mxu0
  %v7052 = vadd.f32 %v6971, %v7051
  %v7053 = vpop.f32.mrb[0].mxu0
  %v7054 = vadd.f32 %v6973, %v7053
  %7055 = vmatprep.mubr.bf16.mxu0 %v1686
  %7056 = vmatmul.mubr.bf16.gmra.mrb[0].mxu0 %v1685
  %v7057 = vpop.f32.mrb[0].mxu0
  %v7058 = vadd.f32 %v6977, %v7057
  %v7059 = vpop.f32.mrb[0].mxu0
  %v7060 = vadd.f32 %v6979, %v7059
  %v7061 = vpop.f32.mrb[0].mxu0
  %v7062 = vadd.f32 %v6981, %v7061
  %v7063 = vpop.f32.mrb[0].mxu0
  %v7064 = vadd.f32 %v6983, %v7063
  %7065 = vmatprep.mubr.bf16.mxu0 %v1727
  %7066 = vmatmul.mubr.bf16.gmra.mrb[0].mxu0 %v1726
  %v7067 = vpop.f32.mrb[0].mxu0
  %v7068 = vadd.f32 %v6987, %v7067
  %v7069 = vpop.f32.mrb[0].mxu0
  %v7070 = vadd.f32 %v6989, %v7069
  %v7071 = vpop.f32.mrb[0].mxu0
  %v7072 = vadd.f32 %v6991, %v7071
  %v7073 = vpop.f32.mrb[0].mxu0
  %v7074 = vadd.f32 %v6993, %v7073
  %7075 = vmatprep.mubr.bf16.mxu0 %v1768
  %7076 = vmatmul.mubr.bf16.gmra.mrb[0].mxu0 %v1767
  %v7077 = vpop.f32.mrb[0].mxu0
  %v7078 = vadd.f32 %v6997, %v7077
  %v7079 = vpop.f32.mrb[0].mxu0
  %v7080 = vadd.f32 %v6999, %v7079
  %v7081 = vpop.f32.mrb[0].mxu0
  %v7082 = vpop.f32.mrb[0].mxu0
  %7083 = vdwg.mxu0
  %7084 = vmatprep.subr.bf16.mxu0 %v4367
  %7085 = vmatpush1.bf16.xpose.msra.mxu0 %v4366
  %7086 = vmatprep.subr.bf16.mxu0 %v4408
  %7087 = vmatpush1.bf16.xpose.msra.mxu0 %v4407
  %7088 = vmatprep.subr.bf16.mxu0 %v4449
  %7089 = vmatpush1.bf16.xpose.msra.mxu0 %v4448
  %7090 = vmatprep.subr.bf16.mxu0 %v4490
  %7091 = vmatpush1.bf16.xpose.msra.mxu0 %v4489
  %7092 = vmatprep.subr.bf16.mxu0 %v4531
  %7093 = vmatpush1.bf16.xpose.msra.mxu0 %v4530
  %7094 = vmatprep.subr.bf16.mxu0 %v4572
  %7095 = vmatpush1.bf16.xpose.msra.mxu0 %v4571
  %7096 = vmatprep.subr.bf16.mxu0 %v4613
  %7097 = vmatpush1.bf16.xpose.msra.mxu0 %v4612
  %7098 = vmatprep.subr.bf16.mxu0 %v4654
  %7099 = vmatpush1.bf16.xpose.msra.mxu0 %v4653
  %7100 = vmatprep.subr.bf16.mxu0 %v4695
  %7101 = vmatpush1.bf16.xpose.msra.mxu0 %v4694
  %7102 = vmatprep.subr.bf16.mxu0 %v4736
  %7103 = vmatpush1.bf16.xpose.msra.mxu0 %v4735
  %7104 = vmatprep.subr.bf16.mxu0 %v4777
  %7105 = vmatpush1.bf16.xpose.msra.mxu0 %v4776
  %7106 = vmatprep.subr.bf16.mxu0 %v4818
  %7107 = vmatpush1.bf16.xpose.msra.mxu0 %v4817
  %7108 = vmatprep.subr.bf16.mxu0 %v4859
  %7109 = vmatpush1.bf16.xpose.msra.mxu0 %v4858
  %7110 = vmatprep.subr.bf16.mxu0 %v4900
  %7111 = vmatpush1.bf16.xpose.msra.mxu0 %v4899
  %7112 = vmatprep.subr.bf16.mxu0 %v4941
  %7113 = vmatpush1.bf16.xpose.msra.mxu0 %v4940
  %7114 = vmatprep.subr.bf16.mxu0 %v4982
  %7115 = vmatpush1.bf16.xpose.msra.mxu0 %v4981
  %7116 = vmatprep.mubr.bf16.mxu0 %v1606
  %7117 = vmatmul.mubr.bf16.gmra.mrb[0].mxu0 %v1605
  %v7118 = vpop.f32.mrb[0].mxu0
  %v7119 = vadd.f32 %v7038, %v7118
  %v7120 = vpop.f32.mrb[0].mxu0
  %v7121 = vadd.f32 %v7040, %v7120
  %v7122 = vpop.f32.mrb[0].mxu0
  %v7123 = vadd.f32 %v7042, %v7122
  %v7124 = vpop.f32.mrb[0].mxu0
  %v7125 = vadd.f32 %v7044, %v7124
  %7126 = vmatprep.mubr.bf16.mxu0 %v1647
  %7127 = vmatmul.mubr.bf16.gmra.mrb[0].mxu0 %v1646
  %v7128 = vpop.f32.mrb[0].mxu0
  %v7129 = vadd.f32 %v7048, %v7128
  %v7130 = vpop.f32.mrb[0].mxu0
  %v7131 = vadd.f32 %v7050, %v7130
  %v7132 = vpop.f32.mrb[0].mxu0
  %v7133 = vadd.f32 %v7052, %v7132
  %v7134 = vpop.f32.mrb[0].mxu0
  %v7135 = vadd.f32 %v7054, %v7134
  %7136 = vmatprep.mubr.bf16.mxu0 %v1688
  %7137 = vmatmul.mubr.bf16.gmra.mrb[0].mxu0 %v1687
  %v7138 = vpop.f32.mrb[0].mxu0
  %v7139 = vadd.f32 %v7058, %v7138
  %v7140 = vpop.f32.mrb[0].mxu0
  %v7141 = vadd.f32 %v7060, %v7140
  %v7142 = vpop.f32.mrb[0].mxu0
  %v7143 = vadd.f32 %v7062, %v7142
  %v7144 = vpop.f32.mrb[0].mxu0
  %v7145 = vadd.f32 %v7064, %v7144
  %7146 = vmatprep.mubr.bf16.mxu0 %v1729
  %7147 = vmatmul.mubr.bf16.gmra.mrb[0].mxu0 %v1728
  %v7148 = vpop.f32.mrb[0].mxu0
  %v7149 = vadd.f32 %v7068, %v7148
  %v7150 = vpop.f32.mrb[0].mxu0
  %v7151 = vadd.f32 %v7070, %v7150
  %v7152 = vpop.f32.mrb[0].mxu0
  %v7153 = vadd.f32 %v7072, %v7152
  %v7154 = vpop.f32.mrb[0].mxu0
  %v7155 = vadd.f32 %v7074, %v7154
  %7156 = vmatprep.mubr.bf16.mxu0 %v1770
  %7157 = vmatmul.mubr.bf16.gmra.mrb[0].mxu0 %v1769
  %v7158 = vpop.f32.mrb[0].mxu0
  %v7159 = vadd.f32 %v7078, %v7158
  %v7160 = vpop.f32.mrb[0].mxu0
  %v7161 = vadd.f32 %v7080, %v7160
  %v7162 = vpop.f32.mrb[0].mxu0
  %v7163 = vpop.f32.mrb[0].mxu0
  %7164 = vdwg.mxu0
  %7165 = vmatprep.subr.bf16.mxu0 %v4369
  %7166 = vmatpush1.bf16.xpose.msra.mxu0 %v4368
  %7167 = vmatprep.subr.bf16.mxu0 %v4410
  %7168 = vmatpush1.bf16.xpose.msra.mxu0 %v4409
  %7169 = vmatprep.subr.bf16.mxu0 %v4451
  %7170 = vmatpush1.bf16.xpose.msra.mxu0 %v4450
  %7171 = vmatprep.subr.bf16.mxu0 %v4492
  %7172 = vmatpush1.bf16.xpose.msra.mxu0 %v4491
  %7173 = vmatprep.subr.bf16.mxu0 %v4533
  %7174 = vmatpush1.bf16.xpose.msra.mxu0 %v4532
  %7175 = vmatprep.subr.bf16.mxu0 %v4574
  %7176 = vmatpush1.bf16.xpose.msra.mxu0 %v4573
  %7177 = vmatprep.subr.bf16.mxu0 %v4615
  %7178 = vmatpush1.bf16.xpose.msra.mxu0 %v4614
  %7179 = vmatprep.subr.bf16.mxu0 %v4656
  %7180 = vmatpush1.bf16.xpose.msra.mxu0 %v4655
  %7181 = vmatprep.subr.bf16.mxu0 %v4697
  %7182 = vmatpush1.bf16.xpose.msra.mxu0 %v4696
  %7183 = vmatprep.subr.bf16.mxu0 %v4738
  %7184 = vmatpush1.bf16.xpose.msra.mxu0 %v4737
  %7185 = vmatprep.subr.bf16.mxu0 %v4779
  %7186 = vmatpush1.bf16.xpose.msra.mxu0 %v4778
  %7187 = vmatprep.subr.bf16.mxu0 %v4820
  %7188 = vmatpush1.bf16.xpose.msra.mxu0 %v4819
  %7189 = vmatprep.subr.bf16.mxu0 %v4861
  %7190 = vmatpush1.bf16.xpose.msra.mxu0 %v4860
  %7191 = vmatprep.subr.bf16.mxu0 %v4902
  %7192 = vmatpush1.bf16.xpose.msra.mxu0 %v4901
  %7193 = vmatprep.subr.bf16.mxu0 %v4943
  %7194 = vmatpush1.bf16.xpose.msra.mxu0 %v4942
  %7195 = vmatprep.subr.bf16.mxu0 %v4984
  %7196 = vmatpush1.bf16.xpose.msra.mxu0 %v4983
  %7197 = vmatprep.mubr.bf16.mxu0 %v1608
  %7198 = vmatmul.mubr.bf16.gmra.mrb[0].mxu0 %v1607
  %v7199 = vpop.f32.mrb[0].mxu0
  %v7200 = vadd.f32 %v7119, %v7199
  %v7201 = vpop.f32.mrb[0].mxu0
  %v7202 = vadd.f32 %v7121, %v7201
  %v7203 = vpop.f32.mrb[0].mxu0
  %v7204 = vadd.f32 %v7123, %v7203
  %v7205 = vpop.f32.mrb[0].mxu0
  %v7206 = vadd.f32 %v7125, %v7205
  %7207 = vmatprep.mubr.bf16.mxu0 %v1649
  %7208 = vmatmul.mubr.bf16.gmra.mrb[0].mxu0 %v1648
  %v7209 = vpop.f32.mrb[0].mxu0
  %v7210 = vadd.f32 %v7129, %v7209
  %v7211 = vpop.f32.mrb[0].mxu0
  %v7212 = vadd.f32 %v7131, %v7211
  %v7213 = vpop.f32.mrb[0].mxu0
  %v7214 = vadd.f32 %v7133, %v7213
  %v7215 = vpop.f32.mrb[0].mxu0
  %v7216 = vadd.f32 %v7135, %v7215
  %7217 = vmatprep.mubr.bf16.mxu0 %v1690
  %7218 = vmatmul.mubr.bf16.gmra.mrb[0].mxu0 %v1689
  %v7219 = vpop.f32.mrb[0].mxu0
  %v7220 = vadd.f32 %v7139, %v7219
  %v7221 = vpop.f32.mrb[0].mxu0
  %v7222 = vadd.f32 %v7141, %v7221
  %v7223 = vpop.f32.mrb[0].mxu0
  %v7224 = vadd.f32 %v7143, %v7223
  %v7225 = vpop.f32.mrb[0].mxu0
  %v7226 = vadd.f32 %v7145, %v7225
  %7227 = vmatprep.mubr.bf16.mxu0 %v1731
  %7228 = vmatmul.mubr.bf16.gmra.mrb[0].mxu0 %v1730
  %v7229 = vpop.f32.mrb[0].mxu0
  %v7230 = vadd.f32 %v7149, %v7229
  %v7231 = vpop.f32.mrb[0].mxu0
  %v7232 = vadd.f32 %v7151, %v7231
  %v7233 = vpop.f32.mrb[0].mxu0
  %v7234 = vadd.f32 %v7153, %v7233
  %v7235 = vpop.f32.mrb[0].mxu0
  %v7236 = vadd.f32 %v7155, %v7235
  %7237 = vmatprep.mubr.bf16.mxu0 %v1772
  %7238 = vmatmul.mubr.bf16.gmra.mrb[0].mxu0 %v1771
  %v7239 = vpop.f32.mrb[0].mxu0
  %v7240 = vadd.f32 %v7159, %v7239
  %v7241 = vpop.f32.mrb[0].mxu0
  %v7242 = vadd.f32 %v7161, %v7241
  %v7243 = vpop.f32.mrb[0].mxu0
  %v7244 = vpop.f32.mrb[0].mxu0
  %7245 = vdwg.mxu0
  %7246 = vmatprep.subr.bf16.mxu0 %v4371
  %7247 = vmatpush1.bf16.xpose.msra.mxu0 %v4370
  %7248 = vmatprep.subr.bf16.mxu0 %v4412
  %7249 = vmatpush1.bf16.xpose.msra.mxu0 %v4411
  %7250 = vmatprep.subr.bf16.mxu0 %v4453
  %7251 = vmatpush1.bf16.xpose.msra.mxu0 %v4452
  %7252 = vmatprep.subr.bf16.mxu0 %v4494
  %7253 = vmatpush1.bf16.xpose.msra.mxu0 %v4493
  %7254 = vmatprep.subr.bf16.mxu0 %v4535
  %7255 = vmatpush1.bf16.xpose.msra.mxu0 %v4534
  %7256 = vmatprep.subr.bf16.mxu0 %v4576
  %7257 = vmatpush1.bf16.xpose.msra.mxu0 %v4575
  %7258 = vmatprep.subr.bf16.mxu0 %v4617
  %7259 = vmatpush1.bf16.xpose.msra.mxu0 %v4616
  %7260 = vmatprep.subr.bf16.mxu0 %v4658
  %7261 = vmatpush1.bf16.xpose.msra.mxu0 %v4657
  %7262 = vmatprep.subr.bf16.mxu0 %v4699
  %7263 = vmatpush1.bf16.xpose.msra.mxu0 %v4698
  %7264 = vmatprep.subr.bf16.mxu0 %v4740
  %7265 = vmatpush1.bf16.xpose.msra.mxu0 %v4739
  %7266 = vmatprep.subr.bf16.mxu0 %v4781
  %7267 = vmatpush1.bf16.xpose.msra.mxu0 %v4780
  %7268 = vmatprep.subr.bf16.mxu0 %v4822
  %7269 = vmatpush1.bf16.xpose.msra.mxu0 %v4821
  %7270 = vmatprep.subr.bf16.mxu0 %v4863
  %7271 = vmatpush1.bf16.xpose.msra.mxu0 %v4862
  %7272 = vmatprep.subr.bf16.mxu0 %v4904
  %7273 = vmatpush1.bf16.xpose.msra.mxu0 %v4903
  %7274 = vmatprep.subr.bf16.mxu0 %v4945
  %7275 = vmatpush1.bf16.xpose.msra.mxu0 %v4944
  %7276 = vmatprep.subr.bf16.mxu0 %v4986
  %7277 = vmatpush1.bf16.xpose.msra.mxu0 %v4985
  %7278 = vmatprep.mubr.bf16.mxu0 %v1610
  %7279 = vmatmul.mubr.bf16.gmra.mrb[0].mxu0 %v1609
  %v7280 = vpop.f32.mrb[0].mxu0
  %v7281 = vadd.f32 %v7200, %v7280
  %v7282 = vpop.f32.mrb[0].mxu0
  %v7283 = vadd.f32 %v7202, %v7282
  %v7284 = vpop.f32.mrb[0].mxu0
  %v7285 = vadd.f32 %v7204, %v7284
  %v7286 = vpop.f32.mrb[0].mxu0
  %v7287 = vadd.f32 %v7206, %v7286
  %7288 = vmatprep.mubr.bf16.mxu0 %v1651
  %7289 = vmatmul.mubr.bf16.gmra.mrb[0].mxu0 %v1650
  %v7290 = vpop.f32.mrb[0].mxu0
  %v7291 = vadd.f32 %v7210, %v7290
  %v7292 = vpop.f32.mrb[0].mxu0
  %v7293 = vadd.f32 %v7212, %v7292
  %v7294 = vpop.f32.mrb[0].mxu0
  %v7295 = vadd.f32 %v7214, %v7294
  %v7296 = vpop.f32.mrb[0].mxu0
  %v7297 = vadd.f32 %v7216, %v7296
  %7298 = vmatprep.mubr.bf16.mxu0 %v1692
  %7299 = vmatmul.mubr.bf16.gmra.mrb[0].mxu0 %v1691
  %v7300 = vpop.f32.mrb[0].mxu0
  %v7301 = vadd.f32 %v7220, %v7300
  %v7302 = vpop.f32.mrb[0].mxu0
  %v7303 = vadd.f32 %v7222, %v7302
  %v7304 = vpop.f32.mrb[0].mxu0
  %v7305 = vadd.f32 %v7224, %v7304
  %v7306 = vpop.f32.mrb[0].mxu0
  %v7307 = vadd.f32 %v7226, %v7306
  %7308 = vmatprep.mubr.bf16.mxu0 %v1733
  %7309 = vmatmul.mubr.bf16.gmra.mrb[0].mxu0 %v1732
  %v7310 = vpop.f32.mrb[0].mxu0
  %v7311 = vadd.f32 %v7230, %v7310
  %v7312 = vpop.f32.mrb[0].mxu0
  %v7313 = vadd.f32 %v7232, %v7312
  %v7314 = vpop.f32.mrb[0].mxu0
  %v7315 = vadd.f32 %v7234, %v7314
  %v7316 = vpop.f32.mrb[0].mxu0
  %v7317 = vadd.f32 %v7236, %v7316
  %7318 = vmatprep.mubr.bf16.mxu0 %v1774
  %7319 = vmatmul.mubr.bf16.gmra.mrb[0].mxu0 %v1773
  %v7320 = vpop.f32.mrb[0].mxu0
  %v7321 = vadd.f32 %v7240, %v7320
  %v7322 = vpop.f32.mrb[0].mxu0
  %v7323 = vadd.f32 %v7242, %v7322
  %v7324 = vpop.f32.mrb[0].mxu0
  %v7325 = vpop.f32.mrb[0].mxu0
  %7326 = vdwg.mxu0
  %7327 = vmatprep.subr.bf16.mxu0 %v4373
  %7328 = vmatpush1.bf16.xpose.msra.mxu0 %v4372
  %7329 = vmatprep.subr.bf16.mxu0 %v4414
  %7330 = vmatpush1.bf16.xpose.msra.mxu0 %v4413
  %7331 = vmatprep.subr.bf16.mxu0 %v4455
  %7332 = vmatpush1.bf16.xpose.msra.mxu0 %v4454
  %7333 = vmatprep.subr.bf16.mxu0 %v4496
  %7334 = vmatpush1.bf16.xpose.msra.mxu0 %v4495
  %7335 = vmatprep.subr.bf16.mxu0 %v4537
  %7336 = vmatpush1.bf16.xpose.msra.mxu0 %v4536
  %7337 = vmatprep.subr.bf16.mxu0 %v4578
  %7338 = vmatpush1.bf16.xpose.msra.mxu0 %v4577
  %7339 = vmatprep.subr.bf16.mxu0 %v4619
  %7340 = vmatpush1.bf16.xpose.msra.mxu0 %v4618
  %7341 = vmatprep.subr.bf16.mxu0 %v4660
  %7342 = vmatpush1.bf16.xpose.msra.mxu0 %v4659
  %7343 = vmatprep.subr.bf16.mxu0 %v4701
  %7344 = vmatpush1.bf16.xpose.msra.mxu0 %v4700
  %7345 = vmatprep.subr.bf16.mxu0 %v4742
  %7346 = vmatpush1.bf16.xpose.msra.mxu0 %v4741
  %7347 = vmatprep.subr.bf16.mxu0 %v4783
  %7348 = vmatpush1.bf16.xpose.msra.mxu0 %v4782
  %7349 = vmatprep.subr.bf16.mxu0 %v4824
  %7350 = vmatpush1.bf16.xpose.msra.mxu0 %v4823
  %7351 = vmatprep.subr.bf16.mxu0 %v4865
  %7352 = vmatpush1.bf16.xpose.msra.mxu0 %v4864
  %7353 = vmatprep.subr.bf16.mxu0 %v4906
  %7354 = vmatpush1.bf16.xpose.msra.mxu0 %v4905
  %7355 = vmatprep.subr.bf16.mxu0 %v4947
  %7356 = vmatpush1.bf16.xpose.msra.mxu0 %v4946
  %7357 = vmatprep.subr.bf16.mxu0 %v4988
  %7358 = vmatpush1.bf16.xpose.msra.mxu0 %v4987
  %7359 = vmatprep.mubr.bf16.mxu0 %v1612
  %7360 = vmatmul.mubr.bf16.gmra.mrb[0].mxu0 %v1611
  %v7361 = vpop.f32.mrb[0].mxu0
  %v7362 = vadd.f32 %v7281, %v7361
  %v7363 = vpop.f32.mrb[0].mxu0
  %v7364 = vadd.f32 %v7283, %v7363
  %v7365 = vpop.f32.mrb[0].mxu0
  %v7366 = vadd.f32 %v7285, %v7365
  %v7367 = vpop.f32.mrb[0].mxu0
  %v7368 = vadd.f32 %v7287, %v7367
  %7369 = vmatprep.mubr.bf16.mxu0 %v1653
  %7370 = vmatmul.mubr.bf16.gmra.mrb[0].mxu0 %v1652
  %v7371 = vpop.f32.mrb[0].mxu0
  %v7372 = vadd.f32 %v7291, %v7371
  %v7373 = vpop.f32.mrb[0].mxu0
  %v7374 = vadd.f32 %v7293, %v7373
  %v7375 = vpop.f32.mrb[0].mxu0
  %v7376 = vadd.f32 %v7295, %v7375
  %v7377 = vpop.f32.mrb[0].mxu0
  %v7378 = vadd.f32 %v7297, %v7377
  %7379 = vmatprep.mubr.bf16.mxu0 %v1694
  %7380 = vmatmul.mubr.bf16.gmra.mrb[0].mxu0 %v1693
  %v7381 = vpop.f32.mrb[0].mxu0
  %v7382 = vadd.f32 %v7301, %v7381
  %v7383 = vpop.f32.mrb[0].mxu0
  %v7384 = vadd.f32 %v7303, %v7383
  %v7385 = vpop.f32.mrb[0].mxu0
  %v7386 = vadd.f32 %v7305, %v7385
  %v7387 = vpop.f32.mrb[0].mxu0
  %v7388 = vadd.f32 %v7307, %v7387
  %7389 = vmatprep.mubr.bf16.mxu0 %v1735
  %7390 = vmatmul.mubr.bf16.gmra.mrb[0].mxu0 %v1734
  %v7391 = vpop.f32.mrb[0].mxu0
  %v7392 = vadd.f32 %v7311, %v7391
  %v7393 = vpop.f32.mrb[0].mxu0
  %v7394 = vadd.f32 %v7313, %v7393
  %v7395 = vpop.f32.mrb[0].mxu0
  %v7396 = vadd.f32 %v7315, %v7395
  %v7397 = vpop.f32.mrb[0].mxu0
  %v7398 = vadd.f32 %v7317, %v7397
  %7399 = vmatprep.mubr.bf16.mxu0 %v1776
  %7400 = vmatmul.mubr.bf16.gmra.mrb[0].mxu0 %v1775
  %v7401 = vpop.f32.mrb[0].mxu0
  %v7402 = vadd.f32 %v7321, %v7401
  %v7403 = vpop.f32.mrb[0].mxu0
  %v7404 = vadd.f32 %v7323, %v7403
  %v7405 = vpop.f32.mrb[0].mxu0
  %v7406 = vpop.f32.mrb[0].mxu0
  %7407 = vdwg.mxu0
  %7408 = vmatprep.subr.bf16.mxu0 %v4375
  %7409 = vmatpush1.bf16.xpose.msra.mxu0 %v4374
  %7410 = vmatprep.subr.bf16.mxu0 %v4416
  %7411 = vmatpush1.bf16.xpose.msra.mxu0 %v4415
  %7412 = vmatprep.subr.bf16.mxu0 %v4457
  %7413 = vmatpush1.bf16.xpose.msra.mxu0 %v4456
  %7414 = vmatprep.subr.bf16.mxu0 %v4498
  %7415 = vmatpush1.bf16.xpose.msra.mxu0 %v4497
  %7416 = vmatprep.subr.bf16.mxu0 %v4539
  %7417 = vmatpush1.bf16.xpose.msra.mxu0 %v4538
  %7418 = vmatprep.subr.bf16.mxu0 %v4580
  %7419 = vmatpush1.bf16.xpose.msra.mxu0 %v4579
  %7420 = vmatprep.subr.bf16.mxu0 %v4621
  %7421 = vmatpush1.bf16.xpose.msra.mxu0 %v4620
  %7422 = vmatprep.subr.bf16.mxu0 %v4662
  %7423 = vmatpush1.bf16.xpose.msra.mxu0 %v4661
  %7424 = vmatprep.subr.bf16.mxu0 %v4703
  %7425 = vmatpush1.bf16.xpose.msra.mxu0 %v4702
  %7426 = vmatprep.subr.bf16.mxu0 %v4744
  %7427 = vmatpush1.bf16.xpose.msra.mxu0 %v4743
  %7428 = vmatprep.subr.bf16.mxu0 %v4785
  %7429 = vmatpush1.bf16.xpose.msra.mxu0 %v4784
  %7430 = vmatprep.subr.bf16.mxu0 %v4826
  %7431 = vmatpush1.bf16.xpose.msra.mxu0 %v4825
  %7432 = vmatprep.subr.bf16.mxu0 %v4867
  %7433 = vmatpush1.bf16.xpose.msra.mxu0 %v4866
  %7434 = vmatprep.subr.bf16.mxu0 %v4908
  %7435 = vmatpush1.bf16.xpose.msra.mxu0 %v4907
  %7436 = vmatprep.subr.bf16.mxu0 %v4949
  %7437 = vmatpush1.bf16.xpose.msra.mxu0 %v4948
  %7438 = vmatprep.subr.bf16.mxu0 %v4990
  %7439 = vmatpush1.bf16.xpose.msra.mxu0 %v4989
  %7440 = vmatprep.mubr.bf16.mxu0 %v1614
  %7441 = vmatmul.mubr.bf16.gmra.mrb[0].mxu0 %v1613
  %v7442 = vpop.f32.mrb[0].mxu0
  %v7443 = vadd.f32 %v7362, %v7442
  %v7444 = vpop.f32.mrb[0].mxu0
  %v7445 = vadd.f32 %v7364, %v7444
  %v7446 = vpop.f32.mrb[0].mxu0
  %v7447 = vadd.f32 %v7366, %v7446
  %v7448 = vpop.f32.mrb[0].mxu0
  %v7449 = vadd.f32 %v7368, %v7448
  %7450 = vmatprep.mubr.bf16.mxu0 %v1655
  %7451 = vmatmul.mubr.bf16.gmra.mrb[0].mxu0 %v1654
  %v7452 = vpop.f32.mrb[0].mxu0
  %v7453 = vadd.f32 %v7372, %v7452
  %v7454 = vpop.f32.mrb[0].mxu0
  %v7455 = vadd.f32 %v7374, %v7454
  %v7456 = vpop.f32.mrb[0].mxu0
  %v7457 = vadd.f32 %v7376, %v7456
  %v7458 = vpop.f32.mrb[0].mxu0
  %v7459 = vadd.f32 %v7378, %v7458
  %7460 = vmatprep.mubr.bf16.mxu0 %v1696
  %7461 = vmatmul.mubr.bf16.gmra.mrb[0].mxu0 %v1695
  %v7462 = vpop.f32.mrb[0].mxu0
  %v7463 = vadd.f32 %v7382, %v7462
  %v7464 = vpop.f32.mrb[0].mxu0
  %v7465 = vadd.f32 %v7384, %v7464
  %v7466 = vpop.f32.mrb[0].mxu0
  %v7467 = vadd.f32 %v7386, %v7466
  %v7468 = vpop.f32.mrb[0].mxu0
  %v7469 = vadd.f32 %v7388, %v7468
  %7470 = vmatprep.mubr.bf16.mxu0 %v1737
  %7471 = vmatmul.mubr.bf16.gmra.mrb[0].mxu0 %v1736
  %v7472 = vpop.f32.mrb[0].mxu0
  %v7473 = vadd.f32 %v7392, %v7472
  %v7474 = vpop.f32.mrb[0].mxu0
  %v7475 = vadd.f32 %v7394, %v7474
  %v7476 = vpop.f32.mrb[0].mxu0
  %v7477 = vadd.f32 %v7396, %v7476
  %v7478 = vpop.f32.mrb[0].mxu0
  %v7479 = vadd.f32 %v7398, %v7478
  %7480 = vmatprep.mubr.bf16.mxu0 %v1778
  %7481 = vmatmul.mubr.bf16.gmra.mrb[0].mxu0 %v1777
  %v7482 = vpop.f32.mrb[0].mxu0
  %v7483 = vadd.f32 %v7402, %v7482
  %v7484 = vpop.f32.mrb[0].mxu0
  %v7485 = vadd.f32 %v7404, %v7484
  %v7486 = vpop.f32.mrb[0].mxu0
  %v7487 = vpop.f32.mrb[0].mxu0
  %7488 = vdwg.mxu0
  %7489 = vmatprep.subr.bf16.mxu0 %v4377
  %7490 = vmatpush1.bf16.xpose.msra.mxu0 %v4376
  %7491 = vmatprep.subr.bf16.mxu0 %v4418
  %7492 = vmatpush1.bf16.xpose.msra.mxu0 %v4417
  %7493 = vmatprep.subr.bf16.mxu0 %v4459
  %7494 = vmatpush1.bf16.xpose.msra.mxu0 %v4458
  %7495 = vmatprep.subr.bf16.mxu0 %v4500
  %7496 = vmatpush1.bf16.xpose.msra.mxu0 %v4499
  %7497 = vmatprep.subr.bf16.mxu0 %v4541
  %7498 = vmatpush1.bf16.xpose.msra.mxu0 %v4540
  %7499 = vmatprep.subr.bf16.mxu0 %v4582
  %7500 = vmatpush1.bf16.xpose.msra.mxu0 %v4581
  %7501 = vmatprep.subr.bf16.mxu0 %v4623
  %7502 = vmatpush1.bf16.xpose.msra.mxu0 %v4622
  %7503 = vmatprep.subr.bf16.mxu0 %v4664
  %7504 = vmatpush1.bf16.xpose.msra.mxu0 %v4663
  %7505 = vmatprep.subr.bf16.mxu0 %v4705
  %7506 = vmatpush1.bf16.xpose.msra.mxu0 %v4704
  %7507 = vmatprep.subr.bf16.mxu0 %v4746
  %7508 = vmatpush1.bf16.xpose.msra.mxu0 %v4745
  %7509 = vmatprep.subr.bf16.mxu0 %v4787
  %7510 = vmatpush1.bf16.xpose.msra.mxu0 %v4786
  %7511 = vmatprep.subr.bf16.mxu0 %v4828
  %7512 = vmatpush1.bf16.xpose.msra.mxu0 %v4827
  %7513 = vmatprep.subr.bf16.mxu0 %v4869
  %7514 = vmatpush1.bf16.xpose.msra.mxu0 %v4868
  %7515 = vmatprep.subr.bf16.mxu0 %v4910
  %7516 = vmatpush1.bf16.xpose.msra.mxu0 %v4909
  %7517 = vmatprep.subr.bf16.mxu0 %v4951
  %7518 = vmatpush1.bf16.xpose.msra.mxu0 %v4950
  %7519 = vmatprep.subr.bf16.mxu0 %v4992
  %7520 = vmatpush1.bf16.xpose.msra.mxu0 %v4991
  %7521 = vmatprep.mubr.bf16.mxu0 %v1616
  %7522 = vmatmul.mubr.bf16.gmra.mrb[0].mxu0 %v1615
  %v7523 = vpop.f32.mrb[0].mxu0
  %v7524 = vadd.f32 %v7443, %v7523
  %v7525 = vpop.f32.mrb[0].mxu0
  %v7526 = vadd.f32 %v7445, %v7525
  %v7527 = vpop.f32.mrb[0].mxu0
  %v7528 = vadd.f32 %v7447, %v7527
  %v7529 = vpop.f32.mrb[0].mxu0
  %v7530 = vadd.f32 %v7449, %v7529
  %7531 = vmatprep.mubr.bf16.mxu0 %v1657
  %7532 = vmatmul.mubr.bf16.gmra.mrb[0].mxu0 %v1656
  %v7533 = vpop.f32.mrb[0].mxu0
  %v7534 = vadd.f32 %v7453, %v7533
  %v7535 = vpop.f32.mrb[0].mxu0
  %v7536 = vadd.f32 %v7455, %v7535
  %v7537 = vpop.f32.mrb[0].mxu0
  %v7538 = vadd.f32 %v7457, %v7537
  %v7539 = vpop.f32.mrb[0].mxu0
  %v7540 = vadd.f32 %v7459, %v7539
  %7541 = vmatprep.mubr.bf16.mxu0 %v1698
  %7542 = vmatmul.mubr.bf16.gmra.mrb[0].mxu0 %v1697
  %v7543 = vpop.f32.mrb[0].mxu0
  %v7544 = vadd.f32 %v7463, %v7543
  %v7545 = vpop.f32.mrb[0].mxu0
  %v7546 = vadd.f32 %v7465, %v7545
  %v7547 = vpop.f32.mrb[0].mxu0
  %v7548 = vadd.f32 %v7467, %v7547
  %v7549 = vpop.f32.mrb[0].mxu0
  %v7550 = vadd.f32 %v7469, %v7549
  %7551 = vmatprep.mubr.bf16.mxu0 %v1739
  %7552 = vmatmul.mubr.bf16.gmra.mrb[0].mxu0 %v1738
  %v7553 = vpop.f32.mrb[0].mxu0
  %v7554 = vadd.f32 %v7473, %v7553
  %v7555 = vpop.f32.mrb[0].mxu0
  %v7556 = vadd.f32 %v7475, %v7555
  %v7557 = vpop.f32.mrb[0].mxu0
  %v7558 = vadd.f32 %v7477, %v7557
  %v7559 = vpop.f32.mrb[0].mxu0
  %v7560 = vadd.f32 %v7479, %v7559
  %7561 = vmatprep.mubr.bf16.mxu0 %v1780
  %7562 = vmatmul.mubr.bf16.gmra.mrb[0].mxu0 %v1779
  %v7563 = vpop.f32.mrb[0].mxu0
  %v7564 = vadd.f32 %v7483, %v7563
  %v7565 = vpop.f32.mrb[0].mxu0
  %v7566 = vadd.f32 %v7485, %v7565
  %v7567 = vpop.f32.mrb[0].mxu0
  %v7568 = vpop.f32.mrb[0].mxu0
  %7569 = vdwg.mxu0
  %7570 = vmatprep.subr.bf16.mxu0 0
  %7571 = vmatpush1.bf16.xpose.msra.mxu0 %v5894
  %7572 = vmatprep.subr.bf16.mxu0 0
  %7573 = vmatpush1.bf16.xpose.msra.mxu0 %v5897
  %7574 = vmatprep.subr.bf16.mxu0 0
  %7575 = vmatpush1.bf16.xpose.msra.mxu0 %v5900
  %7576 = vmatprep.subr.bf16.mxu0 0
  %7577 = vmatpush1.bf16.xpose.msra.mxu0 %v5903
  %7578 = vmatprep.subr.bf16.mxu0 0
  %7579 = vmatpush1.bf16.xpose.msra.mxu0 %v5906
  %7580 = vmatprep.subr.bf16.mxu0 0
  %7581 = vmatpush1.bf16.xpose.msra.mxu0 %v5909
  %7582 = vmatprep.subr.bf16.mxu0 0
  %7583 = vmatpush1.bf16.xpose.msra.mxu0 %v5912
  %7584 = vmatprep.subr.bf16.mxu0 0
  %7585 = vmatpush1.bf16.xpose.msra.mxu0 %v5915
  %7586 = vmatprep.subr.bf16.mxu0 0
  %7587 = vmatpush1.bf16.xpose.msra.mxu0 %v5918
  %7588 = vmatprep.subr.bf16.mxu0 0
  %7589 = vmatpush1.bf16.xpose.msra.mxu0 %v5921
  %7590 = vmatprep.subr.bf16.mxu0 0
  %7591 = vmatpush1.bf16.xpose.msra.mxu0 %v5924
  %7592 = vmatprep.subr.bf16.mxu0 0
  %7593 = vmatpush1.bf16.xpose.msra.mxu0 %v5927
  %7594 = vmatprep.subr.bf16.mxu0 0
  %7595 = vmatpush1.bf16.xpose.msra.mxu0 %v5930
  %7596 = vmatprep.subr.bf16.mxu0 0
  %7597 = vmatpush1.bf16.xpose.msra.mxu0 %v5933
  %7598 = vmatprep.subr.bf16.mxu0 0
  %7599 = vmatpush1.bf16.xpose.msra.mxu0 %v5936
  %7600 = vmatprep.subr.bf16.mxu0 0
  %7601 = vmatpush1.bf16.xpose.msra.mxu0 %v5939
  %7602 = vmatprep.mubr.bf16.mxu0 0
  %7603 = vmatmul.mubr.bf16.gmra.mrb[0].mxu0 %v5879
  %v7604 = vpop.f32.mrb[0].mxu0
  %v7605 = vadd.f32 %v7524, %v7604
  %v7606 = vpop.f32.mrb[0].mxu0
  %v7607 = vadd.f32 %v7526, %v7606
  %v7608 = vpop.f32.mrb[0].mxu0
  %v7609 = vadd.f32 %v7528, %v7608
  %v7610 = vpop.f32.mrb[0].mxu0
  %v7611 = vadd.f32 %v7530, %v7610
  %7612 = vmatprep.mubr.bf16.mxu0 0
  %7613 = vmatmul.mubr.bf16.gmra.mrb[0].mxu0 %v5882
  %v7614 = vpop.f32.mrb[0].mxu0
  %v7615 = vadd.f32 %v7534, %v7614
  %v7616 = vpop.f32.mrb[0].mxu0
  %v7617 = vadd.f32 %v7536, %v7616
  %v7618 = vpop.f32.mrb[0].mxu0
  %v7619 = vadd.f32 %v7538, %v7618
  %v7620 = vpop.f32.mrb[0].mxu0
  %v7621 = vadd.f32 %v7540, %v7620
  %7622 = vmatprep.mubr.bf16.mxu0 0
  %7623 = vmatmul.mubr.bf16.gmra.mrb[0].mxu0 %v5885
  %v7624 = vpop.f32.mrb[0].mxu0
  %v7625 = vadd.f32 %v7544, %v7624
  %v7626 = vpop.f32.mrb[0].mxu0
  %v7627 = vadd.f32 %v7546, %v7626
  %v7628 = vpop.f32.mrb[0].mxu0
  %v7629 = vadd.f32 %v7548, %v7628
  %v7630 = vpop.f32.mrb[0].mxu0
  %v7631 = vadd.f32 %v7550, %v7630
  %7632 = vmatprep.mubr.bf16.mxu0 0
  %7633 = vmatmul.mubr.bf16.gmra.mrb[0].mxu0 %v5888
  %v7634 = vpop.f32.mrb[0].mxu0
  %v7635 = vadd.f32 %v7554, %v7634
  %v7636 = vpop.f32.mrb[0].mxu0
  %v7637 = vadd.f32 %v7556, %v7636
  %v7638 = vpop.f32.mrb[0].mxu0
  %v7639 = vadd.f32 %v7558, %v7638
  %v7640 = vpop.f32.mrb[0].mxu0
  %v7641 = vadd.f32 %v7560, %v7640
  %7642 = vmatprep.mubr.bf16.mxu0 0
  %7643 = vmatmul.mubr.bf16.gmra.mrb[0].mxu0 %v5891
  %v7644 = vpop.f32.mrb[0].mxu0
  %v7645 = vadd.f32 %v7564, %v7644
  %v7646 = vpop.f32.mrb[0].mxu0
  %v7647 = vadd.f32 %v7566, %v7646
  %v7648 = vpop.f32.mrb[0].mxu0
  %v7649 = vpop.f32.mrb[0].mxu0
  %7650 = vdwg.mxu0
  %7651 = vmatprep.subr.bf16.mxu0 %v4995
  %7652 = vmatpush1.bf16.xpose.msra.mxu0 %v4994
  %7653 = vmatprep.subr.bf16.mxu0 %v5036
  %7654 = vmatpush1.bf16.xpose.msra.mxu0 %v5035
  %7655 = vmatprep.subr.bf16.mxu0 %v5077
  %7656 = vmatpush1.bf16.xpose.msra.mxu0 %v5076
  %7657 = vmatprep.subr.bf16.mxu0 0
  %7658 = vmatpush1.bf16.xpose.msra.mxu0 0
  %7659 = vmatprep.subr.bf16.mxu0 0
  %7660 = vmatpush1.bf16.xpose.msra.mxu0 0
  %7661 = vmatprep.subr.bf16.mxu0 0
  %7662 = vmatpush1.bf16.xpose.msra.mxu0 0
  %7663 = vmatprep.subr.bf16.mxu0 0
  %7664 = vmatpush1.bf16.xpose.msra.mxu0 0
  %7665 = vmatprep.subr.bf16.mxu0 0
  %7666 = vmatpush1.bf16.xpose.msra.mxu0 0
  %7667 = vmatprep.subr.bf16.mxu0 0
  %7668 = vmatpush1.bf16.xpose.msra.mxu0 0
  %7669 = vmatprep.subr.bf16.mxu0 0
  %7670 = vmatpush1.bf16.xpose.msra.mxu0 0
  %7671 = vmatprep.subr.bf16.mxu0 0
  %7672 = vmatpush1.bf16.xpose.msra.mxu0 0
  %7673 = vmatprep.subr.bf16.mxu0 0
  %7674 = vmatpush1.bf16.xpose.msra.mxu0 0
  %7675 = vmatprep.subr.bf16.mxu0 0
  %7676 = vmatpush1.bf16.xpose.msra.mxu0 0
  %7677 = vmatprep.subr.bf16.mxu0 0
  %7678 = vmatpush1.bf16.xpose.msra.mxu0 0
  %7679 = vmatprep.subr.bf16.mxu0 0
  %7680 = vmatpush1.bf16.xpose.msra.mxu0 0
  %7681 = vmatprep.subr.bf16.mxu0 0
  %7682 = vmatpush1.bf16.xpose.msra.mxu0 0
  %7683 = vmatprep.mubr.bf16.mxu0 %v1578
  %7684 = vmatmul.mubr.bf16.gmra.mrb[0].mxu0 %v1577
  %v7685 = vpop.f32.mrb[0].mxu0
  %v7686 = vadd.f32 %v1015, %v7685
  %v7687 = vpop.f32.mrb[0].mxu0
  %v7688 = vpop.f32.mrb[0].mxu0
  %v7689 = vadd.f32 %v1015, %v7688
  %v7690 = vpop.f32.mrb[0].mxu0
  %7691 = vmatprep.mubr.bf16.mxu0 %v1619
  %7692 = vmatmul.mubr.bf16.gmra.mrb[0].mxu0 %v1618
  %v7693 = vpop.f32.mrb[0].mxu0
  %v7694 = vadd.f32 %v1015, %v7693
  %v7695 = vpop.f32.mrb[0].mxu0
  %v7696 = vpop.f32.mrb[0].mxu0
  %v7697 = vadd.f32 %v1015, %v7696
  %v7698 = vpop.f32.mrb[0].mxu0
  %7699 = vmatprep.mubr.bf16.mxu0 %v1660
  %7700 = vmatmul.mubr.bf16.gmra.mrb[0].mxu0 %v1659
  %v7701 = vpop.f32.mrb[0].mxu0
  %v7702 = vadd.f32 %v1015, %v7701
  %v7703 = vpop.f32.mrb[0].mxu0
  %v7704 = vpop.f32.mrb[0].mxu0
  %v7705 = vadd.f32 %v1015, %v7704
  %v7706 = vpop.f32.mrb[0].mxu0
  %7707 = vmatprep.mubr.bf16.mxu0 %v1701
  %7708 = vmatmul.mubr.bf16.gmra.mrb[0].mxu0 %v1700
  %v7709 = vpop.f32.mrb[0].mxu0
  %v7710 = vadd.f32 %v1015, %v7709
  %v7711 = vpop.f32.mrb[0].mxu0
  %v7712 = vpop.f32.mrb[0].mxu0
  %v7713 = vadd.f32 %v1015, %v7712
  %v7714 = vpop.f32.mrb[0].mxu0
  %7715 = vmatprep.mubr.bf16.mxu0 %v1742
  %7716 = vmatmul.mubr.bf16.gmra.mrb[0].mxu0 %v1741
  %v7717 = vpop.f32.mrb[0].mxu0
  %v7718 = vadd.f32 %v1015, %v7717
  %v7719 = vpop.f32.mrb[0].mxu0
  %v7720 = vpop.f32.mrb[0].mxu0
  %v7721 = vpop.f32.mrb[0].mxu0
  %7722 = vdwg.mxu0
  %7723 = vmatprep.subr.bf16.mxu0 %v4997
  %7724 = vmatpush1.bf16.xpose.msra.mxu0 %v4996
  %7725 = vmatprep.subr.bf16.mxu0 %v5038
  %7726 = vmatpush1.bf16.xpose.msra.mxu0 %v5037
  %7727 = vmatprep.subr.bf16.mxu0 %v5079
  %7728 = vmatpush1.bf16.xpose.msra.mxu0 %v5078
  %7729 = vmatprep.subr.bf16.mxu0 0
  %7730 = vmatpush1.bf16.xpose.msra.mxu0 0
  %7731 = vmatprep.subr.bf16.mxu0 0
  %7732 = vmatpush1.bf16.xpose.msra.mxu0 0
  %7733 = vmatprep.subr.bf16.mxu0 0
  %7734 = vmatpush1.bf16.xpose.msra.mxu0 0
  %7735 = vmatprep.subr.bf16.mxu0 0
  %7736 = vmatpush1.bf16.xpose.msra.mxu0 0
  %7737 = vmatprep.subr.bf16.mxu0 0
  %7738 = vmatpush1.bf16.xpose.msra.mxu0 0
  %7739 = vmatprep.subr.bf16.mxu0 0
  %7740 = vmatpush1.bf16.xpose.msra.mxu0 0
  %7741 = vmatprep.subr.bf16.mxu0 0
  %7742 = vmatpush1.bf16.xpose.msra.mxu0 0
  %7743 = vmatprep.subr.bf16.mxu0 0
  %7744 = vmatpush1.bf16.xpose.msra.mxu0 0
  %7745 = vmatprep.subr.bf16.mxu0 0
  %7746 = vmatpush1.bf16.xpose.msra.mxu0 0
  %7747 = vmatprep.subr.bf16.mxu0 0
  %7748 = vmatpush1.bf16.xpose.msra.mxu0 0
  %7749 = vmatprep.subr.bf16.mxu0 0
  %7750 = vmatpush1.bf16.xpose.msra.mxu0 0
  %7751 = vmatprep.subr.bf16.mxu0 0
  %7752 = vmatpush1.bf16.xpose.msra.mxu0 0
  %7753 = vmatprep.subr.bf16.mxu0 0
  %7754 = vmatpush1.bf16.xpose.msra.mxu0 0
  %7755 = vmatprep.mubr.bf16.mxu0 %v1580
  %7756 = vmatmul.mubr.bf16.gmra.mrb[0].mxu0 %v1579
  %v7757 = vpop.f32.mrb[0].mxu0
  %v7758 = vadd.f32 %v7686, %v7757
  %v7759 = vpop.f32.mrb[0].mxu0
  %v7760 = vpop.f32.mrb[0].mxu0
  %v7761 = vadd.f32 %v7689, %v7760
  %v7762 = vpop.f32.mrb[0].mxu0
  %7763 = vmatprep.mubr.bf16.mxu0 %v1621
  %7764 = vmatmul.mubr.bf16.gmra.mrb[0].mxu0 %v1620
  %v7765 = vpop.f32.mrb[0].mxu0
  %v7766 = vadd.f32 %v7694, %v7765
  %v7767 = vpop.f32.mrb[0].mxu0
  %v7768 = vpop.f32.mrb[0].mxu0
  %v7769 = vadd.f32 %v7697, %v7768
  %v7770 = vpop.f32.mrb[0].mxu0
  %7771 = vmatprep.mubr.bf16.mxu0 %v1662
  %7772 = vmatmul.mubr.bf16.gmra.mrb[0].mxu0 %v1661
  %v7773 = vpop.f32.mrb[0].mxu0
  %v7774 = vadd.f32 %v7702, %v7773
  %v7775 = vpop.f32.mrb[0].mxu0
  %v7776 = vpop.f32.mrb[0].mxu0
  %v7777 = vadd.f32 %v7705, %v7776
  %v7778 = vpop.f32.mrb[0].mxu0
  %7779 = vmatprep.mubr.bf16.mxu0 %v1703
  %7780 = vmatmul.mubr.bf16.gmra.mrb[0].mxu0 %v1702
  %v7781 = vpop.f32.mrb[0].mxu0
  %v7782 = vadd.f32 %v7710, %v7781
  %v7783 = vpop.f32.mrb[0].mxu0
  %v7784 = vpop.f32.mrb[0].mxu0
  %v7785 = vadd.f32 %v7713, %v7784
  %v7786 = vpop.f32.mrb[0].mxu0
  %7787 = vmatprep.mubr.bf16.mxu0 %v1744
  %7788 = vmatmul.mubr.bf16.gmra.mrb[0].mxu0 %v1743
  %v7789 = vpop.f32.mrb[0].mxu0
  %v7790 = vadd.f32 %v7718, %v7789
  %v7791 = vpop.f32.mrb[0].mxu0
  %v7792 = vpop.f32.mrb[0].mxu0
  %v7793 = vpop.f32.mrb[0].mxu0
  %7794 = vdwg.mxu0
  %7795 = vmatprep.subr.bf16.mxu0 %v4999
  %7796 = vmatpush1.bf16.xpose.msra.mxu0 %v4998
  %7797 = vmatprep.subr.bf16.mxu0 %v5040
  %7798 = vmatpush1.bf16.xpose.msra.mxu0 %v5039
  %7799 = vmatprep.subr.bf16.mxu0 %v5081
  %7800 = vmatpush1.bf16.xpose.msra.mxu0 %v5080
  %7801 = vmatprep.subr.bf16.mxu0 0
  %7802 = vmatpush1.bf16.xpose.msra.mxu0 0
  %7803 = vmatprep.subr.bf16.mxu0 0
  %7804 = vmatpush1.bf16.xpose.msra.mxu0 0
  %7805 = vmatprep.subr.bf16.mxu0 0
  %7806 = vmatpush1.bf16.xpose.msra.mxu0 0
  %7807 = vmatprep.subr.bf16.mxu0 0
  %7808 = vmatpush1.bf16.xpose.msra.mxu0 0
  %7809 = vmatprep.subr.bf16.mxu0 0
  %7810 = vmatpush1.bf16.xpose.msra.mxu0 0
  %7811 = vmatprep.subr.bf16.mxu0 0
  %7812 = vmatpush1.bf16.xpose.msra.mxu0 0
  %7813 = vmatprep.subr.bf16.mxu0 0
  %7814 = vmatpush1.bf16.xpose.msra.mxu0 0
  %7815 = vmatprep.subr.bf16.mxu0 0
  %7816 = vmatpush1.bf16.xpose.msra.mxu0 0
  %7817 = vmatprep.subr.bf16.mxu0 0
  %7818 = vmatpush1.bf16.xpose.msra.mxu0 0
  %7819 = vmatprep.subr.bf16.mxu0 0
  %7820 = vmatpush1.bf16.xpose.msra.mxu0 0
  %7821 = vmatprep.subr.bf16.mxu0 0
  %7822 = vmatpush1.bf16.xpose.msra.mxu0 0
  %7823 = vmatprep.subr.bf16.mxu0 0
  %7824 = vmatpush1.bf16.xpose.msra.mxu0 0
  %7825 = vmatprep.subr.bf16.mxu0 0
  %7826 = vmatpush1.bf16.xpose.msra.mxu0 0
  %7827 = vmatprep.mubr.bf16.mxu0 %v1582
  %7828 = vmatmul.mubr.bf16.gmra.mrb[0].mxu0 %v1581
  %v7829 = vpop.f32.mrb[0].mxu0
  %v7830 = vadd.f32 %v7758, %v7829
  %v7831 = vpop.f32.mrb[0].mxu0
  %v7832 = vpop.f32.mrb[0].mxu0
  %v7833 = vadd.f32 %v7761, %v7832
  %v7834 = vpop.f32.mrb[0].mxu0
  %7835 = vmatprep.mubr.bf16.mxu0 %v1623
  %7836 = vmatmul.mubr.bf16.gmra.mrb[0].mxu0 %v1622
  %v7837 = vpop.f32.mrb[0].mxu0
  %v7838 = vadd.f32 %v7766, %v7837
  %v7839 = vpop.f32.mrb[0].mxu0
  %v7840 = vpop.f32.mrb[0].mxu0
  %v7841 = vadd.f32 %v7769, %v7840
  %v7842 = vpop.f32.mrb[0].mxu0
  %7843 = vmatprep.mubr.bf16.mxu0 %v1664
  %7844 = vmatmul.mubr.bf16.gmra.mrb[0].mxu0 %v1663
  %v7845 = vpop.f32.mrb[0].mxu0
  %v7846 = vadd.f32 %v7774, %v7845
  %v7847 = vpop.f32.mrb[0].mxu0
  %v7848 = vpop.f32.mrb[0].mxu0
  %v7849 = vadd.f32 %v7777, %v7848
  %v7850 = vpop.f32.mrb[0].mxu0
  %7851 = vmatprep.mubr.bf16.mxu0 %v1705
  %7852 = vmatmul.mubr.bf16.gmra.mrb[0].mxu0 %v1704
  %v7853 = vpop.f32.mrb[0].mxu0
  %v7854 = vadd.f32 %v7782, %v7853
  %v7855 = vpop.f32.mrb[0].mxu0
  %v7856 = vpop.f32.mrb[0].mxu0
  %v7857 = vadd.f32 %v7785, %v7856
  %v7858 = vpop.f32.mrb[0].mxu0
  %7859 = vmatprep.mubr.bf16.mxu0 %v1746
  %7860 = vmatmul.mubr.bf16.gmra.mrb[0].mxu0 %v1745
  %v7861 = vpop.f32.mrb[0].mxu0
  %v7862 = vadd.f32 %v7790, %v7861
  %v7863 = vpop.f32.mrb[0].mxu0
  %v7864 = vpop.f32.mrb[0].mxu0
  %v7865 = vpop.f32.mrb[0].mxu0
  %7866 = vdwg.mxu0
  %7867 = vmatprep.subr.bf16.mxu0 %v5001
  %7868 = vmatpush1.bf16.xpose.msra.mxu0 %v5000
  %7869 = vmatprep.subr.bf16.mxu0 %v5042
  %7870 = vmatpush1.bf16.xpose.msra.mxu0 %v5041
  %7871 = vmatprep.subr.bf16.mxu0 %v5083
  %7872 = vmatpush1.bf16.xpose.msra.mxu0 %v5082
  %7873 = vmatprep.subr.bf16.mxu0 0
  %7874 = vmatpush1.bf16.xpose.msra.mxu0 0
  %7875 = vmatprep.subr.bf16.mxu0 0
  %7876 = vmatpush1.bf16.xpose.msra.mxu0 0
  %7877 = vmatprep.subr.bf16.mxu0 0
  %7878 = vmatpush1.bf16.xpose.msra.mxu0 0
  %7879 = vmatprep.subr.bf16.mxu0 0
  %7880 = vmatpush1.bf16.xpose.msra.mxu0 0
  %7881 = vmatprep.subr.bf16.mxu0 0
  %7882 = vmatpush1.bf16.xpose.msra.mxu0 0
  %7883 = vmatprep.subr.bf16.mxu0 0
  %7884 = vmatpush1.bf16.xpose.msra.mxu0 0
  %7885 = vmatprep.subr.bf16.mxu0 0
  %7886 = vmatpush1.bf16.xpose.msra.mxu0 0
  %7887 = vmatprep.subr.bf16.mxu0 0
  %7888 = vmatpush1.bf16.xpose.msra.mxu0 0
  %7889 = vmatprep.subr.bf16.mxu0 0
  %7890 = vmatpush1.bf16.xpose.msra.mxu0 0
  %7891 = vmatprep.subr.bf16.mxu0 0
  %7892 = vmatpush1.bf16.xpose.msra.mxu0 0
  %7893 = vmatprep.subr.bf16.mxu0 0
  %7894 = vmatpush1.bf16.xpose.msra.mxu0 0
  %7895 = vmatprep.subr.bf16.mxu0 0
  %7896 = vmatpush1.bf16.xpose.msra.mxu0 0
  %7897 = vmatprep.subr.bf16.mxu0 0
  %7898 = vmatpush1.bf16.xpose.msra.mxu0 0
  %7899 = vmatprep.mubr.bf16.mxu0 %v1584
  %7900 = vmatmul.mubr.bf16.gmra.mrb[0].mxu0 %v1583
  %v7901 = vpop.f32.mrb[0].mxu0
  %v7902 = vadd.f32 %v7830, %v7901
  %v7903 = vpop.f32.mrb[0].mxu0
  %v7904 = vpop.f32.mrb[0].mxu0
  %v7905 = vadd.f32 %v7833, %v7904
  %v7906 = vpop.f32.mrb[0].mxu0
  %7907 = vmatprep.mubr.bf16.mxu0 %v1625
  %7908 = vmatmul.mubr.bf16.gmra.mrb[0].mxu0 %v1624
  %v7909 = vpop.f32.mrb[0].mxu0
  %v7910 = vadd.f32 %v7838, %v7909
  %v7911 = vpop.f32.mrb[0].mxu0
  %v7912 = vpop.f32.mrb[0].mxu0
  %v7913 = vadd.f32 %v7841, %v7912
  %v7914 = vpop.f32.mrb[0].mxu0
  %7915 = vmatprep.mubr.bf16.mxu0 %v1666
  %7916 = vmatmul.mubr.bf16.gmra.mrb[0].mxu0 %v1665
  %v7917 = vpop.f32.mrb[0].mxu0
  %v7918 = vadd.f32 %v7846, %v7917
  %v7919 = vpop.f32.mrb[0].mxu0
  %v7920 = vpop.f32.mrb[0].mxu0
  %v7921 = vadd.f32 %v7849, %v7920
  %v7922 = vpop.f32.mrb[0].mxu0
  %7923 = vmatprep.mubr.bf16.mxu0 %v1707
  %7924 = vmatmul.mubr.bf16.gmra.mrb[0].mxu0 %v1706
  %v7925 = vpop.f32.mrb[0].mxu0
  %v7926 = vadd.f32 %v7854, %v7925
  %v7927 = vpop.f32.mrb[0].mxu0
  %v7928 = vpop.f32.mrb[0].mxu0
  %v7929 = vadd.f32 %v7857, %v7928
  %v7930 = vpop.f32.mrb[0].mxu0
  %7931 = vmatprep.mubr.bf16.mxu0 %v1748
  %7932 = vmatmul.mubr.bf16.gmra.mrb[0].mxu0 %v1747
  %v7933 = vpop.f32.mrb[0].mxu0
  %v7934 = vadd.f32 %v7862, %v7933
  %v7935 = vpop.f32.mrb[0].mxu0
  %v7936 = vpop.f32.mrb[0].mxu0
  %v7937 = vpop.f32.mrb[0].mxu0
  %7938 = vdwg.mxu0
  %7939 = vmatprep.subr.bf16.mxu0 %v5003
  %7940 = vmatpush1.bf16.xpose.msra.mxu0 %v5002
  %7941 = vmatprep.subr.bf16.mxu0 %v5044
  %7942 = vmatpush1.bf16.xpose.msra.mxu0 %v5043
  %7943 = vmatprep.subr.bf16.mxu0 %v5085
  %7944 = vmatpush1.bf16.xpose.msra.mxu0 %v5084
  %7945 = vmatprep.subr.bf16.mxu0 0
  %7946 = vmatpush1.bf16.xpose.msra.mxu0 0
  %7947 = vmatprep.subr.bf16.mxu0 0
  %7948 = vmatpush1.bf16.xpose.msra.mxu0 0
  %7949 = vmatprep.subr.bf16.mxu0 0
  %7950 = vmatpush1.bf16.xpose.msra.mxu0 0
  %7951 = vmatprep.subr.bf16.mxu0 0
  %7952 = vmatpush1.bf16.xpose.msra.mxu0 0
  %7953 = vmatprep.subr.bf16.mxu0 0
  %7954 = vmatpush1.bf16.xpose.msra.mxu0 0
  %7955 = vmatprep.subr.bf16.mxu0 0
  %7956 = vmatpush1.bf16.xpose.msra.mxu0 0
  %7957 = vmatprep.subr.bf16.mxu0 0
  %7958 = vmatpush1.bf16.xpose.msra.mxu0 0
  %7959 = vmatprep.subr.bf16.mxu0 0
  %7960 = vmatpush1.bf16.xpose.msra.mxu0 0
  %7961 = vmatprep.subr.bf16.mxu0 0
  %7962 = vmatpush1.bf16.xpose.msra.mxu0 0
  %7963 = vmatprep.subr.bf16.mxu0 0
  %7964 = vmatpush1.bf16.xpose.msra.mxu0 0
  %7965 = vmatprep.subr.bf16.mxu0 0
  %7966 = vmatpush1.bf16.xpose.msra.mxu0 0
  %7967 = vmatprep.subr.bf16.mxu0 0
  %7968 = vmatpush1.bf16.xpose.msra.mxu0 0
  %7969 = vmatprep.subr.bf16.mxu0 0
  %7970 = vmatpush1.bf16.xpose.msra.mxu0 0
  %7971 = vmatprep.mubr.bf16.mxu0 %v1586
  %7972 = vmatmul.mubr.bf16.gmra.mrb[0].mxu0 %v1585
  %v7973 = vpop.f32.mrb[0].mxu0
  %v7974 = vadd.f32 %v7902, %v7973
  %v7975 = vpop.f32.mrb[0].mxu0
  %v7976 = vpop.f32.mrb[0].mxu0
  %v7977 = vadd.f32 %v7905, %v7976
  %v7978 = vpop.f32.mrb[0].mxu0
  %7979 = vmatprep.mubr.bf16.mxu0 %v1627
  %7980 = vmatmul.mubr.bf16.gmra.mrb[0].mxu0 %v1626
  %v7981 = vpop.f32.mrb[0].mxu0
  %v7982 = vadd.f32 %v7910, %v7981
  %v7983 = vpop.f32.mrb[0].mxu0
  %v7984 = vpop.f32.mrb[0].mxu0
  %v7985 = vadd.f32 %v7913, %v7984
  %v7986 = vpop.f32.mrb[0].mxu0
  %7987 = vmatprep.mubr.bf16.mxu0 %v1668
  %7988 = vmatmul.mubr.bf16.gmra.mrb[0].mxu0 %v1667
  %v7989 = vpop.f32.mrb[0].mxu0
  %v7990 = vadd.f32 %v7918, %v7989
  %v7991 = vpop.f32.mrb[0].mxu0
  %v7992 = vpop.f32.mrb[0].mxu0
  %v7993 = vadd.f32 %v7921, %v7992
  %v7994 = vpop.f32.mrb[0].mxu0
  %7995 = vmatprep.mubr.bf16.mxu0 %v1709
  %7996 = vmatmul.mubr.bf16.gmra.mrb[0].mxu0 %v1708
  %v7997 = vpop.f32.mrb[0].mxu0
  %v7998 = vadd.f32 %v7926, %v7997
  %v7999 = vpop.f32.mrb[0].mxu0
  %v8000 = vpop.f32.mrb[0].mxu0
  %v8001 = vadd.f32 %v7929, %v8000
  %v8002 = vpop.f32.mrb[0].mxu0
  %8003 = vmatprep.mubr.bf16.mxu0 %v1750
  %8004 = vmatmul.mubr.bf16.gmra.mrb[0].mxu0 %v1749
  %v8005 = vpop.f32.mrb[0].mxu0
  %v8006 = vadd.f32 %v7934, %v8005
  %v8007 = vpop.f32.mrb[0].mxu0
  %v8008 = vpop.f32.mrb[0].mxu0
  %v8009 = vpop.f32.mrb[0].mxu0
  %8010 = vdwg.mxu0
  %8011 = vmatprep.subr.bf16.mxu0 %v5005
  %8012 = vmatpush1.bf16.xpose.msra.mxu0 %v5004
  %8013 = vmatprep.subr.bf16.mxu0 %v5046
  %8014 = vmatpush1.bf16.xpose.msra.mxu0 %v5045
  %8015 = vmatprep.subr.bf16.mxu0 %v5087
  %8016 = vmatpush1.bf16.xpose.msra.mxu0 %v5086
  %8017 = vmatprep.subr.bf16.mxu0 0
  %8018 = vmatpush1.bf16.xpose.msra.mxu0 0
  %8019 = vmatprep.subr.bf16.mxu0 0
  %8020 = vmatpush1.bf16.xpose.msra.mxu0 0
  %8021 = vmatprep.subr.bf16.mxu0 0
  %8022 = vmatpush1.bf16.xpose.msra.mxu0 0
  %8023 = vmatprep.subr.bf16.mxu0 0
  %8024 = vmatpush1.bf16.xpose.msra.mxu0 0
  %8025 = vmatprep.subr.bf16.mxu0 0
  %8026 = vmatpush1.bf16.xpose.msra.mxu0 0
  %8027 = vmatprep.subr.bf16.mxu0 0
  %8028 = vmatpush1.bf16.xpose.msra.mxu0 0
  %8029 = vmatprep.subr.bf16.mxu0 0
  %8030 = vmatpush1.bf16.xpose.msra.mxu0 0
  %8031 = vmatprep.subr.bf16.mxu0 0
  %8032 = vmatpush1.bf16.xpose.msra.mxu0 0
  %8033 = vmatprep.subr.bf16.mxu0 0
  %8034 = vmatpush1.bf16.xpose.msra.mxu0 0
  %8035 = vmatprep.subr.bf16.mxu0 0
  %8036 = vmatpush1.bf16.xpose.msra.mxu0 0
  %8037 = vmatprep.subr.bf16.mxu0 0
  %8038 = vmatpush1.bf16.xpose.msra.mxu0 0
  %8039 = vmatprep.subr.bf16.mxu0 0
  %8040 = vmatpush1.bf16.xpose.msra.mxu0 0
  %8041 = vmatprep.subr.bf16.mxu0 0
  %8042 = vmatpush1.bf16.xpose.msra.mxu0 0
  %8043 = vmatprep.mubr.bf16.mxu0 %v1588
  %8044 = vmatmul.mubr.bf16.gmra.mrb[0].mxu0 %v1587
  %v8045 = vpop.f32.mrb[0].mxu0
  %v8046 = vadd.f32 %v7974, %v8045
  %v8047 = vpop.f32.mrb[0].mxu0
  %v8048 = vpop.f32.mrb[0].mxu0
  %v8049 = vadd.f32 %v7977, %v8048
  %v8050 = vpop.f32.mrb[0].mxu0
  %8051 = vmatprep.mubr.bf16.mxu0 %v1629
  %8052 = vmatmul.mubr.bf16.gmra.mrb[0].mxu0 %v1628
  %v8053 = vpop.f32.mrb[0].mxu0
  %v8054 = vadd.f32 %v7982, %v8053
  %v8055 = vpop.f32.mrb[0].mxu0
  %v8056 = vpop.f32.mrb[0].mxu0
  %v8057 = vadd.f32 %v7985, %v8056
  %v8058 = vpop.f32.mrb[0].mxu0
  %8059 = vmatprep.mubr.bf16.mxu0 %v1670
  %8060 = vmatmul.mubr.bf16.gmra.mrb[0].mxu0 %v1669
  %v8061 = vpop.f32.mrb[0].mxu0
  %v8062 = vadd.f32 %v7990, %v8061
  %v8063 = vpop.f32.mrb[0].mxu0
  %v8064 = vpop.f32.mrb[0].mxu0
  %v8065 = vadd.f32 %v7993, %v8064
  %v8066 = vpop.f32.mrb[0].mxu0
  %8067 = vmatprep.mubr.bf16.mxu0 %v1711
  %8068 = vmatmul.mubr.bf16.gmra.mrb[0].mxu0 %v1710
  %v8069 = vpop.f32.mrb[0].mxu0
  %v8070 = vadd.f32 %v7998, %v8069
  %v8071 = vpop.f32.mrb[0].mxu0
  %v8072 = vpop.f32.mrb[0].mxu0
  %v8073 = vadd.f32 %v8001, %v8072
  %v8074 = vpop.f32.mrb[0].mxu0
  %8075 = vmatprep.mubr.bf16.mxu0 %v1752
  %8076 = vmatmul.mubr.bf16.gmra.mrb[0].mxu0 %v1751
  %v8077 = vpop.f32.mrb[0].mxu0
  %v8078 = vadd.f32 %v8006, %v8077
  %v8079 = vpop.f32.mrb[0].mxu0
  %v8080 = vpop.f32.mrb[0].mxu0
  %v8081 = vpop.f32.mrb[0].mxu0
  %8082 = vdwg.mxu0
  %8083 = vmatprep.subr.bf16.mxu0 %v5007
  %8084 = vmatpush1.bf16.xpose.msra.mxu0 %v5006
  %8085 = vmatprep.subr.bf16.mxu0 %v5048
  %8086 = vmatpush1.bf16.xpose.msra.mxu0 %v5047
  %8087 = vmatprep.subr.bf16.mxu0 %v5089
  %8088 = vmatpush1.bf16.xpose.msra.mxu0 %v5088
  %8089 = vmatprep.subr.bf16.mxu0 0
  %8090 = vmatpush1.bf16.xpose.msra.mxu0 0
  %8091 = vmatprep.subr.bf16.mxu0 0
  %8092 = vmatpush1.bf16.xpose.msra.mxu0 0
  %8093 = vmatprep.subr.bf16.mxu0 0
  %8094 = vmatpush1.bf16.xpose.msra.mxu0 0
  %8095 = vmatprep.subr.bf16.mxu0 0
  %8096 = vmatpush1.bf16.xpose.msra.mxu0 0
  %8097 = vmatprep.subr.bf16.mxu0 0
  %8098 = vmatpush1.bf16.xpose.msra.mxu0 0
  %8099 = vmatprep.subr.bf16.mxu0 0
  %8100 = vmatpush1.bf16.xpose.msra.mxu0 0
  %8101 = vmatprep.subr.bf16.mxu0 0
  %8102 = vmatpush1.bf16.xpose.msra.mxu0 0
  %8103 = vmatprep.subr.bf16.mxu0 0
  %8104 = vmatpush1.bf16.xpose.msra.mxu0 0
  %8105 = vmatprep.subr.bf16.mxu0 0
  %8106 = vmatpush1.bf16.xpose.msra.mxu0 0
  %8107 = vmatprep.subr.bf16.mxu0 0
  %8108 = vmatpush1.bf16.xpose.msra.mxu0 0
  %8109 = vmatprep.subr.bf16.mxu0 0
  %8110 = vmatpush1.bf16.xpose.msra.mxu0 0
  %8111 = vmatprep.subr.bf16.mxu0 0
  %8112 = vmatpush1.bf16.xpose.msra.mxu0 0
  %8113 = vmatprep.subr.bf16.mxu0 0
  %8114 = vmatpush1.bf16.xpose.msra.mxu0 0
  %8115 = vmatprep.mubr.bf16.mxu0 %v1590
  %8116 = vmatmul.mubr.bf16.gmra.mrb[0].mxu0 %v1589
  %v8117 = vpop.f32.mrb[0].mxu0
  %v8118 = vadd.f32 %v8046, %v8117
  %v8119 = vpop.f32.mrb[0].mxu0
  %v8120 = vpop.f32.mrb[0].mxu0
  %v8121 = vadd.f32 %v8049, %v8120
  %v8122 = vpop.f32.mrb[0].mxu0
  %8123 = vmatprep.mubr.bf16.mxu0 %v1631
  %8124 = vmatmul.mubr.bf16.gmra.mrb[0].mxu0 %v1630
  %v8125 = vpop.f32.mrb[0].mxu0
  %v8126 = vadd.f32 %v8054, %v8125
  %v8127 = vpop.f32.mrb[0].mxu0
  %v8128 = vpop.f32.mrb[0].mxu0
  %v8129 = vadd.f32 %v8057, %v8128
  %v8130 = vpop.f32.mrb[0].mxu0
  %8131 = vmatprep.mubr.bf16.mxu0 %v1672
  %8132 = vmatmul.mubr.bf16.gmra.mrb[0].mxu0 %v1671
  %v8133 = vpop.f32.mrb[0].mxu0
  %v8134 = vadd.f32 %v8062, %v8133
  %v8135 = vpop.f32.mrb[0].mxu0
  %v8136 = vpop.f32.mrb[0].mxu0
  %v8137 = vadd.f32 %v8065, %v8136
  %v8138 = vpop.f32.mrb[0].mxu0
  %8139 = vmatprep.mubr.bf16.mxu0 %v1713
  %8140 = vmatmul.mubr.bf16.gmra.mrb[0].mxu0 %v1712
  %v8141 = vpop.f32.mrb[0].mxu0
  %v8142 = vadd.f32 %v8070, %v8141
  %v8143 = vpop.f32.mrb[0].mxu0
  %v8144 = vpop.f32.mrb[0].mxu0
  %v8145 = vadd.f32 %v8073, %v8144
  %v8146 = vpop.f32.mrb[0].mxu0
  %8147 = vmatprep.mubr.bf16.mxu0 %v1754
  %8148 = vmatmul.mubr.bf16.gmra.mrb[0].mxu0 %v1753
  %v8149 = vpop.f32.mrb[0].mxu0
  %v8150 = vadd.f32 %v8078, %v8149
  %v8151 = vpop.f32.mrb[0].mxu0
  %v8152 = vpop.f32.mrb[0].mxu0
  %v8153 = vpop.f32.mrb[0].mxu0
  %8154 = vdwg.mxu0
  %8155 = vmatprep.subr.bf16.mxu0 %v5009
  %8156 = vmatpush1.bf16.xpose.msra.mxu0 %v5008
  %8157 = vmatprep.subr.bf16.mxu0 %v5050
  %8158 = vmatpush1.bf16.xpose.msra.mxu0 %v5049
  %8159 = vmatprep.subr.bf16.mxu0 %v5091
  %8160 = vmatpush1.bf16.xpose.msra.mxu0 %v5090
  %8161 = vmatprep.subr.bf16.mxu0 0
  %8162 = vmatpush1.bf16.xpose.msra.mxu0 0
  %8163 = vmatprep.subr.bf16.mxu0 0
  %8164 = vmatpush1.bf16.xpose.msra.mxu0 0
  %8165 = vmatprep.subr.bf16.mxu0 0
  %8166 = vmatpush1.bf16.xpose.msra.mxu0 0
  %8167 = vmatprep.subr.bf16.mxu0 0
  %8168 = vmatpush1.bf16.xpose.msra.mxu0 0
  %8169 = vmatprep.subr.bf16.mxu0 0
  %8170 = vmatpush1.bf16.xpose.msra.mxu0 0
  %8171 = vmatprep.subr.bf16.mxu0 0
  %8172 = vmatpush1.bf16.xpose.msra.mxu0 0
  %8173 = vmatprep.subr.bf16.mxu0 0
  %8174 = vmatpush1.bf16.xpose.msra.mxu0 0
  %8175 = vmatprep.subr.bf16.mxu0 0
  %8176 = vmatpush1.bf16.xpose.msra.mxu0 0
  %8177 = vmatprep.subr.bf16.mxu0 0
  %8178 = vmatpush1.bf16.xpose.msra.mxu0 0
  %8179 = vmatprep.subr.bf16.mxu0 0
  %8180 = vmatpush1.bf16.xpose.msra.mxu0 0
  %8181 = vmatprep.subr.bf16.mxu0 0
  %8182 = vmatpush1.bf16.xpose.msra.mxu0 0
  %8183 = vmatprep.subr.bf16.mxu0 0
  %8184 = vmatpush1.bf16.xpose.msra.mxu0 0
  %8185 = vmatprep.subr.bf16.mxu0 0
  %8186 = vmatpush1.bf16.xpose.msra.mxu0 0
  %8187 = vmatprep.mubr.bf16.mxu0 %v1592
  %8188 = vmatmul.mubr.bf16.gmra.mrb[0].mxu0 %v1591
  %v8189 = vpop.f32.mrb[0].mxu0
  %v8190 = vadd.f32 %v8118, %v8189
  %v8191 = vpop.f32.mrb[0].mxu0
  %v8192 = vpop.f32.mrb[0].mxu0
  %v8193 = vadd.f32 %v8121, %v8192
  %v8194 = vpop.f32.mrb[0].mxu0
  %8195 = vmatprep.mubr.bf16.mxu0 %v1633
  %8196 = vmatmul.mubr.bf16.gmra.mrb[0].mxu0 %v1632
  %v8197 = vpop.f32.mrb[0].mxu0
  %v8198 = vadd.f32 %v8126, %v8197
  %v8199 = vpop.f32.mrb[0].mxu0
  %v8200 = vpop.f32.mrb[0].mxu0
  %v8201 = vadd.f32 %v8129, %v8200
  %v8202 = vpop.f32.mrb[0].mxu0
  %8203 = vmatprep.mubr.bf16.mxu0 %v1674
  %8204 = vmatmul.mubr.bf16.gmra.mrb[0].mxu0 %v1673
  %v8205 = vpop.f32.mrb[0].mxu0
  %v8206 = vadd.f32 %v8134, %v8205
  %v8207 = vpop.f32.mrb[0].mxu0
  %v8208 = vpop.f32.mrb[0].mxu0
  %v8209 = vadd.f32 %v8137, %v8208
  %v8210 = vpop.f32.mrb[0].mxu0
  %8211 = vmatprep.mubr.bf16.mxu0 %v1715
  %8212 = vmatmul.mubr.bf16.gmra.mrb[0].mxu0 %v1714
  %v8213 = vpop.f32.mrb[0].mxu0
  %v8214 = vadd.f32 %v8142, %v8213
  %v8215 = vpop.f32.mrb[0].mxu0
  %v8216 = vpop.f32.mrb[0].mxu0
  %v8217 = vadd.f32 %v8145, %v8216
  %v8218 = vpop.f32.mrb[0].mxu0
  %8219 = vmatprep.mubr.bf16.mxu0 %v1756
  %8220 = vmatmul.mubr.bf16.gmra.mrb[0].mxu0 %v1755
  %v8221 = vpop.f32.mrb[0].mxu0
  %v8222 = vadd.f32 %v8150, %v8221
  %v8223 = vpop.f32.mrb[0].mxu0
  %v8224 = vpop.f32.mrb[0].mxu0
  %v8225 = vpop.f32.mrb[0].mxu0
  %8226 = vdwg.mxu0
  %8227 = vmatprep.subr.bf16.mxu0 %v5011
  %8228 = vmatpush1.bf16.xpose.msra.mxu0 %v5010
  %8229 = vmatprep.subr.bf16.mxu0 %v5052
  %8230 = vmatpush1.bf16.xpose.msra.mxu0 %v5051
  %8231 = vmatprep.subr.bf16.mxu0 %v5093
  %8232 = vmatpush1.bf16.xpose.msra.mxu0 %v5092
  %8233 = vmatprep.subr.bf16.mxu0 0
  %8234 = vmatpush1.bf16.xpose.msra.mxu0 0
  %8235 = vmatprep.subr.bf16.mxu0 0
  %8236 = vmatpush1.bf16.xpose.msra.mxu0 0
  %8237 = vmatprep.subr.bf16.mxu0 0
  %8238 = vmatpush1.bf16.xpose.msra.mxu0 0
  %8239 = vmatprep.subr.bf16.mxu0 0
  %8240 = vmatpush1.bf16.xpose.msra.mxu0 0
  %8241 = vmatprep.subr.bf16.mxu0 0
  %8242 = vmatpush1.bf16.xpose.msra.mxu0 0
  %8243 = vmatprep.subr.bf16.mxu0 0
  %8244 = vmatpush1.bf16.xpose.msra.mxu0 0
  %8245 = vmatprep.subr.bf16.mxu0 0
  %8246 = vmatpush1.bf16.xpose.msra.mxu0 0
  %8247 = vmatprep.subr.bf16.mxu0 0
  %8248 = vmatpush1.bf16.xpose.msra.mxu0 0
  %8249 = vmatprep.subr.bf16.mxu0 0
  %8250 = vmatpush1.bf16.xpose.msra.mxu0 0
  %8251 = vmatprep.subr.bf16.mxu0 0
  %8252 = vmatpush1.bf16.xpose.msra.mxu0 0
  %8253 = vmatprep.subr.bf16.mxu0 0
  %8254 = vmatpush1.bf16.xpose.msra.mxu0 0
  %8255 = vmatprep.subr.bf16.mxu0 0
  %8256 = vmatpush1.bf16.xpose.msra.mxu0 0
  %8257 = vmatprep.subr.bf16.mxu0 0
  %8258 = vmatpush1.bf16.xpose.msra.mxu0 0
  %8259 = vmatprep.mubr.bf16.mxu0 %v1594
  %8260 = vmatmul.mubr.bf16.gmra.mrb[0].mxu0 %v1593
  %v8261 = vpop.f32.mrb[0].mxu0
  %v8262 = vadd.f32 %v8190, %v8261
  %v8263 = vpop.f32.mrb[0].mxu0
  %v8264 = vpop.f32.mrb[0].mxu0
  %v8265 = vadd.f32 %v8193, %v8264
  %v8266 = vpop.f32.mrb[0].mxu0
  %8267 = vmatprep.mubr.bf16.mxu0 %v1635
  %8268 = vmatmul.mubr.bf16.gmra.mrb[0].mxu0 %v1634
  %v8269 = vpop.f32.mrb[0].mxu0
  %v8270 = vadd.f32 %v8198, %v8269
  %v8271 = vpop.f32.mrb[0].mxu0
  %v8272 = vpop.f32.mrb[0].mxu0
  %v8273 = vadd.f32 %v8201, %v8272
  %v8274 = vpop.f32.mrb[0].mxu0
  %8275 = vmatprep.mubr.bf16.mxu0 %v1676
  %8276 = vmatmul.mubr.bf16.gmra.mrb[0].mxu0 %v1675
  %v8277 = vpop.f32.mrb[0].mxu0
  %v8278 = vadd.f32 %v8206, %v8277
  %v8279 = vpop.f32.mrb[0].mxu0
  %v8280 = vpop.f32.mrb[0].mxu0
  %v8281 = vadd.f32 %v8209, %v8280
  %v8282 = vpop.f32.mrb[0].mxu0
  %8283 = vmatprep.mubr.bf16.mxu0 %v1717
  %8284 = vmatmul.mubr.bf16.gmra.mrb[0].mxu0 %v1716
  %v8285 = vpop.f32.mrb[0].mxu0
  %v8286 = vadd.f32 %v8214, %v8285
  %v8287 = vpop.f32.mrb[0].mxu0
  %v8288 = vpop.f32.mrb[0].mxu0
  %v8289 = vadd.f32 %v8217, %v8288
  %v8290 = vpop.f32.mrb[0].mxu0
  %8291 = vmatprep.mubr.bf16.mxu0 %v1758
  %8292 = vmatmul.mubr.bf16.gmra.mrb[0].mxu0 %v1757
  %v8293 = vpop.f32.mrb[0].mxu0
  %v8294 = vadd.f32 %v8222, %v8293
  %v8295 = vpop.f32.mrb[0].mxu0
  %v8296 = vpop.f32.mrb[0].mxu0
  %v8297 = vpop.f32.mrb[0].mxu0
  %8298 = vdwg.mxu0
  %8299 = vmatprep.subr.bf16.mxu0 %v5013
  %8300 = vmatpush1.bf16.xpose.msra.mxu0 %v5012
  %8301 = vmatprep.subr.bf16.mxu0 %v5054
  %8302 = vmatpush1.bf16.xpose.msra.mxu0 %v5053
  %8303 = vmatprep.subr.bf16.mxu0 %v5095
  %8304 = vmatpush1.bf16.xpose.msra.mxu0 %v5094
  %8305 = vmatprep.subr.bf16.mxu0 0
  %8306 = vmatpush1.bf16.xpose.msra.mxu0 0
  %8307 = vmatprep.subr.bf16.mxu0 0
  %8308 = vmatpush1.bf16.xpose.msra.mxu0 0
  %8309 = vmatprep.subr.bf16.mxu0 0
  %8310 = vmatpush1.bf16.xpose.msra.mxu0 0
  %8311 = vmatprep.subr.bf16.mxu0 0
  %8312 = vmatpush1.bf16.xpose.msra.mxu0 0
  %8313 = vmatprep.subr.bf16.mxu0 0
  %8314 = vmatpush1.bf16.xpose.msra.mxu0 0
  %8315 = vmatprep.subr.bf16.mxu0 0
  %8316 = vmatpush1.bf16.xpose.msra.mxu0 0
  %8317 = vmatprep.subr.bf16.mxu0 0
  %8318 = vmatpush1.bf16.xpose.msra.mxu0 0
  %8319 = vmatprep.subr.bf16.mxu0 0
  %8320 = vmatpush1.bf16.xpose.msra.mxu0 0
  %8321 = vmatprep.subr.bf16.mxu0 0
  %8322 = vmatpush1.bf16.xpose.msra.mxu0 0
  %8323 = vmatprep.subr.bf16.mxu0 0
  %8324 = vmatpush1.bf16.xpose.msra.mxu0 0
  %8325 = vmatprep.subr.bf16.mxu0 0
  %8326 = vmatpush1.bf16.xpose.msra.mxu0 0
  %8327 = vmatprep.subr.bf16.mxu0 0
  %8328 = vmatpush1.bf16.xpose.msra.mxu0 0
  %8329 = vmatprep.subr.bf16.mxu0 0
  %8330 = vmatpush1.bf16.xpose.msra.mxu0 0
  %8331 = vmatprep.mubr.bf16.mxu0 %v1596
  %8332 = vmatmul.mubr.bf16.gmra.mrb[0].mxu0 %v1595
  %v8333 = vpop.f32.mrb[0].mxu0
  %v8334 = vadd.f32 %v8262, %v8333
  %v8335 = vpop.f32.mrb[0].mxu0
  %v8336 = vpop.f32.mrb[0].mxu0
  %v8337 = vadd.f32 %v8265, %v8336
  %v8338 = vpop.f32.mrb[0].mxu0
  %8339 = vmatprep.mubr.bf16.mxu0 %v1637
  %8340 = vmatmul.mubr.bf16.gmra.mrb[0].mxu0 %v1636
  %v8341 = vpop.f32.mrb[0].mxu0
  %v8342 = vadd.f32 %v8270, %v8341
  %v8343 = vpop.f32.mrb[0].mxu0
  %v8344 = vpop.f32.mrb[0].mxu0
  %v8345 = vadd.f32 %v8273, %v8344
  %v8346 = vpop.f32.mrb[0].mxu0
  %8347 = vmatprep.mubr.bf16.mxu0 %v1678
  %8348 = vmatmul.mubr.bf16.gmra.mrb[0].mxu0 %v1677
  %v8349 = vpop.f32.mrb[0].mxu0
  %v8350 = vadd.f32 %v8278, %v8349
  %v8351 = vpop.f32.mrb[0].mxu0
  %v8352 = vpop.f32.mrb[0].mxu0
  %v8353 = vadd.f32 %v8281, %v8352
  %v8354 = vpop.f32.mrb[0].mxu0
  %8355 = vmatprep.mubr.bf16.mxu0 %v1719
  %8356 = vmatmul.mubr.bf16.gmra.mrb[0].mxu0 %v1718
  %v8357 = vpop.f32.mrb[0].mxu0
  %v8358 = vadd.f32 %v8286, %v8357
  %v8359 = vpop.f32.mrb[0].mxu0
  %v8360 = vpop.f32.mrb[0].mxu0
  %v8361 = vadd.f32 %v8289, %v8360
  %v8362 = vpop.f32.mrb[0].mxu0
  %8363 = vmatprep.mubr.bf16.mxu0 %v1760
  %8364 = vmatmul.mubr.bf16.gmra.mrb[0].mxu0 %v1759
  %v8365 = vpop.f32.mrb[0].mxu0
  %v8366 = vadd.f32 %v8294, %v8365
  %v8367 = vpop.f32.mrb[0].mxu0
  %v8368 = vpop.f32.mrb[0].mxu0
  %v8369 = vpop.f32.mrb[0].mxu0
  %8370 = vdwg.mxu0
  %8371 = vmatprep.subr.bf16.mxu0 %v5015
  %8372 = vmatpush1.bf16.xpose.msra.mxu0 %v5014
  %8373 = vmatprep.subr.bf16.mxu0 %v5056
  %8374 = vmatpush1.bf16.xpose.msra.mxu0 %v5055
  %8375 = vmatprep.subr.bf16.mxu0 %v5097
  %8376 = vmatpush1.bf16.xpose.msra.mxu0 %v5096
  %8377 = vmatprep.subr.bf16.mxu0 0
  %8378 = vmatpush1.bf16.xpose.msra.mxu0 0
  %8379 = vmatprep.subr.bf16.mxu0 0
  %8380 = vmatpush1.bf16.xpose.msra.mxu0 0
  %8381 = vmatprep.subr.bf16.mxu0 0
  %8382 = vmatpush1.bf16.xpose.msra.mxu0 0
  %8383 = vmatprep.subr.bf16.mxu0 0
  %8384 = vmatpush1.bf16.xpose.msra.mxu0 0
  %8385 = vmatprep.subr.bf16.mxu0 0
  %8386 = vmatpush1.bf16.xpose.msra.mxu0 0
  %8387 = vmatprep.subr.bf16.mxu0 0
  %8388 = vmatpush1.bf16.xpose.msra.mxu0 0
  %8389 = vmatprep.subr.bf16.mxu0 0
  %8390 = vmatpush1.bf16.xpose.msra.mxu0 0
  %8391 = vmatprep.subr.bf16.mxu0 0
  %8392 = vmatpush1.bf16.xpose.msra.mxu0 0
  %8393 = vmatprep.subr.bf16.mxu0 0
  %8394 = vmatpush1.bf16.xpose.msra.mxu0 0
  %8395 = vmatprep.subr.bf16.mxu0 0
  %8396 = vmatpush1.bf16.xpose.msra.mxu0 0
  %8397 = vmatprep.subr.bf16.mxu0 0
  %8398 = vmatpush1.bf16.xpose.msra.mxu0 0
  %8399 = vmatprep.subr.bf16.mxu0 0
  %8400 = vmatpush1.bf16.xpose.msra.mxu0 0
  %8401 = vmatprep.subr.bf16.mxu0 0
  %8402 = vmatpush1.bf16.xpose.msra.mxu0 0
  %8403 = vmatprep.mubr.bf16.mxu0 %v1598
  %8404 = vmatmul.mubr.bf16.gmra.mrb[0].mxu0 %v1597
  %v8405 = vpop.f32.mrb[0].mxu0
  %v8406 = vadd.f32 %v8334, %v8405
  %v8407 = vpop.f32.mrb[0].mxu0
  %v8408 = vpop.f32.mrb[0].mxu0
  %v8409 = vadd.f32 %v8337, %v8408
  %v8410 = vpop.f32.mrb[0].mxu0
  %8411 = vmatprep.mubr.bf16.mxu0 %v1639
  %8412 = vmatmul.mubr.bf16.gmra.mrb[0].mxu0 %v1638
  %v8413 = vpop.f32.mrb[0].mxu0
  %v8414 = vadd.f32 %v8342, %v8413
  %v8415 = vpop.f32.mrb[0].mxu0
  %v8416 = vpop.f32.mrb[0].mxu0
  %v8417 = vadd.f32 %v8345, %v8416
  %v8418 = vpop.f32.mrb[0].mxu0
  %8419 = vmatprep.mubr.bf16.mxu0 %v1680
  %8420 = vmatmul.mubr.bf16.gmra.mrb[0].mxu0 %v1679
  %v8421 = vpop.f32.mrb[0].mxu0
  %v8422 = vadd.f32 %v8350, %v8421
  %v8423 = vpop.f32.mrb[0].mxu0
  %v8424 = vpop.f32.mrb[0].mxu0
  %v8425 = vadd.f32 %v8353, %v8424
  %v8426 = vpop.f32.mrb[0].mxu0
  %8427 = vmatprep.mubr.bf16.mxu0 %v1721
  %8428 = vmatmul.mubr.bf16.gmra.mrb[0].mxu0 %v1720
  %v8429 = vpop.f32.mrb[0].mxu0
  %v8430 = vadd.f32 %v8358, %v8429
  %v8431 = vpop.f32.mrb[0].mxu0
  %v8432 = vpop.f32.mrb[0].mxu0
  %v8433 = vadd.f32 %v8361, %v8432
  %v8434 = vpop.f32.mrb[0].mxu0
  %8435 = vmatprep.mubr.bf16.mxu0 %v1762
  %8436 = vmatmul.mubr.bf16.gmra.mrb[0].mxu0 %v1761
  %v8437 = vpop.f32.mrb[0].mxu0
  %v8438 = vadd.f32 %v8366, %v8437
  %v8439 = vpop.f32.mrb[0].mxu0
  %v8440 = vpop.f32.mrb[0].mxu0
  %v8441 = vpop.f32.mrb[0].mxu0
  %8442 = vdwg.mxu0
  %8443 = vmatprep.subr.bf16.mxu0 %v5017
  %8444 = vmatpush1.bf16.xpose.msra.mxu0 %v5016
  %8445 = vmatprep.subr.bf16.mxu0 %v5058
  %8446 = vmatpush1.bf16.xpose.msra.mxu0 %v5057
  %8447 = vmatprep.subr.bf16.mxu0 %v5099
  %8448 = vmatpush1.bf16.xpose.msra.mxu0 %v5098
  %8449 = vmatprep.subr.bf16.mxu0 0
  %8450 = vmatpush1.bf16.xpose.msra.mxu0 0
  %8451 = vmatprep.subr.bf16.mxu0 0
  %8452 = vmatpush1.bf16.xpose.msra.mxu0 0
  %8453 = vmatprep.subr.bf16.mxu0 0
  %8454 = vmatpush1.bf16.xpose.msra.mxu0 0
  %8455 = vmatprep.subr.bf16.mxu0 0
  %8456 = vmatpush1.bf16.xpose.msra.mxu0 0
  %8457 = vmatprep.subr.bf16.mxu0 0
  %8458 = vmatpush1.bf16.xpose.msra.mxu0 0
  %8459 = vmatprep.subr.bf16.mxu0 0
  %8460 = vmatpush1.bf16.xpose.msra.mxu0 0
  %8461 = vmatprep.subr.bf16.mxu0 0
  %8462 = vmatpush1.bf16.xpose.msra.mxu0 0
  %8463 = vmatprep.subr.bf16.mxu0 0
  %8464 = vmatpush1.bf16.xpose.msra.mxu0 0
  %8465 = vmatprep.subr.bf16.mxu0 0
  %8466 = vmatpush1.bf16.xpose.msra.mxu0 0
  %8467 = vmatprep.subr.bf16.mxu0 0
  %8468 = vmatpush1.bf16.xpose.msra.mxu0 0
  %8469 = vmatprep.subr.bf16.mxu0 0
  %8470 = vmatpush1.bf16.xpose.msra.mxu0 0
  %8471 = vmatprep.subr.bf16.mxu0 0
  %8472 = vmatpush1.bf16.xpose.msra.mxu0 0
  %8473 = vmatprep.subr.bf16.mxu0 0
  %8474 = vmatpush1.bf16.xpose.msra.mxu0 0
  %8475 = vmatprep.mubr.bf16.mxu0 %v1600
  %8476 = vmatmul.mubr.bf16.gmra.mrb[0].mxu0 %v1599
  %v8477 = vpop.f32.mrb[0].mxu0
  %v8478 = vadd.f32 %v8406, %v8477
  %v8479 = vpop.f32.mrb[0].mxu0
  %v8480 = vpop.f32.mrb[0].mxu0
  %v8481 = vadd.f32 %v8409, %v8480
  %v8482 = vpop.f32.mrb[0].mxu0
  %8483 = vmatprep.mubr.bf16.mxu0 %v1641
  %8484 = vmatmul.mubr.bf16.gmra.mrb[0].mxu0 %v1640
  %v8485 = vpop.f32.mrb[0].mxu0
  %v8486 = vadd.f32 %v8414, %v8485
  %v8487 = vpop.f32.mrb[0].mxu0
  %v8488 = vpop.f32.mrb[0].mxu0
  %v8489 = vadd.f32 %v8417, %v8488
  %v8490 = vpop.f32.mrb[0].mxu0
  %8491 = vmatprep.mubr.bf16.mxu0 %v1682
  %8492 = vmatmul.mubr.bf16.gmra.mrb[0].mxu0 %v1681
  %v8493 = vpop.f32.mrb[0].mxu0
  %v8494 = vadd.f32 %v8422, %v8493
  %v8495 = vpop.f32.mrb[0].mxu0
  %v8496 = vpop.f32.mrb[0].mxu0
  %v8497 = vadd.f32 %v8425, %v8496
  %v8498 = vpop.f32.mrb[0].mxu0
  %8499 = vmatprep.mubr.bf16.mxu0 %v1723
  %8500 = vmatmul.mubr.bf16.gmra.mrb[0].mxu0 %v1722
  %v8501 = vpop.f32.mrb[0].mxu0
  %v8502 = vadd.f32 %v8430, %v8501
  %v8503 = vpop.f32.mrb[0].mxu0
  %v8504 = vpop.f32.mrb[0].mxu0
  %v8505 = vadd.f32 %v8433, %v8504
  %v8506 = vpop.f32.mrb[0].mxu0
  %8507 = vmatprep.mubr.bf16.mxu0 %v1764
  %8508 = vmatmul.mubr.bf16.gmra.mrb[0].mxu0 %v1763
  %v8509 = vpop.f32.mrb[0].mxu0
  %v8510 = vadd.f32 %v8438, %v8509
  %v8511 = vpop.f32.mrb[0].mxu0
  %v8512 = vpop.f32.mrb[0].mxu0
  %v8513 = vpop.f32.mrb[0].mxu0
  %8514 = vdwg.mxu0
  %8515 = vmatprep.subr.bf16.mxu0 %v5019
  %8516 = vmatpush1.bf16.xpose.msra.mxu0 %v5018
  %8517 = vmatprep.subr.bf16.mxu0 %v5060
  %8518 = vmatpush1.bf16.xpose.msra.mxu0 %v5059
  %8519 = vmatprep.subr.bf16.mxu0 %v5101
  %8520 = vmatpush1.bf16.xpose.msra.mxu0 %v5100
  %8521 = vmatprep.subr.bf16.mxu0 0
  %8522 = vmatpush1.bf16.xpose.msra.mxu0 0
  %8523 = vmatprep.subr.bf16.mxu0 0
  %8524 = vmatpush1.bf16.xpose.msra.mxu0 0
  %8525 = vmatprep.subr.bf16.mxu0 0
  %8526 = vmatpush1.bf16.xpose.msra.mxu0 0
  %8527 = vmatprep.subr.bf16.mxu0 0
  %8528 = vmatpush1.bf16.xpose.msra.mxu0 0
  %8529 = vmatprep.subr.bf16.mxu0 0
  %8530 = vmatpush1.bf16.xpose.msra.mxu0 0
  %8531 = vmatprep.subr.bf16.mxu0 0
  %8532 = vmatpush1.bf16.xpose.msra.mxu0 0
  %8533 = vmatprep.subr.bf16.mxu0 0
  %8534 = vmatpush1.bf16.xpose.msra.mxu0 0
  %8535 = vmatprep.subr.bf16.mxu0 0
  %8536 = vmatpush1.bf16.xpose.msra.mxu0 0
  %8537 = vmatprep.subr.bf16.mxu0 0
  %8538 = vmatpush1.bf16.xpose.msra.mxu0 0
  %8539 = vmatprep.subr.bf16.mxu0 0
  %8540 = vmatpush1.bf16.xpose.msra.mxu0 0
  %8541 = vmatprep.subr.bf16.mxu0 0
  %8542 = vmatpush1.bf16.xpose.msra.mxu0 0
  %8543 = vmatprep.subr.bf16.mxu0 0
  %8544 = vmatpush1.bf16.xpose.msra.mxu0 0
  %8545 = vmatprep.subr.bf16.mxu0 0
  %8546 = vmatpush1.bf16.xpose.msra.mxu0 0
  %8547 = vmatprep.mubr.bf16.mxu0 %v1602
  %8548 = vmatmul.mubr.bf16.gmra.mrb[0].mxu0 %v1601
  %v8549 = vpop.f32.mrb[0].mxu0
  %v8550 = vadd.f32 %v8478, %v8549
  %v8551 = vpop.f32.mrb[0].mxu0
  %v8552 = vpop.f32.mrb[0].mxu0
  %v8553 = vadd.f32 %v8481, %v8552
  %v8554 = vpop.f32.mrb[0].mxu0
  %8555 = vmatprep.mubr.bf16.mxu0 %v1643
  %8556 = vmatmul.mubr.bf16.gmra.mrb[0].mxu0 %v1642
  %v8557 = vpop.f32.mrb[0].mxu0
  %v8558 = vadd.f32 %v8486, %v8557
  %v8559 = vpop.f32.mrb[0].mxu0
  %v8560 = vpop.f32.mrb[0].mxu0
  %v8561 = vadd.f32 %v8489, %v8560
  %v8562 = vpop.f32.mrb[0].mxu0
  %8563 = vmatprep.mubr.bf16.mxu0 %v1684
  %8564 = vmatmul.mubr.bf16.gmra.mrb[0].mxu0 %v1683
  %v8565 = vpop.f32.mrb[0].mxu0
  %v8566 = vadd.f32 %v8494, %v8565
  %v8567 = vpop.f32.mrb[0].mxu0
  %v8568 = vpop.f32.mrb[0].mxu0
  %v8569 = vadd.f32 %v8497, %v8568
  %v8570 = vpop.f32.mrb[0].mxu0
  %8571 = vmatprep.mubr.bf16.mxu0 %v1725
  %8572 = vmatmul.mubr.bf16.gmra.mrb[0].mxu0 %v1724
  %v8573 = vpop.f32.mrb[0].mxu0
  %v8574 = vadd.f32 %v8502, %v8573
  %v8575 = vpop.f32.mrb[0].mxu0
  %v8576 = vpop.f32.mrb[0].mxu0
  %v8577 = vadd.f32 %v8505, %v8576
  %v8578 = vpop.f32.mrb[0].mxu0
  %8579 = vmatprep.mubr.bf16.mxu0 %v1766
  %8580 = vmatmul.mubr.bf16.gmra.mrb[0].mxu0 %v1765
  %v8581 = vpop.f32.mrb[0].mxu0
  %v8582 = vadd.f32 %v8510, %v8581
  %v8583 = vpop.f32.mrb[0].mxu0
  %v8584 = vpop.f32.mrb[0].mxu0
  %v8585 = vpop.f32.mrb[0].mxu0
  %8586 = vdwg.mxu0
  %8587 = vmatprep.subr.bf16.mxu0 %v5021
  %8588 = vmatpush1.bf16.xpose.msra.mxu0 %v5020
  %8589 = vmatprep.subr.bf16.mxu0 %v5062
  %8590 = vmatpush1.bf16.xpose.msra.mxu0 %v5061
  %8591 = vmatprep.subr.bf16.mxu0 %v5103
  %8592 = vmatpush1.bf16.xpose.msra.mxu0 %v5102
  %8593 = vmatprep.subr.bf16.mxu0 0
  %8594 = vmatpush1.bf16.xpose.msra.mxu0 0
  %8595 = vmatprep.subr.bf16.mxu0 0
  %8596 = vmatpush1.bf16.xpose.msra.mxu0 0
  %8597 = vmatprep.subr.bf16.mxu0 0
  %8598 = vmatpush1.bf16.xpose.msra.mxu0 0
  %8599 = vmatprep.subr.bf16.mxu0 0
  %8600 = vmatpush1.bf16.xpose.msra.mxu0 0
  %8601 = vmatprep.subr.bf16.mxu0 0
  %8602 = vmatpush1.bf16.xpose.msra.mxu0 0
  %8603 = vmatprep.subr.bf16.mxu0 0
  %8604 = vmatpush1.bf16.xpose.msra.mxu0 0
  %8605 = vmatprep.subr.bf16.mxu0 0
  %8606 = vmatpush1.bf16.xpose.msra.mxu0 0
  %8607 = vmatprep.subr.bf16.mxu0 0
  %8608 = vmatpush1.bf16.xpose.msra.mxu0 0
  %8609 = vmatprep.subr.bf16.mxu0 0
  %8610 = vmatpush1.bf16.xpose.msra.mxu0 0
  %8611 = vmatprep.subr.bf16.mxu0 0
  %8612 = vmatpush1.bf16.xpose.msra.mxu0 0
  %8613 = vmatprep.subr.bf16.mxu0 0
  %8614 = vmatpush1.bf16.xpose.msra.mxu0 0
  %8615 = vmatprep.subr.bf16.mxu0 0
  %8616 = vmatpush1.bf16.xpose.msra.mxu0 0
  %8617 = vmatprep.subr.bf16.mxu0 0
  %8618 = vmatpush1.bf16.xpose.msra.mxu0 0
  %8619 = vmatprep.mubr.bf16.mxu0 %v1604
  %8620 = vmatmul.mubr.bf16.gmra.mrb[0].mxu0 %v1603
  %v8621 = vpop.f32.mrb[0].mxu0
  %v8622 = vadd.f32 %v8550, %v8621
  %v8623 = vpop.f32.mrb[0].mxu0
  %v8624 = vpop.f32.mrb[0].mxu0
  %v8625 = vadd.f32 %v8553, %v8624
  %v8626 = vpop.f32.mrb[0].mxu0
  %8627 = vmatprep.mubr.bf16.mxu0 %v1645
  %8628 = vmatmul.mubr.bf16.gmra.mrb[0].mxu0 %v1644
  %v8629 = vpop.f32.mrb[0].mxu0
  %v8630 = vadd.f32 %v8558, %v8629
  %v8631 = vpop.f32.mrb[0].mxu0
  %v8632 = vpop.f32.mrb[0].mxu0
  %v8633 = vadd.f32 %v8561, %v8632
  %v8634 = vpop.f32.mrb[0].mxu0
  %8635 = vmatprep.mubr.bf16.mxu0 %v1686
  %8636 = vmatmul.mubr.bf16.gmra.mrb[0].mxu0 %v1685
  %v8637 = vpop.f32.mrb[0].mxu0
  %v8638 = vadd.f32 %v8566, %v8637
  %v8639 = vpop.f32.mrb[0].mxu0
  %v8640 = vpop.f32.mrb[0].mxu0
  %v8641 = vadd.f32 %v8569, %v8640
  %v8642 = vpop.f32.mrb[0].mxu0
  %8643 = vmatprep.mubr.bf16.mxu0 %v1727
  %8644 = vmatmul.mubr.bf16.gmra.mrb[0].mxu0 %v1726
  %v8645 = vpop.f32.mrb[0].mxu0
  %v8646 = vadd.f32 %v8574, %v8645
  %v8647 = vpop.f32.mrb[0].mxu0
  %v8648 = vpop.f32.mrb[0].mxu0
  %v8649 = vadd.f32 %v8577, %v8648
  %v8650 = vpop.f32.mrb[0].mxu0
  %8651 = vmatprep.mubr.bf16.mxu0 %v1768
  %8652 = vmatmul.mubr.bf16.gmra.mrb[0].mxu0 %v1767
  %v8653 = vpop.f32.mrb[0].mxu0
  %v8654 = vadd.f32 %v8582, %v8653
  %v8655 = vpop.f32.mrb[0].mxu0
  %v8656 = vpop.f32.mrb[0].mxu0
  %v8657 = vpop.f32.mrb[0].mxu0
  %8658 = vdwg.mxu0
  %8659 = vmatprep.subr.bf16.mxu0 %v5023
  %8660 = vmatpush1.bf16.xpose.msra.mxu0 %v5022
  %8661 = vmatprep.subr.bf16.mxu0 %v5064
  %8662 = vmatpush1.bf16.xpose.msra.mxu0 %v5063
  %8663 = vmatprep.subr.bf16.mxu0 %v5105
  %8664 = vmatpush1.bf16.xpose.msra.mxu0 %v5104
  %8665 = vmatprep.subr.bf16.mxu0 0
  %8666 = vmatpush1.bf16.xpose.msra.mxu0 0
  %8667 = vmatprep.subr.bf16.mxu0 0
  %8668 = vmatpush1.bf16.xpose.msra.mxu0 0
  %8669 = vmatprep.subr.bf16.mxu0 0
  %8670 = vmatpush1.bf16.xpose.msra.mxu0 0
  %8671 = vmatprep.subr.bf16.mxu0 0
  %8672 = vmatpush1.bf16.xpose.msra.mxu0 0
  %8673 = vmatprep.subr.bf16.mxu0 0
  %8674 = vmatpush1.bf16.xpose.msra.mxu0 0
  %8675 = vmatprep.subr.bf16.mxu0 0
  %8676 = vmatpush1.bf16.xpose.msra.mxu0 0
  %8677 = vmatprep.subr.bf16.mxu0 0
  %8678 = vmatpush1.bf16.xpose.msra.mxu0 0
  %8679 = vmatprep.subr.bf16.mxu0 0
  %8680 = vmatpush1.bf16.xpose.msra.mxu0 0
  %8681 = vmatprep.subr.bf16.mxu0 0
  %8682 = vmatpush1.bf16.xpose.msra.mxu0 0
  %8683 = vmatprep.subr.bf16.mxu0 0
  %8684 = vmatpush1.bf16.xpose.msra.mxu0 0
  %8685 = vmatprep.subr.bf16.mxu0 0
  %8686 = vmatpush1.bf16.xpose.msra.mxu0 0
  %8687 = vmatprep.subr.bf16.mxu0 0
  %8688 = vmatpush1.bf16.xpose.msra.mxu0 0
  %8689 = vmatprep.subr.bf16.mxu0 0
  %8690 = vmatpush1.bf16.xpose.msra.mxu0 0
  %8691 = vmatprep.mubr.bf16.mxu0 %v1606
  %8692 = vmatmul.mubr.bf16.gmra.mrb[0].mxu0 %v1605
  %v8693 = vpop.f32.mrb[0].mxu0
  %v8694 = vadd.f32 %v8622, %v8693
  %v8695 = vpop.f32.mrb[0].mxu0
  %v8696 = vpop.f32.mrb[0].mxu0
  %v8697 = vadd.f32 %v8625, %v8696
  %v8698 = vpop.f32.mrb[0].mxu0
  %8699 = vmatprep.mubr.bf16.mxu0 %v1647
  %8700 = vmatmul.mubr.bf16.gmra.mrb[0].mxu0 %v1646
  %v8701 = vpop.f32.mrb[0].mxu0
  %v8702 = vadd.f32 %v8630, %v8701
  %v8703 = vpop.f32.mrb[0].mxu0
  %v8704 = vpop.f32.mrb[0].mxu0
  %v8705 = vadd.f32 %v8633, %v8704
  %v8706 = vpop.f32.mrb[0].mxu0
  %8707 = vmatprep.mubr.bf16.mxu0 %v1688
  %8708 = vmatmul.mubr.bf16.gmra.mrb[0].mxu0 %v1687
  %v8709 = vpop.f32.mrb[0].mxu0
  %v8710 = vadd.f32 %v8638, %v8709
  %v8711 = vpop.f32.mrb[0].mxu0
  %v8712 = vpop.f32.mrb[0].mxu0
  %v8713 = vadd.f32 %v8641, %v8712
  %v8714 = vpop.f32.mrb[0].mxu0
  %8715 = vmatprep.mubr.bf16.mxu0 %v1729
  %8716 = vmatmul.mubr.bf16.gmra.mrb[0].mxu0 %v1728
  %v8717 = vpop.f32.mrb[0].mxu0
  %v8718 = vadd.f32 %v8646, %v8717
  %v8719 = vpop.f32.mrb[0].mxu0
  %v8720 = vpop.f32.mrb[0].mxu0
  %v8721 = vadd.f32 %v8649, %v8720
  %v8722 = vpop.f32.mrb[0].mxu0
  %8723 = vmatprep.mubr.bf16.mxu0 %v1770
  %8724 = vmatmul.mubr.bf16.gmra.mrb[0].mxu0 %v1769
  %v8725 = vpop.f32.mrb[0].mxu0
  %v8726 = vadd.f32 %v8654, %v8725
  %v8727 = vpop.f32.mrb[0].mxu0
  %v8728 = vpop.f32.mrb[0].mxu0
  %v8729 = vpop.f32.mrb[0].mxu0
  %8730 = vdwg.mxu0
  %8731 = vmatprep.subr.bf16.mxu0 %v5025
  %8732 = vmatpush1.bf16.xpose.msra.mxu0 %v5024
  %8733 = vmatprep.subr.bf16.mxu0 %v5066
  %8734 = vmatpush1.bf16.xpose.msra.mxu0 %v5065
  %8735 = vmatprep.subr.bf16.mxu0 %v5107
  %8736 = vmatpush1.bf16.xpose.msra.mxu0 %v5106
  %8737 = vmatprep.subr.bf16.mxu0 0
  %8738 = vmatpush1.bf16.xpose.msra.mxu0 0
  %8739 = vmatprep.subr.bf16.mxu0 0
  %8740 = vmatpush1.bf16.xpose.msra.mxu0 0
  %8741 = vmatprep.subr.bf16.mxu0 0
  %8742 = vmatpush1.bf16.xpose.msra.mxu0 0
  %8743 = vmatprep.subr.bf16.mxu0 0
  %8744 = vmatpush1.bf16.xpose.msra.mxu0 0
  %8745 = vmatprep.subr.bf16.mxu0 0
  %8746 = vmatpush1.bf16.xpose.msra.mxu0 0
  %8747 = vmatprep.subr.bf16.mxu0 0
  %8748 = vmatpush1.bf16.xpose.msra.mxu0 0
  %8749 = vmatprep.subr.bf16.mxu0 0
  %8750 = vmatpush1.bf16.xpose.msra.mxu0 0
  %8751 = vmatprep.subr.bf16.mxu0 0
  %8752 = vmatpush1.bf16.xpose.msra.mxu0 0
  %8753 = vmatprep.subr.bf16.mxu0 0
  %8754 = vmatpush1.bf16.xpose.msra.mxu0 0
  %8755 = vmatprep.subr.bf16.mxu0 0
  %8756 = vmatpush1.bf16.xpose.msra.mxu0 0
  %8757 = vmatprep.subr.bf16.mxu0 0
  %8758 = vmatpush1.bf16.xpose.msra.mxu0 0
  %8759 = vmatprep.subr.bf16.mxu0 0
  %8760 = vmatpush1.bf16.xpose.msra.mxu0 0
  %8761 = vmatprep.subr.bf16.mxu0 0
  %8762 = vmatpush1.bf16.xpose.msra.mxu0 0
  %8763 = vmatprep.mubr.bf16.mxu0 %v1608
  %8764 = vmatmul.mubr.bf16.gmra.mrb[0].mxu0 %v1607
  %v8765 = vpop.f32.mrb[0].mxu0
  %v8766 = vadd.f32 %v8694, %v8765
  %v8767 = vpop.f32.mrb[0].mxu0
  %v8768 = vpop.f32.mrb[0].mxu0
  %v8769 = vadd.f32 %v8697, %v8768
  %v8770 = vpop.f32.mrb[0].mxu0
  %8771 = vmatprep.mubr.bf16.mxu0 %v1649
  %8772 = vmatmul.mubr.bf16.gmra.mrb[0].mxu0 %v1648
  %v8773 = vpop.f32.mrb[0].mxu0
  %v8774 = vadd.f32 %v8702, %v8773
  %v8775 = vpop.f32.mrb[0].mxu0
  %v8776 = vpop.f32.mrb[0].mxu0
  %v8777 = vadd.f32 %v8705, %v8776
  %v8778 = vpop.f32.mrb[0].mxu0
  %8779 = vmatprep.mubr.bf16.mxu0 %v1690
  %8780 = vmatmul.mubr.bf16.gmra.mrb[0].mxu0 %v1689
  %v8781 = vpop.f32.mrb[0].mxu0
  %v8782 = vadd.f32 %v8710, %v8781
  %v8783 = vpop.f32.mrb[0].mxu0
  %v8784 = vpop.f32.mrb[0].mxu0
  %v8785 = vadd.f32 %v8713, %v8784
  %v8786 = vpop.f32.mrb[0].mxu0
  %8787 = vmatprep.mubr.bf16.mxu0 %v1731
  %8788 = vmatmul.mubr.bf16.gmra.mrb[0].mxu0 %v1730
  %v8789 = vpop.f32.mrb[0].mxu0
  %v8790 = vadd.f32 %v8718, %v8789
  %v8791 = vpop.f32.mrb[0].mxu0
  %v8792 = vpop.f32.mrb[0].mxu0
  %v8793 = vadd.f32 %v8721, %v8792
  %v8794 = vpop.f32.mrb[0].mxu0
  %8795 = vmatprep.mubr.bf16.mxu0 %v1772
  %8796 = vmatmul.mubr.bf16.gmra.mrb[0].mxu0 %v1771
  %v8797 = vpop.f32.mrb[0].mxu0
  %v8798 = vadd.f32 %v8726, %v8797
  %v8799 = vpop.f32.mrb[0].mxu0
  %v8800 = vpop.f32.mrb[0].mxu0
  %v8801 = vpop.f32.mrb[0].mxu0
  %8802 = vdwg.mxu0
  %8803 = vmatprep.subr.bf16.mxu0 %v5027
  %8804 = vmatpush1.bf16.xpose.msra.mxu0 %v5026
  %8805 = vmatprep.subr.bf16.mxu0 %v5068
  %8806 = vmatpush1.bf16.xpose.msra.mxu0 %v5067
  %8807 = vmatprep.subr.bf16.mxu0 %v5109
  %8808 = vmatpush1.bf16.xpose.msra.mxu0 %v5108
  %8809 = vmatprep.subr.bf16.mxu0 0
  %8810 = vmatpush1.bf16.xpose.msra.mxu0 0
  %8811 = vmatprep.subr.bf16.mxu0 0
  %8812 = vmatpush1.bf16.xpose.msra.mxu0 0
  %8813 = vmatprep.subr.bf16.mxu0 0
  %8814 = vmatpush1.bf16.xpose.msra.mxu0 0
  %8815 = vmatprep.subr.bf16.mxu0 0
  %8816 = vmatpush1.bf16.xpose.msra.mxu0 0
  %8817 = vmatprep.subr.bf16.mxu0 0
  %8818 = vmatpush1.bf16.xpose.msra.mxu0 0
  %8819 = vmatprep.subr.bf16.mxu0 0
  %8820 = vmatpush1.bf16.xpose.msra.mxu0 0
  %8821 = vmatprep.subr.bf16.mxu0 0
  %8822 = vmatpush1.bf16.xpose.msra.mxu0 0
  %8823 = vmatprep.subr.bf16.mxu0 0
  %8824 = vmatpush1.bf16.xpose.msra.mxu0 0
  %8825 = vmatprep.subr.bf16.mxu0 0
  %8826 = vmatpush1.bf16.xpose.msra.mxu0 0
  %8827 = vmatprep.subr.bf16.mxu0 0
  %8828 = vmatpush1.bf16.xpose.msra.mxu0 0
  %8829 = vmatprep.subr.bf16.mxu0 0
  %8830 = vmatpush1.bf16.xpose.msra.mxu0 0
  %8831 = vmatprep.subr.bf16.mxu0 0
  %8832 = vmatpush1.bf16.xpose.msra.mxu0 0
  %8833 = vmatprep.subr.bf16.mxu0 0
  %8834 = vmatpush1.bf16.xpose.msra.mxu0 0
  %8835 = vmatprep.mubr.bf16.mxu0 %v1610
  %8836 = vmatmul.mubr.bf16.gmra.mrb[0].mxu0 %v1609
  %v8837 = vpop.f32.mrb[0].mxu0
  %v8838 = vadd.f32 %v8766, %v8837
  %v8839 = vpop.f32.mrb[0].mxu0
  %v8840 = vpop.f32.mrb[0].mxu0
  %v8841 = vadd.f32 %v8769, %v8840
  %v8842 = vpop.f32.mrb[0].mxu0
  %8843 = vmatprep.mubr.bf16.mxu0 %v1651
  %8844 = vmatmul.mubr.bf16.gmra.mrb[0].mxu0 %v1650
  %v8845 = vpop.f32.mrb[0].mxu0
  %v8846 = vadd.f32 %v8774, %v8845
  %v8847 = vpop.f32.mrb[0].mxu0
  %v8848 = vpop.f32.mrb[0].mxu0
  %v8849 = vadd.f32 %v8777, %v8848
  %v8850 = vpop.f32.mrb[0].mxu0
  %8851 = vmatprep.mubr.bf16.mxu0 %v1692
  %8852 = vmatmul.mubr.bf16.gmra.mrb[0].mxu0 %v1691
  %v8853 = vpop.f32.mrb[0].mxu0
  %v8854 = vadd.f32 %v8782, %v8853
  %v8855 = vpop.f32.mrb[0].mxu0
  %v8856 = vpop.f32.mrb[0].mxu0
  %v8857 = vadd.f32 %v8785, %v8856
  %v8858 = vpop.f32.mrb[0].mxu0
  %8859 = vmatprep.mubr.bf16.mxu0 %v1733
  %8860 = vmatmul.mubr.bf16.gmra.mrb[0].mxu0 %v1732
  %v8861 = vpop.f32.mrb[0].mxu0
  %v8862 = vadd.f32 %v8790, %v8861
  %v8863 = vpop.f32.mrb[0].mxu0
  %v8864 = vpop.f32.mrb[0].mxu0
  %v8865 = vadd.f32 %v8793, %v8864
  %v8866 = vpop.f32.mrb[0].mxu0
  %8867 = vmatprep.mubr.bf16.mxu0 %v1774
  %8868 = vmatmul.mubr.bf16.gmra.mrb[0].mxu0 %v1773
  %v8869 = vpop.f32.mrb[0].mxu0
  %v8870 = vadd.f32 %v8798, %v8869
  %v8871 = vpop.f32.mrb[0].mxu0
  %v8872 = vpop.f32.mrb[0].mxu0
  %v8873 = vpop.f32.mrb[0].mxu0
  %8874 = vdwg.mxu0
  %8875 = vmatprep.subr.bf16.mxu0 %v5029
  %8876 = vmatpush1.bf16.xpose.msra.mxu0 %v5028
  %8877 = vmatprep.subr.bf16.mxu0 %v5070
  %8878 = vmatpush1.bf16.xpose.msra.mxu0 %v5069
  %8879 = vmatprep.subr.bf16.mxu0 %v5111
  %8880 = vmatpush1.bf16.xpose.msra.mxu0 %v5110
  %8881 = vmatprep.subr.bf16.mxu0 0
  %8882 = vmatpush1.bf16.xpose.msra.mxu0 0
  %8883 = vmatprep.subr.bf16.mxu0 0
  %8884 = vmatpush1.bf16.xpose.msra.mxu0 0
  %8885 = vmatprep.subr.bf16.mxu0 0
  %8886 = vmatpush1.bf16.xpose.msra.mxu0 0
  %8887 = vmatprep.subr.bf16.mxu0 0
  %8888 = vmatpush1.bf16.xpose.msra.mxu0 0
  %8889 = vmatprep.subr.bf16.mxu0 0
  %8890 = vmatpush1.bf16.xpose.msra.mxu0 0
  %8891 = vmatprep.subr.bf16.mxu0 0
  %8892 = vmatpush1.bf16.xpose.msra.mxu0 0
  %8893 = vmatprep.subr.bf16.mxu0 0
  %8894 = vmatpush1.bf16.xpose.msra.mxu0 0
  %8895 = vmatprep.subr.bf16.mxu0 0
  %8896 = vmatpush1.bf16.xpose.msra.mxu0 0
  %8897 = vmatprep.subr.bf16.mxu0 0
  %8898 = vmatpush1.bf16.xpose.msra.mxu0 0
  %8899 = vmatprep.subr.bf16.mxu0 0
  %8900 = vmatpush1.bf16.xpose.msra.mxu0 0
  %8901 = vmatprep.subr.bf16.mxu0 0
  %8902 = vmatpush1.bf16.xpose.msra.mxu0 0
  %8903 = vmatprep.subr.bf16.mxu0 0
  %8904 = vmatpush1.bf16.xpose.msra.mxu0 0
  %8905 = vmatprep.subr.bf16.mxu0 0
  %8906 = vmatpush1.bf16.xpose.msra.mxu0 0
  %8907 = vmatprep.mubr.bf16.mxu0 %v1612
  %8908 = vmatmul.mubr.bf16.gmra.mrb[0].mxu0 %v1611
  %v8909 = vpop.f32.mrb[0].mxu0
  %v8910 = vadd.f32 %v8838, %v8909
  %v8911 = vpop.f32.mrb[0].mxu0
  %v8912 = vpop.f32.mrb[0].mxu0
  %v8913 = vadd.f32 %v8841, %v8912
  %v8914 = vpop.f32.mrb[0].mxu0
  %8915 = vmatprep.mubr.bf16.mxu0 %v1653
  %8916 = vmatmul.mubr.bf16.gmra.mrb[0].mxu0 %v1652
  %v8917 = vpop.f32.mrb[0].mxu0
  %v8918 = vadd.f32 %v8846, %v8917
  %v8919 = vpop.f32.mrb[0].mxu0
  %v8920 = vpop.f32.mrb[0].mxu0
  %v8921 = vadd.f32 %v8849, %v8920
  %v8922 = vpop.f32.mrb[0].mxu0
  %8923 = vmatprep.mubr.bf16.mxu0 %v1694
  %8924 = vmatmul.mubr.bf16.gmra.mrb[0].mxu0 %v1693
  %v8925 = vpop.f32.mrb[0].mxu0
  %v8926 = vadd.f32 %v8854, %v8925
  %v8927 = vpop.f32.mrb[0].mxu0
  %v8928 = vpop.f32.mrb[0].mxu0
  %v8929 = vadd.f32 %v8857, %v8928
  %v8930 = vpop.f32.mrb[0].mxu0
  %8931 = vmatprep.mubr.bf16.mxu0 %v1735
  %8932 = vmatmul.mubr.bf16.gmra.mrb[0].mxu0 %v1734
  %v8933 = vpop.f32.mrb[0].mxu0
  %v8934 = vadd.f32 %v8862, %v8933
  %v8935 = vpop.f32.mrb[0].mxu0
  %v8936 = vpop.f32.mrb[0].mxu0
  %v8937 = vadd.f32 %v8865, %v8936
  %v8938 = vpop.f32.mrb[0].mxu0
  %8939 = vmatprep.mubr.bf16.mxu0 %v1776
  %8940 = vmatmul.mubr.bf16.gmra.mrb[0].mxu0 %v1775
  %v8941 = vpop.f32.mrb[0].mxu0
  %v8942 = vadd.f32 %v8870, %v8941
  %v8943 = vpop.f32.mrb[0].mxu0
  %v8944 = vpop.f32.mrb[0].mxu0
  %v8945 = vpop.f32.mrb[0].mxu0
  %8946 = vdwg.mxu0
  %8947 = vmatprep.subr.bf16.mxu0 %v5031
  %8948 = vmatpush1.bf16.xpose.msra.mxu0 %v5030
  %8949 = vmatprep.subr.bf16.mxu0 %v5072
  %8950 = vmatpush1.bf16.xpose.msra.mxu0 %v5071
  %8951 = vmatprep.subr.bf16.mxu0 %v5113
  %8952 = vmatpush1.bf16.xpose.msra.mxu0 %v5112
  %8953 = vmatprep.subr.bf16.mxu0 0
  %8954 = vmatpush1.bf16.xpose.msra.mxu0 0
  %8955 = vmatprep.subr.bf16.mxu0 0
  %8956 = vmatpush1.bf16.xpose.msra.mxu0 0
  %8957 = vmatprep.subr.bf16.mxu0 0
  %8958 = vmatpush1.bf16.xpose.msra.mxu0 0
  %8959 = vmatprep.subr.bf16.mxu0 0
  %8960 = vmatpush1.bf16.xpose.msra.mxu0 0
  %8961 = vmatprep.subr.bf16.mxu0 0
  %8962 = vmatpush1.bf16.xpose.msra.mxu0 0
  %8963 = vmatprep.subr.bf16.mxu0 0
  %8964 = vmatpush1.bf16.xpose.msra.mxu0 0
  %8965 = vmatprep.subr.bf16.mxu0 0
  %8966 = vmatpush1.bf16.xpose.msra.mxu0 0
  %8967 = vmatprep.subr.bf16.mxu0 0
  %8968 = vmatpush1.bf16.xpose.msra.mxu0 0
  %8969 = vmatprep.subr.bf16.mxu0 0
  %8970 = vmatpush1.bf16.xpose.msra.mxu0 0
  %8971 = vmatprep.subr.bf16.mxu0 0
  %8972 = vmatpush1.bf16.xpose.msra.mxu0 0
  %8973 = vmatprep.subr.bf16.mxu0 0
  %8974 = vmatpush1.bf16.xpose.msra.mxu0 0
  %8975 = vmatprep.subr.bf16.mxu0 0
  %8976 = vmatpush1.bf16.xpose.msra.mxu0 0
  %8977 = vmatprep.subr.bf16.mxu0 0
  %8978 = vmatpush1.bf16.xpose.msra.mxu0 0
  %8979 = vmatprep.mubr.bf16.mxu0 %v1614
  %8980 = vmatmul.mubr.bf16.gmra.mrb[0].mxu0 %v1613
  %v8981 = vpop.f32.mrb[0].mxu0
  %v8982 = vadd.f32 %v8910, %v8981
  %v8983 = vpop.f32.mrb[0].mxu0
  %v8984 = vpop.f32.mrb[0].mxu0
  %v8985 = vadd.f32 %v8913, %v8984
  %v8986 = vpop.f32.mrb[0].mxu0
  %8987 = vmatprep.mubr.bf16.mxu0 %v1655
  %8988 = vmatmul.mubr.bf16.gmra.mrb[0].mxu0 %v1654
  %v8989 = vpop.f32.mrb[0].mxu0
  %v8990 = vadd.f32 %v8918, %v8989
  %v8991 = vpop.f32.mrb[0].mxu0
  %v8992 = vpop.f32.mrb[0].mxu0
  %v8993 = vadd.f32 %v8921, %v8992
  %v8994 = vpop.f32.mrb[0].mxu0
  %8995 = vmatprep.mubr.bf16.mxu0 %v1696
  %8996 = vmatmul.mubr.bf16.gmra.mrb[0].mxu0 %v1695
  %v8997 = vpop.f32.mrb[0].mxu0
  %v8998 = vadd.f32 %v8926, %v8997
  %v8999 = vpop.f32.mrb[0].mxu0
  %v9000 = vpop.f32.mrb[0].mxu0
  %v9001 = vadd.f32 %v8929, %v9000
  %v9002 = vpop.f32.mrb[0].mxu0
  %9003 = vmatprep.mubr.bf16.mxu0 %v1737
  %9004 = vmatmul.mubr.bf16.gmra.mrb[0].mxu0 %v1736
  %v9005 = vpop.f32.mrb[0].mxu0
  %v9006 = vadd.f32 %v8934, %v9005
  %v9007 = vpop.f32.mrb[0].mxu0
  %v9008 = vpop.f32.mrb[0].mxu0
  %v9009 = vadd.f32 %v8937, %v9008
  %v9010 = vpop.f32.mrb[0].mxu0
  %9011 = vmatprep.mubr.bf16.mxu0 %v1778
  %9012 = vmatmul.mubr.bf16.gmra.mrb[0].mxu0 %v1777
  %v9013 = vpop.f32.mrb[0].mxu0
  %v9014 = vadd.f32 %v8942, %v9013
  %v9015 = vpop.f32.mrb[0].mxu0
  %v9016 = vpop.f32.mrb[0].mxu0
  %v9017 = vpop.f32.mrb[0].mxu0
  %9018 = vdwg.mxu0
  %9019 = vmatprep.subr.bf16.mxu0 %v5033
  %9020 = vmatpush1.bf16.xpose.msra.mxu0 %v5032
  %9021 = vmatprep.subr.bf16.mxu0 %v5074
  %9022 = vmatpush1.bf16.xpose.msra.mxu0 %v5073
  %9023 = vmatprep.subr.bf16.mxu0 %v5115
  %9024 = vmatpush1.bf16.xpose.msra.mxu0 %v5114
  %9025 = vmatprep.subr.bf16.mxu0 0
  %9026 = vmatpush1.bf16.xpose.msra.mxu0 0
  %9027 = vmatprep.subr.bf16.mxu0 0
  %9028 = vmatpush1.bf16.xpose.msra.mxu0 0
  %9029 = vmatprep.subr.bf16.mxu0 0
  %9030 = vmatpush1.bf16.xpose.msra.mxu0 0
  %9031 = vmatprep.subr.bf16.mxu0 0
  %9032 = vmatpush1.bf16.xpose.msra.mxu0 0
  %9033 = vmatprep.subr.bf16.mxu0 0
  %9034 = vmatpush1.bf16.xpose.msra.mxu0 0
  %9035 = vmatprep.subr.bf16.mxu0 0
  %9036 = vmatpush1.bf16.xpose.msra.mxu0 0
  %9037 = vmatprep.subr.bf16.mxu0 0
  %9038 = vmatpush1.bf16.xpose.msra.mxu0 0
  %9039 = vmatprep.subr.bf16.mxu0 0
  %9040 = vmatpush1.bf16.xpose.msra.mxu0 0
  %9041 = vmatprep.subr.bf16.mxu0 0
  %9042 = vmatpush1.bf16.xpose.msra.mxu0 0
  %9043 = vmatprep.subr.bf16.mxu0 0
  %9044 = vmatpush1.bf16.xpose.msra.mxu0 0
  %9045 = vmatprep.subr.bf16.mxu0 0
  %9046 = vmatpush1.bf16.xpose.msra.mxu0 0
  %9047 = vmatprep.subr.bf16.mxu0 0
  %9048 = vmatpush1.bf16.xpose.msra.mxu0 0
  %9049 = vmatprep.subr.bf16.mxu0 0
  %9050 = vmatpush1.bf16.xpose.msra.mxu0 0
  %9051 = vmatprep.mubr.bf16.mxu0 %v1616
  %9052 = vmatmul.mubr.bf16.gmra.mrb[0].mxu0 %v1615
  %v9053 = vpop.f32.mrb[0].mxu0
  %v9054 = vadd.f32 %v8982, %v9053
  %v9055 = vpop.f32.mrb[0].mxu0
  %v9056 = vpop.f32.mrb[0].mxu0
  %v9057 = vadd.f32 %v8985, %v9056
  %v9058 = vpop.f32.mrb[0].mxu0
  %9059 = vmatprep.mubr.bf16.mxu0 %v1657
  %9060 = vmatmul.mubr.bf16.gmra.mrb[0].mxu0 %v1656
  %v9061 = vpop.f32.mrb[0].mxu0
  %v9062 = vadd.f32 %v8990, %v9061
  %v9063 = vpop.f32.mrb[0].mxu0
  %v9064 = vpop.f32.mrb[0].mxu0
  %v9065 = vadd.f32 %v8993, %v9064
  %v9066 = vpop.f32.mrb[0].mxu0
  %9067 = vmatprep.mubr.bf16.mxu0 %v1698
  %9068 = vmatmul.mubr.bf16.gmra.mrb[0].mxu0 %v1697
  %v9069 = vpop.f32.mrb[0].mxu0
  %v9070 = vadd.f32 %v8998, %v9069
  %v9071 = vpop.f32.mrb[0].mxu0
  %v9072 = vpop.f32.mrb[0].mxu0
  %v9073 = vadd.f32 %v9001, %v9072
  %v9074 = vpop.f32.mrb[0].mxu0
  %9075 = vmatprep.mubr.bf16.mxu0 %v1739
  %9076 = vmatmul.mubr.bf16.gmra.mrb[0].mxu0 %v1738
  %v9077 = vpop.f32.mrb[0].mxu0
  %v9078 = vadd.f32 %v9006, %v9077
  %v9079 = vpop.f32.mrb[0].mxu0
  %v9080 = vpop.f32.mrb[0].mxu0
  %v9081 = vadd.f32 %v9009, %v9080
  %v9082 = vpop.f32.mrb[0].mxu0
  %9083 = vmatprep.mubr.bf16.mxu0 %v1780
  %9084 = vmatmul.mubr.bf16.gmra.mrb[0].mxu0 %v1779
  %v9085 = vpop.f32.mrb[0].mxu0
  %v9086 = vadd.f32 %v9014, %v9085
  %v9087 = vpop.f32.mrb[0].mxu0
  %v9088 = vpop.f32.mrb[0].mxu0
  %v9089 = vpop.f32.mrb[0].mxu0
  %9090 = vdwg.mxu0
  %9091 = vmatprep.subr.bf16.mxu0 0
  %9092 = vmatpush1.bf16.xpose.msra.mxu0 %v5942
  %9093 = vmatprep.subr.bf16.mxu0 0
  %9094 = vmatpush1.bf16.xpose.msra.mxu0 %v5945
  %9095 = vmatprep.subr.bf16.mxu0 0
  %9096 = vmatpush1.bf16.xpose.msra.mxu0 %v5948
  %9097 = vmatprep.subr.bf16.mxu0 0
  %9098 = vmatpush1.bf16.xpose.msra.mxu0 0
  %9099 = vmatprep.subr.bf16.mxu0 0
  %9100 = vmatpush1.bf16.xpose.msra.mxu0 0
  %9101 = vmatprep.subr.bf16.mxu0 0
  %9102 = vmatpush1.bf16.xpose.msra.mxu0 0
  %9103 = vmatprep.subr.bf16.mxu0 0
  %9104 = vmatpush1.bf16.xpose.msra.mxu0 0
  %9105 = vmatprep.subr.bf16.mxu0 0
  %9106 = vmatpush1.bf16.xpose.msra.mxu0 0
  %9107 = vmatprep.subr.bf16.mxu0 0
  %9108 = vmatpush1.bf16.xpose.msra.mxu0 0
  %9109 = vmatprep.subr.bf16.mxu0 0
  %9110 = vmatpush1.bf16.xpose.msra.mxu0 0
  %9111 = vmatprep.subr.bf16.mxu0 0
  %9112 = vmatpush1.bf16.xpose.msra.mxu0 0
  %9113 = vmatprep.subr.bf16.mxu0 0
  %9114 = vmatpush1.bf16.xpose.msra.mxu0 0
  %9115 = vmatprep.subr.bf16.mxu0 0
  %9116 = vmatpush1.bf16.xpose.msra.mxu0 0
  %9117 = vmatprep.subr.bf16.mxu0 0
  %9118 = vmatpush1.bf16.xpose.msra.mxu0 0
  %9119 = vmatprep.subr.bf16.mxu0 0
  %9120 = vmatpush1.bf16.xpose.msra.mxu0 0
  %9121 = vmatprep.subr.bf16.mxu0 0
  %9122 = vmatpush1.bf16.xpose.msra.mxu0 0
  %9123 = vmatprep.mubr.bf16.mxu0 0
  %9124 = vmatmul.mubr.bf16.gmra.mrb[0].mxu0 %v5879
  %v9125 = vpop.f32.mrb[0].mxu0
  %v9126 = vadd.f32 %v9054, %v9125
  %v9127 = vpop.f32.mrb[0].mxu0
  %v9128 = vpop.f32.mrb[0].mxu0
  %v9129 = vadd.f32 %v9057, %v9128
  %v9130 = vpop.f32.mrb[0].mxu0
  %9131 = vmatprep.mubr.bf16.mxu0 0
  %9132 = vmatmul.mubr.bf16.gmra.mrb[0].mxu0 %v5882
  %v9133 = vpop.f32.mrb[0].mxu0
  %v9134 = vadd.f32 %v9062, %v9133
  %v9135 = vpop.f32.mrb[0].mxu0
  %v9136 = vpop.f32.mrb[0].mxu0
  %v9137 = vadd.f32 %v9065, %v9136
  %v9138 = vpop.f32.mrb[0].mxu0
  %9139 = vmatprep.mubr.bf16.mxu0 0
  %9140 = vmatmul.mubr.bf16.gmra.mrb[0].mxu0 %v5885
  %v9141 = vpop.f32.mrb[0].mxu0
  %v9142 = vadd.f32 %v9070, %v9141
  %v9143 = vpop.f32.mrb[0].mxu0
  %v9144 = vpop.f32.mrb[0].mxu0
  %v9145 = vadd.f32 %v9073, %v9144
  %v9146 = vpop.f32.mrb[0].mxu0
  %9147 = vmatprep.mubr.bf16.mxu0 0
  %9148 = vmatmul.mubr.bf16.gmra.mrb[0].mxu0 %v5888
  %v9149 = vpop.f32.mrb[0].mxu0
  %v9150 = vadd.f32 %v9078, %v9149
  %v9151 = vpop.f32.mrb[0].mxu0
  %v9152 = vpop.f32.mrb[0].mxu0
  %v9153 = vadd.f32 %v9081, %v9152
  %v9154 = vpop.f32.mrb[0].mxu0
  %9155 = vmatprep.mubr.bf16.mxu0 0
  %9156 = vmatmul.mubr.bf16.gmra.mrb[0].mxu0 %v5891
  %v9157 = vpop.f32.mrb[0].mxu0
  %v9158 = vadd.f32 %v9086, %v9157
  %v9159 = vpop.f32.mrb[0].mxu0
  %v9160 = vpop.f32.mrb[0].mxu0
  %v9161 = vpop.f32.mrb[0].mxu0
  %9162 = vdwg.mxu0
  %v9163 = vmax.f32 %v7605, 0.0
  %v9164 = vmax.f32 %v7607, 0.0
  %v9165 = vmax.f32 %v9126, 0.0
  %v9166 = vmax.f32 %v7609, 0.0
  %v9167 = vmax.f32 %v7611, 0.0
  %v9168 = vmax.f32 %v9129, 0.0
  %v9169 = vmax.f32 %v7615, 0.0
  %v9170 = vmax.f32 %v7617, 0.0
  %v9171 = vmax.f32 %v9134, 0.0
  %v9172 = vmax.f32 %v7619, 0.0
  %v9173 = vmax.f32 %v7621, 0.0
  %v9174 = vmax.f32 %v9137, 0.0
  %v9175 = vmax.f32 %v7625, 0.0
  %v9176 = vmax.f32 %v7627, 0.0
  %v9177 = vmax.f32 %v9142, 0.0
  %v9178 = vmax.f32 %v7629, 0.0
  %v9179 = vmax.f32 %v7631, 0.0
  %v9180 = vmax.f32 %v9145, 0.0
  %v9181 = vmax.f32 %v7635, 0.0
  %v9182 = vmax.f32 %v7637, 0.0
  %v9183 = vmax.f32 %v9150, 0.0
  %v9184 = vmax.f32 %v7639, 0.0
  %v9185 = vmax.f32 %v7641, 0.0
  %v9186 = vmax.f32 %v9153, 0.0
  %v9187 = vmax.f32 %v7645, 0.0
  %v9188 = vmax.f32 %v7647, 0.0
  %v9189 = vmax.f32 %v9158, 0.0
  %v9190 = vpack.c.bf16 %v9166, %v9163
  %v9191 = vpack.c.bf16 %v9167, %v9164
  %v9192 = vpack.c.bf16 %v9168, %v9165
  %v9193 = vpack.c.bf16 %v9172, %v9169
  %v9194 = vpack.c.bf16 %v9173, %v9170
  %v9195 = vpack.c.bf16 %v9174, %v9171
  %v9196 = vpack.c.bf16 %v9178, %v9175
  %v9197 = vpack.c.bf16 %v9179, %v9176
  %v9198 = vpack.c.bf16 %v9180, %v9177
  %v9199 = vpack.c.bf16 %v9184, %v9181
  %v9200 = vpack.c.bf16 %v9185, %v9182
  %v9201 = vpack.c.bf16 %v9186, %v9183
  %v9202 = vpack.c.bf16 %v9187, %v9187
  %v9203 = vpack.c.bf16 %v9188, %v9188
  %v9204 = vpack.c.bf16 %v9189, %v9189
  %v9220 = vunpack.c.l.b16 %v9190
  %v9221 = vunpack.c.l.b16 %v9191
  %v9222 = vunpack.c.l.b16 %v9192
  %v9223 = vunpack.c.h.b16 %v9190
  %v9224 = vunpack.c.h.b16 %v9191
  %v9225 = vunpack.c.h.b16 %v9192
  %v9226 = vunpack.c.l.b16 %v9193
  %v9227 = vunpack.c.l.b16 %v9194
  %v9228 = vunpack.c.l.b16 %v9195
  %v9229 = vunpack.c.h.b16 %v9193
  %v9230 = vunpack.c.h.b16 %v9194
  %v9231 = vunpack.c.h.b16 %v9195
  %v9232 = vunpack.c.l.b16 %v9196
  %v9233 = vunpack.c.l.b16 %v9197
  %v9234 = vunpack.c.l.b16 %v9198
  %v9235 = vunpack.c.h.b16 %v9196
  %v9236 = vunpack.c.h.b16 %v9197
  %v9237 = vunpack.c.h.b16 %v9198
  %v9238 = vunpack.c.l.b16 %v9199
  %v9239 = vunpack.c.l.b16 %v9200
  %v9240 = vunpack.c.l.b16 %v9201
  %v9241 = vunpack.c.h.b16 %v9199
  %v9242 = vunpack.c.h.b16 %v9200
  %v9243 = vunpack.c.h.b16 %v9201
  %v9244 = vunpack.c.l.b16 %v9202
  %v9245 = vunpack.c.l.b16 %v9203
  %v9246 = vunpack.c.l.b16 %v9204
  %v9247 = vpack.c.b16 %v9221, %v9220
  %v9248 = vpack.c.b16 %v9222, %v9222
  %v9249 = vpack.c.b16 %v9224, %v9223
  %v9250 = vpack.c.b16 %v9225, %v9225
  %v9251 = vpack.c.b16 %v9227, %v9226
  %v9252 = vpack.c.b16 %v9228, %v9228
  %v9253 = vpack.c.b16 %v9230, %v9229
  %v9254 = vpack.c.b16 %v9231, %v9231
  %v9255 = vpack.c.b16 %v9233, %v9232
  %v9256 = vpack.c.b16 %v9234, %v9234
  %v9257 = vpack.c.b16 %v9236, %v9235
  %v9258 = vpack.c.b16 %v9237, %v9237
  %v9259 = vpack.c.b16 %v9239, %v9238
  %v9260 = vpack.c.b16 %v9240, %v9240
  %v9261 = vpack.c.b16 %v9242, %v9241
  %v9262 = vpack.c.b16 %v9243, %v9243
  %v9263 = vpack.c.b16 %v9245, %v9244
  %v9264 = vpack.c.b16 %v9246, %v9246
  %9283 = vst [vmem:[%s3] sm:$0xff] %v9247
  %vm9284 = vcmask 355328
  %9285 = vst.msk [vmem:[%s3 + $0x8] sm:$0xf] %vm9284, %v9248
  %9286 = vst [vmem:[%s3 + $0xc] sm:$0xff] %v9249
  %9287 = vst.msk [vmem:[%s3 + $0x14] sm:$0xf] %vm9284, %v9250
  %9288 = vst [vmem:[%s3 + $0x18] sm:$0xff] %v9251
  %9289 = vst.msk [vmem:[%s3 + $0x20] sm:$0xf] %vm9284, %v9252
  %9290 = vst [vmem:[%s3 + $0x24] sm:$0xff] %v9253
  %9291 = vst.msk [vmem:[%s3 + $0x2c] sm:$0xf] %vm9284, %v9254
  %9292 = vst [vmem:[%s3 + $0x30] sm:$0xff] %v9255
  %9293 = vst.msk [vmem:[%s3 + $0x38] sm:$0xf] %vm9284, %v9256
  %9294 = vst [vmem:[%s3 + $0x3c] sm:$0xff] %v9257
  %9295 = vst.msk [vmem:[%s3 + $0x44] sm:$0xf] %vm9284, %v9258
  %9296 = vst [vmem:[%s3 + $0x48] sm:$0xff] %v9259
  %9297 = vst.msk [vmem:[%s3 + $0x50] sm:$0xf] %vm9284, %v9260
  %9298 = vst [vmem:[%s3 + $0x54] sm:$0xff] %v9261
  %9299 = vst.msk [vmem:[%s3 + $0x5c] sm:$0xf] %vm9284, %v9262
  %9300 = vst [vmem:[%s3 + $0x60] sm:$0xff] %v9263
  %9301 = vst.msk [vmem:[%s3 + $0x68] sm:$0xf] %vm9284, %v9264
  // Predicated region
  $region14: #{waste_head_forward.2} parent=0 // pred_check
    _
  $region15: #{waste_head_forward.2} parent=0 // pred_check_branch
    %9303 = sbr.rel (0) target = $region17
  $region16: #{waste_head_forward.2} parent=0 // pred_region
    _
  $region17: #{waste_head_forward.2} parent=0 // pred_fallthru
    _
  // Predicated region
  $region18: #{waste_head_forward.2} parent=0 // pred_check
    _
  $region19: #{waste_head_forward.2} parent=0 // pred_check_branch
    %9305 = sbr.rel (0) target = $region21
  $region20: #{waste_head_forward.2} parent=0 // pred_region
    _
  $region21: #{waste_head_forward.2} parent=0 // pred_fallthru
    _

// kernel: waste_head_forward.3
$region0: #{waste_head_forward.3}
  #allocation0 [shape = 'u32[]', space=smem, size = 0x4, offset = 0x4, fixed_abs, tag = 'smem constant byte address 0x4 - core index']
  #allocation1 [shape = 'u32[144,128]{1,0:T(1,128)}', space=vmem, size = 0x12000, scoped, tag = 'internal scratch']
  %s0 = inlined_call_operand.vmem [shape: bf16[2,10800], index: 0, kind: input, shape index: {}]
  %s1 = inlined_call_operand.vmem [shape: bf16[30,10800], index: 1, kind: input, shape index: {}]
  %s2 = inlined_call_operand.vmem [shape: f32[1,30], index: 2, kind: input, shape index: {}]
  %s3 = inlined_call_operand.hbm [shape: f32[2,30], index: 3, kind: output, shape index: {}]
  %s4 = sld [smem:[#allocation0]]
  $region22: #{waste_head_forward.3} parent=0
    _
  %s6 = ssub.s32 1, %s4
  %s7 = scalar_select 0, %s6, %s4
  $region1: #{waste_head_forward.3} parent=0
    #allocation2 [shape = 'u8[1024]{0}', space=vmem, size = 0x400, scoped, tag = 'output window, operand 0, single buffered']
    #allocation3 [shape = 's32[1]{0}', space=sflag, size = 0x4, scoped, tag = 'scoped memory for waste_head_forward.3']
    %8 = vsyncpa [#allocation3], 0
    // Predicated region
    $region2: #{waste_head_forward.3} parent=1 // pred_check
      _
    $region3: #{waste_head_forward.3} parent=1 // pred_check_branch
      %10 = sbr.rel (0) target = $region5
    $region4: #{waste_head_forward.3} parent=1 // pred_region
      _
    $region5: #{waste_head_forward.3} parent=1 // pred_fallthru
      _
    // Predicated region
    $region6: #{waste_head_forward.3} parent=1 // pred_check
      _
    $region7: #{waste_head_forward.3} parent=1 // pred_check_branch
      %12 = sbr.rel (0) target = $region9
    $region8: #{waste_head_forward.3} parent=1 // pred_region
      _
    $region9: #{waste_head_forward.3} parent=1 // pred_fallthru
      _
    // Predicated region
    $region10: #{waste_head_forward.3} parent=1 // pred_check
      _
    $region11: #{waste_head_forward.3} parent=1 // pred_check_branch
      %14 = sbr.rel (0) target = $region13
    $region12: #{waste_head_forward.3} parent=1 // pred_region
      _
    $region13: #{waste_head_forward.3} parent=1 // pred_fallthru
      _
    %v16 = vld [vmem:[%s0] sm:$0xff]
    %v17 = vld [vmem:[%s0 + $0x8] sm:$0xff]
    %v18 = vld [vmem:[%s0 + $0x10] sm:$0xff]
    %v19 = vld [vmem:[%s0 + $0x18] sm:$0xff]
    %v20 = vld [vmem:[%s0 + $0x20] sm:$0xff]
    %v21 = vld [vmem:[%s0 + $0x28] sm:$0xff]
    %v22 = vld [vmem:[%s0 + $0x30] sm:$0xff]
    %v23 = vld [vmem:[%s0 + $0x38] sm:$0xff]
    %v24 = vld [vmem:[%s0 + $0x40] sm:$0xff]
    %v25 = vld [vmem:[%s0 + $0x48] sm:$0xff]
    %v26 = vld [vmem:[%s0 + $0x50] sm:$0x1f]
    %v27 = vld [vmem:[%s1] sm:$0xff]
    %v28 = vld [vmem:[%s1 + $0x8] sm:$0xff]
    %v29 = vld [vmem:[%s1 + $0x10] sm:$0xff]
    %v30 = vld [vmem:[%s1 + $0x18] sm:$0xff]
    %v31 = vld [vmem:[%s1 + $0x20] sm:$0xff]
    %v32 = vld [vmem:[%s1 + $0x28] sm:$0xff]
    %v33 = vld [vmem:[%s1 + $0x30] sm:$0xff]
    %v34 = vld [vmem:[%s1 + $0x38] sm:$0xff]
    %v35 = vld [vmem:[%s1 + $0x40] sm:$0xff]
    %v36 = vld [vmem:[%s1 + $0x48] sm:$0xff]
    %v37 = vld [vmem:[%s1 + $0x50] sm:$0xff]
    %v38 = vld [vmem:[%s1 + $0x58] sm:$0xff]
    %v39 = vld [vmem:[%s1 + $0x60] sm:$0xff]
    %v40 = vld [vmem:[%s1 + $0x68] sm:$0xff]
    %v41 = vld [vmem:[%s1 + $0x70] sm:$0xff]
    %v42 = vld [vmem:[%s1 + $0x78] sm:$0xff]
    %v43 = vld [vmem:[%s1 + $0x80] sm:$0xff]
    %v44 = vld [vmem:[%s1 + $0x88] sm:$0xff]
    %v45 = vld [vmem:[%s1 + $0x90] sm:$0xff]
    %v46 = vld [vmem:[%s1 + $0x98] sm:$0xff]
    %v47 = vld [vmem:[%s1 + $0xa0] sm:$0xff]
    %v48 = vld [vmem:[%s1 + $0xa8] sm:$0xff]
    %v49 = vld [vmem:[%s1 + $0xb0] sm:$0xff]
    %v50 = vld [vmem:[%s1 + $0xb8] sm:$0xff]
    %v51 = vld [vmem:[%s1 + $0xc0] sm:$0xff]
    %v52 = vld [vmem:[%s1 + $0xc8] sm:$0xff]
    %v53 = vld [vmem:[%s1 + $0xd0] sm:$0xff]
    %v54 = vld [vmem:[%s1 + $0xd8] sm:$0xff]
    %v55 = vld [vmem:[%s1 + $0xe0] sm:$0xff]
    %v56 = vld [vmem:[%s1 + $0xe8] sm:$0xff]
    %v57 = vld [vmem:[%s1 + $0xf0] sm:$0xff]
    %v58 = vld [vmem:[%s1 + $0xf8] sm:$0xff]
    %v59 = vld [vmem:[%s1 + $0x100] sm:$0xff]
    %v60 = vld [vmem:[%s1 + $0x108] sm:$0xff]
    %v61 = vld [vmem:[%s1 + $0x110] sm:$0xff]
    %v62 = vld [vmem:[%s1 + $0x118] sm:$0xff]
    %v63 = vld [vmem:[%s1 + $0x120] sm:$0xff]
    %v64 = vld [vmem:[%s1 + $0x128] sm:$0xff]
    %v65 = vld [vmem:[%s1 + $0x130] sm:$0xff]
    %v66 = vld [vmem:[%s1 + $0x138] sm:$0xff]
    %v67 = vld [vmem:[%s1 + $0x140] sm:$0xff]
    %v68 = vld [vmem:[%s1 + $0x148] sm:$0xff]
    %v69 = vld [vmem:[%s1 + $0x150] sm:$0xf]
    %v70 = vld [vmem:[%s1 + $0x154] sm:$0xff]
    %v71 = vld [vmem:[%s1 + $0x15c] sm:$0xff]
    %v72 = vld [vmem:[%s1 + $0x164] sm:$0xff]
    %v73 = vld [vmem:[%s1 + $0x16c] sm:$0xff]
    %v74 = vld [vmem:[%s1 + $0x174] sm:$0xff]
    %v75 = vld [vmem:[%s1 + $0x17c] sm:$0xff]
    %v76 = vld [vmem:[%s1 + $0x184] sm:$0xff]
    %v77 = vld [vmem:[%s1 + $0x18c] sm:$0xff]
    %v78 = vld [vmem:[%s1 + $0x194] sm:$0xff]
    %v79 = vld [vmem:[%s1 + $0x19c] sm:$0xff]
    %v80 = vld [vmem:[%s1 + $0x1a4] sm:$0xff]
    %v81 = vld [vmem:[%s1 + $0x1ac] sm:$0xff]
    %v82 = vld [vmem:[%s1 + $0x1b4] sm:$0xff]
    %v83 = vld [vmem:[%s1 + $0x1bc] sm:$0xff]
    %v84 = vld [vmem:[%s1 + $0x1c4] sm:$0xff]
    %v85 = vld [vmem:[%s1 + $0x1cc] sm:$0xff]
    %v86 = vld [vmem:[%s1 + $0x1d4] sm:$0xff]
    %v87 = vld [vmem:[%s1 + $0x1dc] sm:$0xff]
    %v88 = vld [vmem:[%s1 + $0x1e4] sm:$0xff]
    %v89 = vld [vmem:[%s1 + $0x1ec] sm:$0xff]
    %v90 = vld [vmem:[%s1 + $0x1f4] sm:$0xff]
    %v91 = vld [vmem:[%s1 + $0x1fc] sm:$0xff]
    %v92 = vld [vmem:[%s1 + $0x204] sm:$0xff]
    %v93 = vld [vmem:[%s1 + $0x20c] sm:$0xff]
    %v94 = vld [vmem:[%s1 + $0x214] sm:$0xff]
    %v95 = vld [vmem:[%s1 + $0x21c] sm:$0xff]
    %v96 = vld [vmem:[%s1 + $0x224] sm:$0xff]
    %v97 = vld [vmem:[%s1 + $0x22c] sm:$0xff]
    %v98 = vld [vmem:[%s1 + $0x234] sm:$0xff]
    %v99 = vld [vmem:[%s1 + $0x23c] sm:$0xff]
    %v100 = vld [vmem:[%s1 + $0x244] sm:$0xff]
    %v101 = vld [vmem:[%s1 + $0x24c] sm:$0xff]
    %v102 = vld [vmem:[%s1 + $0x254] sm:$0xff]
    %v103 = vld [vmem:[%s1 + $0x25c] sm:$0xff]
    %v104 = vld [vmem:[%s1 + $0x264] sm:$0xff]
    %v105 = vld [vmem:[%s1 + $0x26c] sm:$0xff]
    %v106 = vld [vmem:[%s1 + $0x274] sm:$0xff]
    %v107 = vld [vmem:[%s1 + $0x27c] sm:$0xff]
    %v108 = vld [vmem:[%s1 + $0x284] sm:$0xff]
    %v109 = vld [vmem:[%s1 + $0x28c] sm:$0xff]
    %v110 = vld [vmem:[%s1 + $0x294] sm:$0xff]
    %v111 = vld [vmem:[%s1 + $0x29c] sm:$0xff]
    %v112 = vld [vmem:[%s1 + $0x2a4] sm:$0xf]
    %v113 = vld [vmem:[%s1 + $0x2a8] sm:$0xff]
    %v114 = vld [vmem:[%s1 + $0x2b0] sm:$0xff]
    %v115 = vld [vmem:[%s1 + $0x2b8] sm:$0xff]
    %v116 = vld [vmem:[%s1 + $0x2c0] sm:$0xff]
    %v117 = vld [vmem:[%s1 + $0x2c8] sm:$0xff]
    %v118 = vld [vmem:[%s1 + $0x2d0] sm:$0xff]
    %v119 = vld [vmem:[%s1 + $0x2d8] sm:$0xff]
    %v120 = vld [vmem:[%s1 + $0x2e0] sm:$0xff]
    %v121 = vld [vmem:[%s1 + $0x2e8] sm:$0xff]
    %v122 = vld [vmem:[%s1 + $0x2f0] sm:$0xff]
    %v123 = vld [vmem:[%s1 + $0x2f8] sm:$0xff]
    %v124 = vld [vmem:[%s1 + $0x300] sm:$0xff]
    %v125 = vld [vmem:[%s1 + $0x308] sm:$0xff]
    %v126 = vld [vmem:[%s1 + $0x310] sm:$0xff]
    %v127 = vld [vmem:[%s1 + $0x318] sm:$0xff]
    %v128 = vld [vmem:[%s1 + $0x320] sm:$0xff]
    %v129 = vld [vmem:[%s1 + $0x328] sm:$0xff]
    %v130 = vld [vmem:[%s1 + $0x330] sm:$0xff]
    %v131 = vld [vmem:[%s1 + $0x338] sm:$0xff]
    %v132 = vld [vmem:[%s1 + $0x340] sm:$0xff]
    %v133 = vld [vmem:[%s1 + $0x348] sm:$0xff]
    %v134 = vld [vmem:[%s1 + $0x350] sm:$0xff]
    %v135 = vld [vmem:[%s1 + $0x358] sm:$0xff]
    %v136 = vld [vmem:[%s1 + $0x360] sm:$0xff]
    %v137 = vld [vmem:[%s1 + $0x368] sm:$0xff]
    %v138 = vld [vmem:[%s1 + $0x370] sm:$0xff]
    %v139 = vld [vmem:[%s1 + $0x378] sm:$0xff]
    %v140 = vld [vmem:[%s1 + $0x380] sm:$0xff]
    %v141 = vld [vmem:[%s1 + $0x388] sm:$0xff]
    %v142 = vld [vmem:[%s1 + $0x390] sm:$0xff]
    %v143 = vld [vmem:[%s1 + $0x398] sm:$0xff]
    %v144 = vld [vmem:[%s1 + $0x3a0] sm:$0xff]
    %v145 = vld [vmem:[%s1 + $0x3a8] sm:$0xff]
    %v146 = vld [vmem:[%s1 + $0x3b0] sm:$0xff]
    %v147 = vld [vmem:[%s1 + $0x3b8] sm:$0xff]
    %v148 = vld [vmem:[%s1 + $0x3c0] sm:$0xff]
    %v149 = vld [vmem:[%s1 + $0x3c8] sm:$0xff]
    %v150 = vld [vmem:[%s1 + $0x3d0] sm:$0xff]
    %v151 = vld [vmem:[%s1 + $0x3d8] sm:$0xff]
    %v152 = vld [vmem:[%s1 + $0x3e0] sm:$0xff]
    %v153 = vld [vmem:[%s1 + $0x3e8] sm:$0xff]
    %v154 = vld [vmem:[%s1 + $0x3f0] sm:$0xff]
    %v155 = vld [vmem:[%s1 + $0x3f8] sm:$0xf]
    %v156 = vld [vmem:[%s1 + $0x3fc] sm:$0x77]
    %v157 = vld [vmem:[%s1 + $0x404] sm:$0x77]
    %v158 = vld [vmem:[%s1 + $0x40c] sm:$0x77]
    %v159 = vld [vmem:[%s1 + $0x414] sm:$0x77]
    %v160 = vld [vmem:[%s1 + $0x41c] sm:$0x77]
    %v161 = vld [vmem:[%s1 + $0x424] sm:$0x77]
    %v162 = vld [vmem:[%s1 + $0x42c] sm:$0x77]
    %v163 = vld [vmem:[%s1 + $0x434] sm:$0x77]
    %v164 = vld [vmem:[%s1 + $0x43c] sm:$0x77]
    %v165 = vld [vmem:[%s1 + $0x444] sm:$0x77]
    %v166 = vld [vmem:[%s1 + $0x44c] sm:$0x77]
    %v167 = vld [vmem:[%s1 + $0x454] sm:$0x77]
    %v168 = vld [vmem:[%s1 + $0x45c] sm:$0x77]
    %v169 = vld [vmem:[%s1 + $0x464] sm:$0x77]
    %v170 = vld [vmem:[%s1 + $0x46c] sm:$0x77]
    %v171 = vld [vmem:[%s1 + $0x474] sm:$0x77]
    %v172 = vld [vmem:[%s1 + $0x47c] sm:$0x77]
    %v173 = vld [vmem:[%s1 + $0x484] sm:$0x77]
    %v174 = vld [vmem:[%s1 + $0x48c] sm:$0x77]
    %v175 = vld [vmem:[%s1 + $0x494] sm:$0x77]
    %v176 = vld [vmem:[%s1 + $0x49c] sm:$0x77]
    %v177 = vld [vmem:[%s1 + $0x4a4] sm:$0x77]
    %v178 = vld [vmem:[%s1 + $0x4ac] sm:$0x77]
    %v179 = vld [vmem:[%s1 + $0x4b4] sm:$0x77]
    %v180 = vld [vmem:[%s1 + $0x4bc] sm:$0x77]
    %v181 = vld [vmem:[%s1 + $0x4c4] sm:$0x77]
    %v182 = vld [vmem:[%s1 + $0x4cc] sm:$0x77]
    %v183 = vld [vmem:[%s1 + $0x4d4] sm:$0x77]
    %v184 = vld [vmem:[%s1 + $0x4dc] sm:$0x77]
    %v185 = vld [vmem:[%s1 + $0x4e4] sm:$0x77]
    %v186 = vld [vmem:[%s1 + $0x4ec] sm:$0x77]
    %v187 = vld [vmem:[%s1 + $0x4f4] sm:$0x77]
    %v188 = vld [vmem:[%s1 + $0x4fc] sm:$0x77]
    %v189 = vld [vmem:[%s1 + $0x504] sm:$0x77]
    %v190 = vld [vmem:[%s1 + $0x50c] sm:$0x77]
    %v191 = vld [vmem:[%s1 + $0x514] sm:$0x77]
    %v192 = vld [vmem:[%s1 + $0x51c] sm:$0x77]
    %v193 = vld [vmem:[%s1 + $0x524] sm:$0x77]
    %v194 = vld [vmem:[%s1 + $0x52c] sm:$0x77]
    %v195 = vld [vmem:[%s1 + $0x534] sm:$0x77]
    %v196 = vld [vmem:[%s1 + $0x53c] sm:$0x77]
    %v197 = vld [vmem:[%s1 + $0x544] sm:$0x77]
    %v198 = vld [vmem:[%s1 + $0x54c] sm:$0x7]
    %v199 = vld [vmem:[%s2] sm:$0x1]
    %v201 = vlaneseq
    %v202 = vshrl.u32 %v201, 7
    %v203 = vsub.s32 0, %v202
    %v204 = vrot.slane %v199, %v203
    %v217 = vcombine.high %v16, %v16
    %v219 = vunpack.c.l.s4 1966171168
    %v220 = vunpack.c.0.s8 %v219
    %v221 = vlaneseq
    %v222 = vshrl.u32 %v221, 7
    %v223 = vsub.s32 %v220, %v222
    %v224 = vrot.slane %v16, %v223
    %v226 = vunpack.c.l.s4 1966171168
    %v227 = vunpack.c.0.s8 %v226
    %v228 = vlaneseq
    %v229 = vshrl.u32 %v228, 7
    %v230 = vsub.s32 %v227, %v229
    %v231 = vrot.slane %v217, %v230
    %v232 = vcombine.high %v224, %v224
    %v233 = vcombine.high %v231, %v231
    %v235 = vunpack.c.l.s4 1966171168
    %v236 = vunpack.c.0.s8 %v235
    %v237 = vlaneseq
    %v238 = vshrl.u32 %v237, 7
    %v239 = vsub.s32 %v236, %v238
    %v240 = vrot.slane %v224, %v239
    %v242 = vunpack.c.l.s4 1966171168
    %v243 = vunpack.c.0.s8 %v242
    %v244 = vlaneseq
    %v245 = vshrl.u32 %v244, 7
    %v246 = vsub.s32 %v243, %v245
    %v247 = vrot.slane %v231, %v246
    %v249 = vunpack.c.l.s4 1966171168
    %v250 = vunpack.c.0.s8 %v249
    %v251 = vlaneseq
    %v252 = vshrl.u32 %v251, 7
    %v253 = vsub.s32 %v250, %v252
    %v254 = vrot.slane %v232, %v253
    %v256 = vunpack.c.l.s4 1966171168
    %v257 = vunpack.c.0.s8 %v256
    %v258 = vlaneseq
    %v259 = vshrl.u32 %v258, 7
    %v260 = vsub.s32 %v257, %v259
    %v261 = vrot.slane %v233, %v260
    %v262 = vcombine.high %v240, %v240
    %v263 = vcombine.high %v247, %v247
    %v264 = vcombine.high %v254, %v254
    %v265 = vcombine.high %v261, %v261
    %v266 = vcombine.high %v17, %v17
    %v268 = vunpack.c.l.s4 1966171168
    %v269 = vunpack.c.0.s8 %v268
    %v270 = vlaneseq
    %v271 = vshrl.u32 %v270, 7
    %v272 = vsub.s32 %v269, %v271
    %v273 = vrot.slane %v17, %v272
    %v275 = vunpack.c.l.s4 1966171168
    %v276 = vunpack.c.0.s8 %v275
    %v277 = vlaneseq
    %v278 = vshrl.u32 %v277, 7
    %v279 = vsub.s32 %v276, %v278
    %v280 = vrot.slane %v266, %v279
    %v281 = vcombine.high %v273, %v273
    %v282 = vcombine.high %v280, %v280
    %v284 = vunpack.c.l.s4 1966171168
    %v285 = vunpack.c.0.s8 %v284
    %v286 = vlaneseq
    %v287 = vshrl.u32 %v286, 7
    %v288 = vsub.s32 %v285, %v287
    %v289 = vrot.slane %v273, %v288
    %v291 = vunpack.c.l.s4 1966171168
    %v292 = vunpack.c.0.s8 %v291
    %v293 = vlaneseq
    %v294 = vshrl.u32 %v293, 7
    %v295 = vsub.s32 %v292, %v294
    %v296 = vrot.slane %v280, %v295
    %v298 = vunpack.c.l.s4 1966171168
    %v299 = vunpack.c.0.s8 %v298
    %v300 = vlaneseq
    %v301 = vshrl.u32 %v300, 7
    %v302 = vsub.s32 %v299, %v301
    %v303 = vrot.slane %v281, %v302
    %v305 = vunpack.c.l.s4 1966171168
    %v306 = vunpack.c.0.s8 %v305
    %v307 = vlaneseq
    %v308 = vshrl.u32 %v307, 7
    %v309 = vsub.s32 %v306, %v308
    %v310 = vrot.slane %v282, %v309
    %v311 = vcombine.high %v289, %v289
    %v312 = vcombine.high %v296, %v296
    %v313 = vcombine.high %v303, %v303
    %v314 = vcombine.high %v310, %v310
    %v315 = vcombine.high %v18, %v18
    %v317 = vunpack.c.l.s4 1966171168
    %v318 = vunpack.c.0.s8 %v317
    %v319 = vlaneseq
    %v320 = vshrl.u32 %v319, 7
    %v321 = vsub.s32 %v318, %v320
    %v322 = vrot.slane %v18, %v321
    %v324 = vunpack.c.l.s4 1966171168
    %v325 = vunpack.c.0.s8 %v324
    %v326 = vlaneseq
    %v327 = vshrl.u32 %v326, 7
    %v328 = vsub.s32 %v325, %v327
    %v329 = vrot.slane %v315, %v328
    %v330 = vcombine.high %v322, %v322
    %v331 = vcombine.high %v329, %v329
    %v333 = vunpack.c.l.s4 1966171168
    %v334 = vunpack.c.0.s8 %v333
    %v335 = vlaneseq
    %v336 = vshrl.u32 %v335, 7
    %v337 = vsub.s32 %v334, %v336
    %v338 = vrot.slane %v322, %v337
    %v340 = vunpack.c.l.s4 1966171168
    %v341 = vunpack.c.0.s8 %v340
    %v342 = vlaneseq
    %v343 = vshrl.u32 %v342, 7
    %v344 = vsub.s32 %v341, %v343
    %v345 = vrot.slane %v329, %v344
    %v347 = vunpack.c.l.s4 1966171168
    %v348 = vunpack.c.0.s8 %v347
    %v349 = vlaneseq
    %v350 = vshrl.u32 %v349, 7
    %v351 = vsub.s32 %v348, %v350
    %v352 = vrot.slane %v330, %v351
    %v354 = vunpack.c.l.s4 1966171168
    %v355 = vunpack.c.0.s8 %v354
    %v356 = vlaneseq
    %v357 = vshrl.u32 %v356, 7
    %v358 = vsub.s32 %v355, %v357
    %v359 = vrot.slane %v331, %v358
    %v360 = vcombine.high %v338, %v338
    %v361 = vcombine.high %v345, %v345
    %v362 = vcombine.high %v352, %v352
    %v363 = vcombine.high %v359, %v359
    %v364 = vcombine.high %v19, %v19
    %v366 = vunpack.c.l.s4 1966171168
    %v367 = vunpack.c.0.s8 %v366
    %v368 = vlaneseq
    %v369 = vshrl.u32 %v368, 7
    %v370 = vsub.s32 %v367, %v369
    %v371 = vrot.slane %v19, %v370
    %v373 = vunpack.c.l.s4 1966171168
    %v374 = vunpack.c.0.s8 %v373
    %v375 = vlaneseq
    %v376 = vshrl.u32 %v375, 7
    %v377 = vsub.s32 %v374, %v376
    %v378 = vrot.slane %v364, %v377
    %v379 = vcombine.high %v371, %v371
    %v380 = vcombine.high %v378, %v378
    %v382 = vunpack.c.l.s4 1966171168
    %v383 = vunpack.c.0.s8 %v382
    %v384 = vlaneseq
    %v385 = vshrl.u32 %v384, 7
    %v386 = vsub.s32 %v383, %v385
    %v387 = vrot.slane %v371, %v386
    %v389 = vunpack.c.l.s4 1966171168
    %v390 = vunpack.c.0.s8 %v389
    %v391 = vlaneseq
    %v392 = vshrl.u32 %v391, 7
    %v393 = vsub.s32 %v390, %v392
    %v394 = vrot.slane %v378, %v393
    %v396 = vunpack.c.l.s4 1966171168
    %v397 = vunpack.c.0.s8 %v396
    %v398 = vlaneseq
    %v399 = vshrl.u32 %v398, 7
    %v400 = vsub.s32 %v397, %v399
    %v401 = vrot.slane %v379, %v400
    %v403 = vunpack.c.l.s4 1966171168
    %v404 = vunpack.c.0.s8 %v403
    %v405 = vlaneseq
    %v406 = vshrl.u32 %v405, 7
    %v407 = vsub.s32 %v404, %v406
    %v408 = vrot.slane %v380, %v407
    %v409 = vcombine.high %v387, %v387
    %v410 = vcombine.high %v394, %v394
    %v411 = vcombine.high %v401, %v401
    %v412 = vcombine.high %v408, %v408
    %v413 = vcombine.high %v20, %v20
    %v415 = vunpack.c.l.s4 1966171168
    %v416 = vunpack.c.0.s8 %v415
    %v417 = vlaneseq
    %v418 = vshrl.u32 %v417, 7
    %v419 = vsub.s32 %v416, %v418
    %v420 = vrot.slane %v20, %v419
    %v422 = vunpack.c.l.s4 1966171168
    %v423 = vunpack.c.0.s8 %v422
    %v424 = vlaneseq
    %v425 = vshrl.u32 %v424, 7
    %v426 = vsub.s32 %v423, %v425
    %v427 = vrot.slane %v413, %v426
    %v428 = vcombine.high %v420, %v420
    %v429 = vcombine.high %v427, %v427
    %v431 = vunpack.c.l.s4 1966171168
    %v432 = vunpack.c.0.s8 %v431
    %v433 = vlaneseq
    %v434 = vshrl.u32 %v433, 7
    %v435 = vsub.s32 %v432, %v434
    %v436 = vrot.slane %v420, %v435
    %v438 = vunpack.c.l.s4 1966171168
    %v439 = vunpack.c.0.s8 %v438
    %v440 = vlaneseq
    %v441 = vshrl.u32 %v440, 7
    %v442 = vsub.s32 %v439, %v441
    %v443 = vrot.slane %v427, %v442
    %v445 = vunpack.c.l.s4 1966171168
    %v446 = vunpack.c.0.s8 %v445
    %v447 = vlaneseq
    %v448 = vshrl.u32 %v447, 7
    %v449 = vsub.s32 %v446, %v448
    %v450 = vrot.slane %v428, %v449
    %v452 = vunpack.c.l.s4 1966171168
    %v453 = vunpack.c.0.s8 %v452
    %v454 = vlaneseq
    %v455 = vshrl.u32 %v454, 7
    %v456 = vsub.s32 %v453, %v455
    %v457 = vrot.slane %v429, %v456
    %v458 = vcombine.high %v436, %v436
    %v459 = vcombine.high %v443, %v443
    %v460 = vcombine.high %v450, %v450
    %v461 = vcombine.high %v457, %v457
    %v462 = vcombine.high %v21, %v21
    %v464 = vunpack.c.l.s4 1966171168
    %v465 = vunpack.c.0.s8 %v464
    %v466 = vlaneseq
    %v467 = vshrl.u32 %v466, 7
    %v468 = vsub.s32 %v465, %v467
    %v469 = vrot.slane %v21, %v468
    %v471 = vunpack.c.l.s4 1966171168
    %v472 = vunpack.c.0.s8 %v471
    %v473 = vlaneseq
    %v474 = vshrl.u32 %v473, 7
    %v475 = vsub.s32 %v472, %v474
    %v476 = vrot.slane %v462, %v475
    %v477 = vcombine.high %v469, %v469
    %v478 = vcombine.high %v476, %v476
    %v480 = vunpack.c.l.s4 1966171168
    %v481 = vunpack.c.0.s8 %v480
    %v482 = vlaneseq
    %v483 = vshrl.u32 %v482, 7
    %v484 = vsub.s32 %v481, %v483
    %v485 = vrot.slane %v469, %v484
    %v487 = vunpack.c.l.s4 1966171168
    %v488 = vunpack.c.0.s8 %v487
    %v489 = vlaneseq
    %v490 = vshrl.u32 %v489, 7
    %v491 = vsub.s32 %v488, %v490
    %v492 = vrot.slane %v476, %v491
    %v494 = vunpack.c.l.s4 1966171168
    %v495 = vunpack.c.0.s8 %v494
    %v496 = vlaneseq
    %v497 = vshrl.u32 %v496, 7
    %v498 = vsub.s32 %v495, %v497
    %v499 = vrot.slane %v477, %v498
    %v501 = vunpack.c.l.s4 1966171168
    %v502 = vunpack.c.0.s8 %v501
    %v503 = vlaneseq
    %v504 = vshrl.u32 %v503, 7
    %v505 = vsub.s32 %v502, %v504
    %v506 = vrot.slane %v478, %v505
    %v507 = vcombine.high %v485, %v485
    %v508 = vcombine.high %v492, %v492
    %v509 = vcombine.high %v499, %v499
    %v510 = vcombine.high %v506, %v506
    %v511 = vcombine.high %v22, %v22
    %v513 = vunpack.c.l.s4 1966171168
    %v514 = vunpack.c.0.s8 %v513
    %v515 = vlaneseq
    %v516 = vshrl.u32 %v515, 7
    %v517 = vsub.s32 %v514, %v516
    %v518 = vrot.slane %v22, %v517
    %v520 = vunpack.c.l.s4 1966171168
    %v521 = vunpack.c.0.s8 %v520
    %v522 = vlaneseq
    %v523 = vshrl.u32 %v522, 7
    %v524 = vsub.s32 %v521, %v523
    %v525 = vrot.slane %v511, %v524
    %v526 = vcombine.high %v518, %v518
    %v527 = vcombine.high %v525, %v525
    %v529 = vunpack.c.l.s4 1966171168
    %v530 = vunpack.c.0.s8 %v529
    %v531 = vlaneseq
    %v532 = vshrl.u32 %v531, 7
    %v533 = vsub.s32 %v530, %v532
    %v534 = vrot.slane %v518, %v533
    %v536 = vunpack.c.l.s4 1966171168
    %v537 = vunpack.c.0.s8 %v536
    %v538 = vlaneseq
    %v539 = vshrl.u32 %v538, 7
    %v540 = vsub.s32 %v537, %v539
    %v541 = vrot.slane %v525, %v540
    %v543 = vunpack.c.l.s4 1966171168
    %v544 = vunpack.c.0.s8 %v543
    %v545 = vlaneseq
    %v546 = vshrl.u32 %v545, 7
    %v547 = vsub.s32 %v544, %v546
    %v548 = vrot.slane %v526, %v547
    %v550 = vunpack.c.l.s4 1966171168
    %v551 = vunpack.c.0.s8 %v550
    %v552 = vlaneseq
    %v553 = vshrl.u32 %v552, 7
    %v554 = vsub.s32 %v551, %v553
    %v555 = vrot.slane %v527, %v554
    %v556 = vcombine.high %v534, %v534
    %v557 = vcombine.high %v541, %v541
    %v558 = vcombine.high %v548, %v548
    %v559 = vcombine.high %v555, %v555
    %v560 = vcombine.high %v23, %v23
    %v562 = vunpack.c.l.s4 1966171168
    %v563 = vunpack.c.0.s8 %v562
    %v564 = vlaneseq
    %v565 = vshrl.u32 %v564, 7
    %v566 = vsub.s32 %v563, %v565
    %v567 = vrot.slane %v23, %v566
    %v569 = vunpack.c.l.s4 1966171168
    %v570 = vunpack.c.0.s8 %v569
    %v571 = vlaneseq
    %v572 = vshrl.u32 %v571, 7
    %v573 = vsub.s32 %v570, %v572
    %v574 = vrot.slane %v560, %v573
    %v575 = vcombine.high %v567, %v567
    %v576 = vcombine.high %v574, %v574
    %v578 = vunpack.c.l.s4 1966171168
    %v579 = vunpack.c.0.s8 %v578
    %v580 = vlaneseq
    %v581 = vshrl.u32 %v580, 7
    %v582 = vsub.s32 %v579, %v581
    %v583 = vrot.slane %v567, %v582
    %v585 = vunpack.c.l.s4 1966171168
    %v586 = vunpack.c.0.s8 %v585
    %v587 = vlaneseq
    %v588 = vshrl.u32 %v587, 7
    %v589 = vsub.s32 %v586, %v588
    %v590 = vrot.slane %v574, %v589
    %v592 = vunpack.c.l.s4 1966171168
    %v593 = vunpack.c.0.s8 %v592
    %v594 = vlaneseq
    %v595 = vshrl.u32 %v594, 7
    %v596 = vsub.s32 %v593, %v595
    %v597 = vrot.slane %v575, %v596
    %v599 = vunpack.c.l.s4 1966171168
    %v600 = vunpack.c.0.s8 %v599
    %v601 = vlaneseq
    %v602 = vshrl.u32 %v601, 7
    %v603 = vsub.s32 %v600, %v602
    %v604 = vrot.slane %v576, %v603
    %v605 = vcombine.high %v583, %v583
    %v606 = vcombine.high %v590, %v590
    %v607 = vcombine.high %v597, %v597
    %v608 = vcombine.high %v604, %v604
    %v609 = vcombine.high %v24, %v24
    %v611 = vunpack.c.l.s4 1966171168
    %v612 = vunpack.c.0.s8 %v611
    %v613 = vlaneseq
    %v614 = vshrl.u32 %v613, 7
    %v615 = vsub.s32 %v612, %v614
    %v616 = vrot.slane %v24, %v615
    %v618 = vunpack.c.l.s4 1966171168
    %v619 = vunpack.c.0.s8 %v618
    %v620 = vlaneseq
    %v621 = vshrl.u32 %v620, 7
    %v622 = vsub.s32 %v619, %v621
    %v623 = vrot.slane %v609, %v622
    %v624 = vcombine.high %v616, %v616
    %v625 = vcombine.high %v623, %v623
    %v627 = vunpack.c.l.s4 1966171168
    %v628 = vunpack.c.0.s8 %v627
    %v629 = vlaneseq
    %v630 = vshrl.u32 %v629, 7
    %v631 = vsub.s32 %v628, %v630
    %v632 = vrot.slane %v616, %v631
    %v634 = vunpack.c.l.s4 1966171168
    %v635 = vunpack.c.0.s8 %v634
    %v636 = vlaneseq
    %v637 = vshrl.u32 %v636, 7
    %v638 = vsub.s32 %v635, %v637
    %v639 = vrot.slane %v623, %v638
    %v641 = vunpack.c.l.s4 1966171168
    %v642 = vunpack.c.0.s8 %v641
    %v643 = vlaneseq
    %v644 = vshrl.u32 %v643, 7
    %v645 = vsub.s32 %v642, %v644
    %v646 = vrot.slane %v624, %v645
    %v648 = vunpack.c.l.s4 1966171168
    %v649 = vunpack.c.0.s8 %v648
    %v650 = vlaneseq
    %v651 = vshrl.u32 %v650, 7
    %v652 = vsub.s32 %v649, %v651
    %v653 = vrot.slane %v625, %v652
    %v654 = vcombine.high %v632, %v632
    %v655 = vcombine.high %v639, %v639
    %v656 = vcombine.high %v646, %v646
    %v657 = vcombine.high %v653, %v653
    %v658 = vcombine.high %v25, %v25
    %v660 = vunpack.c.l.s4 1966171168
    %v661 = vunpack.c.0.s8 %v660
    %v662 = vlaneseq
    %v663 = vshrl.u32 %v662, 7
    %v664 = vsub.s32 %v661, %v663
    %v665 = vrot.slane %v25, %v664
    %v667 = vunpack.c.l.s4 1966171168
    %v668 = vunpack.c.0.s8 %v667
    %v669 = vlaneseq
    %v670 = vshrl.u32 %v669, 7
    %v671 = vsub.s32 %v668, %v670
    %v672 = vrot.slane %v658, %v671
    %v673 = vcombine.high %v665, %v665
    %v674 = vcombine.high %v672, %v672
    %v676 = vunpack.c.l.s4 1966171168
    %v677 = vunpack.c.0.s8 %v676
    %v678 = vlaneseq
    %v679 = vshrl.u32 %v678, 7
    %v680 = vsub.s32 %v677, %v679
    %v681 = vrot.slane %v665, %v680
    %v683 = vunpack.c.l.s4 1966171168
    %v684 = vunpack.c.0.s8 %v683
    %v685 = vlaneseq
    %v686 = vshrl.u32 %v685, 7
    %v687 = vsub.s32 %v684, %v686
    %v688 = vrot.slane %v672, %v687
    %v690 = vunpack.c.l.s4 1966171168
    %v691 = vunpack.c.0.s8 %v690
    %v692 = vlaneseq
    %v693 = vshrl.u32 %v692, 7
    %v694 = vsub.s32 %v691, %v693
    %v695 = vrot.slane %v673, %v694
    %v697 = vunpack.c.l.s4 1966171168
    %v698 = vunpack.c.0.s8 %v697
    %v699 = vlaneseq
    %v700 = vshrl.u32 %v699, 7
    %v701 = vsub.s32 %v698, %v700
    %v702 = vrot.slane %v674, %v701
    %v703 = vcombine.high %v681, %v681
    %v704 = vcombine.high %v688, %v688
    %v705 = vcombine.high %v695, %v695
    %v706 = vcombine.high %v702, %v702
    %v707 = vcombine.high %v26, %v26
    %v709 = vunpack.c.l.s4 1966171168
    %v710 = vunpack.c.0.s8 %v709
    %v711 = vlaneseq
    %v712 = vshrl.u32 %v711, 7
    %v713 = vsub.s32 %v710, %v712
    %v714 = vrot.slane %v26, %v713
    %v716 = vunpack.c.l.s4 1966171168
    %v717 = vunpack.c.0.s8 %v716
    %v718 = vlaneseq
    %v719 = vshrl.u32 %v718, 7
    %v720 = vsub.s32 %v717, %v719
    %v721 = vrot.slane %v707, %v720
    %v722 = vcombine.high %v714, %v714
    %v724 = vunpack.c.l.s4 1966171168
    %v725 = vunpack.c.0.s8 %v724
    %v726 = vlaneseq
    %v727 = vshrl.u32 %v726, 7
    %v728 = vsub.s32 %v725, %v727
    %v729 = vrot.slane %v714, %v728
    %v731 = vunpack.c.l.s4 1966171168
    %v732 = vunpack.c.0.s8 %v731
    %v733 = vlaneseq
    %v734 = vshrl.u32 %v733, 7
    %v735 = vsub.s32 %v732, %v734
    %v736 = vrot.slane %v721, %v735
    %v738 = vunpack.c.l.s4 1966171168
    %v739 = vunpack.c.0.s8 %v738
    %v740 = vlaneseq
    %v741 = vshrl.u32 %v740, 7
    %v742 = vsub.s32 %v739, %v741
    %v743 = vrot.slane %v722, %v742
    %v744 = vcombine.high %v729, %v729
    %v745 = vcombine.high %v743, %v743
    %v1002 = vunpack.c.l.b16 %v27
    %v1003 = vunpack.c.h.b16 %v27
    %v1004 = vunpack.c.l.b16 %v28
    %v1005 = vunpack.c.h.b16 %v28
    %v1006 = vunpack.c.l.b16 %v29
    %v1007 = vunpack.c.h.b16 %v29
    %v1008 = vunpack.c.l.b16 %v30
    %v1009 = vunpack.c.h.b16 %v30
    %v1010 = vunpack.c.l.b16 %v31
    %v1011 = vunpack.c.h.b16 %v31
    %v1012 = vunpack.c.l.b16 %v32
    %v1013 = vunpack.c.h.b16 %v32
    %v1014 = vunpack.c.l.b16 %v33
    %v1015 = vunpack.c.h.b16 %v33
    %v1016 = vunpack.c.l.b16 %v34
    %v1017 = vunpack.c.h.b16 %v34
    %v1018 = vunpack.c.l.b16 %v35
    %v1019 = vunpack.c.h.b16 %v35
    %v1020 = vunpack.c.l.b16 %v36
    %v1021 = vunpack.c.h.b16 %v36
    %v1022 = vunpack.c.l.b16 %v37
    %v1023 = vunpack.c.h.b16 %v37
    %v1024 = vunpack.c.l.b16 %v38
    %v1025 = vunpack.c.h.b16 %v38
    %v1026 = vunpack.c.l.b16 %v39
    %v1027 = vunpack.c.h.b16 %v39
    %v1028 = vunpack.c.l.b16 %v40
    %v1029 = vunpack.c.h.b16 %v40
    %v1030 = vunpack.c.l.b16 %v41
    %v1031 = vunpack.c.h.b16 %v41
    %v1032 = vunpack.c.l.b16 %v42
    %v1033 = vunpack.c.h.b16 %v42
    %v1034 = vunpack.c.l.b16 %v43
    %v1035 = vunpack.c.h.b16 %v43
    %v1036 = vunpack.c.l.b16 %v44
    %v1037 = vunpack.c.h.b16 %v44
    %v1038 = vunpack.c.l.b16 %v45
    %v1039 = vunpack.c.h.b16 %v45
    %v1040 = vunpack.c.l.b16 %v46
    %v1041 = vunpack.c.h.b16 %v46
    %v1042 = vunpack.c.l.b16 %v47
    %v1043 = vunpack.c.h.b16 %v47
    %v1044 = vunpack.c.l.b16 %v48
    %v1045 = vunpack.c.h.b16 %v48
    %v1046 = vunpack.c.l.b16 %v49
    %v1047 = vunpack.c.h.b16 %v49
    %v1048 = vunpack.c.l.b16 %v50
    %v1049 = vunpack.c.h.b16 %v50
    %v1050 = vunpack.c.l.b16 %v51
    %v1051 = vunpack.c.h.b16 %v51
    %v1052 = vunpack.c.l.b16 %v52
    %v1053 = vunpack.c.h.b16 %v52
    %v1054 = vunpack.c.l.b16 %v53
    %v1055 = vunpack.c.h.b16 %v53
    %v1056 = vunpack.c.l.b16 %v54
    %v1057 = vunpack.c.h.b16 %v54
    %v1058 = vunpack.c.l.b16 %v55
    %v1059 = vunpack.c.h.b16 %v55
    %v1060 = vunpack.c.l.b16 %v56
    %v1061 = vunpack.c.h.b16 %v56
    %v1062 = vunpack.c.l.b16 %v57
    %v1063 = vunpack.c.h.b16 %v57
    %v1064 = vunpack.c.l.b16 %v58
    %v1065 = vunpack.c.h.b16 %v58
    %v1066 = vunpack.c.l.b16 %v59
    %v1067 = vunpack.c.h.b16 %v59
    %v1068 = vunpack.c.l.b16 %v60
    %v1069 = vunpack.c.h.b16 %v60
    %v1070 = vunpack.c.l.b16 %v61
    %v1071 = vunpack.c.h.b16 %v61
    %v1072 = vunpack.c.l.b16 %v62
    %v1073 = vunpack.c.h.b16 %v62
    %v1074 = vunpack.c.l.b16 %v63
    %v1075 = vunpack.c.h.b16 %v63
    %v1076 = vunpack.c.l.b16 %v64
    %v1077 = vunpack.c.h.b16 %v64
    %v1078 = vunpack.c.l.b16 %v65
    %v1079 = vunpack.c.h.b16 %v65
    %v1080 = vunpack.c.l.b16 %v66
    %v1081 = vunpack.c.h.b16 %v66
    %v1082 = vunpack.c.l.b16 %v67
    %v1083 = vunpack.c.h.b16 %v67
    %v1084 = vunpack.c.l.b16 %v68
    %v1085 = vunpack.c.h.b16 %v68
    %v1086 = vunpack.c.l.b16 %v69
    %v1087 = vunpack.c.l.b16 %v70
    %v1088 = vunpack.c.h.b16 %v70
    %v1089 = vunpack.c.l.b16 %v71
    %v1090 = vunpack.c.h.b16 %v71
    %v1091 = vunpack.c.l.b16 %v72
    %v1092 = vunpack.c.h.b16 %v72
    %v1093 = vunpack.c.l.b16 %v73
    %v1094 = vunpack.c.h.b16 %v73
    %v1095 = vunpack.c.l.b16 %v74
    %v1096 = vunpack.c.h.b16 %v74
    %v1097 = vunpack.c.l.b16 %v75
    %v1098 = vunpack.c.h.b16 %v75
    %v1099 = vunpack.c.l.b16 %v76
    %v1100 = vunpack.c.h.b16 %v76
    %v1101 = vunpack.c.l.b16 %v77
    %v1102 = vunpack.c.h.b16 %v77
    %v1103 = vunpack.c.l.b16 %v78
    %v1104 = vunpack.c.h.b16 %v78
    %v1105 = vunpack.c.l.b16 %v79
    %v1106 = vunpack.c.h.b16 %v79
    %v1107 = vunpack.c.l.b16 %v80
    %v1108 = vunpack.c.h.b16 %v80
    %v1109 = vunpack.c.l.b16 %v81
    %v1110 = vunpack.c.h.b16 %v81
    %v1111 = vunpack.c.l.b16 %v82
    %v1112 = vunpack.c.h.b16 %v82
    %v1113 = vunpack.c.l.b16 %v83
    %v1114 = vunpack.c.h.b16 %v83
    %v1115 = vunpack.c.l.b16 %v84
    %v1116 = vunpack.c.h.b16 %v84
    %v1117 = vunpack.c.l.b16 %v85
    %v1118 = vunpack.c.h.b16 %v85
    %v1119 = vunpack.c.l.b16 %v86
    %v1120 = vunpack.c.h.b16 %v86
    %v1121 = vunpack.c.l.b16 %v87
    %v1122 = vunpack.c.h.b16 %v87
    %v1123 = vunpack.c.l.b16 %v88
    %v1124 = vunpack.c.h.b16 %v88
    %v1125 = vunpack.c.l.b16 %v89
    %v1126 = vunpack.c.h.b16 %v89
    %v1127 = vunpack.c.l.b16 %v90
    %v1128 = vunpack.c.h.b16 %v90
    %v1129 = vunpack.c.l.b16 %v91
    %v1130 = vunpack.c.h.b16 %v91
    %v1131 = vunpack.c.l.b16 %v92
    %v1132 = vunpack.c.h.b16 %v92
    %v1133 = vunpack.c.l.b16 %v93
    %v1134 = vunpack.c.h.b16 %v93
    %v1135 = vunpack.c.l.b16 %v94
    %v1136 = vunpack.c.h.b16 %v94
    %v1137 = vunpack.c.l.b16 %v95
    %v1138 = vunpack.c.h.b16 %v95
    %v1139 = vunpack.c.l.b16 %v96
    %v1140 = vunpack.c.h.b16 %v96
    %v1141 = vunpack.c.l.b16 %v97
    %v1142 = vunpack.c.h.b16 %v97
    %v1143 = vunpack.c.l.b16 %v98
    %v1144 = vunpack.c.h.b16 %v98
    %v1145 = vunpack.c.l.b16 %v99
    %v1146 = vunpack.c.h.b16 %v99
    %v1147 = vunpack.c.l.b16 %v100
    %v1148 = vunpack.c.h.b16 %v100
    %v1149 = vunpack.c.l.b16 %v101
    %v1150 = vunpack.c.h.b16 %v101
    %v1151 = vunpack.c.l.b16 %v102
    %v1152 = vunpack.c.h.b16 %v102
    %v1153 = vunpack.c.l.b16 %v103
    %v1154 = vunpack.c.h.b16 %v103
    %v1155 = vunpack.c.l.b16 %v104
    %v1156 = vunpack.c.h.b16 %v104
    %v1157 = vunpack.c.l.b16 %v105
    %v1158 = vunpack.c.h.b16 %v105
    %v1159 = vunpack.c.l.b16 %v106
    %v1160 = vunpack.c.h.b16 %v106
    %v1161 = vunpack.c.l.b16 %v107
    %v1162 = vunpack.c.h.b16 %v107
    %v1163 = vunpack.c.l.b16 %v108
    %v1164 = vunpack.c.h.b16 %v108
    %v1165 = vunpack.c.l.b16 %v109
    %v1166 = vunpack.c.h.b16 %v109
    %v1167 = vunpack.c.l.b16 %v110
    %v1168 = vunpack.c.h.b16 %v110
    %v1169 = vunpack.c.l.b16 %v111
    %v1170 = vunpack.c.h.b16 %v111
    %v1171 = vunpack.c.l.b16 %v112
    %v1172 = vunpack.c.l.b16 %v113
    %v1173 = vunpack.c.h.b16 %v113
    %v1174 = vunpack.c.l.b16 %v114
    %v1175 = vunpack.c.h.b16 %v114
    %v1176 = vunpack.c.l.b16 %v115
    %v1177 = vunpack.c.h.b16 %v115
    %v1178 = vunpack.c.l.b16 %v116
    %v1179 = vunpack.c.h.b16 %v116
    %v1180 = vunpack.c.l.b16 %v117
    %v1181 = vunpack.c.h.b16 %v117
    %v1182 = vunpack.c.l.b16 %v118
    %v1183 = vunpack.c.h.b16 %v118
    %v1184 = vunpack.c.l.b16 %v119
    %v1185 = vunpack.c.h.b16 %v119
    %v1186 = vunpack.c.l.b16 %v120
    %v1187 = vunpack.c.h.b16 %v120
    %v1188 = vunpack.c.l.b16 %v121
    %v1189 = vunpack.c.h.b16 %v121
    %v1190 = vunpack.c.l.b16 %v122
    %v1191 = vunpack.c.h.b16 %v122
    %v1192 = vunpack.c.l.b16 %v123
    %v1193 = vunpack.c.h.b16 %v123
    %v1194 = vunpack.c.l.b16 %v124
    %v1195 = vunpack.c.h.b16 %v124
    %v1196 = vunpack.c.l.b16 %v125
    %v1197 = vunpack.c.h.b16 %v125
    %v1198 = vunpack.c.l.b16 %v126
    %v1199 = vunpack.c.h.b16 %v126
    %v1200 = vunpack.c.l.b16 %v127
    %v1201 = vunpack.c.h.b16 %v127
    %v1202 = vunpack.c.l.b16 %v128
    %v1203 = vunpack.c.h.b16 %v128
    %v1204 = vunpack.c.l.b16 %v129
    %v1205 = vunpack.c.h.b16 %v129
    %v1206 = vunpack.c.l.b16 %v130
    %v1207 = vunpack.c.h.b16 %v130
    %v1208 = vunpack.c.l.b16 %v131
    %v1209 = vunpack.c.h.b16 %v131
    %v1210 = vunpack.c.l.b16 %v132
    %v1211 = vunpack.c.h.b16 %v132
    %v1212 = vunpack.c.l.b16 %v133
    %v1213 = vunpack.c.h.b16 %v133
    %v1214 = vunpack.c.l.b16 %v134
    %v1215 = vunpack.c.h.b16 %v134
    %v1216 = vunpack.c.l.b16 %v135
    %v1217 = vunpack.c.h.b16 %v135
    %v1218 = vunpack.c.l.b16 %v136
    %v1219 = vunpack.c.h.b16 %v136
    %v1220 = vunpack.c.l.b16 %v137
    %v1221 = vunpack.c.h.b16 %v137
    %v1222 = vunpack.c.l.b16 %v138
    %v1223 = vunpack.c.h.b16 %v138
    %v1224 = vunpack.c.l.b16 %v139
    %v1225 = vunpack.c.h.b16 %v139
    %v1226 = vunpack.c.l.b16 %v140
    %v1227 = vunpack.c.h.b16 %v140
    %v1228 = vunpack.c.l.b16 %v141
    %v1229 = vunpack.c.h.b16 %v141
    %v1230 = vunpack.c.l.b16 %v142
    %v1231 = vunpack.c.h.b16 %v142
    %v1232 = vunpack.c.l.b16 %v143
    %v1233 = vunpack.c.h.b16 %v143
    %v1234 = vunpack.c.l.b16 %v144
    %v1235 = vunpack.c.h.b16 %v144
    %v1236 = vunpack.c.l.b16 %v145
    %v1237 = vunpack.c.h.b16 %v145
    %v1238 = vunpack.c.l.b16 %v146
    %v1239 = vunpack.c.h.b16 %v146
    %v1240 = vunpack.c.l.b16 %v147
    %v1241 = vunpack.c.h.b16 %v147
    %v1242 = vunpack.c.l.b16 %v148
    %v1243 = vunpack.c.h.b16 %v148
    %v1244 = vunpack.c.l.b16 %v149
    %v1245 = vunpack.c.h.b16 %v149
    %v1246 = vunpack.c.l.b16 %v150
    %v1247 = vunpack.c.h.b16 %v150
    %v1248 = vunpack.c.l.b16 %v151
    %v1249 = vunpack.c.h.b16 %v151
    %v1250 = vunpack.c.l.b16 %v152
    %v1251 = vunpack.c.h.b16 %v152
    %v1252 = vunpack.c.l.b16 %v153
    %v1253 = vunpack.c.h.b16 %v153
    %v1254 = vunpack.c.l.b16 %v154
    %v1255 = vunpack.c.h.b16 %v154
    %v1256 = vunpack.c.l.b16 %v155
    %v1257 = vunpack.c.l.b16 %v156
    %v1258 = vunpack.c.h.b16 %v156
    %v1259 = vunpack.c.l.b16 %v157
    %v1260 = vunpack.c.h.b16 %v157
    %v1261 = vunpack.c.l.b16 %v158
    %v1262 = vunpack.c.h.b16 %v158
    %v1263 = vunpack.c.l.b16 %v159
    %v1264 = vunpack.c.h.b16 %v159
    %v1265 = vunpack.c.l.b16 %v160
    %v1266 = vunpack.c.h.b16 %v160
    %v1267 = vunpack.c.l.b16 %v161
    %v1268 = vunpack.c.h.b16 %v161
    %v1269 = vunpack.c.l.b16 %v162
    %v1270 = vunpack.c.h.b16 %v162
    %v1271 = vunpack.c.l.b16 %v163
    %v1272 = vunpack.c.h.b16 %v163
    %v1273 = vunpack.c.l.b16 %v164
    %v1274 = vunpack.c.h.b16 %v164
    %v1275 = vunpack.c.l.b16 %v165
    %v1276 = vunpack.c.h.b16 %v165
    %v1277 = vunpack.c.l.b16 %v166
    %v1278 = vunpack.c.h.b16 %v166
    %v1279 = vunpack.c.l.b16 %v167
    %v1280 = vunpack.c.h.b16 %v167
    %v1281 = vunpack.c.l.b16 %v168
    %v1282 = vunpack.c.h.b16 %v168
    %v1283 = vunpack.c.l.b16 %v169
    %v1284 = vunpack.c.h.b16 %v169
    %v1285 = vunpack.c.l.b16 %v170
    %v1286 = vunpack.c.h.b16 %v170
    %v1287 = vunpack.c.l.b16 %v171
    %v1288 = vunpack.c.h.b16 %v171
    %v1289 = vunpack.c.l.b16 %v172
    %v1290 = vunpack.c.h.b16 %v172
    %v1291 = vunpack.c.l.b16 %v173
    %v1292 = vunpack.c.h.b16 %v173
    %v1293 = vunpack.c.l.b16 %v174
    %v1294 = vunpack.c.h.b16 %v174
    %v1295 = vunpack.c.l.b16 %v175
    %v1296 = vunpack.c.h.b16 %v175
    %v1297 = vunpack.c.l.b16 %v176
    %v1298 = vunpack.c.h.b16 %v176
    %v1299 = vunpack.c.l.b16 %v177
    %v1300 = vunpack.c.h.b16 %v177
    %v1301 = vunpack.c.l.b16 %v178
    %v1302 = vunpack.c.h.b16 %v178
    %v1303 = vunpack.c.l.b16 %v179
    %v1304 = vunpack.c.h.b16 %v179
    %v1305 = vunpack.c.l.b16 %v180
    %v1306 = vunpack.c.h.b16 %v180
    %v1307 = vunpack.c.l.b16 %v181
    %v1308 = vunpack.c.h.b16 %v181
    %v1309 = vunpack.c.l.b16 %v182
    %v1310 = vunpack.c.h.b16 %v182
    %v1311 = vunpack.c.l.b16 %v183
    %v1312 = vunpack.c.h.b16 %v183
    %v1313 = vunpack.c.l.b16 %v184
    %v1314 = vunpack.c.h.b16 %v184
    %v1315 = vunpack.c.l.b16 %v185
    %v1316 = vunpack.c.h.b16 %v185
    %v1317 = vunpack.c.l.b16 %v186
    %v1318 = vunpack.c.h.b16 %v186
    %v1319 = vunpack.c.l.b16 %v187
    %v1320 = vunpack.c.h.b16 %v187
    %v1321 = vunpack.c.l.b16 %v188
    %v1322 = vunpack.c.h.b16 %v188
    %v1323 = vunpack.c.l.b16 %v189
    %v1324 = vunpack.c.h.b16 %v189
    %v1325 = vunpack.c.l.b16 %v190
    %v1326 = vunpack.c.h.b16 %v190
    %v1327 = vunpack.c.l.b16 %v191
    %v1328 = vunpack.c.h.b16 %v191
    %v1329 = vunpack.c.l.b16 %v192
    %v1330 = vunpack.c.h.b16 %v192
    %v1331 = vunpack.c.l.b16 %v193
    %v1332 = vunpack.c.h.b16 %v193
    %v1333 = vunpack.c.l.b16 %v194
    %v1334 = vunpack.c.h.b16 %v194
    %v1335 = vunpack.c.l.b16 %v195
    %v1336 = vunpack.c.h.b16 %v195
    %v1337 = vunpack.c.l.b16 %v196
    %v1338 = vunpack.c.h.b16 %v196
    %v1339 = vunpack.c.l.b16 %v197
    %v1340 = vunpack.c.h.b16 %v197
    %v1341 = vunpack.c.l.b16 %v198
    %v1342 = vpack.c.b16 %v1087, %v1002
    %v1343 = vpack.c.b16 %v1088, %v1003
    %v1344 = vpack.c.b16 %v1089, %v1004
    %v1345 = vpack.c.b16 %v1090, %v1005
    %v1346 = vpack.c.b16 %v1091, %v1006
    %v1347 = vpack.c.b16 %v1092, %v1007
    %v1348 = vpack.c.b16 %v1093, %v1008
    %v1349 = vpack.c.b16 %v1094, %v1009
    %v1350 = vpack.c.b16 %v1095, %v1010
    %v1351 = vpack.c.b16 %v1096, %v1011
    %v1352 = vpack.c.b16 %v1097, %v1012
    %v1353 = vpack.c.b16 %v1098, %v1013
    %v1354 = vpack.c.b16 %v1099, %v1014
    %v1355 = vpack.c.b16 %v1100, %v1015
    %v1356 = vpack.c.b16 %v1101, %v1016
    %v1357 = vpack.c.b16 %v1102, %v1017
    %v1358 = vpack.c.b16 %v1103, %v1018
    %v1359 = vpack.c.b16 %v1104, %v1019
    %v1360 = vpack.c.b16 %v1105, %v1020
    %v1361 = vpack.c.b16 %v1106, %v1021
    %v1362 = vpack.c.b16 %v1107, %v1022
    %v1363 = vpack.c.b16 %v1108, %v1023
    %v1364 = vpack.c.b16 %v1109, %v1024
    %v1365 = vpack.c.b16 %v1110, %v1025
    %v1366 = vpack.c.b16 %v1111, %v1026
    %v1367 = vpack.c.b16 %v1112, %v1027
    %v1368 = vpack.c.b16 %v1113, %v1028
    %v1369 = vpack.c.b16 %v1114, %v1029
    %v1370 = vpack.c.b16 %v1115, %v1030
    %v1371 = vpack.c.b16 %v1116, %v1031
    %v1372 = vpack.c.b16 %v1117, %v1032
    %v1373 = vpack.c.b16 %v1118, %v1033
    %v1374 = vpack.c.b16 %v1119, %v1034
    %v1375 = vpack.c.b16 %v1120, %v1035
    %v1376 = vpack.c.b16 %v1121, %v1036
    %v1377 = vpack.c.b16 %v1122, %v1037
    %v1378 = vpack.c.b16 %v1123, %v1038
    %v1379 = vpack.c.b16 %v1124, %v1039
    %v1380 = vpack.c.b16 %v1125, %v1040
    %v1381 = vpack.c.b16 %v1126, %v1041
    %v1382 = vpack.c.b16 %v1127, %v1042
    %v1383 = vpack.c.b16 %v1128, %v1043
    %v1384 = vpack.c.b16 %v1129, %v1044
    %v1385 = vpack.c.b16 %v1130, %v1045
    %v1386 = vpack.c.b16 %v1131, %v1046
    %v1387 = vpack.c.b16 %v1132, %v1047
    %v1388 = vpack.c.b16 %v1133, %v1048
    %v1389 = vpack.c.b16 %v1134, %v1049
    %v1390 = vpack.c.b16 %v1135, %v1050
    %v1391 = vpack.c.b16 %v1136, %v1051
    %v1392 = vpack.c.b16 %v1137, %v1052
    %v1393 = vpack.c.b16 %v1138, %v1053
    %v1394 = vpack.c.b16 %v1139, %v1054
    %v1395 = vpack.c.b16 %v1140, %v1055
    %v1396 = vpack.c.b16 %v1141, %v1056
    %v1397 = vpack.c.b16 %v1142, %v1057
    %v1398 = vpack.c.b16 %v1143, %v1058
    %v1399 = vpack.c.b16 %v1144, %v1059
    %v1400 = vpack.c.b16 %v1145, %v1060
    %v1401 = vpack.c.b16 %v1146, %v1061
    %v1402 = vpack.c.b16 %v1147, %v1062
    %v1403 = vpack.c.b16 %v1148, %v1063
    %v1404 = vpack.c.b16 %v1149, %v1064
    %v1405 = vpack.c.b16 %v1150, %v1065
    %v1406 = vpack.c.b16 %v1151, %v1066
    %v1407 = vpack.c.b16 %v1152, %v1067
    %v1408 = vpack.c.b16 %v1153, %v1068
    %v1409 = vpack.c.b16 %v1154, %v1069
    %v1410 = vpack.c.b16 %v1155, %v1070
    %v1411 = vpack.c.b16 %v1156, %v1071
    %v1412 = vpack.c.b16 %v1157, %v1072
    %v1413 = vpack.c.b16 %v1158, %v1073
    %v1414 = vpack.c.b16 %v1159, %v1074
    %v1415 = vpack.c.b16 %v1160, %v1075
    %v1416 = vpack.c.b16 %v1161, %v1076
    %v1417 = vpack.c.b16 %v1162, %v1077
    %v1418 = vpack.c.b16 %v1163, %v1078
    %v1419 = vpack.c.b16 %v1164, %v1079
    %v1420 = vpack.c.b16 %v1165, %v1080
    %v1421 = vpack.c.b16 %v1166, %v1081
    %v1422 = vpack.c.b16 %v1167, %v1082
    %v1423 = vpack.c.b16 %v1168, %v1083
    %v1424 = vpack.c.b16 %v1169, %v1084
    %v1425 = vpack.c.b16 %v1170, %v1085
    %v1426 = vpack.c.b16 %v1171, %v1086
    %v1427 = vpack.c.b16 %v1257, %v1172
    %v1428 = vpack.c.b16 %v1258, %v1173
    %v1429 = vpack.c.b16 %v1259, %v1174
    %v1430 = vpack.c.b16 %v1260, %v1175
    %v1431 = vpack.c.b16 %v1261, %v1176
    %v1432 = vpack.c.b16 %v1262, %v1177
    %v1433 = vpack.c.b16 %v1263, %v1178
    %v1434 = vpack.c.b16 %v1264, %v1179
    %v1435 = vpack.c.b16 %v1265, %v1180
    %v1436 = vpack.c.b16 %v1266, %v1181
    %v1437 = vpack.c.b16 %v1267, %v1182
    %v1438 = vpack.c.b16 %v1268, %v1183
    %v1439 = vpack.c.b16 %v1269, %v1184
    %v1440 = vpack.c.b16 %v1270, %v1185
    %v1441 = vpack.c.b16 %v1271, %v1186
    %v1442 = vpack.c.b16 %v1272, %v1187
    %v1443 = vpack.c.b16 %v1273, %v1188
    %v1444 = vpack.c.b16 %v1274, %v1189
    %v1445 = vpack.c.b16 %v1275, %v1190
    %v1446 = vpack.c.b16 %v1276, %v1191
    %v1447 = vpack.c.b16 %v1277, %v1192
    %v1448 = vpack.c.b16 %v1278, %v1193
    %v1449 = vpack.c.b16 %v1279, %v1194
    %v1450 = vpack.c.b16 %v1280, %v1195
    %v1451 = vpack.c.b16 %v1281, %v1196
    %v1452 = vpack.c.b16 %v1282, %v1197
    %v1453 = vpack.c.b16 %v1283, %v1198
    %v1454 = vpack.c.b16 %v1284, %v1199
    %v1455 = vpack.c.b16 %v1285, %v1200
    %v1456 = vpack.c.b16 %v1286, %v1201
    %v1457 = vpack.c.b16 %v1287, %v1202
    %v1458 = vpack.c.b16 %v1288, %v1203
    %v1459 = vpack.c.b16 %v1289, %v1204
    %v1460 = vpack.c.b16 %v1290, %v1205
    %v1461 = vpack.c.b16 %v1291, %v1206
    %v1462 = vpack.c.b16 %v1292, %v1207
    %v1463 = vpack.c.b16 %v1293, %v1208
    %v1464 = vpack.c.b16 %v1294, %v1209
    %v1465 = vpack.c.b16 %v1295, %v1210
    %v1466 = vpack.c.b16 %v1296, %v1211
    %v1467 = vpack.c.b16 %v1297, %v1212
    %v1468 = vpack.c.b16 %v1298, %v1213
    %v1469 = vpack.c.b16 %v1299, %v1214
    %v1470 = vpack.c.b16 %v1300, %v1215
    %v1471 = vpack.c.b16 %v1301, %v1216
    %v1472 = vpack.c.b16 %v1302, %v1217
    %v1473 = vpack.c.b16 %v1303, %v1218
    %v1474 = vpack.c.b16 %v1304, %v1219
    %v1475 = vpack.c.b16 %v1305, %v1220
    %v1476 = vpack.c.b16 %v1306, %v1221
    %v1477 = vpack.c.b16 %v1307, %v1222
    %v1478 = vpack.c.b16 %v1308, %v1223
    %v1479 = vpack.c.b16 %v1309, %v1224
    %v1480 = vpack.c.b16 %v1310, %v1225
    %v1481 = vpack.c.b16 %v1311, %v1226
    %v1482 = vpack.c.b16 %v1312, %v1227
    %v1483 = vpack.c.b16 %v1313, %v1228
    %v1484 = vpack.c.b16 %v1314, %v1229
    %v1485 = vpack.c.b16 %v1315, %v1230
    %v1486 = vpack.c.b16 %v1316, %v1231
    %v1487 = vpack.c.b16 %v1317, %v1232
    %v1488 = vpack.c.b16 %v1318, %v1233
    %v1489 = vpack.c.b16 %v1319, %v1234
    %v1490 = vpack.c.b16 %v1320, %v1235
    %v1491 = vpack.c.b16 %v1321, %v1236
    %v1492 = vpack.c.b16 %v1322, %v1237
    %v1493 = vpack.c.b16 %v1323, %v1238
    %v1494 = vpack.c.b16 %v1324, %v1239
    %v1495 = vpack.c.b16 %v1325, %v1240
    %v1496 = vpack.c.b16 %v1326, %v1241
    %v1497 = vpack.c.b16 %v1327, %v1242
    %v1498 = vpack.c.b16 %v1328, %v1243
    %v1499 = vpack.c.b16 %v1329, %v1244
    %v1500 = vpack.c.b16 %v1330, %v1245
    %v1501 = vpack.c.b16 %v1331, %v1246
    %v1502 = vpack.c.b16 %v1332, %v1247
    %v1503 = vpack.c.b16 %v1333, %v1248
    %v1504 = vpack.c.b16 %v1334, %v1249
    %v1505 = vpack.c.b16 %v1335, %v1250
    %v1506 = vpack.c.b16 %v1336, %v1251
    %v1507 = vpack.c.b16 %v1337, %v1252
    %v1508 = vpack.c.b16 %v1338, %v1253
    %v1509 = vpack.c.b16 %v1339, %v1254
    %v1510 = vpack.c.b16 %v1340, %v1255
    %v1511 = vpack.c.b16 %v1341, %v1256
    %vm1680 = vcmask 392192
    %v1682 = vsel %vm1680, %v736, 0
    %v1685 = vsel %vm1680, %v1426, 0
    %v1688 = vsel %vm1680, %v1511, 0
    %1690 = vmatprep.subr.bf16.mxu0 %v1343
    %1691 = vmatpush1.bf16.xpose.msra.mxu0 %v1342
    %1692 = vmatprep.subr.bf16.mxu0 %v1428
    %1693 = vmatpush1.bf16.xpose.msra.mxu0 %v1427
    %1694 = vmatprep.subr.bf16.mxu0 0
    %1695 = vmatpush1.bf16.xpose.msra.mxu0 0
    %1696 = vmatprep.subr.bf16.mxu0 0
    %1697 = vmatpush1.bf16.xpose.msra.mxu0 0
    %1698 = vmatprep.subr.bf16.mxu0 0
    %1699 = vmatpush1.bf16.xpose.msra.mxu0 0
    %1700 = vmatprep.subr.bf16.mxu0 0
    %1701 = vmatpush1.bf16.xpose.msra.mxu0 0
    %1702 = vmatprep.subr.bf16.mxu0 0
    %1703 = vmatpush1.bf16.xpose.msra.mxu0 0
    %1704 = vmatprep.subr.bf16.mxu0 0
    %1705 = vmatpush1.bf16.xpose.msra.mxu0 0
    %1706 = vmatprep.subr.bf16.mxu0 0
    %1707 = vmatpush1.bf16.xpose.msra.mxu0 0
    %1708 = vmatprep.subr.bf16.mxu0 0
    %1709 = vmatpush1.bf16.xpose.msra.mxu0 0
    %1710 = vmatprep.subr.bf16.mxu0 0
    %1711 = vmatpush1.bf16.xpose.msra.mxu0 0
    %1712 = vmatprep.subr.bf16.mxu0 0
    %1713 = vmatpush1.bf16.xpose.msra.mxu0 0
    %1714 = vmatprep.subr.bf16.mxu0 0
    %1715 = vmatpush1.bf16.xpose.msra.mxu0 0
    %1716 = vmatprep.subr.bf16.mxu0 0
    %1717 = vmatpush1.bf16.xpose.msra.mxu0 0
    %1718 = vmatprep.subr.bf16.mxu0 0
    %1719 = vmatpush1.bf16.xpose.msra.mxu0 0
    %1720 = vmatprep.subr.bf16.mxu0 0
    %1721 = vmatpush1.bf16.xpose.msra.mxu0 0
    %1722 = vmatprep.mubr.bf16.mxu0 %v254
    %1723 = vmatmul.mubr.bf16.gmra.mrb[0].mxu0 %v240
    %v1724 = vpop.f32.mrb[0].mxu0
    %v1725 = vadd.f32 %v204, %v1724
    %v1726 = vpop.f32.mrb[0].mxu0
    %v1727 = vpop.f32.mrb[0].mxu0
    %v1728 = vpop.f32.mrb[0].mxu0
    %1729 = vdwg.mxu0
    %1730 = vmatprep.subr.bf16.mxu0 %v1345
    %1731 = vmatpush1.bf16.xpose.msra.mxu0 %v1344
    %1732 = vmatprep.subr.bf16.mxu0 %v1430
    %1733 = vmatpush1.bf16.xpose.msra.mxu0 %v1429
    %1734 = vmatprep.subr.bf16.mxu0 0
    %1735 = vmatpush1.bf16.xpose.msra.mxu0 0
    %1736 = vmatprep.subr.bf16.mxu0 0
    %1737 = vmatpush1.bf16.xpose.msra.mxu0 0
    %1738 = vmatprep.subr.bf16.mxu0 0
    %1739 = vmatpush1.bf16.xpose.msra.mxu0 0
    %1740 = vmatprep.subr.bf16.mxu0 0
    %1741 = vmatpush1.bf16.xpose.msra.mxu0 0
    %1742 = vmatprep.subr.bf16.mxu0 0
    %1743 = vmatpush1.bf16.xpose.msra.mxu0 0
    %1744 = vmatprep.subr.bf16.mxu0 0
    %1745 = vmatpush1.bf16.xpose.msra.mxu0 0
    %1746 = vmatprep.subr.bf16.mxu0 0
    %1747 = vmatpush1.bf16.xpose.msra.mxu0 0
    %1748 = vmatprep.subr.bf16.mxu0 0
    %1749 = vmatpush1.bf16.xpose.msra.mxu0 0
    %1750 = vmatprep.subr.bf16.mxu0 0
    %1751 = vmatpush1.bf16.xpose.msra.mxu0 0
    %1752 = vmatprep.subr.bf16.mxu0 0
    %1753 = vmatpush1.bf16.xpose.msra.mxu0 0
    %1754 = vmatprep.subr.bf16.mxu0 0
    %1755 = vmatpush1.bf16.xpose.msra.mxu0 0
    %1756 = vmatprep.subr.bf16.mxu0 0
    %1757 = vmatpush1.bf16.xpose.msra.mxu0 0
    %1758 = vmatprep.subr.bf16.mxu0 0
    %1759 = vmatpush1.bf16.xpose.msra.mxu0 0
    %1760 = vmatprep.subr.bf16.mxu0 0
    %1761 = vmatpush1.bf16.xpose.msra.mxu0 0
    %1762 = vmatprep.mubr.bf16.mxu0 %v264
    %1763 = vmatmul.mubr.bf16.gmra.mrb[0].mxu0 %v262
    %v1764 = vpop.f32.mrb[0].mxu0
    %v1765 = vadd.f32 %v1725, %v1764
    %v1766 = vpop.f32.mrb[0].mxu0
    %v1767 = vpop.f32.mrb[0].mxu0
    %v1768 = vpop.f32.mrb[0].mxu0
    %1769 = vdwg.mxu0
    %1770 = vmatprep.subr.bf16.mxu0 %v1347
    %1771 = vmatpush1.bf16.xpose.msra.mxu0 %v1346
    %1772 = vmatprep.subr.bf16.mxu0 %v1432
    %1773 = vmatpush1.bf16.xpose.msra.mxu0 %v1431
    %1774 = vmatprep.subr.bf16.mxu0 0
    %1775 = vmatpush1.bf16.xpose.msra.mxu0 0
    %1776 = vmatprep.subr.bf16.mxu0 0
    %1777 = vmatpush1.bf16.xpose.msra.mxu0 0
    %1778 = vmatprep.subr.bf16.mxu0 0
    %1779 = vmatpush1.bf16.xpose.msra.mxu0 0
    %1780 = vmatprep.subr.bf16.mxu0 0
    %1781 = vmatpush1.bf16.xpose.msra.mxu0 0
    %1782 = vmatprep.subr.bf16.mxu0 0
    %1783 = vmatpush1.bf16.xpose.msra.mxu0 0
    %1784 = vmatprep.subr.bf16.mxu0 0
    %1785 = vmatpush1.bf16.xpose.msra.mxu0 0
    %1786 = vmatprep.subr.bf16.mxu0 0
    %1787 = vmatpush1.bf16.xpose.msra.mxu0 0
    %1788 = vmatprep.subr.bf16.mxu0 0
    %1789 = vmatpush1.bf16.xpose.msra.mxu0 0
    %1790 = vmatprep.subr.bf16.mxu0 0
    %1791 = vmatpush1.bf16.xpose.msra.mxu0 0
    %1792 = vmatprep.subr.bf16.mxu0 0
    %1793 = vmatpush1.bf16.xpose.msra.mxu0 0
    %1794 = vmatprep.subr.bf16.mxu0 0
    %1795 = vmatpush1.bf16.xpose.msra.mxu0 0
    %1796 = vmatprep.subr.bf16.mxu0 0
    %1797 = vmatpush1.bf16.xpose.msra.mxu0 0
    %1798 = vmatprep.subr.bf16.mxu0 0
    %1799 = vmatpush1.bf16.xpose.msra.mxu0 0
    %1800 = vmatprep.subr.bf16.mxu0 0
    %1801 = vmatpush1.bf16.xpose.msra.mxu0 0
    %1802 = vmatprep.mubr.bf16.mxu0 %v261
    %1803 = vmatmul.mubr.bf16.gmra.mrb[0].mxu0 %v247
    %v1804 = vpop.f32.mrb[0].mxu0
    %v1805 = vadd.f32 %v1765, %v1804
    %v1806 = vpop.f32.mrb[0].mxu0
    %v1807 = vpop.f32.mrb[0].mxu0
    %v1808 = vpop.f32.mrb[0].mxu0
    %1809 = vdwg.mxu0
    %1810 = vmatprep.subr.bf16.mxu0 %v1349
    %1811 = vmatpush1.bf16.xpose.msra.mxu0 %v1348
    %1812 = vmatprep.subr.bf16.mxu0 %v1434
    %1813 = vmatpush1.bf16.xpose.msra.mxu0 %v1433
    %1814 = vmatprep.subr.bf16.mxu0 0
    %1815 = vmatpush1.bf16.xpose.msra.mxu0 0
    %1816 = vmatprep.subr.bf16.mxu0 0
    %1817 = vmatpush1.bf16.xpose.msra.mxu0 0
    %1818 = vmatprep.subr.bf16.mxu0 0
    %1819 = vmatpush1.bf16.xpose.msra.mxu0 0
    %1820 = vmatprep.subr.bf16.mxu0 0
    %1821 = vmatpush1.bf16.xpose.msra.mxu0 0
    %1822 = vmatprep.subr.bf16.mxu0 0
    %1823 = vmatpush1.bf16.xpose.msra.mxu0 0
    %1824 = vmatprep.subr.bf16.mxu0 0
    %1825 = vmatpush1.bf16.xpose.msra.mxu0 0
    %1826 = vmatprep.subr.bf16.mxu0 0
    %1827 = vmatpush1.bf16.xpose.msra.mxu0 0
    %1828 = vmatprep.subr.bf16.mxu0 0
    %1829 = vmatpush1.bf16.xpose.msra.mxu0 0
    %1830 = vmatprep.subr.bf16.mxu0 0
    %1831 = vmatpush1.bf16.xpose.msra.mxu0 0
    %1832 = vmatprep.subr.bf16.mxu0 0
    %1833 = vmatpush1.bf16.xpose.msra.mxu0 0
    %1834 = vmatprep.subr.bf16.mxu0 0
    %1835 = vmatpush1.bf16.xpose.msra.mxu0 0
    %1836 = vmatprep.subr.bf16.mxu0 0
    %1837 = vmatpush1.bf16.xpose.msra.mxu0 0
    %1838 = vmatprep.subr.bf16.mxu0 0
    %1839 = vmatpush1.bf16.xpose.msra.mxu0 0
    %1840 = vmatprep.subr.bf16.mxu0 0
    %1841 = vmatpush1.bf16.xpose.msra.mxu0 0
    %1842 = vmatprep.mubr.bf16.mxu0 %v265
    %1843 = vmatmul.mubr.bf16.gmra.mrb[0].mxu0 %v263
    %v1844 = vpop.f32.mrb[0].mxu0
    %v1845 = vadd.f32 %v1805, %v1844
    %v1846 = vpop.f32.mrb[0].mxu0
    %v1847 = vpop.f32.mrb[0].mxu0
    %v1848 = vpop.f32.mrb[0].mxu0
    %1849 = vdwg.mxu0
    %1850 = vmatprep.subr.bf16.mxu0 %v1351
    %1851 = vmatpush1.bf16.xpose.msra.mxu0 %v1350
    %1852 = vmatprep.subr.bf16.mxu0 %v1436
    %1853 = vmatpush1.bf16.xpose.msra.mxu0 %v1435
    %1854 = vmatprep.subr.bf16.mxu0 0
    %1855 = vmatpush1.bf16.xpose.msra.mxu0 0
    %1856 = vmatprep.subr.bf16.mxu0 0
    %1857 = vmatpush1.bf16.xpose.msra.mxu0 0
    %1858 = vmatprep.subr.bf16.mxu0 0
    %1859 = vmatpush1.bf16.xpose.msra.mxu0 0
    %1860 = vmatprep.subr.bf16.mxu0 0
    %1861 = vmatpush1.bf16.xpose.msra.mxu0 0
    %1862 = vmatprep.subr.bf16.mxu0 0
    %1863 = vmatpush1.bf16.xpose.msra.mxu0 0
    %1864 = vmatprep.subr.bf16.mxu0 0
    %1865 = vmatpush1.bf16.xpose.msra.mxu0 0
    %1866 = vmatprep.subr.bf16.mxu0 0
    %1867 = vmatpush1.bf16.xpose.msra.mxu0 0
    %1868 = vmatprep.subr.bf16.mxu0 0
    %1869 = vmatpush1.bf16.xpose.msra.mxu0 0
    %1870 = vmatprep.subr.bf16.mxu0 0
    %1871 = vmatpush1.bf16.xpose.msra.mxu0 0
    %1872 = vmatprep.subr.bf16.mxu0 0
    %1873 = vmatpush1.bf16.xpose.msra.mxu0 0
    %1874 = vmatprep.subr.bf16.mxu0 0
    %1875 = vmatpush1.bf16.xpose.msra.mxu0 0
    %1876 = vmatprep.subr.bf16.mxu0 0
    %1877 = vmatpush1.bf16.xpose.msra.mxu0 0
    %1878 = vmatprep.subr.bf16.mxu0 0
    %1879 = vmatpush1.bf16.xpose.msra.mxu0 0
    %1880 = vmatprep.subr.bf16.mxu0 0
    %1881 = vmatpush1.bf16.xpose.msra.mxu0 0
    %1882 = vmatprep.mubr.bf16.mxu0 %v303
    %1883 = vmatmul.mubr.bf16.gmra.mrb[0].mxu0 %v289
    %v1884 = vpop.f32.mrb[0].mxu0
    %v1885 = vadd.f32 %v1845, %v1884
    %v1886 = vpop.f32.mrb[0].mxu0
    %v1887 = vpop.f32.mrb[0].mxu0
    %v1888 = vpop.f32.mrb[0].mxu0
    %1889 = vdwg.mxu0
    %1890 = vmatprep.subr.bf16.mxu0 %v1353
    %1891 = vmatpush1.bf16.xpose.msra.mxu0 %v1352
    %1892 = vmatprep.subr.bf16.mxu0 %v1438
    %1893 = vmatpush1.bf16.xpose.msra.mxu0 %v1437
    %1894 = vmatprep.subr.bf16.mxu0 0
    %1895 = vmatpush1.bf16.xpose.msra.mxu0 0
    %1896 = vmatprep.subr.bf16.mxu0 0
    %1897 = vmatpush1.bf16.xpose.msra.mxu0 0
    %1898 = vmatprep.subr.bf16.mxu0 0
    %1899 = vmatpush1.bf16.xpose.msra.mxu0 0
    %1900 = vmatprep.subr.bf16.mxu0 0
    %1901 = vmatpush1.bf16.xpose.msra.mxu0 0
    %1902 = vmatprep.subr.bf16.mxu0 0
    %1903 = vmatpush1.bf16.xpose.msra.mxu0 0
    %1904 = vmatprep.subr.bf16.mxu0 0
    %1905 = vmatpush1.bf16.xpose.msra.mxu0 0
    %1906 = vmatprep.subr.bf16.mxu0 0
    %1907 = vmatpush1.bf16.xpose.msra.mxu0 0
    %1908 = vmatprep.subr.bf16.mxu0 0
    %1909 = vmatpush1.bf16.xpose.msra.mxu0 0
    %1910 = vmatprep.subr.bf16.mxu0 0
    %1911 = vmatpush1.bf16.xpose.msra.mxu0 0
    %1912 = vmatprep.subr.bf16.mxu0 0
    %1913 = vmatpush1.bf16.xpose.msra.mxu0 0
    %1914 = vmatprep.subr.bf16.mxu0 0
    %1915 = vmatpush1.bf16.xpose.msra.mxu0 0
    %1916 = vmatprep.subr.bf16.mxu0 0
    %1917 = vmatpush1.bf16.xpose.msra.mxu0 0
    %1918 = vmatprep.subr.bf16.mxu0 0
    %1919 = vmatpush1.bf16.xpose.msra.mxu0 0
    %1920 = vmatprep.subr.bf16.mxu0 0
    %1921 = vmatpush1.bf16.xpose.msra.mxu0 0
    %1922 = vmatprep.mubr.bf16.mxu0 %v313
    %1923 = vmatmul.mubr.bf16.gmra.mrb[0].mxu0 %v311
    %v1924 = vpop.f32.mrb[0].mxu0
    %v1925 = vadd.f32 %v1885, %v1924
    %v1926 = vpop.f32.mrb[0].mxu0
    %v1927 = vpop.f32.mrb[0].mxu0
    %v1928 = vpop.f32.mrb[0].mxu0
    %1929 = vdwg.mxu0
    %1930 = vmatprep.subr.bf16.mxu0 %v1355
    %1931 = vmatpush1.bf16.xpose.msra.mxu0 %v1354
    %1932 = vmatprep.subr.bf16.mxu0 %v1440
    %1933 = vmatpush1.bf16.xpose.msra.mxu0 %v1439
    %1934 = vmatprep.subr.bf16.mxu0 0
    %1935 = vmatpush1.bf16.xpose.msra.mxu0 0
    %1936 = vmatprep.subr.bf16.mxu0 0
    %1937 = vmatpush1.bf16.xpose.msra.mxu0 0
    %1938 = vmatprep.subr.bf16.mxu0 0
    %1939 = vmatpush1.bf16.xpose.msra.mxu0 0
    %1940 = vmatprep.subr.bf16.mxu0 0
    %1941 = vmatpush1.bf16.xpose.msra.mxu0 0
    %1942 = vmatprep.subr.bf16.mxu0 0
    %1943 = vmatpush1.bf16.xpose.msra.mxu0 0
    %1944 = vmatprep.subr.bf16.mxu0 0
    %1945 = vmatpush1.bf16.xpose.msra.mxu0 0
    %1946 = vmatprep.subr.bf16.mxu0 0
    %1947 = vmatpush1.bf16.xpose.msra.mxu0 0
    %1948 = vmatprep.subr.bf16.mxu0 0
    %1949 = vmatpush1.bf16.xpose.msra.mxu0 0
    %1950 = vmatprep.subr.bf16.mxu0 0
    %1951 = vmatpush1.bf16.xpose.msra.mxu0 0
    %1952 = vmatprep.subr.bf16.mxu0 0
    %1953 = vmatpush1.bf16.xpose.msra.mxu0 0
    %1954 = vmatprep.subr.bf16.mxu0 0
    %1955 = vmatpush1.bf16.xpose.msra.mxu0 0
    %1956 = vmatprep.subr.bf16.mxu0 0
    %1957 = vmatpush1.bf16.xpose.msra.mxu0 0
    %1958 = vmatprep.subr.bf16.mxu0 0
    %1959 = vmatpush1.bf16.xpose.msra.mxu0 0
    %1960 = vmatprep.subr.bf16.mxu0 0
    %1961 = vmatpush1.bf16.xpose.msra.mxu0 0
    %1962 = vmatprep.mubr.bf16.mxu0 %v310
    %1963 = vmatmul.mubr.bf16.gmra.mrb[0].mxu0 %v296
    %v1964 = vpop.f32.mrb[0].mxu0
    %v1965 = vadd.f32 %v1925, %v1964
    %v1966 = vpop.f32.mrb[0].mxu0
    %v1967 = vpop.f32.mrb[0].mxu0
    %v1968 = vpop.f32.mrb[0].mxu0
    %1969 = vdwg.mxu0
    %1970 = vmatprep.subr.bf16.mxu0 %v1357
    %1971 = vmatpush1.bf16.xpose.msra.mxu0 %v1356
    %1972 = vmatprep.subr.bf16.mxu0 %v1442
    %1973 = vmatpush1.bf16.xpose.msra.mxu0 %v1441
    %1974 = vmatprep.subr.bf16.mxu0 0
    %1975 = vmatpush1.bf16.xpose.msra.mxu0 0
    %1976 = vmatprep.subr.bf16.mxu0 0
    %1977 = vmatpush1.bf16.xpose.msra.mxu0 0
    %1978 = vmatprep.subr.bf16.mxu0 0
    %1979 = vmatpush1.bf16.xpose.msra.mxu0 0
    %1980 = vmatprep.subr.bf16.mxu0 0
    %1981 = vmatpush1.bf16.xpose.msra.mxu0 0
    %1982 = vmatprep.subr.bf16.mxu0 0
    %1983 = vmatpush1.bf16.xpose.msra.mxu0 0
    %1984 = vmatprep.subr.bf16.mxu0 0
    %1985 = vmatpush1.bf16.xpose.msra.mxu0 0
    %1986 = vmatprep.subr.bf16.mxu0 0
    %1987 = vmatpush1.bf16.xpose.msra.mxu0 0
    %1988 = vmatprep.subr.bf16.mxu0 0
    %1989 = vmatpush1.bf16.xpose.msra.mxu0 0
    %1990 = vmatprep.subr.bf16.mxu0 0
    %1991 = vmatpush1.bf16.xpose.msra.mxu0 0
    %1992 = vmatprep.subr.bf16.mxu0 0
    %1993 = vmatpush1.bf16.xpose.msra.mxu0 0
    %1994 = vmatprep.subr.bf16.mxu0 0
    %1995 = vmatpush1.bf16.xpose.msra.mxu0 0
    %1996 = vmatprep.subr.bf16.mxu0 0
    %1997 = vmatpush1.bf16.xpose.msra.mxu0 0
    %1998 = vmatprep.subr.bf16.mxu0 0
    %1999 = vmatpush1.bf16.xpose.msra.mxu0 0
    %2000 = vmatprep.subr.bf16.mxu0 0
    %2001 = vmatpush1.bf16.xpose.msra.mxu0 0
    %2002 = vmatprep.mubr.bf16.mxu0 %v314
    %2003 = vmatmul.mubr.bf16.gmra.mrb[0].mxu0 %v312
    %v2004 = vpop.f32.mrb[0].mxu0
    %v2005 = vadd.f32 %v1965, %v2004
    %v2006 = vpop.f32.mrb[0].mxu0
    %v2007 = vpop.f32.mrb[0].mxu0
    %v2008 = vpop.f32.mrb[0].mxu0
    %2009 = vdwg.mxu0
    %2010 = vmatprep.subr.bf16.mxu0 %v1359
    %2011 = vmatpush1.bf16.xpose.msra.mxu0 %v1358
    %2012 = vmatprep.subr.bf16.mxu0 %v1444
    %2013 = vmatpush1.bf16.xpose.msra.mxu0 %v1443
    %2014 = vmatprep.subr.bf16.mxu0 0
    %2015 = vmatpush1.bf16.xpose.msra.mxu0 0
    %2016 = vmatprep.subr.bf16.mxu0 0
    %2017 = vmatpush1.bf16.xpose.msra.mxu0 0
    %2018 = vmatprep.subr.bf16.mxu0 0
    %2019 = vmatpush1.bf16.xpose.msra.mxu0 0
    %2020 = vmatprep.subr.bf16.mxu0 0
    %2021 = vmatpush1.bf16.xpose.msra.mxu0 0
    %2022 = vmatprep.subr.bf16.mxu0 0
    %2023 = vmatpush1.bf16.xpose.msra.mxu0 0
    %2024 = vmatprep.subr.bf16.mxu0 0
    %2025 = vmatpush1.bf16.xpose.msra.mxu0 0
    %2026 = vmatprep.subr.bf16.mxu0 0
    %2027 = vmatpush1.bf16.xpose.msra.mxu0 0
    %2028 = vmatprep.subr.bf16.mxu0 0
    %2029 = vmatpush1.bf16.xpose.msra.mxu0 0
    %2030 = vmatprep.subr.bf16.mxu0 0
    %2031 = vmatpush1.bf16.xpose.msra.mxu0 0
    %2032 = vmatprep.subr.bf16.mxu0 0
    %2033 = vmatpush1.bf16.xpose.msra.mxu0 0
    %2034 = vmatprep.subr.bf16.mxu0 0
    %2035 = vmatpush1.bf16.xpose.msra.mxu0 0
    %2036 = vmatprep.subr.bf16.mxu0 0
    %2037 = vmatpush1.bf16.xpose.msra.mxu0 0
    %2038 = vmatprep.subr.bf16.mxu0 0
    %2039 = vmatpush1.bf16.xpose.msra.mxu0 0
    %2040 = vmatprep.subr.bf16.mxu0 0
    %2041 = vmatpush1.bf16.xpose.msra.mxu0 0
    %2042 = vmatprep.mubr.bf16.mxu0 %v352
    %2043 = vmatmul.mubr.bf16.gmra.mrb[0].mxu0 %v338
    %v2044 = vpop.f32.mrb[0].mxu0
    %v2045 = vadd.f32 %v2005, %v2044
    %v2046 = vpop.f32.mrb[0].mxu0
    %v2047 = vpop.f32.mrb[0].mxu0
    %v2048 = vpop.f32.mrb[0].mxu0
    %2049 = vdwg.mxu0
    %2050 = vmatprep.subr.bf16.mxu0 %v1361
    %2051 = vmatpush1.bf16.xpose.msra.mxu0 %v1360
    %2052 = vmatprep.subr.bf16.mxu0 %v1446
    %2053 = vmatpush1.bf16.xpose.msra.mxu0 %v1445
    %2054 = vmatprep.subr.bf16.mxu0 0
    %2055 = vmatpush1.bf16.xpose.msra.mxu0 0
    %2056 = vmatprep.subr.bf16.mxu0 0
    %2057 = vmatpush1.bf16.xpose.msra.mxu0 0
    %2058 = vmatprep.subr.bf16.mxu0 0
    %2059 = vmatpush1.bf16.xpose.msra.mxu0 0
    %2060 = vmatprep.subr.bf16.mxu0 0
    %2061 = vmatpush1.bf16.xpose.msra.mxu0 0
    %2062 = vmatprep.subr.bf16.mxu0 0
    %2063 = vmatpush1.bf16.xpose.msra.mxu0 0
    %2064 = vmatprep.subr.bf16.mxu0 0
    %2065 = vmatpush1.bf16.xpose.msra.mxu0 0
    %2066 = vmatprep.subr.bf16.mxu0 0
    %2067 = vmatpush1.bf16.xpose.msra.mxu0 0
    %2068 = vmatprep.subr.bf16.mxu0 0
    %2069 = vmatpush1.bf16.xpose.msra.mxu0 0
    %2070 = vmatprep.subr.bf16.mxu0 0
    %2071 = vmatpush1.bf16.xpose.msra.mxu0 0
    %2072 = vmatprep.subr.bf16.mxu0 0
    %2073 = vmatpush1.bf16.xpose.msra.mxu0 0
    %2074 = vmatprep.subr.bf16.mxu0 0
    %2075 = vmatpush1.bf16.xpose.msra.mxu0 0
    %2076 = vmatprep.subr.bf16.mxu0 0
    %2077 = vmatpush1.bf16.xpose.msra.mxu0 0
    %2078 = vmatprep.subr.bf16.mxu0 0
    %2079 = vmatpush1.bf16.xpose.msra.mxu0 0
    %2080 = vmatprep.subr.bf16.mxu0 0
    %2081 = vmatpush1.bf16.xpose.msra.mxu0 0
    %2082 = vmatprep.mubr.bf16.mxu0 %v362
    %2083 = vmatmul.mubr.bf16.gmra.mrb[0].mxu0 %v360
    %v2084 = vpop.f32.mrb[0].mxu0
    %v2085 = vadd.f32 %v2045, %v2084
    %v2086 = vpop.f32.mrb[0].mxu0
    %v2087 = vpop.f32.mrb[0].mxu0
    %v2088 = vpop.f32.mrb[0].mxu0
    %2089 = vdwg.mxu0
    %2090 = vmatprep.subr.bf16.mxu0 %v1363
    %2091 = vmatpush1.bf16.xpose.msra.mxu0 %v1362
    %2092 = vmatprep.subr.bf16.mxu0 %v1448
    %2093 = vmatpush1.bf16.xpose.msra.mxu0 %v1447
    %2094 = vmatprep.subr.bf16.mxu0 0
    %2095 = vmatpush1.bf16.xpose.msra.mxu0 0
    %2096 = vmatprep.subr.bf16.mxu0 0
    %2097 = vmatpush1.bf16.xpose.msra.mxu0 0
    %2098 = vmatprep.subr.bf16.mxu0 0
    %2099 = vmatpush1.bf16.xpose.msra.mxu0 0
    %2100 = vmatprep.subr.bf16.mxu0 0
    %2101 = vmatpush1.bf16.xpose.msra.mxu0 0
    %2102 = vmatprep.subr.bf16.mxu0 0
    %2103 = vmatpush1.bf16.xpose.msra.mxu0 0
    %2104 = vmatprep.subr.bf16.mxu0 0
    %2105 = vmatpush1.bf16.xpose.msra.mxu0 0
    %2106 = vmatprep.subr.bf16.mxu0 0
    %2107 = vmatpush1.bf16.xpose.msra.mxu0 0
    %2108 = vmatprep.subr.bf16.mxu0 0
    %2109 = vmatpush1.bf16.xpose.msra.mxu0 0
    %2110 = vmatprep.subr.bf16.mxu0 0
    %2111 = vmatpush1.bf16.xpose.msra.mxu0 0
    %2112 = vmatprep.subr.bf16.mxu0 0
    %2113 = vmatpush1.bf16.xpose.msra.mxu0 0
    %2114 = vmatprep.subr.bf16.mxu0 0
    %2115 = vmatpush1.bf16.xpose.msra.mxu0 0
    %2116 = vmatprep.subr.bf16.mxu0 0
    %2117 = vmatpush1.bf16.xpose.msra.mxu0 0
    %2118 = vmatprep.subr.bf16.mxu0 0
    %2119 = vmatpush1.bf16.xpose.msra.mxu0 0
    %2120 = vmatprep.subr.bf16.mxu0 0
    %2121 = vmatpush1.bf16.xpose.msra.mxu0 0
    %2122 = vmatprep.mubr.bf16.mxu0 %v359
    %2123 = vmatmul.mubr.bf16.gmra.mrb[0].mxu0 %v345
    %v2124 = vpop.f32.mrb[0].mxu0
    %v2125 = vadd.f32 %v2085, %v2124
    %v2126 = vpop.f32.mrb[0].mxu0
    %v2127 = vpop.f32.mrb[0].mxu0
    %v2128 = vpop.f32.mrb[0].mxu0
    %2129 = vdwg.mxu0
    %2130 = vmatprep.subr.bf16.mxu0 %v1365
    %2131 = vmatpush1.bf16.xpose.msra.mxu0 %v1364
    %2132 = vmatprep.subr.bf16.mxu0 %v1450
    %2133 = vmatpush1.bf16.xpose.msra.mxu0 %v1449
    %2134 = vmatprep.subr.bf16.mxu0 0
    %2135 = vmatpush1.bf16.xpose.msra.mxu0 0
    %2136 = vmatprep.subr.bf16.mxu0 0
    %2137 = vmatpush1.bf16.xpose.msra.mxu0 0
    %2138 = vmatprep.subr.bf16.mxu0 0
    %2139 = vmatpush1.bf16.xpose.msra.mxu0 0
    %2140 = vmatprep.subr.bf16.mxu0 0
    %2141 = vmatpush1.bf16.xpose.msra.mxu0 0
    %2142 = vmatprep.subr.bf16.mxu0 0
    %2143 = vmatpush1.bf16.xpose.msra.mxu0 0
    %2144 = vmatprep.subr.bf16.mxu0 0
    %2145 = vmatpush1.bf16.xpose.msra.mxu0 0
    %2146 = vmatprep.subr.bf16.mxu0 0
    %2147 = vmatpush1.bf16.xpose.msra.mxu0 0
    %2148 = vmatprep.subr.bf16.mxu0 0
    %2149 = vmatpush1.bf16.xpose.msra.mxu0 0
    %2150 = vmatprep.subr.bf16.mxu0 0
    %2151 = vmatpush1.bf16.xpose.msra.mxu0 0
    %2152 = vmatprep.subr.bf16.mxu0 0
    %2153 = vmatpush1.bf16.xpose.msra.mxu0 0
    %2154 = vmatprep.subr.bf16.mxu0 0
    %2155 = vmatpush1.bf16.xpose.msra.mxu0 0
    %2156 = vmatprep.subr.bf16.mxu0 0
    %2157 = vmatpush1.bf16.xpose.msra.mxu0 0
    %2158 = vmatprep.subr.bf16.mxu0 0
    %2159 = vmatpush1.bf16.xpose.msra.mxu0 0
    %2160 = vmatprep.subr.bf16.mxu0 0
    %2161 = vmatpush1.bf16.xpose.msra.mxu0 0
    %2162 = vmatprep.mubr.bf16.mxu0 %v363
    %2163 = vmatmul.mubr.bf16.gmra.mrb[0].mxu0 %v361
    %v2164 = vpop.f32.mrb[0].mxu0
    %v2165 = vadd.f32 %v2125, %v2164
    %v2166 = vpop.f32.mrb[0].mxu0
    %v2167 = vpop.f32.mrb[0].mxu0
    %v2168 = vpop.f32.mrb[0].mxu0
    %2169 = vdwg.mxu0
    %2170 = vmatprep.subr.bf16.mxu0 %v1367
    %2171 = vmatpush1.bf16.xpose.msra.mxu0 %v1366
    %2172 = vmatprep.subr.bf16.mxu0 %v1452
    %2173 = vmatpush1.bf16.xpose.msra.mxu0 %v1451
    %2174 = vmatprep.subr.bf16.mxu0 0
    %2175 = vmatpush1.bf16.xpose.msra.mxu0 0
    %2176 = vmatprep.subr.bf16.mxu0 0
    %2177 = vmatpush1.bf16.xpose.msra.mxu0 0
    %2178 = vmatprep.subr.bf16.mxu0 0
    %2179 = vmatpush1.bf16.xpose.msra.mxu0 0
    %2180 = vmatprep.subr.bf16.mxu0 0
    %2181 = vmatpush1.bf16.xpose.msra.mxu0 0
    %2182 = vmatprep.subr.bf16.mxu0 0
    %2183 = vmatpush1.bf16.xpose.msra.mxu0 0
    %2184 = vmatprep.subr.bf16.mxu0 0
    %2185 = vmatpush1.bf16.xpose.msra.mxu0 0
    %2186 = vmatprep.subr.bf16.mxu0 0
    %2187 = vmatpush1.bf16.xpose.msra.mxu0 0
    %2188 = vmatprep.subr.bf16.mxu0 0
    %2189 = vmatpush1.bf16.xpose.msra.mxu0 0
    %2190 = vmatprep.subr.bf16.mxu0 0
    %2191 = vmatpush1.bf16.xpose.msra.mxu0 0
    %2192 = vmatprep.subr.bf16.mxu0 0
    %2193 = vmatpush1.bf16.xpose.msra.mxu0 0
    %2194 = vmatprep.subr.bf16.mxu0 0
    %2195 = vmatpush1.bf16.xpose.msra.mxu0 0
    %2196 = vmatprep.subr.bf16.mxu0 0
    %2197 = vmatpush1.bf16.xpose.msra.mxu0 0
    %2198 = vmatprep.subr.bf16.mxu0 0
    %2199 = vmatpush1.bf16.xpose.msra.mxu0 0
    %2200 = vmatprep.subr.bf16.mxu0 0
    %2201 = vmatpush1.bf16.xpose.msra.mxu0 0
    %2202 = vmatprep.mubr.bf16.mxu0 %v401
    %2203 = vmatmul.mubr.bf16.gmra.mrb[0].mxu0 %v387
    %v2204 = vpop.f32.mrb[0].mxu0
    %v2205 = vadd.f32 %v2165, %v2204
    %v2206 = vpop.f32.mrb[0].mxu0
    %v2207 = vpop.f32.mrb[0].mxu0
    %v2208 = vpop.f32.mrb[0].mxu0
    %2209 = vdwg.mxu0
    %2210 = vmatprep.subr.bf16.mxu0 %v1369
    %2211 = vmatpush1.bf16.xpose.msra.mxu0 %v1368
    %2212 = vmatprep.subr.bf16.mxu0 %v1454
    %2213 = vmatpush1.bf16.xpose.msra.mxu0 %v1453
    %2214 = vmatprep.subr.bf16.mxu0 0
    %2215 = vmatpush1.bf16.xpose.msra.mxu0 0
    %2216 = vmatprep.subr.bf16.mxu0 0
    %2217 = vmatpush1.bf16.xpose.msra.mxu0 0
    %2218 = vmatprep.subr.bf16.mxu0 0
    %2219 = vmatpush1.bf16.xpose.msra.mxu0 0
    %2220 = vmatprep.subr.bf16.mxu0 0
    %2221 = vmatpush1.bf16.xpose.msra.mxu0 0
    %2222 = vmatprep.subr.bf16.mxu0 0
    %2223 = vmatpush1.bf16.xpose.msra.mxu0 0
    %2224 = vmatprep.subr.bf16.mxu0 0
    %2225 = vmatpush1.bf16.xpose.msra.mxu0 0
    %2226 = vmatprep.subr.bf16.mxu0 0
    %2227 = vmatpush1.bf16.xpose.msra.mxu0 0
    %2228 = vmatprep.subr.bf16.mxu0 0
    %2229 = vmatpush1.bf16.xpose.msra.mxu0 0
    %2230 = vmatprep.subr.bf16.mxu0 0
    %2231 = vmatpush1.bf16.xpose.msra.mxu0 0
    %2232 = vmatprep.subr.bf16.mxu0 0
    %2233 = vmatpush1.bf16.xpose.msra.mxu0 0
    %2234 = vmatprep.subr.bf16.mxu0 0
    %2235 = vmatpush1.bf16.xpose.msra.mxu0 0
    %2236 = vmatprep.subr.bf16.mxu0 0
    %2237 = vmatpush1.bf16.xpose.msra.mxu0 0
    %2238 = vmatprep.subr.bf16.mxu0 0
    %2239 = vmatpush1.bf16.xpose.msra.mxu0 0
    %2240 = vmatprep.subr.bf16.mxu0 0
    %2241 = vmatpush1.bf16.xpose.msra.mxu0 0
    %2242 = vmatprep.mubr.bf16.mxu0 %v411
    %2243 = vmatmul.mubr.bf16.gmra.mrb[0].mxu0 %v409
    %v2244 = vpop.f32.mrb[0].mxu0
    %v2245 = vadd.f32 %v2205, %v2244
    %v2246 = vpop.f32.mrb[0].mxu0
    %v2247 = vpop.f32.mrb[0].mxu0
    %v2248 = vpop.f32.mrb[0].mxu0
    %2249 = vdwg.mxu0
    %2250 = vmatprep.subr.bf16.mxu0 %v1371
    %2251 = vmatpush1.bf16.xpose.msra.mxu0 %v1370
    %2252 = vmatprep.subr.bf16.mxu0 %v1456
    %2253 = vmatpush1.bf16.xpose.msra.mxu0 %v1455
    %2254 = vmatprep.subr.bf16.mxu0 0
    %2255 = vmatpush1.bf16.xpose.msra.mxu0 0
    %2256 = vmatprep.subr.bf16.mxu0 0
    %2257 = vmatpush1.bf16.xpose.msra.mxu0 0
    %2258 = vmatprep.subr.bf16.mxu0 0
    %2259 = vmatpush1.bf16.xpose.msra.mxu0 0
    %2260 = vmatprep.subr.bf16.mxu0 0
    %2261 = vmatpush1.bf16.xpose.msra.mxu0 0
    %2262 = vmatprep.subr.bf16.mxu0 0
    %2263 = vmatpush1.bf16.xpose.msra.mxu0 0
    %2264 = vmatprep.subr.bf16.mxu0 0
    %2265 = vmatpush1.bf16.xpose.msra.mxu0 0
    %2266 = vmatprep.subr.bf16.mxu0 0
    %2267 = vmatpush1.bf16.xpose.msra.mxu0 0
    %2268 = vmatprep.subr.bf16.mxu0 0
    %2269 = vmatpush1.bf16.xpose.msra.mxu0 0
    %2270 = vmatprep.subr.bf16.mxu0 0
    %2271 = vmatpush1.bf16.xpose.msra.mxu0 0
    %2272 = vmatprep.subr.bf16.mxu0 0
    %2273 = vmatpush1.bf16.xpose.msra.mxu0 0
    %2274 = vmatprep.subr.bf16.mxu0 0
    %2275 = vmatpush1.bf16.xpose.msra.mxu0 0
    %2276 = vmatprep.subr.bf16.mxu0 0
    %2277 = vmatpush1.bf16.xpose.msra.mxu0 0
    %2278 = vmatprep.subr.bf16.mxu0 0
    %2279 = vmatpush1.bf16.xpose.msra.mxu0 0
    %2280 = vmatprep.subr.bf16.mxu0 0
    %2281 = vmatpush1.bf16.xpose.msra.mxu0 0
    %2282 = vmatprep.mubr.bf16.mxu0 %v408
    %2283 = vmatmul.mubr.bf16.gmra.mrb[0].mxu0 %v394
    %v2284 = vpop.f32.mrb[0].mxu0
    %v2285 = vadd.f32 %v2245, %v2284
    %v2286 = vpop.f32.mrb[0].mxu0
    %v2287 = vpop.f32.mrb[0].mxu0
    %v2288 = vpop.f32.mrb[0].mxu0
    %2289 = vdwg.mxu0
    %2290 = vmatprep.subr.bf16.mxu0 %v1373
    %2291 = vmatpush1.bf16.xpose.msra.mxu0 %v1372
    %2292 = vmatprep.subr.bf16.mxu0 %v1458
    %2293 = vmatpush1.bf16.xpose.msra.mxu0 %v1457
    %2294 = vmatprep.subr.bf16.mxu0 0
    %2295 = vmatpush1.bf16.xpose.msra.mxu0 0
    %2296 = vmatprep.subr.bf16.mxu0 0
    %2297 = vmatpush1.bf16.xpose.msra.mxu0 0
    %2298 = vmatprep.subr.bf16.mxu0 0
    %2299 = vmatpush1.bf16.xpose.msra.mxu0 0
    %2300 = vmatprep.subr.bf16.mxu0 0
    %2301 = vmatpush1.bf16.xpose.msra.mxu0 0
    %2302 = vmatprep.subr.bf16.mxu0 0
    %2303 = vmatpush1.bf16.xpose.msra.mxu0 0
    %2304 = vmatprep.subr.bf16.mxu0 0
    %2305 = vmatpush1.bf16.xpose.msra.mxu0 0
    %2306 = vmatprep.subr.bf16.mxu0 0
    %2307 = vmatpush1.bf16.xpose.msra.mxu0 0
    %2308 = vmatprep.subr.bf16.mxu0 0
    %2309 = vmatpush1.bf16.xpose.msra.mxu0 0
    %2310 = vmatprep.subr.bf16.mxu0 0
    %2311 = vmatpush1.bf16.xpose.msra.mxu0 0
    %2312 = vmatprep.subr.bf16.mxu0 0
    %2313 = vmatpush1.bf16.xpose.msra.mxu0 0
    %2314 = vmatprep.subr.bf16.mxu0 0
    %2315 = vmatpush1.bf16.xpose.msra.mxu0 0
    %2316 = vmatprep.subr.bf16.mxu0 0
    %2317 = vmatpush1.bf16.xpose.msra.mxu0 0
    %2318 = vmatprep.subr.bf16.mxu0 0
    %2319 = vmatpush1.bf16.xpose.msra.mxu0 0
    %2320 = vmatprep.subr.bf16.mxu0 0
    %2321 = vmatpush1.bf16.xpose.msra.mxu0 0
    %2322 = vmatprep.mubr.bf16.mxu0 %v412
    %2323 = vmatmul.mubr.bf16.gmra.mrb[0].mxu0 %v410
    %v2324 = vpop.f32.mrb[0].mxu0
    %v2325 = vadd.f32 %v2285, %v2324
    %v2326 = vpop.f32.mrb[0].mxu0
    %v2327 = vpop.f32.mrb[0].mxu0
    %v2328 = vpop.f32.mrb[0].mxu0
    %2329 = vdwg.mxu0
    %2330 = vmatprep.subr.bf16.mxu0 %v1375
    %2331 = vmatpush1.bf16.xpose.msra.mxu0 %v1374
    %2332 = vmatprep.subr.bf16.mxu0 %v1460
    %2333 = vmatpush1.bf16.xpose.msra.mxu0 %v1459
    %2334 = vmatprep.subr.bf16.mxu0 0
    %2335 = vmatpush1.bf16.xpose.msra.mxu0 0
    %2336 = vmatprep.subr.bf16.mxu0 0
    %2337 = vmatpush1.bf16.xpose.msra.mxu0 0
    %2338 = vmatprep.subr.bf16.mxu0 0
    %2339 = vmatpush1.bf16.xpose.msra.mxu0 0
    %2340 = vmatprep.subr.bf16.mxu0 0
    %2341 = vmatpush1.bf16.xpose.msra.mxu0 0
    %2342 = vmatprep.subr.bf16.mxu0 0
    %2343 = vmatpush1.bf16.xpose.msra.mxu0 0
    %2344 = vmatprep.subr.bf16.mxu0 0
    %2345 = vmatpush1.bf16.xpose.msra.mxu0 0
    %2346 = vmatprep.subr.bf16.mxu0 0
    %2347 = vmatpush1.bf16.xpose.msra.mxu0 0
    %2348 = vmatprep.subr.bf16.mxu0 0
    %2349 = vmatpush1.bf16.xpose.msra.mxu0 0
    %2350 = vmatprep.subr.bf16.mxu0 0
    %2351 = vmatpush1.bf16.xpose.msra.mxu0 0
    %2352 = vmatprep.subr.bf16.mxu0 0
    %2353 = vmatpush1.bf16.xpose.msra.mxu0 0
    %2354 = vmatprep.subr.bf16.mxu0 0
    %2355 = vmatpush1.bf16.xpose.msra.mxu0 0
    %2356 = vmatprep.subr.bf16.mxu0 0
    %2357 = vmatpush1.bf16.xpose.msra.mxu0 0
    %2358 = vmatprep.subr.bf16.mxu0 0
    %2359 = vmatpush1.bf16.xpose.msra.mxu0 0
    %2360 = vmatprep.subr.bf16.mxu0 0
    %2361 = vmatpush1.bf16.xpose.msra.mxu0 0
    %2362 = vmatprep.mubr.bf16.mxu0 %v450
    %2363 = vmatmul.mubr.bf16.gmra.mrb[0].mxu0 %v436
    %v2364 = vpop.f32.mrb[0].mxu0
    %v2365 = vadd.f32 %v2325, %v2364
    %v2366 = vpop.f32.mrb[0].mxu0
    %v2367 = vpop.f32.mrb[0].mxu0
    %v2368 = vpop.f32.mrb[0].mxu0
    %2369 = vdwg.mxu0
    %2370 = vmatprep.subr.bf16.mxu0 %v1377
    %2371 = vmatpush1.bf16.xpose.msra.mxu0 %v1376
    %2372 = vmatprep.subr.bf16.mxu0 %v1462
    %2373 = vmatpush1.bf16.xpose.msra.mxu0 %v1461
    %2374 = vmatprep.subr.bf16.mxu0 0
    %2375 = vmatpush1.bf16.xpose.msra.mxu0 0
    %2376 = vmatprep.subr.bf16.mxu0 0
    %2377 = vmatpush1.bf16.xpose.msra.mxu0 0
    %2378 = vmatprep.subr.bf16.mxu0 0
    %2379 = vmatpush1.bf16.xpose.msra.mxu0 0
    %2380 = vmatprep.subr.bf16.mxu0 0
    %2381 = vmatpush1.bf16.xpose.msra.mxu0 0
    %2382 = vmatprep.subr.bf16.mxu0 0
    %2383 = vmatpush1.bf16.xpose.msra.mxu0 0
    %2384 = vmatprep.subr.bf16.mxu0 0
    %2385 = vmatpush1.bf16.xpose.msra.mxu0 0
    %2386 = vmatprep.subr.bf16.mxu0 0
    %2387 = vmatpush1.bf16.xpose.msra.mxu0 0
    %2388 = vmatprep.subr.bf16.mxu0 0
    %2389 = vmatpush1.bf16.xpose.msra.mxu0 0
    %2390 = vmatprep.subr.bf16.mxu0 0
    %2391 = vmatpush1.bf16.xpose.msra.mxu0 0
    %2392 = vmatprep.subr.bf16.mxu0 0
    %2393 = vmatpush1.bf16.xpose.msra.mxu0 0
    %2394 = vmatprep.subr.bf16.mxu0 0
    %2395 = vmatpush1.bf16.xpose.msra.mxu0 0
    %2396 = vmatprep.subr.bf16.mxu0 0
    %2397 = vmatpush1.bf16.xpose.msra.mxu0 0
    %2398 = vmatprep.subr.bf16.mxu0 0
    %2399 = vmatpush1.bf16.xpose.msra.mxu0 0
    %2400 = vmatprep.subr.bf16.mxu0 0
    %2401 = vmatpush1.bf16.xpose.msra.mxu0 0
    %2402 = vmatprep.mubr.bf16.mxu0 %v460
    %2403 = vmatmul.mubr.bf16.gmra.mrb[0].mxu0 %v458
    %v2404 = vpop.f32.mrb[0].mxu0
    %v2405 = vadd.f32 %v2365, %v2404
    %v2406 = vpop.f32.mrb[0].mxu0
    %v2407 = vpop.f32.mrb[0].mxu0
    %v2408 = vpop.f32.mrb[0].mxu0
    %2409 = vdwg.mxu0
    %2410 = vmatprep.subr.bf16.mxu0 %v1379
    %2411 = vmatpush1.bf16.xpose.msra.mxu0 %v1378
    %2412 = vmatprep.subr.bf16.mxu0 %v1464
    %2413 = vmatpush1.bf16.xpose.msra.mxu0 %v1463
    %2414 = vmatprep.subr.bf16.mxu0 0
    %2415 = vmatpush1.bf16.xpose.msra.mxu0 0
    %2416 = vmatprep.subr.bf16.mxu0 0
    %2417 = vmatpush1.bf16.xpose.msra.mxu0 0
    %2418 = vmatprep.subr.bf16.mxu0 0
    %2419 = vmatpush1.bf16.xpose.msra.mxu0 0
    %2420 = vmatprep.subr.bf16.mxu0 0
    %2421 = vmatpush1.bf16.xpose.msra.mxu0 0
    %2422 = vmatprep.subr.bf16.mxu0 0
    %2423 = vmatpush1.bf16.xpose.msra.mxu0 0
    %2424 = vmatprep.subr.bf16.mxu0 0
    %2425 = vmatpush1.bf16.xpose.msra.mxu0 0
    %2426 = vmatprep.subr.bf16.mxu0 0
    %2427 = vmatpush1.bf16.xpose.msra.mxu0 0
    %2428 = vmatprep.subr.bf16.mxu0 0
    %2429 = vmatpush1.bf16.xpose.msra.mxu0 0
    %2430 = vmatprep.subr.bf16.mxu0 0
    %2431 = vmatpush1.bf16.xpose.msra.mxu0 0
    %2432 = vmatprep.subr.bf16.mxu0 0
    %2433 = vmatpush1.bf16.xpose.msra.mxu0 0
    %2434 = vmatprep.subr.bf16.mxu0 0
    %2435 = vmatpush1.bf16.xpose.msra.mxu0 0
    %2436 = vmatprep.subr.bf16.mxu0 0
    %2437 = vmatpush1.bf16.xpose.msra.mxu0 0
    %2438 = vmatprep.subr.bf16.mxu0 0
    %2439 = vmatpush1.bf16.xpose.msra.mxu0 0
    %2440 = vmatprep.subr.bf16.mxu0 0
    %2441 = vmatpush1.bf16.xpose.msra.mxu0 0
    %2442 = vmatprep.mubr.bf16.mxu0 %v457
    %2443 = vmatmul.mubr.bf16.gmra.mrb[0].mxu0 %v443
    %v2444 = vpop.f32.mrb[0].mxu0
    %v2445 = vadd.f32 %v2405, %v2444
    %v2446 = vpop.f32.mrb[0].mxu0
    %v2447 = vpop.f32.mrb[0].mxu0
    %v2448 = vpop.f32.mrb[0].mxu0
    %2449 = vdwg.mxu0
    %2450 = vmatprep.subr.bf16.mxu0 %v1381
    %2451 = vmatpush1.bf16.xpose.msra.mxu0 %v1380
    %2452 = vmatprep.subr.bf16.mxu0 %v1466
    %2453 = vmatpush1.bf16.xpose.msra.mxu0 %v1465
    %2454 = vmatprep.subr.bf16.mxu0 0
    %2455 = vmatpush1.bf16.xpose.msra.mxu0 0
    %2456 = vmatprep.subr.bf16.mxu0 0
    %2457 = vmatpush1.bf16.xpose.msra.mxu0 0
    %2458 = vmatprep.subr.bf16.mxu0 0
    %2459 = vmatpush1.bf16.xpose.msra.mxu0 0
    %2460 = vmatprep.subr.bf16.mxu0 0
    %2461 = vmatpush1.bf16.xpose.msra.mxu0 0
    %2462 = vmatprep.subr.bf16.mxu0 0
    %2463 = vmatpush1.bf16.xpose.msra.mxu0 0
    %2464 = vmatprep.subr.bf16.mxu0 0
    %2465 = vmatpush1.bf16.xpose.msra.mxu0 0
    %2466 = vmatprep.subr.bf16.mxu0 0
    %2467 = vmatpush1.bf16.xpose.msra.mxu0 0
    %2468 = vmatprep.subr.bf16.mxu0 0
    %2469 = vmatpush1.bf16.xpose.msra.mxu0 0
    %2470 = vmatprep.subr.bf16.mxu0 0
    %2471 = vmatpush1.bf16.xpose.msra.mxu0 0
    %2472 = vmatprep.subr.bf16.mxu0 0
    %2473 = vmatpush1.bf16.xpose.msra.mxu0 0
    %2474 = vmatprep.subr.bf16.mxu0 0
    %2475 = vmatpush1.bf16.xpose.msra.mxu0 0
    %2476 = vmatprep.subr.bf16.mxu0 0
    %2477 = vmatpush1.bf16.xpose.msra.mxu0 0
    %2478 = vmatprep.subr.bf16.mxu0 0
    %2479 = vmatpush1.bf16.xpose.msra.mxu0 0
    %2480 = vmatprep.subr.bf16.mxu0 0
    %2481 = vmatpush1.bf16.xpose.msra.mxu0 0
    %2482 = vmatprep.mubr.bf16.mxu0 %v461
    %2483 = vmatmul.mubr.bf16.gmra.mrb[0].mxu0 %v459
    %v2484 = vpop.f32.mrb[0].mxu0
    %v2485 = vadd.f32 %v2445, %v2484
    %v2486 = vpop.f32.mrb[0].mxu0
    %v2487 = vpop.f32.mrb[0].mxu0
    %v2488 = vpop.f32.mrb[0].mxu0
    %2489 = vdwg.mxu0
    %2490 = vmatprep.subr.bf16.mxu0 %v1383
    %2491 = vmatpush1.bf16.xpose.msra.mxu0 %v1382
    %2492 = vmatprep.subr.bf16.mxu0 %v1468
    %2493 = vmatpush1.bf16.xpose.msra.mxu0 %v1467
    %2494 = vmatprep.subr.bf16.mxu0 0
    %2495 = vmatpush1.bf16.xpose.msra.mxu0 0
    %2496 = vmatprep.subr.bf16.mxu0 0
    %2497 = vmatpush1.bf16.xpose.msra.mxu0 0
    %2498 = vmatprep.subr.bf16.mxu0 0
    %2499 = vmatpush1.bf16.xpose.msra.mxu0 0
    %2500 = vmatprep.subr.bf16.mxu0 0
    %2501 = vmatpush1.bf16.xpose.msra.mxu0 0
    %2502 = vmatprep.subr.bf16.mxu0 0
    %2503 = vmatpush1.bf16.xpose.msra.mxu0 0
    %2504 = vmatprep.subr.bf16.mxu0 0
    %2505 = vmatpush1.bf16.xpose.msra.mxu0 0
    %2506 = vmatprep.subr.bf16.mxu0 0
    %2507 = vmatpush1.bf16.xpose.msra.mxu0 0
    %2508 = vmatprep.subr.bf16.mxu0 0
    %2509 = vmatpush1.bf16.xpose.msra.mxu0 0
    %2510 = vmatprep.subr.bf16.mxu0 0
    %2511 = vmatpush1.bf16.xpose.msra.mxu0 0
    %2512 = vmatprep.subr.bf16.mxu0 0
    %2513 = vmatpush1.bf16.xpose.msra.mxu0 0
    %2514 = vmatprep.subr.bf16.mxu0 0
    %2515 = vmatpush1.bf16.xpose.msra.mxu0 0
    %2516 = vmatprep.subr.bf16.mxu0 0
    %2517 = vmatpush1.bf16.xpose.msra.mxu0 0
    %2518 = vmatprep.subr.bf16.mxu0 0
    %2519 = vmatpush1.bf16.xpose.msra.mxu0 0
    %2520 = vmatprep.subr.bf16.mxu0 0
    %2521 = vmatpush1.bf16.xpose.msra.mxu0 0
    %2522 = vmatprep.mubr.bf16.mxu0 %v499
    %2523 = vmatmul.mubr.bf16.gmra.mrb[0].mxu0 %v485
    %v2524 = vpop.f32.mrb[0].mxu0
    %v2525 = vadd.f32 %v2485, %v2524
    %v2526 = vpop.f32.mrb[0].mxu0
    %v2527 = vpop.f32.mrb[0].mxu0
    %v2528 = vpop.f32.mrb[0].mxu0
    %2529 = vdwg.mxu0
    %2530 = vmatprep.subr.bf16.mxu0 %v1385
    %2531 = vmatpush1.bf16.xpose.msra.mxu0 %v1384
    %2532 = vmatprep.subr.bf16.mxu0 %v1470
    %2533 = vmatpush1.bf16.xpose.msra.mxu0 %v1469
    %2534 = vmatprep.subr.bf16.mxu0 0
    %2535 = vmatpush1.bf16.xpose.msra.mxu0 0
    %2536 = vmatprep.subr.bf16.mxu0 0
    %2537 = vmatpush1.bf16.xpose.msra.mxu0 0
    %2538 = vmatprep.subr.bf16.mxu0 0
    %2539 = vmatpush1.bf16.xpose.msra.mxu0 0
    %2540 = vmatprep.subr.bf16.mxu0 0
    %2541 = vmatpush1.bf16.xpose.msra.mxu0 0
    %2542 = vmatprep.subr.bf16.mxu0 0
    %2543 = vmatpush1.bf16.xpose.msra.mxu0 0
    %2544 = vmatprep.subr.bf16.mxu0 0
    %2545 = vmatpush1.bf16.xpose.msra.mxu0 0
    %2546 = vmatprep.subr.bf16.mxu0 0
    %2547 = vmatpush1.bf16.xpose.msra.mxu0 0
    %2548 = vmatprep.subr.bf16.mxu0 0
    %2549 = vmatpush1.bf16.xpose.msra.mxu0 0
    %2550 = vmatprep.subr.bf16.mxu0 0
    %2551 = vmatpush1.bf16.xpose.msra.mxu0 0
    %2552 = vmatprep.subr.bf16.mxu0 0
    %2553 = vmatpush1.bf16.xpose.msra.mxu0 0
    %2554 = vmatprep.subr.bf16.mxu0 0
    %2555 = vmatpush1.bf16.xpose.msra.mxu0 0
    %2556 = vmatprep.subr.bf16.mxu0 0
    %2557 = vmatpush1.bf16.xpose.msra.mxu0 0
    %2558 = vmatprep.subr.bf16.mxu0 0
    %2559 = vmatpush1.bf16.xpose.msra.mxu0 0
    %2560 = vmatprep.subr.bf16.mxu0 0
    %2561 = vmatpush1.bf16.xpose.msra.mxu0 0
    %2562 = vmatprep.mubr.bf16.mxu0 %v509
    %2563 = vmatmul.mubr.bf16.gmra.mrb[0].mxu0 %v507
    %v2564 = vpop.f32.mrb[0].mxu0
    %v2565 = vadd.f32 %v2525, %v2564
    %v2566 = vpop.f32.mrb[0].mxu0
    %v2567 = vpop.f32.mrb[0].mxu0
    %v2568 = vpop.f32.mrb[0].mxu0
    %2569 = vdwg.mxu0
    %2570 = vmatprep.subr.bf16.mxu0 %v1387
    %2571 = vmatpush1.bf16.xpose.msra.mxu0 %v1386
    %2572 = vmatprep.subr.bf16.mxu0 %v1472
    %2573 = vmatpush1.bf16.xpose.msra.mxu0 %v1471
    %2574 = vmatprep.subr.bf16.mxu0 0
    %2575 = vmatpush1.bf16.xpose.msra.mxu0 0
    %2576 = vmatprep.subr.bf16.mxu0 0
    %2577 = vmatpush1.bf16.xpose.msra.mxu0 0
    %2578 = vmatprep.subr.bf16.mxu0 0
    %2579 = vmatpush1.bf16.xpose.msra.mxu0 0
    %2580 = vmatprep.subr.bf16.mxu0 0
    %2581 = vmatpush1.bf16.xpose.msra.mxu0 0
    %2582 = vmatprep.subr.bf16.mxu0 0
    %2583 = vmatpush1.bf16.xpose.msra.mxu0 0
    %2584 = vmatprep.subr.bf16.mxu0 0
    %2585 = vmatpush1.bf16.xpose.msra.mxu0 0
    %2586 = vmatprep.subr.bf16.mxu0 0
    %2587 = vmatpush1.bf16.xpose.msra.mxu0 0
    %2588 = vmatprep.subr.bf16.mxu0 0
    %2589 = vmatpush1.bf16.xpose.msra.mxu0 0
    %2590 = vmatprep.subr.bf16.mxu0 0
    %2591 = vmatpush1.bf16.xpose.msra.mxu0 0
    %2592 = vmatprep.subr.bf16.mxu0 0
    %2593 = vmatpush1.bf16.xpose.msra.mxu0 0
    %2594 = vmatprep.subr.bf16.mxu0 0
    %2595 = vmatpush1.bf16.xpose.msra.mxu0 0
    %2596 = vmatprep.subr.bf16.mxu0 0
    %2597 = vmatpush1.bf16.xpose.msra.mxu0 0
    %2598 = vmatprep.subr.bf16.mxu0 0
    %2599 = vmatpush1.bf16.xpose.msra.mxu0 0
    %2600 = vmatprep.subr.bf16.mxu0 0
    %2601 = vmatpush1.bf16.xpose.msra.mxu0 0
    %2602 = vmatprep.mubr.bf16.mxu0 %v506
    %2603 = vmatmul.mubr.bf16.gmra.mrb[0].mxu0 %v492
    %v2604 = vpop.f32.mrb[0].mxu0
    %v2605 = vadd.f32 %v2565, %v2604
    %v2606 = vpop.f32.mrb[0].mxu0
    %v2607 = vpop.f32.mrb[0].mxu0
    %v2608 = vpop.f32.mrb[0].mxu0
    %2609 = vdwg.mxu0
    %2610 = vmatprep.subr.bf16.mxu0 %v1389
    %2611 = vmatpush1.bf16.xpose.msra.mxu0 %v1388
    %2612 = vmatprep.subr.bf16.mxu0 %v1474
    %2613 = vmatpush1.bf16.xpose.msra.mxu0 %v1473
    %2614 = vmatprep.subr.bf16.mxu0 0
    %2615 = vmatpush1.bf16.xpose.msra.mxu0 0
    %2616 = vmatprep.subr.bf16.mxu0 0
    %2617 = vmatpush1.bf16.xpose.msra.mxu0 0
    %2618 = vmatprep.subr.bf16.mxu0 0
    %2619 = vmatpush1.bf16.xpose.msra.mxu0 0
    %2620 = vmatprep.subr.bf16.mxu0 0
    %2621 = vmatpush1.bf16.xpose.msra.mxu0 0
    %2622 = vmatprep.subr.bf16.mxu0 0
    %2623 = vmatpush1.bf16.xpose.msra.mxu0 0
    %2624 = vmatprep.subr.bf16.mxu0 0
    %2625 = vmatpush1.bf16.xpose.msra.mxu0 0
    %2626 = vmatprep.subr.bf16.mxu0 0
    %2627 = vmatpush1.bf16.xpose.msra.mxu0 0
    %2628 = vmatprep.subr.bf16.mxu0 0
    %2629 = vmatpush1.bf16.xpose.msra.mxu0 0
    %2630 = vmatprep.subr.bf16.mxu0 0
    %2631 = vmatpush1.bf16.xpose.msra.mxu0 0
    %2632 = vmatprep.subr.bf16.mxu0 0
    %2633 = vmatpush1.bf16.xpose.msra.mxu0 0
    %2634 = vmatprep.subr.bf16.mxu0 0
    %2635 = vmatpush1.bf16.xpose.msra.mxu0 0
    %2636 = vmatprep.subr.bf16.mxu0 0
    %2637 = vmatpush1.bf16.xpose.msra.mxu0 0
    %2638 = vmatprep.subr.bf16.mxu0 0
    %2639 = vmatpush1.bf16.xpose.msra.mxu0 0
    %2640 = vmatprep.subr.bf16.mxu0 0
    %2641 = vmatpush1.bf16.xpose.msra.mxu0 0
    %2642 = vmatprep.mubr.bf16.mxu0 %v510
    %2643 = vmatmul.mubr.bf16.gmra.mrb[0].mxu0 %v508
    %v2644 = vpop.f32.mrb[0].mxu0
    %v2645 = vadd.f32 %v2605, %v2644
    %v2646 = vpop.f32.mrb[0].mxu0
    %v2647 = vpop.f32.mrb[0].mxu0
    %v2648 = vpop.f32.mrb[0].mxu0
    %2649 = vdwg.mxu0
    %2650 = vmatprep.subr.bf16.mxu0 %v1391
    %2651 = vmatpush1.bf16.xpose.msra.mxu0 %v1390
    %2652 = vmatprep.subr.bf16.mxu0 %v1476
    %2653 = vmatpush1.bf16.xpose.msra.mxu0 %v1475
    %2654 = vmatprep.subr.bf16.mxu0 0
    %2655 = vmatpush1.bf16.xpose.msra.mxu0 0
    %2656 = vmatprep.subr.bf16.mxu0 0
    %2657 = vmatpush1.bf16.xpose.msra.mxu0 0
    %2658 = vmatprep.subr.bf16.mxu0 0
    %2659 = vmatpush1.bf16.xpose.msra.mxu0 0
    %2660 = vmatprep.subr.bf16.mxu0 0
    %2661 = vmatpush1.bf16.xpose.msra.mxu0 0
    %2662 = vmatprep.subr.bf16.mxu0 0
    %2663 = vmatpush1.bf16.xpose.msra.mxu0 0
    %2664 = vmatprep.subr.bf16.mxu0 0
    %2665 = vmatpush1.bf16.xpose.msra.mxu0 0
    %2666 = vmatprep.subr.bf16.mxu0 0
    %2667 = vmatpush1.bf16.xpose.msra.mxu0 0
    %2668 = vmatprep.subr.bf16.mxu0 0
    %2669 = vmatpush1.bf16.xpose.msra.mxu0 0
    %2670 = vmatprep.subr.bf16.mxu0 0
    %2671 = vmatpush1.bf16.xpose.msra.mxu0 0
    %2672 = vmatprep.subr.bf16.mxu0 0
    %2673 = vmatpush1.bf16.xpose.msra.mxu0 0
    %2674 = vmatprep.subr.bf16.mxu0 0
    %2675 = vmatpush1.bf16.xpose.msra.mxu0 0
    %2676 = vmatprep.subr.bf16.mxu0 0
    %2677 = vmatpush1.bf16.xpose.msra.mxu0 0
    %2678 = vmatprep.subr.bf16.mxu0 0
    %2679 = vmatpush1.bf16.xpose.msra.mxu0 0
    %2680 = vmatprep.subr.bf16.mxu0 0
    %2681 = vmatpush1.bf16.xpose.msra.mxu0 0
    %2682 = vmatprep.mubr.bf16.mxu0 %v548
    %2683 = vmatmul.mubr.bf16.gmra.mrb[0].mxu0 %v534
    %v2684 = vpop.f32.mrb[0].mxu0
    %v2685 = vadd.f32 %v2645, %v2684
    %v2686 = vpop.f32.mrb[0].mxu0
    %v2687 = vpop.f32.mrb[0].mxu0
    %v2688 = vpop.f32.mrb[0].mxu0
    %2689 = vdwg.mxu0
    %2690 = vmatprep.subr.bf16.mxu0 %v1393
    %2691 = vmatpush1.bf16.xpose.msra.mxu0 %v1392
    %2692 = vmatprep.subr.bf16.mxu0 %v1478
    %2693 = vmatpush1.bf16.xpose.msra.mxu0 %v1477
    %2694 = vmatprep.subr.bf16.mxu0 0
    %2695 = vmatpush1.bf16.xpose.msra.mxu0 0
    %2696 = vmatprep.subr.bf16.mxu0 0
    %2697 = vmatpush1.bf16.xpose.msra.mxu0 0
    %2698 = vmatprep.subr.bf16.mxu0 0
    %2699 = vmatpush1.bf16.xpose.msra.mxu0 0
    %2700 = vmatprep.subr.bf16.mxu0 0
    %2701 = vmatpush1.bf16.xpose.msra.mxu0 0
    %2702 = vmatprep.subr.bf16.mxu0 0
    %2703 = vmatpush1.bf16.xpose.msra.mxu0 0
    %2704 = vmatprep.subr.bf16.mxu0 0
    %2705 = vmatpush1.bf16.xpose.msra.mxu0 0
    %2706 = vmatprep.subr.bf16.mxu0 0
    %2707 = vmatpush1.bf16.xpose.msra.mxu0 0
    %2708 = vmatprep.subr.bf16.mxu0 0
    %2709 = vmatpush1.bf16.xpose.msra.mxu0 0
    %2710 = vmatprep.subr.bf16.mxu0 0
    %2711 = vmatpush1.bf16.xpose.msra.mxu0 0
    %2712 = vmatprep.subr.bf16.mxu0 0
    %2713 = vmatpush1.bf16.xpose.msra.mxu0 0
    %2714 = vmatprep.subr.bf16.mxu0 0
    %2715 = vmatpush1.bf16.xpose.msra.mxu0 0
    %2716 = vmatprep.subr.bf16.mxu0 0
    %2717 = vmatpush1.bf16.xpose.msra.mxu0 0
    %2718 = vmatprep.subr.bf16.mxu0 0
    %2719 = vmatpush1.bf16.xpose.msra.mxu0 0
    %2720 = vmatprep.subr.bf16.mxu0 0
    %2721 = vmatpush1.bf16.xpose.msra.mxu0 0
    %2722 = vmatprep.mubr.bf16.mxu0 %v558
    %2723 = vmatmul.mubr.bf16.gmra.mrb[0].mxu0 %v556
    %v2724 = vpop.f32.mrb[0].mxu0
    %v2725 = vadd.f32 %v2685, %v2724
    %v2726 = vpop.f32.mrb[0].mxu0
    %v2727 = vpop.f32.mrb[0].mxu0
    %v2728 = vpop.f32.mrb[0].mxu0
    %2729 = vdwg.mxu0
    %2730 = vmatprep.subr.bf16.mxu0 %v1395
    %2731 = vmatpush1.bf16.xpose.msra.mxu0 %v1394
    %2732 = vmatprep.subr.bf16.mxu0 %v1480
    %2733 = vmatpush1.bf16.xpose.msra.mxu0 %v1479
    %2734 = vmatprep.subr.bf16.mxu0 0
    %2735 = vmatpush1.bf16.xpose.msra.mxu0 0
    %2736 = vmatprep.subr.bf16.mxu0 0
    %2737 = vmatpush1.bf16.xpose.msra.mxu0 0
    %2738 = vmatprep.subr.bf16.mxu0 0
    %2739 = vmatpush1.bf16.xpose.msra.mxu0 0
    %2740 = vmatprep.subr.bf16.mxu0 0
    %2741 = vmatpush1.bf16.xpose.msra.mxu0 0
    %2742 = vmatprep.subr.bf16.mxu0 0
    %2743 = vmatpush1.bf16.xpose.msra.mxu0 0
    %2744 = vmatprep.subr.bf16.mxu0 0
    %2745 = vmatpush1.bf16.xpose.msra.mxu0 0
    %2746 = vmatprep.subr.bf16.mxu0 0
    %2747 = vmatpush1.bf16.xpose.msra.mxu0 0
    %2748 = vmatprep.subr.bf16.mxu0 0
    %2749 = vmatpush1.bf16.xpose.msra.mxu0 0
    %2750 = vmatprep.subr.bf16.mxu0 0
    %2751 = vmatpush1.bf16.xpose.msra.mxu0 0
    %2752 = vmatprep.subr.bf16.mxu0 0
    %2753 = vmatpush1.bf16.xpose.msra.mxu0 0
    %2754 = vmatprep.subr.bf16.mxu0 0
    %2755 = vmatpush1.bf16.xpose.msra.mxu0 0
    %2756 = vmatprep.subr.bf16.mxu0 0
    %2757 = vmatpush1.bf16.xpose.msra.mxu0 0
    %2758 = vmatprep.subr.bf16.mxu0 0
    %2759 = vmatpush1.bf16.xpose.msra.mxu0 0
    %2760 = vmatprep.subr.bf16.mxu0 0
    %2761 = vmatpush1.bf16.xpose.msra.mxu0 0
    %2762 = vmatprep.mubr.bf16.mxu0 %v555
    %2763 = vmatmul.mubr.bf16.gmra.mrb[0].mxu0 %v541
    %v2764 = vpop.f32.mrb[0].mxu0
    %v2765 = vadd.f32 %v2725, %v2764
    %v2766 = vpop.f32.mrb[0].mxu0
    %v2767 = vpop.f32.mrb[0].mxu0
    %v2768 = vpop.f32.mrb[0].mxu0
    %2769 = vdwg.mxu0
    %2770 = vmatprep.subr.bf16.mxu0 %v1397
    %2771 = vmatpush1.bf16.xpose.msra.mxu0 %v1396
    %2772 = vmatprep.subr.bf16.mxu0 %v1482
    %2773 = vmatpush1.bf16.xpose.msra.mxu0 %v1481
    %2774 = vmatprep.subr.bf16.mxu0 0
    %2775 = vmatpush1.bf16.xpose.msra.mxu0 0
    %2776 = vmatprep.subr.bf16.mxu0 0
    %2777 = vmatpush1.bf16.xpose.msra.mxu0 0
    %2778 = vmatprep.subr.bf16.mxu0 0
    %2779 = vmatpush1.bf16.xpose.msra.mxu0 0
    %2780 = vmatprep.subr.bf16.mxu0 0
    %2781 = vmatpush1.bf16.xpose.msra.mxu0 0
    %2782 = vmatprep.subr.bf16.mxu0 0
    %2783 = vmatpush1.bf16.xpose.msra.mxu0 0
    %2784 = vmatprep.subr.bf16.mxu0 0
    %2785 = vmatpush1.bf16.xpose.msra.mxu0 0
    %2786 = vmatprep.subr.bf16.mxu0 0
    %2787 = vmatpush1.bf16.xpose.msra.mxu0 0
    %2788 = vmatprep.subr.bf16.mxu0 0
    %2789 = vmatpush1.bf16.xpose.msra.mxu0 0
    %2790 = vmatprep.subr.bf16.mxu0 0
    %2791 = vmatpush1.bf16.xpose.msra.mxu0 0
    %2792 = vmatprep.subr.bf16.mxu0 0
    %2793 = vmatpush1.bf16.xpose.msra.mxu0 0
    %2794 = vmatprep.subr.bf16.mxu0 0
    %2795 = vmatpush1.bf16.xpose.msra.mxu0 0
    %2796 = vmatprep.subr.bf16.mxu0 0
    %2797 = vmatpush1.bf16.xpose.msra.mxu0 0
    %2798 = vmatprep.subr.bf16.mxu0 0
    %2799 = vmatpush1.bf16.xpose.msra.mxu0 0
    %2800 = vmatprep.subr.bf16.mxu0 0
    %2801 = vmatpush1.bf16.xpose.msra.mxu0 0
    %2802 = vmatprep.mubr.bf16.mxu0 %v559
    %2803 = vmatmul.mubr.bf16.gmra.mrb[0].mxu0 %v557
    %v2804 = vpop.f32.mrb[0].mxu0
    %v2805 = vadd.f32 %v2765, %v2804
    %v2806 = vpop.f32.mrb[0].mxu0
    %v2807 = vpop.f32.mrb[0].mxu0
    %v2808 = vpop.f32.mrb[0].mxu0
    %2809 = vdwg.mxu0
    %2810 = vmatprep.subr.bf16.mxu0 %v1399
    %2811 = vmatpush1.bf16.xpose.msra.mxu0 %v1398
    %2812 = vmatprep.subr.bf16.mxu0 %v1484
    %2813 = vmatpush1.bf16.xpose.msra.mxu0 %v1483
    %2814 = vmatprep.subr.bf16.mxu0 0
    %2815 = vmatpush1.bf16.xpose.msra.mxu0 0
    %2816 = vmatprep.subr.bf16.mxu0 0
    %2817 = vmatpush1.bf16.xpose.msra.mxu0 0
    %2818 = vmatprep.subr.bf16.mxu0 0
    %2819 = vmatpush1.bf16.xpose.msra.mxu0 0
    %2820 = vmatprep.subr.bf16.mxu0 0
    %2821 = vmatpush1.bf16.xpose.msra.mxu0 0
    %2822 = vmatprep.subr.bf16.mxu0 0
    %2823 = vmatpush1.bf16.xpose.msra.mxu0 0
    %2824 = vmatprep.subr.bf16.mxu0 0
    %2825 = vmatpush1.bf16.xpose.msra.mxu0 0
    %2826 = vmatprep.subr.bf16.mxu0 0
    %2827 = vmatpush1.bf16.xpose.msra.mxu0 0
    %2828 = vmatprep.subr.bf16.mxu0 0
    %2829 = vmatpush1.bf16.xpose.msra.mxu0 0
    %2830 = vmatprep.subr.bf16.mxu0 0
    %2831 = vmatpush1.bf16.xpose.msra.mxu0 0
    %2832 = vmatprep.subr.bf16.mxu0 0
    %2833 = vmatpush1.bf16.xpose.msra.mxu0 0
    %2834 = vmatprep.subr.bf16.mxu0 0
    %2835 = vmatpush1.bf16.xpose.msra.mxu0 0
    %2836 = vmatprep.subr.bf16.mxu0 0
    %2837 = vmatpush1.bf16.xpose.msra.mxu0 0
    %2838 = vmatprep.subr.bf16.mxu0 0
    %2839 = vmatpush1.bf16.xpose.msra.mxu0 0
    %2840 = vmatprep.subr.bf16.mxu0 0
    %2841 = vmatpush1.bf16.xpose.msra.mxu0 0
    %2842 = vmatprep.mubr.bf16.mxu0 %v597
    %2843 = vmatmul.mubr.bf16.gmra.mrb[0].mxu0 %v583
    %v2844 = vpop.f32.mrb[0].mxu0
    %v2845 = vadd.f32 %v2805, %v2844
    %v2846 = vpop.f32.mrb[0].mxu0
    %v2847 = vpop.f32.mrb[0].mxu0
    %v2848 = vpop.f32.mrb[0].mxu0
    %2849 = vdwg.mxu0
    %2850 = vmatprep.subr.bf16.mxu0 %v1401
    %2851 = vmatpush1.bf16.xpose.msra.mxu0 %v1400
    %2852 = vmatprep.subr.bf16.mxu0 %v1486
    %2853 = vmatpush1.bf16.xpose.msra.mxu0 %v1485
    %2854 = vmatprep.subr.bf16.mxu0 0
    %2855 = vmatpush1.bf16.xpose.msra.mxu0 0
    %2856 = vmatprep.subr.bf16.mxu0 0
    %2857 = vmatpush1.bf16.xpose.msra.mxu0 0
    %2858 = vmatprep.subr.bf16.mxu0 0
    %2859 = vmatpush1.bf16.xpose.msra.mxu0 0
    %2860 = vmatprep.subr.bf16.mxu0 0
    %2861 = vmatpush1.bf16.xpose.msra.mxu0 0
    %2862 = vmatprep.subr.bf16.mxu0 0
    %2863 = vmatpush1.bf16.xpose.msra.mxu0 0
    %2864 = vmatprep.subr.bf16.mxu0 0
    %2865 = vmatpush1.bf16.xpose.msra.mxu0 0
    %2866 = vmatprep.subr.bf16.mxu0 0
    %2867 = vmatpush1.bf16.xpose.msra.mxu0 0
    %2868 = vmatprep.subr.bf16.mxu0 0
    %2869 = vmatpush1.bf16.xpose.msra.mxu0 0
    %2870 = vmatprep.subr.bf16.mxu0 0
    %2871 = vmatpush1.bf16.xpose.msra.mxu0 0
    %2872 = vmatprep.subr.bf16.mxu0 0
    %2873 = vmatpush1.bf16.xpose.msra.mxu0 0
    %2874 = vmatprep.subr.bf16.mxu0 0
    %2875 = vmatpush1.bf16.xpose.msra.mxu0 0
    %2876 = vmatprep.subr.bf16.mxu0 0
    %2877 = vmatpush1.bf16.xpose.msra.mxu0 0
    %2878 = vmatprep.subr.bf16.mxu0 0
    %2879 = vmatpush1.bf16.xpose.msra.mxu0 0
    %2880 = vmatprep.subr.bf16.mxu0 0
    %2881 = vmatpush1.bf16.xpose.msra.mxu0 0
    %2882 = vmatprep.mubr.bf16.mxu0 %v607
    %2883 = vmatmul.mubr.bf16.gmra.mrb[0].mxu0 %v605
    %v2884 = vpop.f32.mrb[0].mxu0
    %v2885 = vadd.f32 %v2845, %v2884
    %v2886 = vpop.f32.mrb[0].mxu0
    %v2887 = vpop.f32.mrb[0].mxu0
    %v2888 = vpop.f32.mrb[0].mxu0
    %2889 = vdwg.mxu0
    %2890 = vmatprep.subr.bf16.mxu0 %v1403
    %2891 = vmatpush1.bf16.xpose.msra.mxu0 %v1402
    %2892 = vmatprep.subr.bf16.mxu0 %v1488
    %2893 = vmatpush1.bf16.xpose.msra.mxu0 %v1487
    %2894 = vmatprep.subr.bf16.mxu0 0
    %2895 = vmatpush1.bf16.xpose.msra.mxu0 0
    %2896 = vmatprep.subr.bf16.mxu0 0
    %2897 = vmatpush1.bf16.xpose.msra.mxu0 0
    %2898 = vmatprep.subr.bf16.mxu0 0
    %2899 = vmatpush1.bf16.xpose.msra.mxu0 0
    %2900 = vmatprep.subr.bf16.mxu0 0
    %2901 = vmatpush1.bf16.xpose.msra.mxu0 0
    %2902 = vmatprep.subr.bf16.mxu0 0
    %2903 = vmatpush1.bf16.xpose.msra.mxu0 0
    %2904 = vmatprep.subr.bf16.mxu0 0
    %2905 = vmatpush1.bf16.xpose.msra.mxu0 0
    %2906 = vmatprep.subr.bf16.mxu0 0
    %2907 = vmatpush1.bf16.xpose.msra.mxu0 0
    %2908 = vmatprep.subr.bf16.mxu0 0
    %2909 = vmatpush1.bf16.xpose.msra.mxu0 0
    %2910 = vmatprep.subr.bf16.mxu0 0
    %2911 = vmatpush1.bf16.xpose.msra.mxu0 0
    %2912 = vmatprep.subr.bf16.mxu0 0
    %2913 = vmatpush1.bf16.xpose.msra.mxu0 0
    %2914 = vmatprep.subr.bf16.mxu0 0
    %2915 = vmatpush1.bf16.xpose.msra.mxu0 0
    %2916 = vmatprep.subr.bf16.mxu0 0
    %2917 = vmatpush1.bf16.xpose.msra.mxu0 0
    %2918 = vmatprep.subr.bf16.mxu0 0
    %2919 = vmatpush1.bf16.xpose.msra.mxu0 0
    %2920 = vmatprep.subr.bf16.mxu0 0
    %2921 = vmatpush1.bf16.xpose.msra.mxu0 0
    %2922 = vmatprep.mubr.bf16.mxu0 %v604
    %2923 = vmatmul.mubr.bf16.gmra.mrb[0].mxu0 %v590
    %v2924 = vpop.f32.mrb[0].mxu0
    %v2925 = vadd.f32 %v2885, %v2924
    %v2926 = vpop.f32.mrb[0].mxu0
    %v2927 = vpop.f32.mrb[0].mxu0
    %v2928 = vpop.f32.mrb[0].mxu0
    %2929 = vdwg.mxu0
    %2930 = vmatprep.subr.bf16.mxu0 %v1405
    %2931 = vmatpush1.bf16.xpose.msra.mxu0 %v1404
    %2932 = vmatprep.subr.bf16.mxu0 %v1490
    %2933 = vmatpush1.bf16.xpose.msra.mxu0 %v1489
    %2934 = vmatprep.subr.bf16.mxu0 0
    %2935 = vmatpush1.bf16.xpose.msra.mxu0 0
    %2936 = vmatprep.subr.bf16.mxu0 0
    %2937 = vmatpush1.bf16.xpose.msra.mxu0 0
    %2938 = vmatprep.subr.bf16.mxu0 0
    %2939 = vmatpush1.bf16.xpose.msra.mxu0 0
    %2940 = vmatprep.subr.bf16.mxu0 0
    %2941 = vmatpush1.bf16.xpose.msra.mxu0 0
    %2942 = vmatprep.subr.bf16.mxu0 0
    %2943 = vmatpush1.bf16.xpose.msra.mxu0 0
    %2944 = vmatprep.subr.bf16.mxu0 0
    %2945 = vmatpush1.bf16.xpose.msra.mxu0 0
    %2946 = vmatprep.subr.bf16.mxu0 0
    %2947 = vmatpush1.bf16.xpose.msra.mxu0 0
    %2948 = vmatprep.subr.bf16.mxu0 0
    %2949 = vmatpush1.bf16.xpose.msra.mxu0 0
    %2950 = vmatprep.subr.bf16.mxu0 0
    %2951 = vmatpush1.bf16.xpose.msra.mxu0 0
    %2952 = vmatprep.subr.bf16.mxu0 0
    %2953 = vmatpush1.bf16.xpose.msra.mxu0 0
    %2954 = vmatprep.subr.bf16.mxu0 0
    %2955 = vmatpush1.bf16.xpose.msra.mxu0 0
    %2956 = vmatprep.subr.bf16.mxu0 0
    %2957 = vmatpush1.bf16.xpose.msra.mxu0 0
    %2958 = vmatprep.subr.bf16.mxu0 0
    %2959 = vmatpush1.bf16.xpose.msra.mxu0 0
    %2960 = vmatprep.subr.bf16.mxu0 0
    %2961 = vmatpush1.bf16.xpose.msra.mxu0 0
    %2962 = vmatprep.mubr.bf16.mxu0 %v608
    %2963 = vmatmul.mubr.bf16.gmra.mrb[0].mxu0 %v606
    %v2964 = vpop.f32.mrb[0].mxu0
    %v2965 = vadd.f32 %v2925, %v2964
    %v2966 = vpop.f32.mrb[0].mxu0
    %v2967 = vpop.f32.mrb[0].mxu0
    %v2968 = vpop.f32.mrb[0].mxu0
    %2969 = vdwg.mxu0
    %2970 = vmatprep.subr.bf16.mxu0 %v1407
    %2971 = vmatpush1.bf16.xpose.msra.mxu0 %v1406
    %2972 = vmatprep.subr.bf16.mxu0 %v1492
    %2973 = vmatpush1.bf16.xpose.msra.mxu0 %v1491
    %2974 = vmatprep.subr.bf16.mxu0 0
    %2975 = vmatpush1.bf16.xpose.msra.mxu0 0
    %2976 = vmatprep.subr.bf16.mxu0 0
    %2977 = vmatpush1.bf16.xpose.msra.mxu0 0
    %2978 = vmatprep.subr.bf16.mxu0 0
    %2979 = vmatpush1.bf16.xpose.msra.mxu0 0
    %2980 = vmatprep.subr.bf16.mxu0 0
    %2981 = vmatpush1.bf16.xpose.msra.mxu0 0
    %2982 = vmatprep.subr.bf16.mxu0 0
    %2983 = vmatpush1.bf16.xpose.msra.mxu0 0
    %2984 = vmatprep.subr.bf16.mxu0 0
    %2985 = vmatpush1.bf16.xpose.msra.mxu0 0
    %2986 = vmatprep.subr.bf16.mxu0 0
    %2987 = vmatpush1.bf16.xpose.msra.mxu0 0
    %2988 = vmatprep.subr.bf16.mxu0 0
    %2989 = vmatpush1.bf16.xpose.msra.mxu0 0
    %2990 = vmatprep.subr.bf16.mxu0 0
    %2991 = vmatpush1.bf16.xpose.msra.mxu0 0
    %2992 = vmatprep.subr.bf16.mxu0 0
    %2993 = vmatpush1.bf16.xpose.msra.mxu0 0
    %2994 = vmatprep.subr.bf16.mxu0 0
    %2995 = vmatpush1.bf16.xpose.msra.mxu0 0
    %2996 = vmatprep.subr.bf16.mxu0 0
    %2997 = vmatpush1.bf16.xpose.msra.mxu0 0
    %2998 = vmatprep.subr.bf16.mxu0 0
    %2999 = vmatpush1.bf16.xpose.msra.mxu0 0
    %3000 = vmatprep.subr.bf16.mxu0 0
    %3001 = vmatpush1.bf16.xpose.msra.mxu0 0
    %3002 = vmatprep.mubr.bf16.mxu0 %v646
    %3003 = vmatmul.mubr.bf16.gmra.mrb[0].mxu0 %v632
    %v3004 = vpop.f32.mrb[0].mxu0
    %v3005 = vadd.f32 %v2965, %v3004
    %v3006 = vpop.f32.mrb[0].mxu0
    %v3007 = vpop.f32.mrb[0].mxu0
    %v3008 = vpop.f32.mrb[0].mxu0
    %3009 = vdwg.mxu0
    %3010 = vmatprep.subr.bf16.mxu0 %v1409
    %3011 = vmatpush1.bf16.xpose.msra.mxu0 %v1408
    %3012 = vmatprep.subr.bf16.mxu0 %v1494
    %3013 = vmatpush1.bf16.xpose.msra.mxu0 %v1493
    %3014 = vmatprep.subr.bf16.mxu0 0
    %3015 = vmatpush1.bf16.xpose.msra.mxu0 0
    %3016 = vmatprep.subr.bf16.mxu0 0
    %3017 = vmatpush1.bf16.xpose.msra.mxu0 0
    %3018 = vmatprep.subr.bf16.mxu0 0
    %3019 = vmatpush1.bf16.xpose.msra.mxu0 0
    %3020 = vmatprep.subr.bf16.mxu0 0
    %3021 = vmatpush1.bf16.xpose.msra.mxu0 0
    %3022 = vmatprep.subr.bf16.mxu0 0
    %3023 = vmatpush1.bf16.xpose.msra.mxu0 0
    %3024 = vmatprep.subr.bf16.mxu0 0
    %3025 = vmatpush1.bf16.xpose.msra.mxu0 0
    %3026 = vmatprep.subr.bf16.mxu0 0
    %3027 = vmatpush1.bf16.xpose.msra.mxu0 0
    %3028 = vmatprep.subr.bf16.mxu0 0
    %3029 = vmatpush1.bf16.xpose.msra.mxu0 0
    %3030 = vmatprep.subr.bf16.mxu0 0
    %3031 = vmatpush1.bf16.xpose.msra.mxu0 0
    %3032 = vmatprep.subr.bf16.mxu0 0
    %3033 = vmatpush1.bf16.xpose.msra.mxu0 0
    %3034 = vmatprep.subr.bf16.mxu0 0
    %3035 = vmatpush1.bf16.xpose.msra.mxu0 0
    %3036 = vmatprep.subr.bf16.mxu0 0
    %3037 = vmatpush1.bf16.xpose.msra.mxu0 0
    %3038 = vmatprep.subr.bf16.mxu0 0
    %3039 = vmatpush1.bf16.xpose.msra.mxu0 0
    %3040 = vmatprep.subr.bf16.mxu0 0
    %3041 = vmatpush1.bf16.xpose.msra.mxu0 0
    %3042 = vmatprep.mubr.bf16.mxu0 %v656
    %3043 = vmatmul.mubr.bf16.gmra.mrb[0].mxu0 %v654
    %v3044 = vpop.f32.mrb[0].mxu0
    %v3045 = vadd.f32 %v3005, %v3044
    %v3046 = vpop.f32.mrb[0].mxu0
    %v3047 = vpop.f32.mrb[0].mxu0
    %v3048 = vpop.f32.mrb[0].mxu0
    %3049 = vdwg.mxu0
    %3050 = vmatprep.subr.bf16.mxu0 %v1411
    %3051 = vmatpush1.bf16.xpose.msra.mxu0 %v1410
    %3052 = vmatprep.subr.bf16.mxu0 %v1496
    %3053 = vmatpush1.bf16.xpose.msra.mxu0 %v1495
    %3054 = vmatprep.subr.bf16.mxu0 0
    %3055 = vmatpush1.bf16.xpose.msra.mxu0 0
    %3056 = vmatprep.subr.bf16.mxu0 0
    %3057 = vmatpush1.bf16.xpose.msra.mxu0 0
    %3058 = vmatprep.subr.bf16.mxu0 0
    %3059 = vmatpush1.bf16.xpose.msra.mxu0 0
    %3060 = vmatprep.subr.bf16.mxu0 0
    %3061 = vmatpush1.bf16.xpose.msra.mxu0 0
    %3062 = vmatprep.subr.bf16.mxu0 0
    %3063 = vmatpush1.bf16.xpose.msra.mxu0 0
    %3064 = vmatprep.subr.bf16.mxu0 0
    %3065 = vmatpush1.bf16.xpose.msra.mxu0 0
    %3066 = vmatprep.subr.bf16.mxu0 0
    %3067 = vmatpush1.bf16.xpose.msra.mxu0 0
    %3068 = vmatprep.subr.bf16.mxu0 0
    %3069 = vmatpush1.bf16.xpose.msra.mxu0 0
    %3070 = vmatprep.subr.bf16.mxu0 0
    %3071 = vmatpush1.bf16.xpose.msra.mxu0 0
    %3072 = vmatprep.subr.bf16.mxu0 0
    %3073 = vmatpush1.bf16.xpose.msra.mxu0 0
    %3074 = vmatprep.subr.bf16.mxu0 0
    %3075 = vmatpush1.bf16.xpose.msra.mxu0 0
    %3076 = vmatprep.subr.bf16.mxu0 0
    %3077 = vmatpush1.bf16.xpose.msra.mxu0 0
    %3078 = vmatprep.subr.bf16.mxu0 0
    %3079 = vmatpush1.bf16.xpose.msra.mxu0 0
    %3080 = vmatprep.subr.bf16.mxu0 0
    %3081 = vmatpush1.bf16.xpose.msra.mxu0 0
    %3082 = vmatprep.mubr.bf16.mxu0 %v653
    %3083 = vmatmul.mubr.bf16.gmra.mrb[0].mxu0 %v639
    %v3084 = vpop.f32.mrb[0].mxu0
    %v3085 = vadd.f32 %v3045, %v3084
    %v3086 = vpop.f32.mrb[0].mxu0
    %v3087 = vpop.f32.mrb[0].mxu0
    %v3088 = vpop.f32.mrb[0].mxu0
    %3089 = vdwg.mxu0
    %3090 = vmatprep.subr.bf16.mxu0 %v1413
    %3091 = vmatpush1.bf16.xpose.msra.mxu0 %v1412
    %3092 = vmatprep.subr.bf16.mxu0 %v1498
    %3093 = vmatpush1.bf16.xpose.msra.mxu0 %v1497
    %3094 = vmatprep.subr.bf16.mxu0 0
    %3095 = vmatpush1.bf16.xpose.msra.mxu0 0
    %3096 = vmatprep.subr.bf16.mxu0 0
    %3097 = vmatpush1.bf16.xpose.msra.mxu0 0
    %3098 = vmatprep.subr.bf16.mxu0 0
    %3099 = vmatpush1.bf16.xpose.msra.mxu0 0
    %3100 = vmatprep.subr.bf16.mxu0 0
    %3101 = vmatpush1.bf16.xpose.msra.mxu0 0
    %3102 = vmatprep.subr.bf16.mxu0 0
    %3103 = vmatpush1.bf16.xpose.msra.mxu0 0
    %3104 = vmatprep.subr.bf16.mxu0 0
    %3105 = vmatpush1.bf16.xpose.msra.mxu0 0
    %3106 = vmatprep.subr.bf16.mxu0 0
    %3107 = vmatpush1.bf16.xpose.msra.mxu0 0
    %3108 = vmatprep.subr.bf16.mxu0 0
    %3109 = vmatpush1.bf16.xpose.msra.mxu0 0
    %3110 = vmatprep.subr.bf16.mxu0 0
    %3111 = vmatpush1.bf16.xpose.msra.mxu0 0
    %3112 = vmatprep.subr.bf16.mxu0 0
    %3113 = vmatpush1.bf16.xpose.msra.mxu0 0
    %3114 = vmatprep.subr.bf16.mxu0 0
    %3115 = vmatpush1.bf16.xpose.msra.mxu0 0
    %3116 = vmatprep.subr.bf16.mxu0 0
    %3117 = vmatpush1.bf16.xpose.msra.mxu0 0
    %3118 = vmatprep.subr.bf16.mxu0 0
    %3119 = vmatpush1.bf16.xpose.msra.mxu0 0
    %3120 = vmatprep.subr.bf16.mxu0 0
    %3121 = vmatpush1.bf16.xpose.msra.mxu0 0
    %3122 = vmatprep.mubr.bf16.mxu0 %v657
    %3123 = vmatmul.mubr.bf16.gmra.mrb[0].mxu0 %v655
    %v3124 = vpop.f32.mrb[0].mxu0
    %v3125 = vadd.f32 %v3085, %v3124
    %v3126 = vpop.f32.mrb[0].mxu0
    %v3127 = vpop.f32.mrb[0].mxu0
    %v3128 = vpop.f32.mrb[0].mxu0
    %3129 = vdwg.mxu0
    %3130 = vmatprep.subr.bf16.mxu0 %v1415
    %3131 = vmatpush1.bf16.xpose.msra.mxu0 %v1414
    %3132 = vmatprep.subr.bf16.mxu0 %v1500
    %3133 = vmatpush1.bf16.xpose.msra.mxu0 %v1499
    %3134 = vmatprep.subr.bf16.mxu0 0
    %3135 = vmatpush1.bf16.xpose.msra.mxu0 0
    %3136 = vmatprep.subr.bf16.mxu0 0
    %3137 = vmatpush1.bf16.xpose.msra.mxu0 0
    %3138 = vmatprep.subr.bf16.mxu0 0
    %3139 = vmatpush1.bf16.xpose.msra.mxu0 0
    %3140 = vmatprep.subr.bf16.mxu0 0
    %3141 = vmatpush1.bf16.xpose.msra.mxu0 0
    %3142 = vmatprep.subr.bf16.mxu0 0
    %3143 = vmatpush1.bf16.xpose.msra.mxu0 0
    %3144 = vmatprep.subr.bf16.mxu0 0
    %3145 = vmatpush1.bf16.xpose.msra.mxu0 0
    %3146 = vmatprep.subr.bf16.mxu0 0
    %3147 = vmatpush1.bf16.xpose.msra.mxu0 0
    %3148 = vmatprep.subr.bf16.mxu0 0
    %3149 = vmatpush1.bf16.xpose.msra.mxu0 0
    %3150 = vmatprep.subr.bf16.mxu0 0
    %3151 = vmatpush1.bf16.xpose.msra.mxu0 0
    %3152 = vmatprep.subr.bf16.mxu0 0
    %3153 = vmatpush1.bf16.xpose.msra.mxu0 0
    %3154 = vmatprep.subr.bf16.mxu0 0
    %3155 = vmatpush1.bf16.xpose.msra.mxu0 0
    %3156 = vmatprep.subr.bf16.mxu0 0
    %3157 = vmatpush1.bf16.xpose.msra.mxu0 0
    %3158 = vmatprep.subr.bf16.mxu0 0
    %3159 = vmatpush1.bf16.xpose.msra.mxu0 0
    %3160 = vmatprep.subr.bf16.mxu0 0
    %3161 = vmatpush1.bf16.xpose.msra.mxu0 0
    %3162 = vmatprep.mubr.bf16.mxu0 %v695
    %3163 = vmatmul.mubr.bf16.gmra.mrb[0].mxu0 %v681
    %v3164 = vpop.f32.mrb[0].mxu0
    %v3165 = vadd.f32 %v3125, %v3164
    %v3166 = vpop.f32.mrb[0].mxu0
    %v3167 = vpop.f32.mrb[0].mxu0
    %v3168 = vpop.f32.mrb[0].mxu0
    %3169 = vdwg.mxu0
    %3170 = vmatprep.subr.bf16.mxu0 %v1417
    %3171 = vmatpush1.bf16.xpose.msra.mxu0 %v1416
    %3172 = vmatprep.subr.bf16.mxu0 %v1502
    %3173 = vmatpush1.bf16.xpose.msra.mxu0 %v1501
    %3174 = vmatprep.subr.bf16.mxu0 0
    %3175 = vmatpush1.bf16.xpose.msra.mxu0 0
    %3176 = vmatprep.subr.bf16.mxu0 0
    %3177 = vmatpush1.bf16.xpose.msra.mxu0 0
    %3178 = vmatprep.subr.bf16.mxu0 0
    %3179 = vmatpush1.bf16.xpose.msra.mxu0 0
    %3180 = vmatprep.subr.bf16.mxu0 0
    %3181 = vmatpush1.bf16.xpose.msra.mxu0 0
    %3182 = vmatprep.subr.bf16.mxu0 0
    %3183 = vmatpush1.bf16.xpose.msra.mxu0 0
    %3184 = vmatprep.subr.bf16.mxu0 0
    %3185 = vmatpush1.bf16.xpose.msra.mxu0 0
    %3186 = vmatprep.subr.bf16.mxu0 0
    %3187 = vmatpush1.bf16.xpose.msra.mxu0 0
    %3188 = vmatprep.subr.bf16.mxu0 0
    %3189 = vmatpush1.bf16.xpose.msra.mxu0 0
    %3190 = vmatprep.subr.bf16.mxu0 0
    %3191 = vmatpush1.bf16.xpose.msra.mxu0 0
    %3192 = vmatprep.subr.bf16.mxu0 0
    %3193 = vmatpush1.bf16.xpose.msra.mxu0 0
    %3194 = vmatprep.subr.bf16.mxu0 0
    %3195 = vmatpush1.bf16.xpose.msra.mxu0 0
    %3196 = vmatprep.subr.bf16.mxu0 0
    %3197 = vmatpush1.bf16.xpose.msra.mxu0 0
    %3198 = vmatprep.subr.bf16.mxu0 0
    %3199 = vmatpush1.bf16.xpose.msra.mxu0 0
    %3200 = vmatprep.subr.bf16.mxu0 0
    %3201 = vmatpush1.bf16.xpose.msra.mxu0 0
    %3202 = vmatprep.mubr.bf16.mxu0 %v705
    %3203 = vmatmul.mubr.bf16.gmra.mrb[0].mxu0 %v703
    %v3204 = vpop.f32.mrb[0].mxu0
    %v3205 = vadd.f32 %v3165, %v3204
    %v3206 = vpop.f32.mrb[0].mxu0
    %v3207 = vpop.f32.mrb[0].mxu0
    %v3208 = vpop.f32.mrb[0].mxu0
    %3209 = vdwg.mxu0
    %3210 = vmatprep.subr.bf16.mxu0 %v1419
    %3211 = vmatpush1.bf16.xpose.msra.mxu0 %v1418
    %3212 = vmatprep.subr.bf16.mxu0 %v1504
    %3213 = vmatpush1.bf16.xpose.msra.mxu0 %v1503
    %3214 = vmatprep.subr.bf16.mxu0 0
    %3215 = vmatpush1.bf16.xpose.msra.mxu0 0
    %3216 = vmatprep.subr.bf16.mxu0 0
    %3217 = vmatpush1.bf16.xpose.msra.mxu0 0
    %3218 = vmatprep.subr.bf16.mxu0 0
    %3219 = vmatpush1.bf16.xpose.msra.mxu0 0
    %3220 = vmatprep.subr.bf16.mxu0 0
    %3221 = vmatpush1.bf16.xpose.msra.mxu0 0
    %3222 = vmatprep.subr.bf16.mxu0 0
    %3223 = vmatpush1.bf16.xpose.msra.mxu0 0
    %3224 = vmatprep.subr.bf16.mxu0 0
    %3225 = vmatpush1.bf16.xpose.msra.mxu0 0
    %3226 = vmatprep.subr.bf16.mxu0 0
    %3227 = vmatpush1.bf16.xpose.msra.mxu0 0
    %3228 = vmatprep.subr.bf16.mxu0 0
    %3229 = vmatpush1.bf16.xpose.msra.mxu0 0
    %3230 = vmatprep.subr.bf16.mxu0 0
    %3231 = vmatpush1.bf16.xpose.msra.mxu0 0
    %3232 = vmatprep.subr.bf16.mxu0 0
    %3233 = vmatpush1.bf16.xpose.msra.mxu0 0
    %3234 = vmatprep.subr.bf16.mxu0 0
    %3235 = vmatpush1.bf16.xpose.msra.mxu0 0
    %3236 = vmatprep.subr.bf16.mxu0 0
    %3237 = vmatpush1.bf16.xpose.msra.mxu0 0
    %3238 = vmatprep.subr.bf16.mxu0 0
    %3239 = vmatpush1.bf16.xpose.msra.mxu0 0
    %3240 = vmatprep.subr.bf16.mxu0 0
    %3241 = vmatpush1.bf16.xpose.msra.mxu0 0
    %3242 = vmatprep.mubr.bf16.mxu0 %v702
    %3243 = vmatmul.mubr.bf16.gmra.mrb[0].mxu0 %v688
    %v3244 = vpop.f32.mrb[0].mxu0
    %v3245 = vadd.f32 %v3205, %v3244
    %v3246 = vpop.f32.mrb[0].mxu0
    %v3247 = vpop.f32.mrb[0].mxu0
    %v3248 = vpop.f32.mrb[0].mxu0
    %3249 = vdwg.mxu0
    %3250 = vmatprep.subr.bf16.mxu0 %v1421
    %3251 = vmatpush1.bf16.xpose.msra.mxu0 %v1420
    %3252 = vmatprep.subr.bf16.mxu0 %v1506
    %3253 = vmatpush1.bf16.xpose.msra.mxu0 %v1505
    %3254 = vmatprep.subr.bf16.mxu0 0
    %3255 = vmatpush1.bf16.xpose.msra.mxu0 0
    %3256 = vmatprep.subr.bf16.mxu0 0
    %3257 = vmatpush1.bf16.xpose.msra.mxu0 0
    %3258 = vmatprep.subr.bf16.mxu0 0
    %3259 = vmatpush1.bf16.xpose.msra.mxu0 0
    %3260 = vmatprep.subr.bf16.mxu0 0
    %3261 = vmatpush1.bf16.xpose.msra.mxu0 0
    %3262 = vmatprep.subr.bf16.mxu0 0
    %3263 = vmatpush1.bf16.xpose.msra.mxu0 0
    %3264 = vmatprep.subr.bf16.mxu0 0
    %3265 = vmatpush1.bf16.xpose.msra.mxu0 0
    %3266 = vmatprep.subr.bf16.mxu0 0
    %3267 = vmatpush1.bf16.xpose.msra.mxu0 0
    %3268 = vmatprep.subr.bf16.mxu0 0
    %3269 = vmatpush1.bf16.xpose.msra.mxu0 0
    %3270 = vmatprep.subr.bf16.mxu0 0
    %3271 = vmatpush1.bf16.xpose.msra.mxu0 0
    %3272 = vmatprep.subr.bf16.mxu0 0
    %3273 = vmatpush1.bf16.xpose.msra.mxu0 0
    %3274 = vmatprep.subr.bf16.mxu0 0
    %3275 = vmatpush1.bf16.xpose.msra.mxu0 0
    %3276 = vmatprep.subr.bf16.mxu0 0
    %3277 = vmatpush1.bf16.xpose.msra.mxu0 0
    %3278 = vmatprep.subr.bf16.mxu0 0
    %3279 = vmatpush1.bf16.xpose.msra.mxu0 0
    %3280 = vmatprep.subr.bf16.mxu0 0
    %3281 = vmatpush1.bf16.xpose.msra.mxu0 0
    %3282 = vmatprep.mubr.bf16.mxu0 %v706
    %3283 = vmatmul.mubr.bf16.gmra.mrb[0].mxu0 %v704
    %v3284 = vpop.f32.mrb[0].mxu0
    %v3285 = vadd.f32 %v3245, %v3284
    %v3286 = vpop.f32.mrb[0].mxu0
    %v3287 = vpop.f32.mrb[0].mxu0
    %v3288 = vpop.f32.mrb[0].mxu0
    %3289 = vdwg.mxu0
    %3290 = vmatprep.subr.bf16.mxu0 %v1423
    %3291 = vmatpush1.bf16.xpose.msra.mxu0 %v1422
    %3292 = vmatprep.subr.bf16.mxu0 %v1508
    %3293 = vmatpush1.bf16.xpose.msra.mxu0 %v1507
    %3294 = vmatprep.subr.bf16.mxu0 0
    %3295 = vmatpush1.bf16.xpose.msra.mxu0 0
    %3296 = vmatprep.subr.bf16.mxu0 0
    %3297 = vmatpush1.bf16.xpose.msra.mxu0 0
    %3298 = vmatprep.subr.bf16.mxu0 0
    %3299 = vmatpush1.bf16.xpose.msra.mxu0 0
    %3300 = vmatprep.subr.bf16.mxu0 0
    %3301 = vmatpush1.bf16.xpose.msra.mxu0 0
    %3302 = vmatprep.subr.bf16.mxu0 0
    %3303 = vmatpush1.bf16.xpose.msra.mxu0 0
    %3304 = vmatprep.subr.bf16.mxu0 0
    %3305 = vmatpush1.bf16.xpose.msra.mxu0 0
    %3306 = vmatprep.subr.bf16.mxu0 0
    %3307 = vmatpush1.bf16.xpose.msra.mxu0 0
    %3308 = vmatprep.subr.bf16.mxu0 0
    %3309 = vmatpush1.bf16.xpose.msra.mxu0 0
    %3310 = vmatprep.subr.bf16.mxu0 0
    %3311 = vmatpush1.bf16.xpose.msra.mxu0 0
    %3312 = vmatprep.subr.bf16.mxu0 0
    %3313 = vmatpush1.bf16.xpose.msra.mxu0 0
    %3314 = vmatprep.subr.bf16.mxu0 0
    %3315 = vmatpush1.bf16.xpose.msra.mxu0 0
    %3316 = vmatprep.subr.bf16.mxu0 0
    %3317 = vmatpush1.bf16.xpose.msra.mxu0 0
    %3318 = vmatprep.subr.bf16.mxu0 0
    %3319 = vmatpush1.bf16.xpose.msra.mxu0 0
    %3320 = vmatprep.subr.bf16.mxu0 0
    %3321 = vmatpush1.bf16.xpose.msra.mxu0 0
    %3322 = vmatprep.mubr.bf16.mxu0 %v743
    %3323 = vmatmul.mubr.bf16.gmra.mrb[0].mxu0 %v729
    %v3324 = vpop.f32.mrb[0].mxu0
    %v3325 = vadd.f32 %v3285, %v3324
    %v3326 = vpop.f32.mrb[0].mxu0
    %v3327 = vpop.f32.mrb[0].mxu0
    %v3328 = vpop.f32.mrb[0].mxu0
    %3329 = vdwg.mxu0
    %3330 = vmatprep.subr.bf16.mxu0 %v1425
    %3331 = vmatpush1.bf16.xpose.msra.mxu0 %v1424
    %3332 = vmatprep.subr.bf16.mxu0 %v1510
    %3333 = vmatpush1.bf16.xpose.msra.mxu0 %v1509
    %3334 = vmatprep.subr.bf16.mxu0 0
    %3335 = vmatpush1.bf16.xpose.msra.mxu0 0
    %3336 = vmatprep.subr.bf16.mxu0 0
    %3337 = vmatpush1.bf16.xpose.msra.mxu0 0
    %3338 = vmatprep.subr.bf16.mxu0 0
    %3339 = vmatpush1.bf16.xpose.msra.mxu0 0
    %3340 = vmatprep.subr.bf16.mxu0 0
    %3341 = vmatpush1.bf16.xpose.msra.mxu0 0
    %3342 = vmatprep.subr.bf16.mxu0 0
    %3343 = vmatpush1.bf16.xpose.msra.mxu0 0
    %3344 = vmatprep.subr.bf16.mxu0 0
    %3345 = vmatpush1.bf16.xpose.msra.mxu0 0
    %3346 = vmatprep.subr.bf16.mxu0 0
    %3347 = vmatpush1.bf16.xpose.msra.mxu0 0
    %3348 = vmatprep.subr.bf16.mxu0 0
    %3349 = vmatpush1.bf16.xpose.msra.mxu0 0
    %3350 = vmatprep.subr.bf16.mxu0 0
    %3351 = vmatpush1.bf16.xpose.msra.mxu0 0
    %3352 = vmatprep.subr.bf16.mxu0 0
    %3353 = vmatpush1.bf16.xpose.msra.mxu0 0
    %3354 = vmatprep.subr.bf16.mxu0 0
    %3355 = vmatpush1.bf16.xpose.msra.mxu0 0
    %3356 = vmatprep.subr.bf16.mxu0 0
    %3357 = vmatpush1.bf16.xpose.msra.mxu0 0
    %3358 = vmatprep.subr.bf16.mxu0 0
    %3359 = vmatpush1.bf16.xpose.msra.mxu0 0
    %3360 = vmatprep.subr.bf16.mxu0 0
    %3361 = vmatpush1.bf16.xpose.msra.mxu0 0
    %3362 = vmatprep.mubr.bf16.mxu0 %v745
    %3363 = vmatmul.mubr.bf16.gmra.mrb[0].mxu0 %v744
    %v3364 = vpop.f32.mrb[0].mxu0
    %v3365 = vadd.f32 %v3325, %v3364
    %v3366 = vpop.f32.mrb[0].mxu0
    %v3367 = vpop.f32.mrb[0].mxu0
    %v3368 = vpop.f32.mrb[0].mxu0
    %3369 = vdwg.mxu0
    %3370 = vmatprep.subr.bf16.mxu0 0
    %3371 = vmatpush1.bf16.xpose.msra.mxu0 %v1685
    %3372 = vmatprep.subr.bf16.mxu0 0
    %3373 = vmatpush1.bf16.xpose.msra.mxu0 %v1688
    %3374 = vmatprep.subr.bf16.mxu0 0
    %3375 = vmatpush1.bf16.xpose.msra.mxu0 0
    %3376 = vmatprep.subr.bf16.mxu0 0
    %3377 = vmatpush1.bf16.xpose.msra.mxu0 0
    %3378 = vmatprep.subr.bf16.mxu0 0
    %3379 = vmatpush1.bf16.xpose.msra.mxu0 0
    %3380 = vmatprep.subr.bf16.mxu0 0
    %3381 = vmatpush1.bf16.xpose.msra.mxu0 0
    %3382 = vmatprep.subr.bf16.mxu0 0
    %3383 = vmatpush1.bf16.xpose.msra.mxu0 0
    %3384 = vmatprep.subr.bf16.mxu0 0
    %3385 = vmatpush1.bf16.xpose.msra.mxu0 0
    %3386 = vmatprep.subr.bf16.mxu0 0
    %3387 = vmatpush1.bf16.xpose.msra.mxu0 0
    %3388 = vmatprep.subr.bf16.mxu0 0
    %3389 = vmatpush1.bf16.xpose.msra.mxu0 0
    %3390 = vmatprep.subr.bf16.mxu0 0
    %3391 = vmatpush1.bf16.xpose.msra.mxu0 0
    %3392 = vmatprep.subr.bf16.mxu0 0
    %3393 = vmatpush1.bf16.xpose.msra.mxu0 0
    %3394 = vmatprep.subr.bf16.mxu0 0
    %3395 = vmatpush1.bf16.xpose.msra.mxu0 0
    %3396 = vmatprep.subr.bf16.mxu0 0
    %3397 = vmatpush1.bf16.xpose.msra.mxu0 0
    %3398 = vmatprep.subr.bf16.mxu0 0
    %3399 = vmatpush1.bf16.xpose.msra.mxu0 0
    %3400 = vmatprep.subr.bf16.mxu0 0
    %3401 = vmatpush1.bf16.xpose.msra.mxu0 0
    %3402 = vmatprep.mubr.bf16.mxu0 0
    %3403 = vmatmul.mubr.bf16.gmra.mrb[0].mxu0 %v1682
    %v3404 = vpop.f32.mrb[0].mxu0
    %v3405 = vadd.f32 %v3365, %v3404
    %v3406 = vpop.f32.mrb[0].mxu0
    %v3407 = vpop.f32.mrb[0].mxu0
    %v3408 = vpop.f32.mrb[0].mxu0
    %3409 = vdwg.mxu0
    %vm3410 = vcmask 238592
    %3411 = vst.msk [vmem:[#allocation2] sm:$0x3] %vm3410, %v3405
    // Predicated region
    $region14: #{waste_head_forward.3} parent=1 // pred_check
      _
    $region15: #{waste_head_forward.3} parent=1 // pred_check_branch
      %3413 = sbr.rel (0) target = $region17
    $region16: #{waste_head_forward.3} parent=1 // pred_region
      %s3415 = ssub.s32 32, 32
      %3416 = vsyncadd [#allocation3], %s3415
      %s3418 = sshll.u32 [#allocation2], 4
      %s3419 = int_to_ptr.vmem [resolvable:$true] %s3418
      %3421 = dma.vmem_to_hbm [thread:$0]  %s3419, 32, %s3, [#allocation3]
    $region17: #{waste_head_forward.3} parent=1 // pred_fallthru
      _
    // Predicated region
    $region18: #{waste_head_forward.3} parent=1 // pred_check
      _
    $region19: #{waste_head_forward.3} parent=1 // pred_check_branch
      %3423 = sbr.rel (0) target = $region21
    $region20: #{waste_head_forward.3} parent=1 // pred_region
      %3424 = dma.done [#allocation3], 32
    $region21: #{waste_head_forward.3} parent=1 // pred_fallthru
      _
    %3425 = vsyncpa [#allocation3], 1

</llo_original>
